<compile_context>
chip_gen: v7x
topology: tpu7x:2x2x1
jax: 0.10.0
libtpu: 0.0.40
codegen_flags: <defaults>
</compile_context>

<pallas_src>
import math

import jax
import jax.numpy as jnp
from jax.experimental import pallas as pl
from jax.experimental.pallas import tpu as pltpu

KS = 7          # depthwise kernel size
PAD = 3         # padding (kernel_size // 2)
LN_EPS = 1e-6   # LayerNorm eps


# ----------------------------------------------------------------------------
# Fused Pallas kernel: dwconv + LayerNorm + MLP(GELU) + layer-scale + residual
# ----------------------------------------------------------------------------
def _block_kernel(xp_ref, dww_ref, dwb_ref, lnw_ref, lnb_ref,
                  w1_ref, b1_ref, w2_ref, b2_ref, g_ref, o_ref):
    _, H, W, C = o_ref.shape  # static block shape

    # ---- depthwise 7x7 conv: 49 shifted windows of the VMEM halo tile (VPU).
    acc = jnp.zeros((H, W, C), jnp.float32)
    for kh in range(KS):                      # static, fully unrolled
        for kw in range(KS):
            tap = xp_ref[0, kh:kh + H, kw:kw + W, :]
            w_tap = dww_ref[kh * KS + kw, :].reshape(1, 1, C)
            acc = acc + tap.astype(jnp.float32) * w_tap
    y = acc.reshape(H * W, C) + dwb_ref[...]            # (M, C), M = H*W

    # ---- LayerNorm over channels (channels on the lane axis).
    u = jnp.mean(y, axis=-1, keepdims=True)
    d = y - u
    v = jnp.mean(d * d, axis=-1, keepdims=True)
    yn = d * jax.lax.rsqrt(v + LN_EPS)
    yn = yn * lnw_ref[...] + lnb_ref[...]

    # ---- MLP: two full-depth MXU matmuls, f32 accumulation.
    h = jnp.dot(yn, w1_ref[...], preferred_element_type=jnp.float32) + b1_ref[...]
    # TODO(synk): nn.GELU() is the exact erf GELU; the tanh approximation
    # (max abs deviation ~1e-3) is used to stay on the EUP tanh path.
    h = 0.5 * h * (1.0 + jnp.tanh(0.7978845608028654 * (h + 0.044715 * h * h * h)))
    z = jnp.dot(h, w2_ref[...], preferred_element_type=jnp.float32) + b2_ref[...]

    # ---- layer scale + residual (residual = centre of the padded tile,
    #      so the un-padded input is never re-read from HBM).
    z = z * g_ref[...]
    res = xp_ref[0, PAD:PAD + H, PAD:PAD + W, :].reshape(H * W, C)
    o_ref[...] = (res + z).reshape(1, H, W, C).astype(o_ref.dtype)


# ----------------------------------------------------------------------------
# Wrapper: NCHW in / NCHW out, NHWC inside the kernel.
# ----------------------------------------------------------------------------
def convnext_block_forward(x_nchw, params):
    dw_w, dw_b, ln_w, ln_b, w1, b1, w2, b2, gamma = params
    x = jnp.transpose(x_nchw, (0, 2, 3, 1))               # NCHW -> NHWC
    N, H, W, C = x.shape
    Hp, Wp = H + 2 * PAD, W + 2 * PAD
    xp = jnp.pad(x, ((0, 0), (PAD, PAD), (PAD, PAD), (0, 0)))
    hidden = w1.shape[1]

    def full(shape):  # whole-array VMEM block, constant index -> fetched once
        return pl.BlockSpec(shape, lambda n, _s=shape: (0,) * len(_s))

    out = pl.pallas_call(
        _block_kernel,
        out_shape=jax.ShapeDtypeStruct((N, H, W, C), x.dtype),
        grid_spec=pltpu.PrefetchScalarGridSpec(
            num_scalar_prefetch=0,
            grid=(N,),
            in_specs=[
                pl.BlockSpec((1, Hp, Wp, C), lambda n: (n, 0, 0, 0)),  # padded img
                full((KS * KS, C)),      # depthwise weights
                full((1, C)),            # depthwise bias
                full((1, C)),            # LN weight
                full((1, C)),            # LN bias
                full((C, hidden)),       # pwconv1 weight
                full((1, hidden)),       # pwconv1 bias
                full((hidden, C)),       # pwconv2 weight
                full((1, C)),            # pwconv2 bias
                full((1, C)),            # gamma (layer scale)
            ],
            out_specs=pl.BlockSpec((1, H, W, C), lambda n: (n, 0, 0, 0)),
        ),
        compiler_params=pltpu.CompilerParams(
            dimension_semantics=("parallel",)),
    )(xp, dw_w.reshape(KS * KS, C), dw_b, ln_w, ln_b, w1, b1, w2, b2, gamma)
    return jnp.transpose(out, (0, 3, 1, 2))               # NHWC -> NCHW


# ----------------------------------------------------------------------------
# Parameters (random; gamma is a learned Parameter in the module, so a random
# value exercises the layer-scale path while keeping identical forward math).
# ----------------------------------------------------------------------------
def make_block_params(key, dim):
    ks = jax.random.split(key, 9)
    hidden = 4 * dim
    dw_w = jax.random.normal(ks[0], (KS, KS, dim), jnp.float32) / float(KS)
    dw_b = 0.1 * jax.random.normal(ks[1], (1, dim), jnp.float32)
    ln_w = 1.0 + 0.1 * jax.random.normal(ks[2], (1, dim), jnp.float32)
    ln_b = 0.05 * jax.random.normal(ks[3], (1, dim), jnp.float32)
    w1 = jax.random.normal(ks[4], (dim, hidden), jnp.float32) / math.sqrt(dim)
    b1 = 0.05 * jax.random.normal(ks[5], (1, hidden), jnp.float32)
    w2 = jax.random.normal(ks[6], (hidden, dim), jnp.float32) / math.sqrt(hidden)
    b2 = 0.05 * jax.random.normal(ks[7], (1, dim), jnp.float32)
    gamma = 0.5 * jax.random.normal(ks[8], (1, dim), jnp.float32)
    return dw_w, dw_b, ln_w, ln_b, w1, b1, w2, b2, gamma


# ----------------------------------------------------------------------------
# Pure-JAX reference (independent dwconv via lax.conv_general_dilated).
# ----------------------------------------------------------------------------
def reference_block(x_nchw, params):
    dw_w, dw_b, ln_w, ln_b, w1, b1, w2, b2, gamma = params
    hi = jax.lax.Precision.HIGHEST
    C = x_nchw.shape[1]
    w = jnp.transpose(dw_w, (2, 0, 1))[:, None, :, :]      # (C, 1, 7, 7) OIHW
    y = jax.lax.conv_general_dilated(
        x_nchw, w, window_strides=(1, 1), padding=((PAD, PAD), (PAD, PAD)),
        dimension_numbers=("NCHW", "OIHW", "NCHW"),
        feature_group_count=C, precision=hi)
    y = y + dw_b.reshape(1, C, 1, 1)
    y = jnp.transpose(y, (0, 2, 3, 1))                     # NHWC
    u = y.mean(-1, keepdims=True)
    s = ((y - u) ** 2).mean(-1, keepdims=True)
    y = (y - u) / jnp.sqrt(s + LN_EPS)
    y = y * ln_w.reshape(-1) + ln_b.reshape(-1)
    h = jnp.dot(y, w1, precision=hi) + b1.reshape(-1)
    h = 0.5 * h * (1.0 + jnp.tanh(0.7978845608028654 * (h + 0.044715 * h ** 3)))
    z = jnp.dot(h, w2, precision=hi) + b2.reshape(-1)
    z = z * gamma.reshape(-1)
    return x_nchw + jnp.transpose(z, (0, 3, 1, 2))


# ----------------------------------------------------------------------------
# Main
# ----------------------------------------------------------------------------
if __name__ == "__main__":
    N, DIM, H, W = 2, 64, 16, 16
    key = jax.random.PRNGKey(0)
    kx, kp = jax.random.split(key)
    x = jax.random.normal(kx, (N, DIM, H, W), jnp.float32)
    params = make_block_params(kp, DIM)

    out = convnext_block_forward(x, params)
    out = jax.block_until_ready(out)
    assert out.shape == (N, DIM, H, W), out.shape
    assert bool(jnp.all(jnp.isfinite(out)))

    ref = reference_block(x, params)
    err = float(jnp.max(jnp.abs(out - ref)))
    assert err < 5e-2, f"max abs err {err}"

    print("KERNEL_OK")
</pallas_src>

<mosaic_0001>
module attributes {stable_mosaic.version = 11 : i64} {
  func.func @_block_kernel(%arg0: i32, %arg1: memref<1x22x22x64xf32, #tpu.memory_space<vmem>>, %arg2: memref<49x64xf32, #tpu.memory_space<vmem>>, %arg3: memref<1x64xf32, #tpu.memory_space<vmem>>, %arg4: memref<1x64xf32, #tpu.memory_space<vmem>>, %arg5: memref<1x64xf32, #tpu.memory_space<vmem>>, %arg6: memref<64x256xf32, #tpu.memory_space<vmem>>, %arg7: memref<1x256xf32, #tpu.memory_space<vmem>>, %arg8: memref<256x64xf32, #tpu.memory_space<vmem>>, %arg9: memref<1x64xf32, #tpu.memory_space<vmem>>, %arg10: memref<1x64xf32, #tpu.memory_space<vmem>>, %arg11: memref<1x16x16x64xf32, #tpu.memory_space<vmem>>) attributes {dimension_semantics = [#tpu.dimension_semantics<parallel>], iteration_bounds = array<i64: 2>, scalar_prefetch = 0 : i64, scratch_operands = 0 : i64, tpu.core_type = #tpu.core_type<tc>, window_params = [{transform_indices = @transform_0, window_bounds = array<i64: 1, 22, 22, 64>}, {pipeline_mode = #tpu.pipeline_mode<synchronous>, transform_indices = @transform_1, window_bounds = array<i64: 49, 64>}, {pipeline_mode = #tpu.pipeline_mode<synchronous>, transform_indices = @transform_2, window_bounds = array<i64: 1, 64>}, {pipeline_mode = #tpu.pipeline_mode<synchronous>, transform_indices = @transform_3, window_bounds = array<i64: 1, 64>}, {pipeline_mode = #tpu.pipeline_mode<synchronous>, transform_indices = @transform_4, window_bounds = array<i64: 1, 64>}, {pipeline_mode = #tpu.pipeline_mode<synchronous>, transform_indices = @transform_5, window_bounds = array<i64: 64, 256>}, {pipeline_mode = #tpu.pipeline_mode<synchronous>, transform_indices = @transform_6, window_bounds = array<i64: 1, 256>}, {pipeline_mode = #tpu.pipeline_mode<synchronous>, transform_indices = @transform_7, window_bounds = array<i64: 256, 64>}, {pipeline_mode = #tpu.pipeline_mode<synchronous>, transform_indices = @transform_8, window_bounds = array<i64: 1, 64>}, {pipeline_mode = #tpu.pipeline_mode<synchronous>, transform_indices = @transform_9, window_bounds = array<i64: 1, 64>}, {transform_indices = @transform_10, window_bounds = array<i64: 1, 16, 16, 64>}]} {
    %cst = arith.constant 0.000000e+00 : f32
    %0 = vector.broadcast %cst : f32 to vector<16x16x64xf32>
    %c0 = arith.constant 0 : index
    %c0_0 = arith.constant 0 : index
    %c0_1 = arith.constant 0 : index
    %c0_2 = arith.constant 0 : index
    %1 = vector.load %arg1[%c0, %c0_0, %c0_1, %c0_2] : memref<1x22x22x64xf32, #tpu.memory_space<vmem>>, vector<1x16x16x64xf32>
    %2 = vector.shape_cast %1 : vector<1x16x16x64xf32> to vector<16x16x64xf32>
    %c0_3 = arith.constant 0 : index
    %c0_4 = arith.constant 0 : index
    %3 = vector.load %arg2[%c0_3, %c0_4] : memref<49x64xf32, #tpu.memory_space<vmem>>, vector<1x64xf32>
    %4 = vector.shape_cast %3 : vector<1x64xf32> to vector<64xf32>
    %5 = vector.shape_cast %4 : vector<64xf32> to vector<1x1x64xf32>
    %6 = vector.broadcast %5 : vector<1x1x64xf32> to vector<16x16x64xf32>
    %7 = arith.mulf %2, %6 : vector<16x16x64xf32>
    %8 = arith.addf %0, %7 : vector<16x16x64xf32>
    %c0_5 = arith.constant 0 : index
    %c0_6 = arith.constant 0 : index
    %c1 = arith.constant 1 : index
    %c0_7 = arith.constant 0 : index
    %9 = vector.load %arg1[%c0_5, %c0_6, %c1, %c0_7] : memref<1x22x22x64xf32, #tpu.memory_space<vmem>>, vector<1x16x16x64xf32>
    %10 = vector.shape_cast %9 : vector<1x16x16x64xf32> to vector<16x16x64xf32>
    %c1_8 = arith.constant 1 : index
    %c0_9 = arith.constant 0 : index
    %11 = vector.load %arg2[%c1_8, %c0_9] : memref<49x64xf32, #tpu.memory_space<vmem>>, vector<1x64xf32>
    %12 = vector.shape_cast %11 : vector<1x64xf32> to vector<64xf32>
    %13 = vector.shape_cast %12 : vector<64xf32> to vector<1x1x64xf32>
    %14 = vector.broadcast %13 : vector<1x1x64xf32> to vector<16x16x64xf32>
    %15 = arith.mulf %10, %14 : vector<16x16x64xf32>
    %16 = arith.addf %8, %15 : vector<16x16x64xf32>
    %c0_10 = arith.constant 0 : index
    %c0_11 = arith.constant 0 : index
    %c2 = arith.constant 2 : index
    %c0_12 = arith.constant 0 : index
    %17 = vector.load %arg1[%c0_10, %c0_11, %c2, %c0_12] : memref<1x22x22x64xf32, #tpu.memory_space<vmem>>, vector<1x16x16x64xf32>
    %18 = vector.shape_cast %17 : vector<1x16x16x64xf32> to vector<16x16x64xf32>
    %c2_13 = arith.constant 2 : index
    %c0_14 = arith.constant 0 : index
    %19 = vector.load %arg2[%c2_13, %c0_14] : memref<49x64xf32, #tpu.memory_space<vmem>>, vector<1x64xf32>
    %20 = vector.shape_cast %19 : vector<1x64xf32> to vector<64xf32>
    %21 = vector.shape_cast %20 : vector<64xf32> to vector<1x1x64xf32>
    %22 = vector.broadcast %21 : vector<1x1x64xf32> to vector<16x16x64xf32>
    %23 = arith.mulf %18, %22 : vector<16x16x64xf32>
    %24 = arith.addf %16, %23 : vector<16x16x64xf32>
    %c0_15 = arith.constant 0 : index
    %c0_16 = arith.constant 0 : index
    %c3 = arith.constant 3 : index
    %c0_17 = arith.constant 0 : index
    %25 = vector.load %arg1[%c0_15, %c0_16, %c3, %c0_17] : memref<1x22x22x64xf32, #tpu.memory_space<vmem>>, vector<1x16x16x64xf32>
    %26 = vector.shape_cast %25 : vector<1x16x16x64xf32> to vector<16x16x64xf32>
    %c3_18 = arith.constant 3 : index
    %c0_19 = arith.constant 0 : index
    %27 = vector.load %arg2[%c3_18, %c0_19] : memref<49x64xf32, #tpu.memory_space<vmem>>, vector<1x64xf32>
    %28 = vector.shape_cast %27 : vector<1x64xf32> to vector<64xf32>
    %29 = vector.shape_cast %28 : vector<64xf32> to vector<1x1x64xf32>
    %30 = vector.broadcast %29 : vector<1x1x64xf32> to vector<16x16x64xf32>
    %31 = arith.mulf %26, %30 : vector<16x16x64xf32>
    %32 = arith.addf %24, %31 : vector<16x16x64xf32>
    %c0_20 = arith.constant 0 : index
    %c0_21 = arith.constant 0 : index
    %c4 = arith.constant 4 : index
    %c0_22 = arith.constant 0 : index
    %33 = vector.load %arg1[%c0_20, %c0_21, %c4, %c0_22] : memref<1x22x22x64xf32, #tpu.memory_space<vmem>>, vector<1x16x16x64xf32>
    %34 = vector.shape_cast %33 : vector<1x16x16x64xf32> to vector<16x16x64xf32>
    %c4_23 = arith.constant 4 : index
    %c0_24 = arith.constant 0 : index
    %35 = vector.load %arg2[%c4_23, %c0_24] : memref<49x64xf32, #tpu.memory_space<vmem>>, vector<1x64xf32>
    %36 = vector.shape_cast %35 : vector<1x64xf32> to vector<64xf32>
    %37 = vector.shape_cast %36 : vector<64xf32> to vector<1x1x64xf32>
    %38 = vector.broadcast %37 : vector<1x1x64xf32> to vector<16x16x64xf32>
    %39 = arith.mulf %34, %38 : vector<16x16x64xf32>
    %40 = arith.addf %32, %39 : vector<16x16x64xf32>
    %c0_25 = arith.constant 0 : index
    %c0_26 = arith.constant 0 : index
    %c5 = arith.constant 5 : index
    %c0_27 = arith.constant 0 : index
    %41 = vector.load %arg1[%c0_25, %c0_26, %c5, %c0_27] : memref<1x22x22x64xf32, #tpu.memory_space<vmem>>, vector<1x16x16x64xf32>
    %42 = vector.shape_cast %41 : vector<1x16x16x64xf32> to vector<16x16x64xf32>
    %c5_28 = arith.constant 5 : index
    %c0_29 = arith.constant 0 : index
    %43 = vector.load %arg2[%c5_28, %c0_29] : memref<49x64xf32, #tpu.memory_space<vmem>>, vector<1x64xf32>
    %44 = vector.shape_cast %43 : vector<1x64xf32> to vector<64xf32>
    %45 = vector.shape_cast %44 : vector<64xf32> to vector<1x1x64xf32>
    %46 = vector.broadcast %45 : vector<1x1x64xf32> to vector<16x16x64xf32>
    %47 = arith.mulf %42, %46 : vector<16x16x64xf32>
    %48 = arith.addf %40, %47 : vector<16x16x64xf32>
    %c0_30 = arith.constant 0 : index
    %c0_31 = arith.constant 0 : index
    %c6 = arith.constant 6 : index
    %c0_32 = arith.constant 0 : index
    %49 = vector.load %arg1[%c0_30, %c0_31, %c6, %c0_32] : memref<1x22x22x64xf32, #tpu.memory_space<vmem>>, vector<1x16x16x64xf32>
    %50 = vector.shape_cast %49 : vector<1x16x16x64xf32> to vector<16x16x64xf32>
    %c6_33 = arith.constant 6 : index
    %c0_34 = arith.constant 0 : index
    %51 = vector.load %arg2[%c6_33, %c0_34] : memref<49x64xf32, #tpu.memory_space<vmem>>, vector<1x64xf32>
    %52 = vector.shape_cast %51 : vector<1x64xf32> to vector<64xf32>
    %53 = vector.shape_cast %52 : vector<64xf32> to vector<1x1x64xf32>
    %54 = vector.broadcast %53 : vector<1x1x64xf32> to vector<16x16x64xf32>
    %55 = arith.mulf %50, %54 : vector<16x16x64xf32>
    %56 = arith.addf %48, %55 : vector<16x16x64xf32>
    %c0_35 = arith.constant 0 : index
    %c1_36 = arith.constant 1 : index
    %c0_37 = arith.constant 0 : index
    %c0_38 = arith.constant 0 : index
    %57 = vector.load %arg1[%c0_35, %c1_36, %c0_37, %c0_38] : memref<1x22x22x64xf32, #tpu.memory_space<vmem>>, vector<1x16x16x64xf32>
    %58 = vector.shape_cast %57 : vector<1x16x16x64xf32> to vector<16x16x64xf32>
    %c7 = arith.constant 7 : index
    %c0_39 = arith.constant 0 : index
    %59 = vector.load %arg2[%c7, %c0_39] : memref<49x64xf32, #tpu.memory_space<vmem>>, vector<1x64xf32>
    %60 = vector.shape_cast %59 : vector<1x64xf32> to vector<64xf32>
    %61 = vector.shape_cast %60 : vector<64xf32> to vector<1x1x64xf32>
    %62 = vector.broadcast %61 : vector<1x1x64xf32> to vector<16x16x64xf32>
    %63 = arith.mulf %58, %62 : vector<16x16x64xf32>
    %64 = arith.addf %56, %63 : vector<16x16x64xf32>
    %c0_40 = arith.constant 0 : index
    %c1_41 = arith.constant 1 : index
    %c1_42 = arith.constant 1 : index
    %c0_43 = arith.constant 0 : index
    %65 = vector.load %arg1[%c0_40, %c1_41, %c1_42, %c0_43] : memref<1x22x22x64xf32, #tpu.memory_space<vmem>>, vector<1x16x16x64xf32>
    %66 = vector.shape_cast %65 : vector<1x16x16x64xf32> to vector<16x16x64xf32>
    %c8 = arith.constant 8 : index
    %c0_44 = arith.constant 0 : index
    %67 = vector.load %arg2[%c8, %c0_44] : memref<49x64xf32, #tpu.memory_space<vmem>>, vector<1x64xf32>
    %68 = vector.shape_cast %67 : vector<1x64xf32> to vector<64xf32>
    %69 = vector.shape_cast %68 : vector<64xf32> to vector<1x1x64xf32>
    %70 = vector.broadcast %69 : vector<1x1x64xf32> to vector<16x16x64xf32>
    %71 = arith.mulf %66, %70 : vector<16x16x64xf32>
    %72 = arith.addf %64, %71 : vector<16x16x64xf32>
    %c0_45 = arith.constant 0 : index
    %c1_46 = arith.constant 1 : index
    %c2_47 = arith.constant 2 : index
    %c0_48 = arith.constant 0 : index
    %73 = vector.load %arg1[%c0_45, %c1_46, %c2_47, %c0_48] : memref<1x22x22x64xf32, #tpu.memory_space<vmem>>, vector<1x16x16x64xf32>
    %74 = vector.shape_cast %73 : vector<1x16x16x64xf32> to vector<16x16x64xf32>
    %c9 = arith.constant 9 : index
    %c0_49 = arith.constant 0 : index
    %75 = vector.load %arg2[%c9, %c0_49] : memref<49x64xf32, #tpu.memory_space<vmem>>, vector<1x64xf32>
    %76 = vector.shape_cast %75 : vector<1x64xf32> to vector<64xf32>
    %77 = vector.shape_cast %76 : vector<64xf32> to vector<1x1x64xf32>
    %78 = vector.broadcast %77 : vector<1x1x64xf32> to vector<16x16x64xf32>
    %79 = arith.mulf %74, %78 : vector<16x16x64xf32>
    %80 = arith.addf %72, %79 : vector<16x16x64xf32>
    %c0_50 = arith.constant 0 : index
    %c1_51 = arith.constant 1 : index
    %c3_52 = arith.constant 3 : index
    %c0_53 = arith.constant 0 : index
    %81 = vector.load %arg1[%c0_50, %c1_51, %c3_52, %c0_53] : memref<1x22x22x64xf32, #tpu.memory_space<vmem>>, vector<1x16x16x64xf32>
    %82 = vector.shape_cast %81 : vector<1x16x16x64xf32> to vector<16x16x64xf32>
    %c10 = arith.constant 10 : index
    %c0_54 = arith.constant 0 : index
    %83 = vector.load %arg2[%c10, %c0_54] : memref<49x64xf32, #tpu.memory_space<vmem>>, vector<1x64xf32>
    %84 = vector.shape_cast %83 : vector<1x64xf32> to vector<64xf32>
    %85 = vector.shape_cast %84 : vector<64xf32> to vector<1x1x64xf32>
    %86 = vector.broadcast %85 : vector<1x1x64xf32> to vector<16x16x64xf32>
    %87 = arith.mulf %82, %86 : vector<16x16x64xf32>
    %88 = arith.addf %80, %87 : vector<16x16x64xf32>
    %c0_55 = arith.constant 0 : index
    %c1_56 = arith.constant 1 : index
    %c4_57 = arith.constant 4 : index
    %c0_58 = arith.constant 0 : index
    %89 = vector.load %arg1[%c0_55, %c1_56, %c4_57, %c0_58] : memref<1x22x22x64xf32, #tpu.memory_space<vmem>>, vector<1x16x16x64xf32>
    %90 = vector.shape_cast %89 : vector<1x16x16x64xf32> to vector<16x16x64xf32>
    %c11 = arith.constant 11 : index
    %c0_59 = arith.constant 0 : index
    %91 = vector.load %arg2[%c11, %c0_59] : memref<49x64xf32, #tpu.memory_space<vmem>>, vector<1x64xf32>
    %92 = vector.shape_cast %91 : vector<1x64xf32> to vector<64xf32>
    %93 = vector.shape_cast %92 : vector<64xf32> to vector<1x1x64xf32>
    %94 = vector.broadcast %93 : vector<1x1x64xf32> to vector<16x16x64xf32>
    %95 = arith.mulf %90, %94 : vector<16x16x64xf32>
    %96 = arith.addf %88, %95 : vector<16x16x64xf32>
    %c0_60 = arith.constant 0 : index
    %c1_61 = arith.constant 1 : index
    %c5_62 = arith.constant 5 : index
    %c0_63 = arith.constant 0 : index
    %97 = vector.load %arg1[%c0_60, %c1_61, %c5_62, %c0_63] : memref<1x22x22x64xf32, #tpu.memory_space<vmem>>, vector<1x16x16x64xf32>
    %98 = vector.shape_cast %97 : vector<1x16x16x64xf32> to vector<16x16x64xf32>
    %c12 = arith.constant 12 : index
    %c0_64 = arith.constant 0 : index
    %99 = vector.load %arg2[%c12, %c0_64] : memref<49x64xf32, #tpu.memory_space<vmem>>, vector<1x64xf32>
    %100 = vector.shape_cast %99 : vector<1x64xf32> to vector<64xf32>
    %101 = vector.shape_cast %100 : vector<64xf32> to vector<1x1x64xf32>
    %102 = vector.broadcast %101 : vector<1x1x64xf32> to vector<16x16x64xf32>
    %103 = arith.mulf %98, %102 : vector<16x16x64xf32>
    %104 = arith.addf %96, %103 : vector<16x16x64xf32>
    %c0_65 = arith.constant 0 : index
    %c1_66 = arith.constant 1 : index
    %c6_67 = arith.constant 6 : index
    %c0_68 = arith.constant 0 : index
    %105 = vector.load %arg1[%c0_65, %c1_66, %c6_67, %c0_68] : memref<1x22x22x64xf32, #tpu.memory_space<vmem>>, vector<1x16x16x64xf32>
    %106 = vector.shape_cast %105 : vector<1x16x16x64xf32> to vector<16x16x64xf32>
    %c13 = arith.constant 13 : index
    %c0_69 = arith.constant 0 : index
    %107 = vector.load %arg2[%c13, %c0_69] : memref<49x64xf32, #tpu.memory_space<vmem>>, vector<1x64xf32>
    %108 = vector.shape_cast %107 : vector<1x64xf32> to vector<64xf32>
    %109 = vector.shape_cast %108 : vector<64xf32> to vector<1x1x64xf32>
    %110 = vector.broadcast %109 : vector<1x1x64xf32> to vector<16x16x64xf32>
    %111 = arith.mulf %106, %110 : vector<16x16x64xf32>
    %112 = arith.addf %104, %111 : vector<16x16x64xf32>
    %c0_70 = arith.constant 0 : index
    %c2_71 = arith.constant 2 : index
    %c0_72 = arith.constant 0 : index
    %c0_73 = arith.constant 0 : index
    %113 = vector.load %arg1[%c0_70, %c2_71, %c0_72, %c0_73] : memref<1x22x22x64xf32, #tpu.memory_space<vmem>>, vector<1x16x16x64xf32>
    %114 = vector.shape_cast %113 : vector<1x16x16x64xf32> to vector<16x16x64xf32>
    %c14 = arith.constant 14 : index
    %c0_74 = arith.constant 0 : index
    %115 = vector.load %arg2[%c14, %c0_74] : memref<49x64xf32, #tpu.memory_space<vmem>>, vector<1x64xf32>
    %116 = vector.shape_cast %115 : vector<1x64xf32> to vector<64xf32>
    %117 = vector.shape_cast %116 : vector<64xf32> to vector<1x1x64xf32>
    %118 = vector.broadcast %117 : vector<1x1x64xf32> to vector<16x16x64xf32>
    %119 = arith.mulf %114, %118 : vector<16x16x64xf32>
    %120 = arith.addf %112, %119 : vector<16x16x64xf32>
    %c0_75 = arith.constant 0 : index
    %c2_76 = arith.constant 2 : index
    %c1_77 = arith.constant 1 : index
    %c0_78 = arith.constant 0 : index
    %121 = vector.load %arg1[%c0_75, %c2_76, %c1_77, %c0_78] : memref<1x22x22x64xf32, #tpu.memory_space<vmem>>, vector<1x16x16x64xf32>
    %122 = vector.shape_cast %121 : vector<1x16x16x64xf32> to vector<16x16x64xf32>
    %c15 = arith.constant 15 : index
    %c0_79 = arith.constant 0 : index
    %123 = vector.load %arg2[%c15, %c0_79] : memref<49x64xf32, #tpu.memory_space<vmem>>, vector<1x64xf32>
    %124 = vector.shape_cast %123 : vector<1x64xf32> to vector<64xf32>
    %125 = vector.shape_cast %124 : vector<64xf32> to vector<1x1x64xf32>
    %126 = vector.broadcast %125 : vector<1x1x64xf32> to vector<16x16x64xf32>
    %127 = arith.mulf %122, %126 : vector<16x16x64xf32>
    %128 = arith.addf %120, %127 : vector<16x16x64xf32>
    %c0_80 = arith.constant 0 : index
    %c2_81 = arith.constant 2 : index
    %c2_82 = arith.constant 2 : index
    %c0_83 = arith.constant 0 : index
    %129 = vector.load %arg1[%c0_80, %c2_81, %c2_82, %c0_83] : memref<1x22x22x64xf32, #tpu.memory_space<vmem>>, vector<1x16x16x64xf32>
    %130 = vector.shape_cast %129 : vector<1x16x16x64xf32> to vector<16x16x64xf32>
    %c16 = arith.constant 16 : index
    %c0_84 = arith.constant 0 : index
    %131 = vector.load %arg2[%c16, %c0_84] : memref<49x64xf32, #tpu.memory_space<vmem>>, vector<1x64xf32>
    %132 = vector.shape_cast %131 : vector<1x64xf32> to vector<64xf32>
    %133 = vector.shape_cast %132 : vector<64xf32> to vector<1x1x64xf32>
    %134 = vector.broadcast %133 : vector<1x1x64xf32> to vector<16x16x64xf32>
    %135 = arith.mulf %130, %134 : vector<16x16x64xf32>
    %136 = arith.addf %128, %135 : vector<16x16x64xf32>
    %c0_85 = arith.constant 0 : index
    %c2_86 = arith.constant 2 : index
    %c3_87 = arith.constant 3 : index
    %c0_88 = arith.constant 0 : index
    %137 = vector.load %arg1[%c0_85, %c2_86, %c3_87, %c0_88] : memref<1x22x22x64xf32, #tpu.memory_space<vmem>>, vector<1x16x16x64xf32>
    %138 = vector.shape_cast %137 : vector<1x16x16x64xf32> to vector<16x16x64xf32>
    %c17 = arith.constant 17 : index
    %c0_89 = arith.constant 0 : index
    %139 = vector.load %arg2[%c17, %c0_89] : memref<49x64xf32, #tpu.memory_space<vmem>>, vector<1x64xf32>
    %140 = vector.shape_cast %139 : vector<1x64xf32> to vector<64xf32>
    %141 = vector.shape_cast %140 : vector<64xf32> to vector<1x1x64xf32>
    %142 = vector.broadcast %141 : vector<1x1x64xf32> to vector<16x16x64xf32>
    %143 = arith.mulf %138, %142 : vector<16x16x64xf32>
    %144 = arith.addf %136, %143 : vector<16x16x64xf32>
    %c0_90 = arith.constant 0 : index
    %c2_91 = arith.constant 2 : index
    %c4_92 = arith.constant 4 : index
    %c0_93 = arith.constant 0 : index
    %145 = vector.load %arg1[%c0_90, %c2_91, %c4_92, %c0_93] : memref<1x22x22x64xf32, #tpu.memory_space<vmem>>, vector<1x16x16x64xf32>
    %146 = vector.shape_cast %145 : vector<1x16x16x64xf32> to vector<16x16x64xf32>
    %c18 = arith.constant 18 : index
    %c0_94 = arith.constant 0 : index
    %147 = vector.load %arg2[%c18, %c0_94] : memref<49x64xf32, #tpu.memory_space<vmem>>, vector<1x64xf32>
    %148 = vector.shape_cast %147 : vector<1x64xf32> to vector<64xf32>
    %149 = vector.shape_cast %148 : vector<64xf32> to vector<1x1x64xf32>
    %150 = vector.broadcast %149 : vector<1x1x64xf32> to vector<16x16x64xf32>
    %151 = arith.mulf %146, %150 : vector<16x16x64xf32>
    %152 = arith.addf %144, %151 : vector<16x16x64xf32>
    %c0_95 = arith.constant 0 : index
    %c2_96 = arith.constant 2 : index
    %c5_97 = arith.constant 5 : index
    %c0_98 = arith.constant 0 : index
    %153 = vector.load %arg1[%c0_95, %c2_96, %c5_97, %c0_98] : memref<1x22x22x64xf32, #tpu.memory_space<vmem>>, vector<1x16x16x64xf32>
    %154 = vector.shape_cast %153 : vector<1x16x16x64xf32> to vector<16x16x64xf32>
    %c19 = arith.constant 19 : index
    %c0_99 = arith.constant 0 : index
    %155 = vector.load %arg2[%c19, %c0_99] : memref<49x64xf32, #tpu.memory_space<vmem>>, vector<1x64xf32>
    %156 = vector.shape_cast %155 : vector<1x64xf32> to vector<64xf32>
    %157 = vector.shape_cast %156 : vector<64xf32> to vector<1x1x64xf32>
    %158 = vector.broadcast %157 : vector<1x1x64xf32> to vector<16x16x64xf32>
    %159 = arith.mulf %154, %158 : vector<16x16x64xf32>
    %160 = arith.addf %152, %159 : vector<16x16x64xf32>
    %c0_100 = arith.constant 0 : index
    %c2_101 = arith.constant 2 : index
    %c6_102 = arith.constant 6 : index
    %c0_103 = arith.constant 0 : index
    %161 = vector.load %arg1[%c0_100, %c2_101, %c6_102, %c0_103] : memref<1x22x22x64xf32, #tpu.memory_space<vmem>>, vector<1x16x16x64xf32>
    %162 = vector.shape_cast %161 : vector<1x16x16x64xf32> to vector<16x16x64xf32>
    %c20 = arith.constant 20 : index
    %c0_104 = arith.constant 0 : index
    %163 = vector.load %arg2[%c20, %c0_104] : memref<49x64xf32, #tpu.memory_space<vmem>>, vector<1x64xf32>
    %164 = vector.shape_cast %163 : vector<1x64xf32> to vector<64xf32>
    %165 = vector.shape_cast %164 : vector<64xf32> to vector<1x1x64xf32>
    %166 = vector.broadcast %165 : vector<1x1x64xf32> to vector<16x16x64xf32>
    %167 = arith.mulf %162, %166 : vector<16x16x64xf32>
    %168 = arith.addf %160, %167 : vector<16x16x64xf32>
    %c0_105 = arith.constant 0 : index
    %c3_106 = arith.constant 3 : index
    %c0_107 = arith.constant 0 : index
    %c0_108 = arith.constant 0 : index
    %169 = vector.load %arg1[%c0_105, %c3_106, %c0_107, %c0_108] : memref<1x22x22x64xf32, #tpu.memory_space<vmem>>, vector<1x16x16x64xf32>
    %170 = vector.shape_cast %169 : vector<1x16x16x64xf32> to vector<16x16x64xf32>
    %c21 = arith.constant 21 : index
    %c0_109 = arith.constant 0 : index
    %171 = vector.load %arg2[%c21, %c0_109] : memref<49x64xf32, #tpu.memory_space<vmem>>, vector<1x64xf32>
    %172 = vector.shape_cast %171 : vector<1x64xf32> to vector<64xf32>
    %173 = vector.shape_cast %172 : vector<64xf32> to vector<1x1x64xf32>
    %174 = vector.broadcast %173 : vector<1x1x64xf32> to vector<16x16x64xf32>
    %175 = arith.mulf %170, %174 : vector<16x16x64xf32>
    %176 = arith.addf %168, %175 : vector<16x16x64xf32>
    %c0_110 = arith.constant 0 : index
    %c3_111 = arith.constant 3 : index
    %c1_112 = arith.constant 1 : index
    %c0_113 = arith.constant 0 : index
    %177 = vector.load %arg1[%c0_110, %c3_111, %c1_112, %c0_113] : memref<1x22x22x64xf32, #tpu.memory_space<vmem>>, vector<1x16x16x64xf32>
    %178 = vector.shape_cast %177 : vector<1x16x16x64xf32> to vector<16x16x64xf32>
    %c22 = arith.constant 22 : index
    %c0_114 = arith.constant 0 : index
    %179 = vector.load %arg2[%c22, %c0_114] : memref<49x64xf32, #tpu.memory_space<vmem>>, vector<1x64xf32>
    %180 = vector.shape_cast %179 : vector<1x64xf32> to vector<64xf32>
    %181 = vector.shape_cast %180 : vector<64xf32> to vector<1x1x64xf32>
    %182 = vector.broadcast %181 : vector<1x1x64xf32> to vector<16x16x64xf32>
    %183 = arith.mulf %178, %182 : vector<16x16x64xf32>
    %184 = arith.addf %176, %183 : vector<16x16x64xf32>
    %c0_115 = arith.constant 0 : index
    %c3_116 = arith.constant 3 : index
    %c2_117 = arith.constant 2 : index
    %c0_118 = arith.constant 0 : index
    %185 = vector.load %arg1[%c0_115, %c3_116, %c2_117, %c0_118] : memref<1x22x22x64xf32, #tpu.memory_space<vmem>>, vector<1x16x16x64xf32>
    %186 = vector.shape_cast %185 : vector<1x16x16x64xf32> to vector<16x16x64xf32>
    %c23 = arith.constant 23 : index
    %c0_119 = arith.constant 0 : index
    %187 = vector.load %arg2[%c23, %c0_119] : memref<49x64xf32, #tpu.memory_space<vmem>>, vector<1x64xf32>
    %188 = vector.shape_cast %187 : vector<1x64xf32> to vector<64xf32>
    %189 = vector.shape_cast %188 : vector<64xf32> to vector<1x1x64xf32>
    %190 = vector.broadcast %189 : vector<1x1x64xf32> to vector<16x16x64xf32>
    %191 = arith.mulf %186, %190 : vector<16x16x64xf32>
    %192 = arith.addf %184, %191 : vector<16x16x64xf32>
    %c0_120 = arith.constant 0 : index
    %c3_121 = arith.constant 3 : index
    %c3_122 = arith.constant 3 : index
    %c0_123 = arith.constant 0 : index
    %193 = vector.load %arg1[%c0_120, %c3_121, %c3_122, %c0_123] : memref<1x22x22x64xf32, #tpu.memory_space<vmem>>, vector<1x16x16x64xf32>
    %194 = vector.shape_cast %193 : vector<1x16x16x64xf32> to vector<16x16x64xf32>
    %c24 = arith.constant 24 : index
    %c0_124 = arith.constant 0 : index
    %195 = vector.load %arg2[%c24, %c0_124] : memref<49x64xf32, #tpu.memory_space<vmem>>, vector<1x64xf32>
    %196 = vector.shape_cast %195 : vector<1x64xf32> to vector<64xf32>
    %197 = vector.shape_cast %196 : vector<64xf32> to vector<1x1x64xf32>
    %198 = vector.broadcast %197 : vector<1x1x64xf32> to vector<16x16x64xf32>
    %199 = arith.mulf %194, %198 : vector<16x16x64xf32>
    %200 = arith.addf %192, %199 : vector<16x16x64xf32>
    %c0_125 = arith.constant 0 : index
    %c3_126 = arith.constant 3 : index
    %c4_127 = arith.constant 4 : index
    %c0_128 = arith.constant 0 : index
    %201 = vector.load %arg1[%c0_125, %c3_126, %c4_127, %c0_128] : memref<1x22x22x64xf32, #tpu.memory_space<vmem>>, vector<1x16x16x64xf32>
    %202 = vector.shape_cast %201 : vector<1x16x16x64xf32> to vector<16x16x64xf32>
    %c25 = arith.constant 25 : index
    %c0_129 = arith.constant 0 : index
    %203 = vector.load %arg2[%c25, %c0_129] : memref<49x64xf32, #tpu.memory_space<vmem>>, vector<1x64xf32>
    %204 = vector.shape_cast %203 : vector<1x64xf32> to vector<64xf32>
    %205 = vector.shape_cast %204 : vector<64xf32> to vector<1x1x64xf32>
    %206 = vector.broadcast %205 : vector<1x1x64xf32> to vector<16x16x64xf32>
    %207 = arith.mulf %202, %206 : vector<16x16x64xf32>
    %208 = arith.addf %200, %207 : vector<16x16x64xf32>
    %c0_130 = arith.constant 0 : index
    %c3_131 = arith.constant 3 : index
    %c5_132 = arith.constant 5 : index
    %c0_133 = arith.constant 0 : index
    %209 = vector.load %arg1[%c0_130, %c3_131, %c5_132, %c0_133] : memref<1x22x22x64xf32, #tpu.memory_space<vmem>>, vector<1x16x16x64xf32>
    %210 = vector.shape_cast %209 : vector<1x16x16x64xf32> to vector<16x16x64xf32>
    %c26 = arith.constant 26 : index
    %c0_134 = arith.constant 0 : index
    %211 = vector.load %arg2[%c26, %c0_134] : memref<49x64xf32, #tpu.memory_space<vmem>>, vector<1x64xf32>
    %212 = vector.shape_cast %211 : vector<1x64xf32> to vector<64xf32>
    %213 = vector.shape_cast %212 : vector<64xf32> to vector<1x1x64xf32>
    %214 = vector.broadcast %213 : vector<1x1x64xf32> to vector<16x16x64xf32>
    %215 = arith.mulf %210, %214 : vector<16x16x64xf32>
    %216 = arith.addf %208, %215 : vector<16x16x64xf32>
    %c0_135 = arith.constant 0 : index
    %c3_136 = arith.constant 3 : index
    %c6_137 = arith.constant 6 : index
    %c0_138 = arith.constant 0 : index
    %217 = vector.load %arg1[%c0_135, %c3_136, %c6_137, %c0_138] : memref<1x22x22x64xf32, #tpu.memory_space<vmem>>, vector<1x16x16x64xf32>
    %218 = vector.shape_cast %217 : vector<1x16x16x64xf32> to vector<16x16x64xf32>
    %c27 = arith.constant 27 : index
    %c0_139 = arith.constant 0 : index
    %219 = vector.load %arg2[%c27, %c0_139] : memref<49x64xf32, #tpu.memory_space<vmem>>, vector<1x64xf32>
    %220 = vector.shape_cast %219 : vector<1x64xf32> to vector<64xf32>
    %221 = vector.shape_cast %220 : vector<64xf32> to vector<1x1x64xf32>
    %222 = vector.broadcast %221 : vector<1x1x64xf32> to vector<16x16x64xf32>
    %223 = arith.mulf %218, %222 : vector<16x16x64xf32>
    %224 = arith.addf %216, %223 : vector<16x16x64xf32>
    %c0_140 = arith.constant 0 : index
    %c4_141 = arith.constant 4 : index
    %c0_142 = arith.constant 0 : index
    %c0_143 = arith.constant 0 : index
    %225 = vector.load %arg1[%c0_140, %c4_141, %c0_142, %c0_143] : memref<1x22x22x64xf32, #tpu.memory_space<vmem>>, vector<1x16x16x64xf32>
    %226 = vector.shape_cast %225 : vector<1x16x16x64xf32> to vector<16x16x64xf32>
    %c28 = arith.constant 28 : index
    %c0_144 = arith.constant 0 : index
    %227 = vector.load %arg2[%c28, %c0_144] : memref<49x64xf32, #tpu.memory_space<vmem>>, vector<1x64xf32>
    %228 = vector.shape_cast %227 : vector<1x64xf32> to vector<64xf32>
    %229 = vector.shape_cast %228 : vector<64xf32> to vector<1x1x64xf32>
    %230 = vector.broadcast %229 : vector<1x1x64xf32> to vector<16x16x64xf32>
    %231 = arith.mulf %226, %230 : vector<16x16x64xf32>
    %232 = arith.addf %224, %231 : vector<16x16x64xf32>
    %c0_145 = arith.constant 0 : index
    %c4_146 = arith.constant 4 : index
    %c1_147 = arith.constant 1 : index
    %c0_148 = arith.constant 0 : index
    %233 = vector.load %arg1[%c0_145, %c4_146, %c1_147, %c0_148] : memref<1x22x22x64xf32, #tpu.memory_space<vmem>>, vector<1x16x16x64xf32>
    %234 = vector.shape_cast %233 : vector<1x16x16x64xf32> to vector<16x16x64xf32>
    %c29 = arith.constant 29 : index
    %c0_149 = arith.constant 0 : index
    %235 = vector.load %arg2[%c29, %c0_149] : memref<49x64xf32, #tpu.memory_space<vmem>>, vector<1x64xf32>
    %236 = vector.shape_cast %235 : vector<1x64xf32> to vector<64xf32>
    %237 = vector.shape_cast %236 : vector<64xf32> to vector<1x1x64xf32>
    %238 = vector.broadcast %237 : vector<1x1x64xf32> to vector<16x16x64xf32>
    %239 = arith.mulf %234, %238 : vector<16x16x64xf32>
    %240 = arith.addf %232, %239 : vector<16x16x64xf32>
    %c0_150 = arith.constant 0 : index
    %c4_151 = arith.constant 4 : index
    %c2_152 = arith.constant 2 : index
    %c0_153 = arith.constant 0 : index
    %241 = vector.load %arg1[%c0_150, %c4_151, %c2_152, %c0_153] : memref<1x22x22x64xf32, #tpu.memory_space<vmem>>, vector<1x16x16x64xf32>
    %242 = vector.shape_cast %241 : vector<1x16x16x64xf32> to vector<16x16x64xf32>
    %c30 = arith.constant 30 : index
    %c0_154 = arith.constant 0 : index
    %243 = vector.load %arg2[%c30, %c0_154] : memref<49x64xf32, #tpu.memory_space<vmem>>, vector<1x64xf32>
    %244 = vector.shape_cast %243 : vector<1x64xf32> to vector<64xf32>
    %245 = vector.shape_cast %244 : vector<64xf32> to vector<1x1x64xf32>
    %246 = vector.broadcast %245 : vector<1x1x64xf32> to vector<16x16x64xf32>
    %247 = arith.mulf %242, %246 : vector<16x16x64xf32>
    %248 = arith.addf %240, %247 : vector<16x16x64xf32>
    %c0_155 = arith.constant 0 : index
    %c4_156 = arith.constant 4 : index
    %c3_157 = arith.constant 3 : index
    %c0_158 = arith.constant 0 : index
    %249 = vector.load %arg1[%c0_155, %c4_156, %c3_157, %c0_158] : memref<1x22x22x64xf32, #tpu.memory_space<vmem>>, vector<1x16x16x64xf32>
    %250 = vector.shape_cast %249 : vector<1x16x16x64xf32> to vector<16x16x64xf32>
    %c31 = arith.constant 31 : index
    %c0_159 = arith.constant 0 : index
    %251 = vector.load %arg2[%c31, %c0_159] : memref<49x64xf32, #tpu.memory_space<vmem>>, vector<1x64xf32>
    %252 = vector.shape_cast %251 : vector<1x64xf32> to vector<64xf32>
    %253 = vector.shape_cast %252 : vector<64xf32> to vector<1x1x64xf32>
    %254 = vector.broadcast %253 : vector<1x1x64xf32> to vector<16x16x64xf32>
    %255 = arith.mulf %250, %254 : vector<16x16x64xf32>
    %256 = arith.addf %248, %255 : vector<16x16x64xf32>
    %c0_160 = arith.constant 0 : index
    %c4_161 = arith.constant 4 : index
    %c4_162 = arith.constant 4 : index
    %c0_163 = arith.constant 0 : index
    %257 = vector.load %arg1[%c0_160, %c4_161, %c4_162, %c0_163] : memref<1x22x22x64xf32, #tpu.memory_space<vmem>>, vector<1x16x16x64xf32>
    %258 = vector.shape_cast %257 : vector<1x16x16x64xf32> to vector<16x16x64xf32>
    %c32 = arith.constant 32 : index
    %c0_164 = arith.constant 0 : index
    %259 = vector.load %arg2[%c32, %c0_164] : memref<49x64xf32, #tpu.memory_space<vmem>>, vector<1x64xf32>
    %260 = vector.shape_cast %259 : vector<1x64xf32> to vector<64xf32>
    %261 = vector.shape_cast %260 : vector<64xf32> to vector<1x1x64xf32>
    %262 = vector.broadcast %261 : vector<1x1x64xf32> to vector<16x16x64xf32>
    %263 = arith.mulf %258, %262 : vector<16x16x64xf32>
    %264 = arith.addf %256, %263 : vector<16x16x64xf32>
    %c0_165 = arith.constant 0 : index
    %c4_166 = arith.constant 4 : index
    %c5_167 = arith.constant 5 : index
    %c0_168 = arith.constant 0 : index
    %265 = vector.load %arg1[%c0_165, %c4_166, %c5_167, %c0_168] : memref<1x22x22x64xf32, #tpu.memory_space<vmem>>, vector<1x16x16x64xf32>
    %266 = vector.shape_cast %265 : vector<1x16x16x64xf32> to vector<16x16x64xf32>
    %c33 = arith.constant 33 : index
    %c0_169 = arith.constant 0 : index
    %267 = vector.load %arg2[%c33, %c0_169] : memref<49x64xf32, #tpu.memory_space<vmem>>, vector<1x64xf32>
    %268 = vector.shape_cast %267 : vector<1x64xf32> to vector<64xf32>
    %269 = vector.shape_cast %268 : vector<64xf32> to vector<1x1x64xf32>
    %270 = vector.broadcast %269 : vector<1x1x64xf32> to vector<16x16x64xf32>
    %271 = arith.mulf %266, %270 : vector<16x16x64xf32>
    %272 = arith.addf %264, %271 : vector<16x16x64xf32>
    %c0_170 = arith.constant 0 : index
    %c4_171 = arith.constant 4 : index
    %c6_172 = arith.constant 6 : index
    %c0_173 = arith.constant 0 : index
    %273 = vector.load %arg1[%c0_170, %c4_171, %c6_172, %c0_173] : memref<1x22x22x64xf32, #tpu.memory_space<vmem>>, vector<1x16x16x64xf32>
    %274 = vector.shape_cast %273 : vector<1x16x16x64xf32> to vector<16x16x64xf32>
    %c34 = arith.constant 34 : index
    %c0_174 = arith.constant 0 : index
    %275 = vector.load %arg2[%c34, %c0_174] : memref<49x64xf32, #tpu.memory_space<vmem>>, vector<1x64xf32>
    %276 = vector.shape_cast %275 : vector<1x64xf32> to vector<64xf32>
    %277 = vector.shape_cast %276 : vector<64xf32> to vector<1x1x64xf32>
    %278 = vector.broadcast %277 : vector<1x1x64xf32> to vector<16x16x64xf32>
    %279 = arith.mulf %274, %278 : vector<16x16x64xf32>
    %280 = arith.addf %272, %279 : vector<16x16x64xf32>
    %c0_175 = arith.constant 0 : index
    %c5_176 = arith.constant 5 : index
    %c0_177 = arith.constant 0 : index
    %c0_178 = arith.constant 0 : index
    %281 = vector.load %arg1[%c0_175, %c5_176, %c0_177, %c0_178] : memref<1x22x22x64xf32, #tpu.memory_space<vmem>>, vector<1x16x16x64xf32>
    %282 = vector.shape_cast %281 : vector<1x16x16x64xf32> to vector<16x16x64xf32>
    %c35 = arith.constant 35 : index
    %c0_179 = arith.constant 0 : index
    %283 = vector.load %arg2[%c35, %c0_179] : memref<49x64xf32, #tpu.memory_space<vmem>>, vector<1x64xf32>
    %284 = vector.shape_cast %283 : vector<1x64xf32> to vector<64xf32>
    %285 = vector.shape_cast %284 : vector<64xf32> to vector<1x1x64xf32>
    %286 = vector.broadcast %285 : vector<1x1x64xf32> to vector<16x16x64xf32>
    %287 = arith.mulf %282, %286 : vector<16x16x64xf32>
    %288 = arith.addf %280, %287 : vector<16x16x64xf32>
    %c0_180 = arith.constant 0 : index
    %c5_181 = arith.constant 5 : index
    %c1_182 = arith.constant 1 : index
    %c0_183 = arith.constant 0 : index
    %289 = vector.load %arg1[%c0_180, %c5_181, %c1_182, %c0_183] : memref<1x22x22x64xf32, #tpu.memory_space<vmem>>, vector<1x16x16x64xf32>
    %290 = vector.shape_cast %289 : vector<1x16x16x64xf32> to vector<16x16x64xf32>
    %c36 = arith.constant 36 : index
    %c0_184 = arith.constant 0 : index
    %291 = vector.load %arg2[%c36, %c0_184] : memref<49x64xf32, #tpu.memory_space<vmem>>, vector<1x64xf32>
    %292 = vector.shape_cast %291 : vector<1x64xf32> to vector<64xf32>
    %293 = vector.shape_cast %292 : vector<64xf32> to vector<1x1x64xf32>
    %294 = vector.broadcast %293 : vector<1x1x64xf32> to vector<16x16x64xf32>
    %295 = arith.mulf %290, %294 : vector<16x16x64xf32>
    %296 = arith.addf %288, %295 : vector<16x16x64xf32>
    %c0_185 = arith.constant 0 : index
    %c5_186 = arith.constant 5 : index
    %c2_187 = arith.constant 2 : index
    %c0_188 = arith.constant 0 : index
    %297 = vector.load %arg1[%c0_185, %c5_186, %c2_187, %c0_188] : memref<1x22x22x64xf32, #tpu.memory_space<vmem>>, vector<1x16x16x64xf32>
    %298 = vector.shape_cast %297 : vector<1x16x16x64xf32> to vector<16x16x64xf32>
    %c37 = arith.constant 37 : index
    %c0_189 = arith.constant 0 : index
    %299 = vector.load %arg2[%c37, %c0_189] : memref<49x64xf32, #tpu.memory_space<vmem>>, vector<1x64xf32>
    %300 = vector.shape_cast %299 : vector<1x64xf32> to vector<64xf32>
    %301 = vector.shape_cast %300 : vector<64xf32> to vector<1x1x64xf32>
    %302 = vector.broadcast %301 : vector<1x1x64xf32> to vector<16x16x64xf32>
    %303 = arith.mulf %298, %302 : vector<16x16x64xf32>
    %304 = arith.addf %296, %303 : vector<16x16x64xf32>
    %c0_190 = arith.constant 0 : index
    %c5_191 = arith.constant 5 : index
    %c3_192 = arith.constant 3 : index
    %c0_193 = arith.constant 0 : index
    %305 = vector.load %arg1[%c0_190, %c5_191, %c3_192, %c0_193] : memref<1x22x22x64xf32, #tpu.memory_space<vmem>>, vector<1x16x16x64xf32>
    %306 = vector.shape_cast %305 : vector<1x16x16x64xf32> to vector<16x16x64xf32>
    %c38 = arith.constant 38 : index
    %c0_194 = arith.constant 0 : index
    %307 = vector.load %arg2[%c38, %c0_194] : memref<49x64xf32, #tpu.memory_space<vmem>>, vector<1x64xf32>
    %308 = vector.shape_cast %307 : vector<1x64xf32> to vector<64xf32>
    %309 = vector.shape_cast %308 : vector<64xf32> to vector<1x1x64xf32>
    %310 = vector.broadcast %309 : vector<1x1x64xf32> to vector<16x16x64xf32>
    %311 = arith.mulf %306, %310 : vector<16x16x64xf32>
    %312 = arith.addf %304, %311 : vector<16x16x64xf32>
    %c0_195 = arith.constant 0 : index
    %c5_196 = arith.constant 5 : index
    %c4_197 = arith.constant 4 : index
    %c0_198 = arith.constant 0 : index
    %313 = vector.load %arg1[%c0_195, %c5_196, %c4_197, %c0_198] : memref<1x22x22x64xf32, #tpu.memory_space<vmem>>, vector<1x16x16x64xf32>
    %314 = vector.shape_cast %313 : vector<1x16x16x64xf32> to vector<16x16x64xf32>
    %c39 = arith.constant 39 : index
    %c0_199 = arith.constant 0 : index
    %315 = vector.load %arg2[%c39, %c0_199] : memref<49x64xf32, #tpu.memory_space<vmem>>, vector<1x64xf32>
    %316 = vector.shape_cast %315 : vector<1x64xf32> to vector<64xf32>
    %317 = vector.shape_cast %316 : vector<64xf32> to vector<1x1x64xf32>
    %318 = vector.broadcast %317 : vector<1x1x64xf32> to vector<16x16x64xf32>
    %319 = arith.mulf %314, %318 : vector<16x16x64xf32>
    %320 = arith.addf %312, %319 : vector<16x16x64xf32>
    %c0_200 = arith.constant 0 : index
    %c5_201 = arith.constant 5 : index
    %c5_202 = arith.constant 5 : index
    %c0_203 = arith.constant 0 : index
    %321 = vector.load %arg1[%c0_200, %c5_201, %c5_202, %c0_203] : memref<1x22x22x64xf32, #tpu.memory_space<vmem>>, vector<1x16x16x64xf32>
    %322 = vector.shape_cast %321 : vector<1x16x16x64xf32> to vector<16x16x64xf32>
    %c40 = arith.constant 40 : index
    %c0_204 = arith.constant 0 : index
    %323 = vector.load %arg2[%c40, %c0_204] : memref<49x64xf32, #tpu.memory_space<vmem>>, vector<1x64xf32>
    %324 = vector.shape_cast %323 : vector<1x64xf32> to vector<64xf32>
    %325 = vector.shape_cast %324 : vector<64xf32> to vector<1x1x64xf32>
    %326 = vector.broadcast %325 : vector<1x1x64xf32> to vector<16x16x64xf32>
    %327 = arith.mulf %322, %326 : vector<16x16x64xf32>
    %328 = arith.addf %320, %327 : vector<16x16x64xf32>
    %c0_205 = arith.constant 0 : index
    %c5_206 = arith.constant 5 : index
    %c6_207 = arith.constant 6 : index
    %c0_208 = arith.constant 0 : index
    %329 = vector.load %arg1[%c0_205, %c5_206, %c6_207, %c0_208] : memref<1x22x22x64xf32, #tpu.memory_space<vmem>>, vector<1x16x16x64xf32>
    %330 = vector.shape_cast %329 : vector<1x16x16x64xf32> to vector<16x16x64xf32>
    %c41 = arith.constant 41 : index
    %c0_209 = arith.constant 0 : index
    %331 = vector.load %arg2[%c41, %c0_209] : memref<49x64xf32, #tpu.memory_space<vmem>>, vector<1x64xf32>
    %332 = vector.shape_cast %331 : vector<1x64xf32> to vector<64xf32>
    %333 = vector.shape_cast %332 : vector<64xf32> to vector<1x1x64xf32>
    %334 = vector.broadcast %333 : vector<1x1x64xf32> to vector<16x16x64xf32>
    %335 = arith.mulf %330, %334 : vector<16x16x64xf32>
    %336 = arith.addf %328, %335 : vector<16x16x64xf32>
    %c0_210 = arith.constant 0 : index
    %c6_211 = arith.constant 6 : index
    %c0_212 = arith.constant 0 : index
    %c0_213 = arith.constant 0 : index
    %337 = vector.load %arg1[%c0_210, %c6_211, %c0_212, %c0_213] : memref<1x22x22x64xf32, #tpu.memory_space<vmem>>, vector<1x16x16x64xf32>
    %338 = vector.shape_cast %337 : vector<1x16x16x64xf32> to vector<16x16x64xf32>
    %c42 = arith.constant 42 : index
    %c0_214 = arith.constant 0 : index
    %339 = vector.load %arg2[%c42, %c0_214] : memref<49x64xf32, #tpu.memory_space<vmem>>, vector<1x64xf32>
    %340 = vector.shape_cast %339 : vector<1x64xf32> to vector<64xf32>
    %341 = vector.shape_cast %340 : vector<64xf32> to vector<1x1x64xf32>
    %342 = vector.broadcast %341 : vector<1x1x64xf32> to vector<16x16x64xf32>
    %343 = arith.mulf %338, %342 : vector<16x16x64xf32>
    %344 = arith.addf %336, %343 : vector<16x16x64xf32>
    %c0_215 = arith.constant 0 : index
    %c6_216 = arith.constant 6 : index
    %c1_217 = arith.constant 1 : index
    %c0_218 = arith.constant 0 : index
    %345 = vector.load %arg1[%c0_215, %c6_216, %c1_217, %c0_218] : memref<1x22x22x64xf32, #tpu.memory_space<vmem>>, vector<1x16x16x64xf32>
    %346 = vector.shape_cast %345 : vector<1x16x16x64xf32> to vector<16x16x64xf32>
    %c43 = arith.constant 43 : index
    %c0_219 = arith.constant 0 : index
    %347 = vector.load %arg2[%c43, %c0_219] : memref<49x64xf32, #tpu.memory_space<vmem>>, vector<1x64xf32>
    %348 = vector.shape_cast %347 : vector<1x64xf32> to vector<64xf32>
    %349 = vector.shape_cast %348 : vector<64xf32> to vector<1x1x64xf32>
    %350 = vector.broadcast %349 : vector<1x1x64xf32> to vector<16x16x64xf32>
    %351 = arith.mulf %346, %350 : vector<16x16x64xf32>
    %352 = arith.addf %344, %351 : vector<16x16x64xf32>
    %c0_220 = arith.constant 0 : index
    %c6_221 = arith.constant 6 : index
    %c2_222 = arith.constant 2 : index
    %c0_223 = arith.constant 0 : index
    %353 = vector.load %arg1[%c0_220, %c6_221, %c2_222, %c0_223] : memref<1x22x22x64xf32, #tpu.memory_space<vmem>>, vector<1x16x16x64xf32>
    %354 = vector.shape_cast %353 : vector<1x16x16x64xf32> to vector<16x16x64xf32>
    %c44 = arith.constant 44 : index
    %c0_224 = arith.constant 0 : index
    %355 = vector.load %arg2[%c44, %c0_224] : memref<49x64xf32, #tpu.memory_space<vmem>>, vector<1x64xf32>
    %356 = vector.shape_cast %355 : vector<1x64xf32> to vector<64xf32>
    %357 = vector.shape_cast %356 : vector<64xf32> to vector<1x1x64xf32>
    %358 = vector.broadcast %357 : vector<1x1x64xf32> to vector<16x16x64xf32>
    %359 = arith.mulf %354, %358 : vector<16x16x64xf32>
    %360 = arith.addf %352, %359 : vector<16x16x64xf32>
    %c0_225 = arith.constant 0 : index
    %c6_226 = arith.constant 6 : index
    %c3_227 = arith.constant 3 : index
    %c0_228 = arith.constant 0 : index
    %361 = vector.load %arg1[%c0_225, %c6_226, %c3_227, %c0_228] : memref<1x22x22x64xf32, #tpu.memory_space<vmem>>, vector<1x16x16x64xf32>
    %362 = vector.shape_cast %361 : vector<1x16x16x64xf32> to vector<16x16x64xf32>
    %c45 = arith.constant 45 : index
    %c0_229 = arith.constant 0 : index
    %363 = vector.load %arg2[%c45, %c0_229] : memref<49x64xf32, #tpu.memory_space<vmem>>, vector<1x64xf32>
    %364 = vector.shape_cast %363 : vector<1x64xf32> to vector<64xf32>
    %365 = vector.shape_cast %364 : vector<64xf32> to vector<1x1x64xf32>
    %366 = vector.broadcast %365 : vector<1x1x64xf32> to vector<16x16x64xf32>
    %367 = arith.mulf %362, %366 : vector<16x16x64xf32>
    %368 = arith.addf %360, %367 : vector<16x16x64xf32>
    %c0_230 = arith.constant 0 : index
    %c6_231 = arith.constant 6 : index
    %c4_232 = arith.constant 4 : index
    %c0_233 = arith.constant 0 : index
    %369 = vector.load %arg1[%c0_230, %c6_231, %c4_232, %c0_233] : memref<1x22x22x64xf32, #tpu.memory_space<vmem>>, vector<1x16x16x64xf32>
    %370 = vector.shape_cast %369 : vector<1x16x16x64xf32> to vector<16x16x64xf32>
    %c46 = arith.constant 46 : index
    %c0_234 = arith.constant 0 : index
    %371 = vector.load %arg2[%c46, %c0_234] : memref<49x64xf32, #tpu.memory_space<vmem>>, vector<1x64xf32>
    %372 = vector.shape_cast %371 : vector<1x64xf32> to vector<64xf32>
    %373 = vector.shape_cast %372 : vector<64xf32> to vector<1x1x64xf32>
    %374 = vector.broadcast %373 : vector<1x1x64xf32> to vector<16x16x64xf32>
    %375 = arith.mulf %370, %374 : vector<16x16x64xf32>
    %376 = arith.addf %368, %375 : vector<16x16x64xf32>
    %c0_235 = arith.constant 0 : index
    %c6_236 = arith.constant 6 : index
    %c5_237 = arith.constant 5 : index
    %c0_238 = arith.constant 0 : index
    %377 = vector.load %arg1[%c0_235, %c6_236, %c5_237, %c0_238] : memref<1x22x22x64xf32, #tpu.memory_space<vmem>>, vector<1x16x16x64xf32>
    %378 = vector.shape_cast %377 : vector<1x16x16x64xf32> to vector<16x16x64xf32>
    %c47 = arith.constant 47 : index
    %c0_239 = arith.constant 0 : index
    %379 = vector.load %arg2[%c47, %c0_239] : memref<49x64xf32, #tpu.memory_space<vmem>>, vector<1x64xf32>
    %380 = vector.shape_cast %379 : vector<1x64xf32> to vector<64xf32>
    %381 = vector.shape_cast %380 : vector<64xf32> to vector<1x1x64xf32>
    %382 = vector.broadcast %381 : vector<1x1x64xf32> to vector<16x16x64xf32>
    %383 = arith.mulf %378, %382 : vector<16x16x64xf32>
    %384 = arith.addf %376, %383 : vector<16x16x64xf32>
    %c0_240 = arith.constant 0 : index
    %c6_241 = arith.constant 6 : index
    %c6_242 = arith.constant 6 : index
    %c0_243 = arith.constant 0 : index
    %385 = vector.load %arg1[%c0_240, %c6_241, %c6_242, %c0_243] : memref<1x22x22x64xf32, #tpu.memory_space<vmem>>, vector<1x16x16x64xf32>
    %386 = vector.shape_cast %385 : vector<1x16x16x64xf32> to vector<16x16x64xf32>
    %c48 = arith.constant 48 : index
    %c0_244 = arith.constant 0 : index
    %387 = vector.load %arg2[%c48, %c0_244] : memref<49x64xf32, #tpu.memory_space<vmem>>, vector<1x64xf32>
    %388 = vector.shape_cast %387 : vector<1x64xf32> to vector<64xf32>
    %389 = vector.shape_cast %388 : vector<64xf32> to vector<1x1x64xf32>
    %390 = vector.broadcast %389 : vector<1x1x64xf32> to vector<16x16x64xf32>
    %391 = arith.mulf %386, %390 : vector<16x16x64xf32>
    %392 = arith.addf %384, %391 : vector<16x16x64xf32>
    %393 = vector.shape_cast %392 : vector<16x16x64xf32> to vector<256x64xf32>
    %c0_245 = arith.constant 0 : index
    %c0_246 = arith.constant 0 : index
    %394 = vector.load %arg3[%c0_245, %c0_246] : memref<1x64xf32, #tpu.memory_space<vmem>>, vector<1x64xf32>
    %395 = vector.broadcast %394 : vector<1x64xf32> to vector<256x64xf32>
    %396 = arith.addf %393, %395 : vector<256x64xf32>
    %cst_247 = arith.constant dense<0.000000e+00> : vector<256xf32>
    %397 = vector.multi_reduction <add>, %396, %cst_247 [1] : vector<256x64xf32> to vector<256xf32>
    %398 = vector.shape_cast %397 : vector<256xf32> to vector<256x1xf32>
    %cst_248 = arith.constant 6.400000e+01 : f32
    %399 = vector.broadcast %cst_248 : f32 to vector<256x1xf32>
    %400 = arith.divf %398, %399 : vector<256x1xf32>
    %401 = vector.broadcast %400 : vector<256x1xf32> to vector<256x64xf32>
    %402 = arith.subf %396, %401 : vector<256x64xf32>
    %403 = arith.mulf %402, %402 : vector<256x64xf32>
    %cst_249 = arith.constant dense<0.000000e+00> : vector<256xf32>
    %404 = vector.multi_reduction <add>, %403, %cst_249 [1] : vector<256x64xf32> to vector<256xf32>
    %405 = vector.shape_cast %404 : vector<256xf32> to vector<256x1xf32>
    %cst_250 = arith.constant 6.400000e+01 : f32
    %406 = vector.broadcast %cst_250 : f32 to vector<256x1xf32>
    %407 = arith.divf %405, %406 : vector<256x1xf32>
    %cst_251 = arith.constant 9.99999997E-7 : f32
    %408 = vector.broadcast %cst_251 : f32 to vector<256x1xf32>
    %409 = arith.addf %407, %408 : vector<256x1xf32>
    %410 = math.rsqrt %409 : vector<256x1xf32>
    %411 = vector.broadcast %410 : vector<256x1xf32> to vector<256x64xf32>
    %412 = arith.mulf %402, %411 : vector<256x64xf32>
    %c0_252 = arith.constant 0 : index
    %c0_253 = arith.constant 0 : index
    %413 = vector.load %arg4[%c0_252, %c0_253] : memref<1x64xf32, #tpu.memory_space<vmem>>, vector<1x64xf32>
    %414 = vector.broadcast %413 : vector<1x64xf32> to vector<256x64xf32>
    %415 = arith.mulf %412, %414 : vector<256x64xf32>
    %c0_254 = arith.constant 0 : index
    %c0_255 = arith.constant 0 : index
    %416 = vector.load %arg5[%c0_254, %c0_255] : memref<1x64xf32, #tpu.memory_space<vmem>>, vector<1x64xf32>
    %417 = vector.broadcast %416 : vector<1x64xf32> to vector<256x64xf32>
    %418 = arith.addf %415, %417 : vector<256x64xf32>
    %c0_256 = arith.constant 0 : index
    %c0_257 = arith.constant 0 : index
    %419 = vector.load %arg6[%c0_256, %c0_257] : memref<64x256xf32, #tpu.memory_space<vmem>>, vector<64x256xf32>
    %cst_258 = arith.constant dense<0.000000e+00> : vector<256x256xf32>
    %420 = tpu.matmul %418, %419, %cst_258 {dimension_numbers = #tpu.dot_dimension_numbers<[1], [0], [0], [1], [0, 0, 1, 1], [], []>} : vector<256x64xf32>, vector<64x256xf32>, vector<256x256xf32> -> vector<256x256xf32>
    %c0_259 = arith.constant 0 : index
    %c0_260 = arith.constant 0 : index
    %421 = vector.load %arg7[%c0_259, %c0_260] : memref<1x256xf32, #tpu.memory_space<vmem>>, vector<1x256xf32>
    %422 = vector.broadcast %421 : vector<1x256xf32> to vector<256x256xf32>
    %423 = arith.addf %420, %422 : vector<256x256xf32>
    %cst_261 = arith.constant 5.000000e-01 : f32
    %424 = vector.broadcast %cst_261 : f32 to vector<256x256xf32>
    %425 = arith.mulf %424, %423 : vector<256x256xf32>
    %cst_262 = arith.constant 4.471500e-02 : f32
    %426 = vector.broadcast %cst_262 : f32 to vector<256x256xf32>
    %427 = arith.mulf %426, %423 : vector<256x256xf32>
    %428 = arith.mulf %427, %423 : vector<256x256xf32>
    %429 = arith.mulf %428, %423 : vector<256x256xf32>
    %430 = arith.addf %423, %429 : vector<256x256xf32>
    %cst_263 = arith.constant 0.797884583 : f32
    %431 = vector.broadcast %cst_263 : f32 to vector<256x256xf32>
    %432 = arith.mulf %431, %430 : vector<256x256xf32>
    %433 = math.tanh %432 : vector<256x256xf32>
    %cst_264 = arith.constant 1.000000e+00 : f32
    %434 = vector.broadcast %cst_264 : f32 to vector<256x256xf32>
    %435 = arith.addf %434, %433 : vector<256x256xf32>
    %436 = arith.mulf %425, %435 : vector<256x256xf32>
    %c0_265 = arith.constant 0 : index
    %c0_266 = arith.constant 0 : index
    %437 = vector.load %arg8[%c0_265, %c0_266] : memref<256x64xf32, #tpu.memory_space<vmem>>, vector<256x64xf32>
    %cst_267 = arith.constant dense<0.000000e+00> : vector<256x64xf32>
    %438 = tpu.matmul %436, %437, %cst_267 {dimension_numbers = #tpu.dot_dimension_numbers<[1], [0], [0], [1], [0, 0, 1, 1], [], []>} : vector<256x256xf32>, vector<256x64xf32>, vector<256x64xf32> -> vector<256x64xf32>
    %c0_268 = arith.constant 0 : index
    %c0_269 = arith.constant 0 : index
    %439 = vector.load %arg9[%c0_268, %c0_269] : memref<1x64xf32, #tpu.memory_space<vmem>>, vector<1x64xf32>
    %440 = vector.broadcast %439 : vector<1x64xf32> to vector<256x64xf32>
    %441 = arith.addf %438, %440 : vector<256x64xf32>
    %c0_270 = arith.constant 0 : index
    %c0_271 = arith.constant 0 : index
    %442 = vector.load %arg10[%c0_270, %c0_271] : memref<1x64xf32, #tpu.memory_space<vmem>>, vector<1x64xf32>
    %443 = vector.broadcast %442 : vector<1x64xf32> to vector<256x64xf32>
    %444 = arith.mulf %441, %443 : vector<256x64xf32>
    %c0_272 = arith.constant 0 : index
    %c3_273 = arith.constant 3 : index
    %c3_274 = arith.constant 3 : index
    %c0_275 = arith.constant 0 : index
    %445 = vector.load %arg1[%c0_272, %c3_273, %c3_274, %c0_275] : memref<1x22x22x64xf32, #tpu.memory_space<vmem>>, vector<1x16x16x64xf32>
    %446 = vector.shape_cast %445 : vector<1x16x16x64xf32> to vector<16x16x64xf32>
    %447 = vector.shape_cast %446 : vector<16x16x64xf32> to vector<256x64xf32>
    %448 = arith.addf %447, %444 : vector<256x64xf32>
    %449 = vector.shape_cast %448 : vector<256x64xf32> to vector<1x16x16x64xf32>
    %c0_276 = arith.constant 0 : index
    %c0_277 = arith.constant 0 : index
    %c0_278 = arith.constant 0 : index
    %c0_279 = arith.constant 0 : index
    %450 = vector.load %arg11[%c0_276, %c0_277, %c0_278, %c0_279] : memref<1x16x16x64xf32, #tpu.memory_space<vmem>>, vector<1x16x16x64xf32>
    tpu.vector_store %arg11[%c0_276, %c0_277, %c0_278, %c0_279], %449 {strides = array<i32>} : memref<1x16x16x64xf32, #tpu.memory_space<vmem>>, vector<1x16x16x64xf32>,
    return
  }
  func.func @transform_0(%arg0: i32) -> (i32, i32, i32, i32) {
    %c0_i32 = arith.constant 0 : i32
    %c0_i32_0 = arith.constant 0 : i32
    %c0_i32_1 = arith.constant 0 : i32
    %c0_i32_2 = arith.constant 0 : i32
    return %arg0, %c0_i32, %c0_i32_0, %c0_i32_1 : i32, i32, i32, i32
  }
  func.func @transform_1(%arg0: i32) -> (i32, i32) {
    %c0_i32 = arith.constant 0 : i32
    %c0_i32_0 = arith.constant 0 : i32
    %c0_i32_1 = arith.constant 0 : i32
    return %c0_i32, %c0_i32_0 : i32, i32
  }
  func.func @transform_2(%arg0: i32) -> (i32, i32) {
    %c0_i32 = arith.constant 0 : i32
    %c0_i32_0 = arith.constant 0 : i32
    %c0_i32_1 = arith.constant 0 : i32
    return %c0_i32, %c0_i32_0 : i32, i32
  }
  func.func @transform_3(%arg0: i32) -> (i32, i32) {
    %c0_i32 = arith.constant 0 : i32
    %c0_i32_0 = arith.constant 0 : i32
    %c0_i32_1 = arith.constant 0 : i32
    return %c0_i32, %c0_i32_0 : i32, i32
  }
  func.func @transform_4(%arg0: i32) -> (i32, i32) {
    %c0_i32 = arith.constant 0 : i32
    %c0_i32_0 = arith.constant 0 : i32
    %c0_i32_1 = arith.constant 0 : i32
    return %c0_i32, %c0_i32_0 : i32, i32
  }
  func.func @transform_5(%arg0: i32) -> (i32, i32) {
    %c0_i32 = arith.constant 0 : i32
    %c0_i32_0 = arith.constant 0 : i32
    %c0_i32_1 = arith.constant 0 : i32
    return %c0_i32, %c0_i32_0 : i32, i32
  }
  func.func @transform_6(%arg0: i32) -> (i32, i32) {
    %c0_i32 = arith.constant 0 : i32
    %c0_i32_0 = arith.constant 0 : i32
    %c0_i32_1 = arith.constant 0 : i32
    return %c0_i32, %c0_i32_0 : i32, i32
  }
  func.func @transform_7(%arg0: i32) -> (i32, i32) {
    %c0_i32 = arith.constant 0 : i32
    %c0_i32_0 = arith.constant 0 : i32
    %c0_i32_1 = arith.constant 0 : i32
    return %c0_i32, %c0_i32_0 : i32, i32
  }
  func.func @transform_8(%arg0: i32) -> (i32, i32) {
    %c0_i32 = arith.constant 0 : i32
    %c0_i32_0 = arith.constant 0 : i32
    %c0_i32_1 = arith.constant 0 : i32
    return %c0_i32, %c0_i32_0 : i32, i32
  }
  func.func @transform_9(%arg0: i32) -> (i32, i32) {
    %c0_i32 = arith.constant 0 : i32
    %c0_i32_0 = arith.constant 0 : i32
    %c0_i32_1 = arith.constant 0 : i32
    return %c0_i32, %c0_i32_0 : i32, i32
  }
  func.func @transform_10(%arg0: i32) -> (i32, i32, i32, i32) {
    %c0_i32 = arith.constant 0 : i32
    %c0_i32_0 = arith.constant 0 : i32
    %c0_i32_1 = arith.constant 0 : i32
    %c0_i32_2 = arith.constant 0 : i32
    return %arg0, %c0_i32, %c0_i32_0, %c0_i32_1 : i32, i32, i32, i32
  }
}

</mosaic_0001>

<llo_original>
// kernel: tpu_custom_call.1
$region0: #{tpu_custom_call.1}
  #allocation0 [shape = 'u32[]', space=smem, size = 0x4, offset = 0x4, fixed_abs, tag = 'smem constant byte address 0x4 - core index']
  #allocation1 [shape = 'u32[144,128]{1,0:T(1,128)}', space=vmem, size = 0x12000, scoped, tag = 'internal scratch']
  %s0 = inlined_call_operand.vmem [shape: f32[2,22,22,64], index: 0, kind: input, shape index: {}]
  %s1 = inlined_call_operand.vmem [shape: f32[49,64], index: 1, kind: input, shape index: {}]
  %s2 = inlined_call_operand.vmem [shape: f32[1,64], index: 2, kind: input, shape index: {}]
  %s3 = inlined_call_operand.vmem [shape: f32[1,64], index: 3, kind: input, shape index: {}]
  %s4 = inlined_call_operand.vmem [shape: f32[1,64], index: 4, kind: input, shape index: {}]
  %s5 = inlined_call_operand.vmem [shape: f32[64,256], index: 5, kind: input, shape index: {}]
  %s6 = inlined_call_operand.vmem [shape: f32[1,256], index: 6, kind: input, shape index: {}]
  %s7 = inlined_call_operand.vmem [shape: f32[256,64], index: 7, kind: input, shape index: {}]
  %s8 = inlined_call_operand.vmem [shape: f32[1,64], index: 8, kind: input, shape index: {}]
  %s9 = inlined_call_operand.vmem [shape: f32[1,64], index: 9, kind: input, shape index: {}]
  %s10 = inlined_call_operand.hbm [shape: f32[2,16,16,64], index: 10, kind: output, shape index: {}]
  %s11 = sld [smem:[#allocation0]]
  $region73: #{tpu_custom_call.1} parent=0
    _
  %s13 = ssub.s32 1, %s11
  %s14 = scalar_select 0, %s13, %s11
  $region1: #{tpu_custom_call.1} parent=0
    #allocation2 [shape = 'u8[262144]{0}', space=vmem, size = 0x40000, scoped, tag = 'output window, operand 0']
    #allocation3 [shape = 's32[2]{0}', space=sflag, size = 0x8, scoped, tag = 'scoped memory for tpu_custom_call.1']
    %15 = vsyncpa [#allocation3], 0
    %s16 = scalar_lea.sflag [#allocation3], 1
    %17 = vsyncpa %s16, 0
    loop: start=0, step=1, limit=4
    $region2: #{tpu_custom_call.1} parent=1 // loop_pre_header
      _
    $region3: #{tpu_custom_call.1} parent=1 // loop_header
      %s19 = sphi 0, %s23
      %p20 = scmp.ge.s32.totalorder %s19, 4
      %s29 = sphi 0, %s31
      %s32 = sphi 0, %s29
      %s33 = sphi 0, %s32
      %s49 = sphi 0, %s33
      %s53 = sphi 0, %s53
      %s55 = sphi 0, %s53
      %s56 = sphi 0, %s55
      %s70 = sphi 0, %s56
      %s74 = sphi 0, %s74
      %s76 = sphi 0, %s74
      %s77 = sphi 0, %s76
      %s91 = sphi 0, %s77
      %s95 = sphi 0, %s95
      %s97 = sphi 0, %s95
      %s98 = sphi 0, %s97
      %s112 = sphi 0, %s98
      %s116 = sphi 0, %s116
      %s118 = sphi 0, %s116
      %s119 = sphi 0, %s118
      %s133 = sphi 0, %s119
      %s137 = sphi 0, %s137
      %s139 = sphi 0, %s137
      %s140 = sphi 0, %s139
      %s154 = sphi 0, %s140
      %s158 = sphi 0, %s158
      %s160 = sphi 0, %s158
      %s161 = sphi 0, %s160
      %s175 = sphi 0, %s161
      %s179 = sphi 0, %s179
      %s181 = sphi 0, %s179
      %s182 = sphi 0, %s181
      %s196 = sphi 0, %s182
      %s200 = sphi 0, %s200
      %s202 = sphi 0, %s200
      %s203 = sphi 0, %s202
      %s217 = sphi 0, %s203
      %s221 = sphi 0, %s221
      %s223 = sphi 0, %s221
      %s224 = sphi 0, %s223
      %s238 = sphi 0, %s224
      %s244 = sphi 0, %s246
      %s247 = sphi 0, %s244
      %s248 = sphi 0, %s247
      %s264 = sphi 0, %s248
    $region4: #{tpu_custom_call.1} parent=1 // loop_header_branch
      %22 = sbr.rel (%p20) target = $region8
    $region5: #{tpu_custom_call.1} parent=1 // loop_body
      %s24 = ssub.s32 %s19, 1
      %s25 = ssub.s32 %s19, 2
      %s26 = sadd.s32 %s19, 1
      %s27 = ssub.s32 %s19, %s26
      %p28 = scmp.eq.s32.totalorder %s27, 0
      %s30 = sadd.s32 %s29, 1
      %s31 = scalar_select %p28, %s29, %s30
      %p34 = pneg %p28
      %p35 = scmp.eq.s32.totalorder %s19, 1
      %p36 = por %p34, %p35
      %p37 = scmp.ne.s32.totalorder %s29, %s32
      %p38 = scmp.eq.s32.totalorder %s19, 0
      %p39 = por %p37, %p38
      %p40 = scmp.ne.s32.totalorder %s29, %s32
      %p41 = scmp.eq.s32.totalorder %s24, 1
      %p42 = por %p40, %p41
      %p43 = scmp.ne.s32.totalorder %s32, %s33
      %p44 = scmp.eq.s32.totalorder %s24, 0
      %p45 = por %p43, %p44
      %p46 = scmp.ne.s32.totalorder %s32, %s33
      %p47 = scmp.eq.s32.totalorder %s25, 1
      %p48 = por %p46, %p47
      %p50 = scmp.ne.s32.totalorder %s33, %s49
      %p51 = scmp.eq.s32.totalorder %s25, 0
      %p52 = por %p50, %p51
      %s54 = sadd.s32 %s53, 1
      %p57 = scmp.eq.s32.totalorder %s19, 1
      %p58 = scmp.ne.s32.totalorder %s53, %s55
      %p59 = scmp.eq.s32.totalorder %s19, 0
      %p60 = por %p58, %p59
      %p61 = scmp.ne.s32.totalorder %s53, %s55
      %p62 = scmp.eq.s32.totalorder %s24, 1
      %p63 = por %p61, %p62
      %p64 = scmp.ne.s32.totalorder %s55, %s56
      %p65 = scmp.eq.s32.totalorder %s24, 0
      %p66 = por %p64, %p65
      %p67 = scmp.ne.s32.totalorder %s55, %s56
      %p68 = scmp.eq.s32.totalorder %s25, 1
      %p69 = por %p67, %p68
      %p71 = scmp.ne.s32.totalorder %s56, %s70
      %p72 = scmp.eq.s32.totalorder %s25, 0
      %p73 = por %p71, %p72
      %s75 = sadd.s32 %s74, 1
      %p78 = scmp.eq.s32.totalorder %s19, 1
      %p79 = scmp.ne.s32.totalorder %s74, %s76
      %p80 = scmp.eq.s32.totalorder %s19, 0
      %p81 = por %p79, %p80
      %p82 = scmp.ne.s32.totalorder %s74, %s76
      %p83 = scmp.eq.s32.totalorder %s24, 1
      %p84 = por %p82, %p83
      %p85 = scmp.ne.s32.totalorder %s76, %s77
      %p86 = scmp.eq.s32.totalorder %s24, 0
      %p87 = por %p85, %p86
      %p88 = scmp.ne.s32.totalorder %s76, %s77
      %p89 = scmp.eq.s32.totalorder %s25, 1
      %p90 = por %p88, %p89
      %p92 = scmp.ne.s32.totalorder %s77, %s91
      %p93 = scmp.eq.s32.totalorder %s25, 0
      %p94 = por %p92, %p93
      %s96 = sadd.s32 %s95, 1
      %p99 = scmp.eq.s32.totalorder %s19, 1
      %p100 = scmp.ne.s32.totalorder %s95, %s97
      %p101 = scmp.eq.s32.totalorder %s19, 0
      %p102 = por %p100, %p101
      %p103 = scmp.ne.s32.totalorder %s95, %s97
      %p104 = scmp.eq.s32.totalorder %s24, 1
      %p105 = por %p103, %p104
      %p106 = scmp.ne.s32.totalorder %s97, %s98
      %p107 = scmp.eq.s32.totalorder %s24, 0
      %p108 = por %p106, %p107
      %p109 = scmp.ne.s32.totalorder %s97, %s98
      %p110 = scmp.eq.s32.totalorder %s25, 1
      %p111 = por %p109, %p110
      %p113 = scmp.ne.s32.totalorder %s98, %s112
      %p114 = scmp.eq.s32.totalorder %s25, 0
      %p115 = por %p113, %p114
      %s117 = sadd.s32 %s116, 1
      %p120 = scmp.eq.s32.totalorder %s19, 1
      %p121 = scmp.ne.s32.totalorder %s116, %s118
      %p122 = scmp.eq.s32.totalorder %s19, 0
      %p123 = por %p121, %p122
      %p124 = scmp.ne.s32.totalorder %s116, %s118
      %p125 = scmp.eq.s32.totalorder %s24, 1
      %p126 = por %p124, %p125
      %p127 = scmp.ne.s32.totalorder %s118, %s119
      %p128 = scmp.eq.s32.totalorder %s24, 0
      %p129 = por %p127, %p128
      %p130 = scmp.ne.s32.totalorder %s118, %s119
      %p131 = scmp.eq.s32.totalorder %s25, 1
      %p132 = por %p130, %p131
      %p134 = scmp.ne.s32.totalorder %s119, %s133
      %p135 = scmp.eq.s32.totalorder %s25, 0
      %p136 = por %p134, %p135
      %s138 = sadd.s32 %s137, 1
      %p141 = scmp.eq.s32.totalorder %s19, 1
      %p142 = scmp.ne.s32.totalorder %s137, %s139
      %p143 = scmp.eq.s32.totalorder %s19, 0
      %p144 = por %p142, %p143
      %p145 = scmp.ne.s32.totalorder %s137, %s139
      %p146 = scmp.eq.s32.totalorder %s24, 1
      %p147 = por %p145, %p146
      %p148 = scmp.ne.s32.totalorder %s139, %s140
      %p149 = scmp.eq.s32.totalorder %s24, 0
      %p150 = por %p148, %p149
      %p151 = scmp.ne.s32.totalorder %s139, %s140
      %p152 = scmp.eq.s32.totalorder %s25, 1
      %p153 = por %p151, %p152
      %p155 = scmp.ne.s32.totalorder %s140, %s154
      %p156 = scmp.eq.s32.totalorder %s25, 0
      %p157 = por %p155, %p156
      %s159 = sadd.s32 %s158, 1
      %p162 = scmp.eq.s32.totalorder %s19, 1
      %p163 = scmp.ne.s32.totalorder %s158, %s160
      %p164 = scmp.eq.s32.totalorder %s19, 0
      %p165 = por %p163, %p164
      %p166 = scmp.ne.s32.totalorder %s158, %s160
      %p167 = scmp.eq.s32.totalorder %s24, 1
      %p168 = por %p166, %p167
      %p169 = scmp.ne.s32.totalorder %s160, %s161
      %p170 = scmp.eq.s32.totalorder %s24, 0
      %p171 = por %p169, %p170
      %p172 = scmp.ne.s32.totalorder %s160, %s161
      %p173 = scmp.eq.s32.totalorder %s25, 1
      %p174 = por %p172, %p173
      %p176 = scmp.ne.s32.totalorder %s161, %s175
      %p177 = scmp.eq.s32.totalorder %s25, 0
      %p178 = por %p176, %p177
      %s180 = sadd.s32 %s179, 1
      %p183 = scmp.eq.s32.totalorder %s19, 1
      %p184 = scmp.ne.s32.totalorder %s179, %s181
      %p185 = scmp.eq.s32.totalorder %s19, 0
      %p186 = por %p184, %p185
      %p187 = scmp.ne.s32.totalorder %s179, %s181
      %p188 = scmp.eq.s32.totalorder %s24, 1
      %p189 = por %p187, %p188
      %p190 = scmp.ne.s32.totalorder %s181, %s182
      %p191 = scmp.eq.s32.totalorder %s24, 0
      %p192 = por %p190, %p191
      %p193 = scmp.ne.s32.totalorder %s181, %s182
      %p194 = scmp.eq.s32.totalorder %s25, 1
      %p195 = por %p193, %p194
      %p197 = scmp.ne.s32.totalorder %s182, %s196
      %p198 = scmp.eq.s32.totalorder %s25, 0
      %p199 = por %p197, %p198
      %s201 = sadd.s32 %s200, 1
      %p204 = scmp.eq.s32.totalorder %s19, 1
      %p205 = scmp.ne.s32.totalorder %s200, %s202
      %p206 = scmp.eq.s32.totalorder %s19, 0
      %p207 = por %p205, %p206
      %p208 = scmp.ne.s32.totalorder %s200, %s202
      %p209 = scmp.eq.s32.totalorder %s24, 1
      %p210 = por %p208, %p209
      %p211 = scmp.ne.s32.totalorder %s202, %s203
      %p212 = scmp.eq.s32.totalorder %s24, 0
      %p213 = por %p211, %p212
      %p214 = scmp.ne.s32.totalorder %s202, %s203
      %p215 = scmp.eq.s32.totalorder %s25, 1
      %p216 = por %p214, %p215
      %p218 = scmp.ne.s32.totalorder %s203, %s217
      %p219 = scmp.eq.s32.totalorder %s25, 0
      %p220 = por %p218, %p219
      %s222 = sadd.s32 %s221, 1
      %p225 = scmp.eq.s32.totalorder %s19, 1
      %p226 = scmp.ne.s32.totalorder %s221, %s223
      %p227 = scmp.eq.s32.totalorder %s19, 0
      %p228 = por %p226, %p227
      %p229 = scmp.ne.s32.totalorder %s221, %s223
      %p230 = scmp.eq.s32.totalorder %s24, 1
      %p231 = por %p229, %p230
      %p232 = scmp.ne.s32.totalorder %s223, %s224
      %p233 = scmp.eq.s32.totalorder %s24, 0
      %p234 = por %p232, %p233
      %p235 = scmp.ne.s32.totalorder %s223, %s224
      %p236 = scmp.eq.s32.totalorder %s25, 1
      %p237 = por %p235, %p236
      %p239 = scmp.ne.s32.totalorder %s224, %s238
      %p240 = scmp.eq.s32.totalorder %s25, 0
      %p241 = por %p239, %p240
      %s242 = ssub.s32 %s19, %s26
      %p243 = scmp.eq.s32.totalorder %s242, 0
      %s245 = sadd.s32 %s244, 1
      %s246 = scalar_select %p243, %s244, %s245
      %p249 = pneg %p243
      %p250 = scmp.eq.s32.totalorder %s19, 1
      %p251 = por %p249, %p250
      %p252 = scmp.ne.s32.totalorder %s244, %s247
      %p253 = scmp.eq.s32.totalorder %s19, 0
      %p254 = por %p252, %p253
      %p255 = scmp.ne.s32.totalorder %s244, %s247
      %p256 = scmp.eq.s32.totalorder %s24, 1
      %p257 = por %p255, %p256
      %p258 = scmp.ne.s32.totalorder %s247, %s248
      %p259 = scmp.eq.s32.totalorder %s24, 0
      %p260 = por %p258, %p259
      %p261 = scmp.ne.s32.totalorder %s247, %s248
      %p262 = scmp.eq.s32.totalorder %s25, 1
      %p263 = por %p261, %p262
      %p265 = scmp.ne.s32.totalorder %s248, %s264
      %p266 = scmp.eq.s32.totalorder %s25, 0
      %p267 = por %p265, %p266
      %p268 = scmp.le.s32.totalorder 1, %s19
      %p269 = scmp.lt.s32.totalorder %s19, 3
      %p270 = pnand %p268, %p269
      %p271 = pneg %p270
      // Predicated region
      $region9: #{tpu_custom_call.1} parent=5 // pred_check
        _
      $region10: #{tpu_custom_call.1} parent=5 // pred_check_branch
        %273 = sbr.rel (%p270) target = $region12
      $region11: #{tpu_custom_call.1} parent=5 // pred_region
        %s274 = ssub.s32 %s19, 1
        // Predicated region
        $region13: #{tpu_custom_call.1} parent=11 // pred_check
          %p275 = pneg %p66
        $region14: #{tpu_custom_call.1} parent=11 // pred_check_branch
          %277 = sbr.rel (%p275) target = $region16
        $region15: #{tpu_custom_call.1} parent=11 // pred_region
          _
        $region16: #{tpu_custom_call.1} parent=11 // pred_fallthru
          _
        // Predicated region
        $region17: #{tpu_custom_call.1} parent=11 // pred_check
          %p278 = pneg %p87
        $region18: #{tpu_custom_call.1} parent=11 // pred_check_branch
          %280 = sbr.rel (%p278) target = $region20
        $region19: #{tpu_custom_call.1} parent=11 // pred_region
          _
        $region20: #{tpu_custom_call.1} parent=11 // pred_fallthru
          _
        // Predicated region
        $region21: #{tpu_custom_call.1} parent=11 // pred_check
          %p281 = pneg %p108
        $region22: #{tpu_custom_call.1} parent=11 // pred_check_branch
          %283 = sbr.rel (%p281) target = $region24
        $region23: #{tpu_custom_call.1} parent=11 // pred_region
          _
        $region24: #{tpu_custom_call.1} parent=11 // pred_fallthru
          _
        // Predicated region
        $region25: #{tpu_custom_call.1} parent=11 // pred_check
          %p284 = pneg %p129
        $region26: #{tpu_custom_call.1} parent=11 // pred_check_branch
          %286 = sbr.rel (%p284) target = $region28
        $region27: #{tpu_custom_call.1} parent=11 // pred_region
          _
        $region28: #{tpu_custom_call.1} parent=11 // pred_fallthru
          _
        // Predicated region
        $region29: #{tpu_custom_call.1} parent=11 // pred_check
          %p287 = pneg %p150
        $region30: #{tpu_custom_call.1} parent=11 // pred_check_branch
          %289 = sbr.rel (%p287) target = $region32
        $region31: #{tpu_custom_call.1} parent=11 // pred_region
          _
        $region32: #{tpu_custom_call.1} parent=11 // pred_fallthru
          _
        // Predicated region
        $region33: #{tpu_custom_call.1} parent=11 // pred_check
          %p290 = pneg %p171
        $region34: #{tpu_custom_call.1} parent=11 // pred_check_branch
          %292 = sbr.rel (%p290) target = $region36
        $region35: #{tpu_custom_call.1} parent=11 // pred_region
          _
        $region36: #{tpu_custom_call.1} parent=11 // pred_fallthru
          _
        // Predicated region
        $region37: #{tpu_custom_call.1} parent=11 // pred_check
          %p293 = pneg %p192
        $region38: #{tpu_custom_call.1} parent=11 // pred_check_branch
          %295 = sbr.rel (%p293) target = $region40
        $region39: #{tpu_custom_call.1} parent=11 // pred_region
          _
        $region40: #{tpu_custom_call.1} parent=11 // pred_fallthru
          _
        // Predicated region
        $region41: #{tpu_custom_call.1} parent=11 // pred_check
          %p296 = pneg %p213
        $region42: #{tpu_custom_call.1} parent=11 // pred_check_branch
          %298 = sbr.rel (%p296) target = $region44
        $region43: #{tpu_custom_call.1} parent=11 // pred_region
          _
        $region44: #{tpu_custom_call.1} parent=11 // pred_fallthru
          _
        // Predicated region
        $region45: #{tpu_custom_call.1} parent=11 // pred_check
          %p299 = pneg %p234
        $region46: #{tpu_custom_call.1} parent=11 // pred_check_branch
          %301 = sbr.rel (%p299) target = $region48
        $region47: #{tpu_custom_call.1} parent=11 // pred_region
          _
        $region48: #{tpu_custom_call.1} parent=11 // pred_fallthru
          _
      $region12: #{tpu_custom_call.1} parent=5 // pred_fallthru
        _
      %p302 = scmp.lt.s32.totalorder %s19, 2
      // Predicated region
      $region49: #{tpu_custom_call.1} parent=5 // pred_check
        %p303 = pneg %p302
      $region50: #{tpu_custom_call.1} parent=5 // pred_check_branch
        %305 = sbr.rel (%p303) target = $region52
      $region51: #{tpu_custom_call.1} parent=5 // pred_region
        // Predicated region
        $region53: #{tpu_custom_call.1} parent=51 // pred_check
          %p306 = pneg %p39
        $region54: #{tpu_custom_call.1} parent=51 // pred_check_branch
          %308 = sbr.rel (%p306) target = $region56
        $region55: #{tpu_custom_call.1} parent=51 // pred_region
          %p309 = scmp.lt.s32.totalorder %s19, 1
          %s310 = scalar_select %p309, %s19, 1
          %s311 = smul.addr %s310, 66
          %s312 = smul.addr %s311, 8
          %s313 = scalar_lea.vmem %s0, %s312
        $region56: #{tpu_custom_call.1} parent=51 // pred_fallthru
          _
      $region52: #{tpu_custom_call.1} parent=5 // pred_fallthru
        _
      %p314 = scmp.le.s32.totalorder 1, %s19
      %p315 = scmp.lt.s32.totalorder %s19, 3
      %p316 = pnand %p314, %p315
      %p317 = pneg %p316
      // Predicated region
      $region57: #{tpu_custom_call.1} parent=5 // pred_check
        _
      $region58: #{tpu_custom_call.1} parent=5 // pred_check_branch
        %319 = sbr.rel (%p316) target = $region60
      $region59: #{tpu_custom_call.1} parent=5 // pred_region
        %s320 = ssub.s32 %s19, 1
        %p321 = scmp.lt.s32.totalorder %s24, 1
        %s322 = scalar_select %p321, %s24, 1
        %s323 = smul.addr %s322, 66
        %s324 = smul.addr %s323, 8
        %s325 = scalar_lea.vmem %s0, %s324
        %p326 = pneg %p45
        %p327 = pneg %p42
        %p328 = pneg %p66
        %p329 = pneg %p63
        %p330 = pneg %p87
        %p331 = pneg %p84
        %p332 = pneg %p108
        %p333 = pneg %p105
        %p334 = pneg %p129
        %p335 = pneg %p126
        %p336 = pneg %p150
        %p337 = pneg %p147
        %p338 = pneg %p171
        %p339 = pneg %p168
        %p340 = pneg %p192
        %p341 = pneg %p189
        %p342 = pneg %p213
        %p343 = pneg %p210
        %p344 = pneg %p234
        %p345 = pneg %p231
        %p346 = pneg %p260
        %p347 = pneg %p257
        %s348 = sand.u32 %s247, 1
        %s349 = scalar_lea.sflag [#allocation3], %s348
        %s350 = sand.u32 %s247, 1
        %s351 = smul.addr %s350, 256
        %s352 = scalar_lea.vmem [#allocation2], %s351
        %p353 = scmp.lt.s32.totalorder %s24, 1
        %s354 = scalar_select %p353, %s24, 1
        %s355 = smul.addr %s354, 66
        %s356 = smul.addr %s355, 8
        %s357 = scalar_lea.vmem %s0, %s356
        %v358 = vld [vmem:[%s357] sm:$0xff]
        %v359 = vld [vmem:[%s357 + $0x8] sm:$0xff]
        %v360 = vld [vmem:[%s357 + $0x18] sm:$0xff]
        %v361 = vld [vmem:[%s357 + $0x20] sm:$0xff]
        %v362 = vld [vmem:[%s357 + $0x30] sm:$0xff]
        %v363 = vld [vmem:[%s357 + $0x38] sm:$0xff]
        %v364 = vld [vmem:[%s357 + $0x48] sm:$0xff]
        %v365 = vld [vmem:[%s357 + $0x50] sm:$0xff]
        %v366 = vld [vmem:[%s357 + $0x60] sm:$0xff]
        %v367 = vld [vmem:[%s357 + $0x68] sm:$0xff]
        %v368 = vld [vmem:[%s357 + $0x78] sm:$0xff]
        %v369 = vld [vmem:[%s357 + $0x80] sm:$0xff]
        %v370 = vld [vmem:[%s357 + $0x90] sm:$0xff]
        %v371 = vld [vmem:[%s357 + $0x98] sm:$0xff]
        %v372 = vld [vmem:[%s357 + $0xa8] sm:$0xff]
        %v373 = vld [vmem:[%s357 + $0xb0] sm:$0xff]
        %v374 = vld [vmem:[%s357 + $0xc0] sm:$0xff]
        %v375 = vld [vmem:[%s357 + $0xc8] sm:$0xff]
        %v376 = vld [vmem:[%s357 + $0xd8] sm:$0xff]
        %v377 = vld [vmem:[%s357 + $0xe0] sm:$0xff]
        %v378 = vld [vmem:[%s357 + $0xf0] sm:$0xff]
        %v379 = vld [vmem:[%s357 + $0xf8] sm:$0xff]
        %v380 = vld [vmem:[%s357 + $0x108] sm:$0xff]
        %v381 = vld [vmem:[%s357 + $0x110] sm:$0xff]
        %v382 = vld [vmem:[%s357 + $0x120] sm:$0xff]
        %v383 = vld [vmem:[%s357 + $0x128] sm:$0xff]
        %v384 = vld [vmem:[%s357 + $0x138] sm:$0xff]
        %v385 = vld [vmem:[%s357 + $0x140] sm:$0xff]
        %v386 = vld [vmem:[%s357 + $0x150] sm:$0xff]
        %v387 = vld [vmem:[%s357 + $0x158] sm:$0xff]
        %v388 = vld [vmem:[%s357 + $0x168] sm:$0xff]
        %v389 = vld [vmem:[%s357 + $0x170] sm:$0xff]
        %v390 = vld [vmem:[%s1] sm:$0x1]
        %v391 = vlaneseq
        %v392 = vshrl.u32 %v391, 7
        %v393 = vsub.s32 0, %v392
        %v394 = vrot.slane %v390, %v393
        %v395 = vmul.f32 %v358, %v394
        %v396 = vmul.f32 %v359, %v394
        %v397 = vmul.f32 %v360, %v394
        %v398 = vmul.f32 %v361, %v394
        %v399 = vmul.f32 %v362, %v394
        %v400 = vmul.f32 %v363, %v394
        %v401 = vmul.f32 %v364, %v394
        %v402 = vmul.f32 %v365, %v394
        %v403 = vmul.f32 %v366, %v394
        %v404 = vmul.f32 %v367, %v394
        %v405 = vmul.f32 %v368, %v394
        %v406 = vmul.f32 %v369, %v394
        %v407 = vmul.f32 %v370, %v394
        %v408 = vmul.f32 %v371, %v394
        %v409 = vmul.f32 %v372, %v394
        %v410 = vmul.f32 %v373, %v394
        %v411 = vmul.f32 %v374, %v394
        %v412 = vmul.f32 %v375, %v394
        %v413 = vmul.f32 %v376, %v394
        %v414 = vmul.f32 %v377, %v394
        %v415 = vmul.f32 %v378, %v394
        %v416 = vmul.f32 %v379, %v394
        %v417 = vmul.f32 %v380, %v394
        %v418 = vmul.f32 %v381, %v394
        %v419 = vmul.f32 %v382, %v394
        %v420 = vmul.f32 %v383, %v394
        %v421 = vmul.f32 %v384, %v394
        %v422 = vmul.f32 %v385, %v394
        %v423 = vmul.f32 %v386, %v394
        %v424 = vmul.f32 %v387, %v394
        %v425 = vmul.f32 %v388, %v394
        %v426 = vmul.f32 %v389, %v394
        %v427 = vadd.f32 %v395, 0.0
        %v428 = vadd.f32 %v396, 0.0
        %v429 = vadd.f32 %v397, 0.0
        %v430 = vadd.f32 %v398, 0.0
        %v431 = vadd.f32 %v399, 0.0
        %v432 = vadd.f32 %v400, 0.0
        %v433 = vadd.f32 %v401, 0.0
        %v434 = vadd.f32 %v402, 0.0
        %v435 = vadd.f32 %v403, 0.0
        %v436 = vadd.f32 %v404, 0.0
        %v437 = vadd.f32 %v405, 0.0
        %v438 = vadd.f32 %v406, 0.0
        %v439 = vadd.f32 %v407, 0.0
        %v440 = vadd.f32 %v408, 0.0
        %v441 = vadd.f32 %v409, 0.0
        %v442 = vadd.f32 %v410, 0.0
        %v443 = vadd.f32 %v411, 0.0
        %v444 = vadd.f32 %v412, 0.0
        %v445 = vadd.f32 %v413, 0.0
        %v446 = vadd.f32 %v414, 0.0
        %v447 = vadd.f32 %v415, 0.0
        %v448 = vadd.f32 %v416, 0.0
        %v449 = vadd.f32 %v417, 0.0
        %v450 = vadd.f32 %v418, 0.0
        %v451 = vadd.f32 %v419, 0.0
        %v452 = vadd.f32 %v420, 0.0
        %v453 = vadd.f32 %v421, 0.0
        %v454 = vadd.f32 %v422, 0.0
        %v455 = vadd.f32 %v423, 0.0
        %v456 = vadd.f32 %v424, 0.0
        %v457 = vadd.f32 %v425, 0.0
        %v458 = vadd.f32 %v426, 0.0
        %v459 = vld [vmem:[%s357 + $0x1] sm:$0xff]
        %v460 = vld [vmem:[%s357 + $0x9] sm:$0xff]
        %v461 = vld [vmem:[%s357 + $0x19] sm:$0xff]
        %v462 = vld [vmem:[%s357 + $0x21] sm:$0xff]
        %v463 = vld [vmem:[%s357 + $0x31] sm:$0xff]
        %v464 = vld [vmem:[%s357 + $0x39] sm:$0xff]
        %v465 = vld [vmem:[%s357 + $0x49] sm:$0xff]
        %v466 = vld [vmem:[%s357 + $0x51] sm:$0xff]
        %v467 = vld [vmem:[%s357 + $0x61] sm:$0xff]
        %v468 = vld [vmem:[%s357 + $0x69] sm:$0xff]
        %v469 = vld [vmem:[%s357 + $0x79] sm:$0xff]
        %v470 = vld [vmem:[%s357 + $0x81] sm:$0xff]
        %v471 = vld [vmem:[%s357 + $0x91] sm:$0xff]
        %v472 = vld [vmem:[%s357 + $0x99] sm:$0xff]
        %v473 = vld [vmem:[%s357 + $0xa9] sm:$0xff]
        %v474 = vld [vmem:[%s357 + $0xb1] sm:$0xff]
        %v475 = vld [vmem:[%s357 + $0xc1] sm:$0xff]
        %v476 = vld [vmem:[%s357 + $0xc9] sm:$0xff]
        %v477 = vld [vmem:[%s357 + $0xd9] sm:$0xff]
        %v478 = vld [vmem:[%s357 + $0xe1] sm:$0xff]
        %v479 = vld [vmem:[%s357 + $0xf1] sm:$0xff]
        %v480 = vld [vmem:[%s357 + $0xf9] sm:$0xff]
        %v481 = vld [vmem:[%s357 + $0x109] sm:$0xff]
        %v482 = vld [vmem:[%s357 + $0x111] sm:$0xff]
        %v483 = vld [vmem:[%s357 + $0x121] sm:$0xff]
        %v484 = vld [vmem:[%s357 + $0x129] sm:$0xff]
        %v485 = vld [vmem:[%s357 + $0x139] sm:$0xff]
        %v486 = vld [vmem:[%s357 + $0x141] sm:$0xff]
        %v487 = vld [vmem:[%s357 + $0x151] sm:$0xff]
        %v488 = vld [vmem:[%s357 + $0x159] sm:$0xff]
        %v489 = vld [vmem:[%s357 + $0x169] sm:$0xff]
        %v490 = vld [vmem:[%s357 + $0x171] sm:$0xff]
        %v491 = vld [vmem:[%s1 + $0x1] sm:$0x1]
        %v492 = vlaneseq
        %v493 = vshrl.u32 %v492, 7
        %v494 = vsub.s32 0, %v493
        %v495 = vrot.slane %v491, %v494
        %v496 = vmul.f32 %v459, %v495
        %v497 = vmul.f32 %v460, %v495
        %v498 = vmul.f32 %v461, %v495
        %v499 = vmul.f32 %v462, %v495
        %v500 = vmul.f32 %v463, %v495
        %v501 = vmul.f32 %v464, %v495
        %v502 = vmul.f32 %v465, %v495
        %v503 = vmul.f32 %v466, %v495
        %v504 = vmul.f32 %v467, %v495
        %v505 = vmul.f32 %v468, %v495
        %v506 = vmul.f32 %v469, %v495
        %v507 = vmul.f32 %v470, %v495
        %v508 = vmul.f32 %v471, %v495
        %v509 = vmul.f32 %v472, %v495
        %v510 = vmul.f32 %v473, %v495
        %v511 = vmul.f32 %v474, %v495
        %v512 = vmul.f32 %v475, %v495
        %v513 = vmul.f32 %v476, %v495
        %v514 = vmul.f32 %v477, %v495
        %v515 = vmul.f32 %v478, %v495
        %v516 = vmul.f32 %v479, %v495
        %v517 = vmul.f32 %v480, %v495
        %v518 = vmul.f32 %v481, %v495
        %v519 = vmul.f32 %v482, %v495
        %v520 = vmul.f32 %v483, %v495
        %v521 = vmul.f32 %v484, %v495
        %v522 = vmul.f32 %v485, %v495
        %v523 = vmul.f32 %v486, %v495
        %v524 = vmul.f32 %v487, %v495
        %v525 = vmul.f32 %v488, %v495
        %v526 = vmul.f32 %v489, %v495
        %v527 = vmul.f32 %v490, %v495
        %v528 = vadd.f32 %v427, %v496
        %v529 = vadd.f32 %v428, %v497
        %v530 = vadd.f32 %v429, %v498
        %v531 = vadd.f32 %v430, %v499
        %v532 = vadd.f32 %v431, %v500
        %v533 = vadd.f32 %v432, %v501
        %v534 = vadd.f32 %v433, %v502
        %v535 = vadd.f32 %v434, %v503
        %v536 = vadd.f32 %v435, %v504
        %v537 = vadd.f32 %v436, %v505
        %v538 = vadd.f32 %v437, %v506
        %v539 = vadd.f32 %v438, %v507
        %v540 = vadd.f32 %v439, %v508
        %v541 = vadd.f32 %v440, %v509
        %v542 = vadd.f32 %v441, %v510
        %v543 = vadd.f32 %v442, %v511
        %v544 = vadd.f32 %v443, %v512
        %v545 = vadd.f32 %v444, %v513
        %v546 = vadd.f32 %v445, %v514
        %v547 = vadd.f32 %v446, %v515
        %v548 = vadd.f32 %v447, %v516
        %v549 = vadd.f32 %v448, %v517
        %v550 = vadd.f32 %v449, %v518
        %v551 = vadd.f32 %v450, %v519
        %v552 = vadd.f32 %v451, %v520
        %v553 = vadd.f32 %v452, %v521
        %v554 = vadd.f32 %v453, %v522
        %v555 = vadd.f32 %v454, %v523
        %v556 = vadd.f32 %v455, %v524
        %v557 = vadd.f32 %v456, %v525
        %v558 = vadd.f32 %v457, %v526
        %v559 = vadd.f32 %v458, %v527
        %v560 = vld [vmem:[%s357 + $0x2] sm:$0xff]
        %v561 = vld [vmem:[%s357 + $0xa] sm:$0xff]
        %v562 = vld [vmem:[%s357 + $0x1a] sm:$0xff]
        %v563 = vld [vmem:[%s357 + $0x22] sm:$0xff]
        %v564 = vld [vmem:[%s357 + $0x32] sm:$0xff]
        %v565 = vld [vmem:[%s357 + $0x3a] sm:$0xff]
        %v566 = vld [vmem:[%s357 + $0x4a] sm:$0xff]
        %v567 = vld [vmem:[%s357 + $0x52] sm:$0xff]
        %v568 = vld [vmem:[%s357 + $0x62] sm:$0xff]
        %v569 = vld [vmem:[%s357 + $0x6a] sm:$0xff]
        %v570 = vld [vmem:[%s357 + $0x7a] sm:$0xff]
        %v571 = vld [vmem:[%s357 + $0x82] sm:$0xff]
        %v572 = vld [vmem:[%s357 + $0x92] sm:$0xff]
        %v573 = vld [vmem:[%s357 + $0x9a] sm:$0xff]
        %v574 = vld [vmem:[%s357 + $0xaa] sm:$0xff]
        %v575 = vld [vmem:[%s357 + $0xb2] sm:$0xff]
        %v576 = vld [vmem:[%s357 + $0xc2] sm:$0xff]
        %v577 = vld [vmem:[%s357 + $0xca] sm:$0xff]
        %v578 = vld [vmem:[%s357 + $0xda] sm:$0xff]
        %v579 = vld [vmem:[%s357 + $0xe2] sm:$0xff]
        %v580 = vld [vmem:[%s357 + $0xf2] sm:$0xff]
        %v581 = vld [vmem:[%s357 + $0xfa] sm:$0xff]
        %v582 = vld [vmem:[%s357 + $0x10a] sm:$0xff]
        %v583 = vld [vmem:[%s357 + $0x112] sm:$0xff]
        %v584 = vld [vmem:[%s357 + $0x122] sm:$0xff]
        %v585 = vld [vmem:[%s357 + $0x12a] sm:$0xff]
        %v586 = vld [vmem:[%s357 + $0x13a] sm:$0xff]
        %v587 = vld [vmem:[%s357 + $0x142] sm:$0xff]
        %v588 = vld [vmem:[%s357 + $0x152] sm:$0xff]
        %v589 = vld [vmem:[%s357 + $0x15a] sm:$0xff]
        %v590 = vld [vmem:[%s357 + $0x16a] sm:$0xff]
        %v591 = vld [vmem:[%s357 + $0x172] sm:$0xff]
        %v592 = vld [vmem:[%s1 + $0x2] sm:$0x1]
        %v593 = vlaneseq
        %v594 = vshrl.u32 %v593, 7
        %v595 = vsub.s32 0, %v594
        %v596 = vrot.slane %v592, %v595
        %v597 = vmul.f32 %v560, %v596
        %v598 = vmul.f32 %v561, %v596
        %v599 = vmul.f32 %v562, %v596
        %v600 = vmul.f32 %v563, %v596
        %v601 = vmul.f32 %v564, %v596
        %v602 = vmul.f32 %v565, %v596
        %v603 = vmul.f32 %v566, %v596
        %v604 = vmul.f32 %v567, %v596
        %v605 = vmul.f32 %v568, %v596
        %v606 = vmul.f32 %v569, %v596
        %v607 = vmul.f32 %v570, %v596
        %v608 = vmul.f32 %v571, %v596
        %v609 = vmul.f32 %v572, %v596
        %v610 = vmul.f32 %v573, %v596
        %v611 = vmul.f32 %v574, %v596
        %v612 = vmul.f32 %v575, %v596
        %v613 = vmul.f32 %v576, %v596
        %v614 = vmul.f32 %v577, %v596
        %v615 = vmul.f32 %v578, %v596
        %v616 = vmul.f32 %v579, %v596
        %v617 = vmul.f32 %v580, %v596
        %v618 = vmul.f32 %v581, %v596
        %v619 = vmul.f32 %v582, %v596
        %v620 = vmul.f32 %v583, %v596
        %v621 = vmul.f32 %v584, %v596
        %v622 = vmul.f32 %v585, %v596
        %v623 = vmul.f32 %v586, %v596
        %v624 = vmul.f32 %v587, %v596
        %v625 = vmul.f32 %v588, %v596
        %v626 = vmul.f32 %v589, %v596
        %v627 = vmul.f32 %v590, %v596
        %v628 = vmul.f32 %v591, %v596
        %v629 = vadd.f32 %v528, %v597
        %v630 = vadd.f32 %v529, %v598
        %v631 = vadd.f32 %v530, %v599
        %v632 = vadd.f32 %v531, %v600
        %v633 = vadd.f32 %v532, %v601
        %v634 = vadd.f32 %v533, %v602
        %v635 = vadd.f32 %v534, %v603
        %v636 = vadd.f32 %v535, %v604
        %v637 = vadd.f32 %v536, %v605
        %v638 = vadd.f32 %v537, %v606
        %v639 = vadd.f32 %v538, %v607
        %v640 = vadd.f32 %v539, %v608
        %v641 = vadd.f32 %v540, %v609
        %v642 = vadd.f32 %v541, %v610
        %v643 = vadd.f32 %v542, %v611
        %v644 = vadd.f32 %v543, %v612
        %v645 = vadd.f32 %v544, %v613
        %v646 = vadd.f32 %v545, %v614
        %v647 = vadd.f32 %v546, %v615
        %v648 = vadd.f32 %v547, %v616
        %v649 = vadd.f32 %v548, %v617
        %v650 = vadd.f32 %v549, %v618
        %v651 = vadd.f32 %v550, %v619
        %v652 = vadd.f32 %v551, %v620
        %v653 = vadd.f32 %v552, %v621
        %v654 = vadd.f32 %v553, %v622
        %v655 = vadd.f32 %v554, %v623
        %v656 = vadd.f32 %v555, %v624
        %v657 = vadd.f32 %v556, %v625
        %v658 = vadd.f32 %v557, %v626
        %v659 = vadd.f32 %v558, %v627
        %v660 = vadd.f32 %v559, %v628
        %v661 = vld [vmem:[%s357 + $0x3] sm:$0xff]
        %v662 = vld [vmem:[%s357 + $0xb] sm:$0xff]
        %v663 = vld [vmem:[%s357 + $0x1b] sm:$0xff]
        %v664 = vld [vmem:[%s357 + $0x23] sm:$0xff]
        %v665 = vld [vmem:[%s357 + $0x33] sm:$0xff]
        %v666 = vld [vmem:[%s357 + $0x3b] sm:$0xff]
        %v667 = vld [vmem:[%s357 + $0x4b] sm:$0xff]
        %v668 = vld [vmem:[%s357 + $0x53] sm:$0xff]
        %v669 = vld [vmem:[%s357 + $0x63] sm:$0xff]
        %v670 = vld [vmem:[%s357 + $0x6b] sm:$0xff]
        %v671 = vld [vmem:[%s357 + $0x7b] sm:$0xff]
        %v672 = vld [vmem:[%s357 + $0x83] sm:$0xff]
        %v673 = vld [vmem:[%s357 + $0x93] sm:$0xff]
        %v674 = vld [vmem:[%s357 + $0x9b] sm:$0xff]
        %v675 = vld [vmem:[%s357 + $0xab] sm:$0xff]
        %v676 = vld [vmem:[%s357 + $0xb3] sm:$0xff]
        %v677 = vld [vmem:[%s357 + $0xc3] sm:$0xff]
        %v678 = vld [vmem:[%s357 + $0xcb] sm:$0xff]
        %v679 = vld [vmem:[%s357 + $0xdb] sm:$0xff]
        %v680 = vld [vmem:[%s357 + $0xe3] sm:$0xff]
        %v681 = vld [vmem:[%s357 + $0xf3] sm:$0xff]
        %v682 = vld [vmem:[%s357 + $0xfb] sm:$0xff]
        %v683 = vld [vmem:[%s357 + $0x10b] sm:$0xff]
        %v684 = vld [vmem:[%s357 + $0x113] sm:$0xff]
        %v685 = vld [vmem:[%s357 + $0x123] sm:$0xff]
        %v686 = vld [vmem:[%s357 + $0x12b] sm:$0xff]
        %v687 = vld [vmem:[%s357 + $0x13b] sm:$0xff]
        %v688 = vld [vmem:[%s357 + $0x143] sm:$0xff]
        %v689 = vld [vmem:[%s357 + $0x153] sm:$0xff]
        %v690 = vld [vmem:[%s357 + $0x15b] sm:$0xff]
        %v691 = vld [vmem:[%s357 + $0x16b] sm:$0xff]
        %v692 = vld [vmem:[%s357 + $0x173] sm:$0xff]
        %v693 = vld [vmem:[%s1 + $0x3] sm:$0x1]
        %v694 = vlaneseq
        %v695 = vshrl.u32 %v694, 7
        %v696 = vsub.s32 0, %v695
        %v697 = vrot.slane %v693, %v696
        %v698 = vmul.f32 %v661, %v697
        %v699 = vmul.f32 %v662, %v697
        %v700 = vmul.f32 %v663, %v697
        %v701 = vmul.f32 %v664, %v697
        %v702 = vmul.f32 %v665, %v697
        %v703 = vmul.f32 %v666, %v697
        %v704 = vmul.f32 %v667, %v697
        %v705 = vmul.f32 %v668, %v697
        %v706 = vmul.f32 %v669, %v697
        %v707 = vmul.f32 %v670, %v697
        %v708 = vmul.f32 %v671, %v697
        %v709 = vmul.f32 %v672, %v697
        %v710 = vmul.f32 %v673, %v697
        %v711 = vmul.f32 %v674, %v697
        %v712 = vmul.f32 %v675, %v697
        %v713 = vmul.f32 %v676, %v697
        %v714 = vmul.f32 %v677, %v697
        %v715 = vmul.f32 %v678, %v697
        %v716 = vmul.f32 %v679, %v697
        %v717 = vmul.f32 %v680, %v697
        %v718 = vmul.f32 %v681, %v697
        %v719 = vmul.f32 %v682, %v697
        %v720 = vmul.f32 %v683, %v697
        %v721 = vmul.f32 %v684, %v697
        %v722 = vmul.f32 %v685, %v697
        %v723 = vmul.f32 %v686, %v697
        %v724 = vmul.f32 %v687, %v697
        %v725 = vmul.f32 %v688, %v697
        %v726 = vmul.f32 %v689, %v697
        %v727 = vmul.f32 %v690, %v697
        %v728 = vmul.f32 %v691, %v697
        %v729 = vmul.f32 %v692, %v697
        %v730 = vadd.f32 %v629, %v698
        %v731 = vadd.f32 %v630, %v699
        %v732 = vadd.f32 %v631, %v700
        %v733 = vadd.f32 %v632, %v701
        %v734 = vadd.f32 %v633, %v702
        %v735 = vadd.f32 %v634, %v703
        %v736 = vadd.f32 %v635, %v704
        %v737 = vadd.f32 %v636, %v705
        %v738 = vadd.f32 %v637, %v706
        %v739 = vadd.f32 %v638, %v707
        %v740 = vadd.f32 %v639, %v708
        %v741 = vadd.f32 %v640, %v709
        %v742 = vadd.f32 %v641, %v710
        %v743 = vadd.f32 %v642, %v711
        %v744 = vadd.f32 %v643, %v712
        %v745 = vadd.f32 %v644, %v713
        %v746 = vadd.f32 %v645, %v714
        %v747 = vadd.f32 %v646, %v715
        %v748 = vadd.f32 %v647, %v716
        %v749 = vadd.f32 %v648, %v717
        %v750 = vadd.f32 %v649, %v718
        %v751 = vadd.f32 %v650, %v719
        %v752 = vadd.f32 %v651, %v720
        %v753 = vadd.f32 %v652, %v721
        %v754 = vadd.f32 %v653, %v722
        %v755 = vadd.f32 %v654, %v723
        %v756 = vadd.f32 %v655, %v724
        %v757 = vadd.f32 %v656, %v725
        %v758 = vadd.f32 %v657, %v726
        %v759 = vadd.f32 %v658, %v727
        %v760 = vadd.f32 %v659, %v728
        %v761 = vadd.f32 %v660, %v729
        %v762 = vld [vmem:[%s357 + $0x4] sm:$0xff]
        %v763 = vld [vmem:[%s357 + $0xc] sm:$0xff]
        %v764 = vld [vmem:[%s357 + $0x1c] sm:$0xff]
        %v765 = vld [vmem:[%s357 + $0x24] sm:$0xff]
        %v766 = vld [vmem:[%s357 + $0x34] sm:$0xff]
        %v767 = vld [vmem:[%s357 + $0x3c] sm:$0xff]
        %v768 = vld [vmem:[%s357 + $0x4c] sm:$0xff]
        %v769 = vld [vmem:[%s357 + $0x54] sm:$0xff]
        %v770 = vld [vmem:[%s357 + $0x64] sm:$0xff]
        %v771 = vld [vmem:[%s357 + $0x6c] sm:$0xff]
        %v772 = vld [vmem:[%s357 + $0x7c] sm:$0xff]
        %v773 = vld [vmem:[%s357 + $0x84] sm:$0xff]
        %v774 = vld [vmem:[%s357 + $0x94] sm:$0xff]
        %v775 = vld [vmem:[%s357 + $0x9c] sm:$0xff]
        %v776 = vld [vmem:[%s357 + $0xac] sm:$0xff]
        %v777 = vld [vmem:[%s357 + $0xb4] sm:$0xff]
        %v778 = vld [vmem:[%s357 + $0xc4] sm:$0xff]
        %v779 = vld [vmem:[%s357 + $0xcc] sm:$0xff]
        %v780 = vld [vmem:[%s357 + $0xdc] sm:$0xff]
        %v781 = vld [vmem:[%s357 + $0xe4] sm:$0xff]
        %v782 = vld [vmem:[%s357 + $0xf4] sm:$0xff]
        %v783 = vld [vmem:[%s357 + $0xfc] sm:$0xff]
        %v784 = vld [vmem:[%s357 + $0x10c] sm:$0xff]
        %v785 = vld [vmem:[%s357 + $0x114] sm:$0xff]
        %v786 = vld [vmem:[%s357 + $0x124] sm:$0xff]
        %v787 = vld [vmem:[%s357 + $0x12c] sm:$0xff]
        %v788 = vld [vmem:[%s357 + $0x13c] sm:$0xff]
        %v789 = vld [vmem:[%s357 + $0x144] sm:$0xff]
        %v790 = vld [vmem:[%s357 + $0x154] sm:$0xff]
        %v791 = vld [vmem:[%s357 + $0x15c] sm:$0xff]
        %v792 = vld [vmem:[%s357 + $0x16c] sm:$0xff]
        %v793 = vld [vmem:[%s357 + $0x174] sm:$0xff]
        %v794 = vld [vmem:[%s1 + $0x4] sm:$0x1]
        %v795 = vlaneseq
        %v796 = vshrl.u32 %v795, 7
        %v797 = vsub.s32 0, %v796
        %v798 = vrot.slane %v794, %v797
        %v799 = vmul.f32 %v762, %v798
        %v800 = vmul.f32 %v763, %v798
        %v801 = vmul.f32 %v764, %v798
        %v802 = vmul.f32 %v765, %v798
        %v803 = vmul.f32 %v766, %v798
        %v804 = vmul.f32 %v767, %v798
        %v805 = vmul.f32 %v768, %v798
        %v806 = vmul.f32 %v769, %v798
        %v807 = vmul.f32 %v770, %v798
        %v808 = vmul.f32 %v771, %v798
        %v809 = vmul.f32 %v772, %v798
        %v810 = vmul.f32 %v773, %v798
        %v811 = vmul.f32 %v774, %v798
        %v812 = vmul.f32 %v775, %v798
        %v813 = vmul.f32 %v776, %v798
        %v814 = vmul.f32 %v777, %v798
        %v815 = vmul.f32 %v778, %v798
        %v816 = vmul.f32 %v779, %v798
        %v817 = vmul.f32 %v780, %v798
        %v818 = vmul.f32 %v781, %v798
        %v819 = vmul.f32 %v782, %v798
        %v820 = vmul.f32 %v783, %v798
        %v821 = vmul.f32 %v784, %v798
        %v822 = vmul.f32 %v785, %v798
        %v823 = vmul.f32 %v786, %v798
        %v824 = vmul.f32 %v787, %v798
        %v825 = vmul.f32 %v788, %v798
        %v826 = vmul.f32 %v789, %v798
        %v827 = vmul.f32 %v790, %v798
        %v828 = vmul.f32 %v791, %v798
        %v829 = vmul.f32 %v792, %v798
        %v830 = vmul.f32 %v793, %v798
        %v831 = vadd.f32 %v730, %v799
        %v832 = vadd.f32 %v731, %v800
        %v833 = vadd.f32 %v732, %v801
        %v834 = vadd.f32 %v733, %v802
        %v835 = vadd.f32 %v734, %v803
        %v836 = vadd.f32 %v735, %v804
        %v837 = vadd.f32 %v736, %v805
        %v838 = vadd.f32 %v737, %v806
        %v839 = vadd.f32 %v738, %v807
        %v840 = vadd.f32 %v739, %v808
        %v841 = vadd.f32 %v740, %v809
        %v842 = vadd.f32 %v741, %v810
        %v843 = vadd.f32 %v742, %v811
        %v844 = vadd.f32 %v743, %v812
        %v845 = vadd.f32 %v744, %v813
        %v846 = vadd.f32 %v745, %v814
        %v847 = vadd.f32 %v746, %v815
        %v848 = vadd.f32 %v747, %v816
        %v849 = vadd.f32 %v748, %v817
        %v850 = vadd.f32 %v749, %v818
        %v851 = vadd.f32 %v750, %v819
        %v852 = vadd.f32 %v751, %v820
        %v853 = vadd.f32 %v752, %v821
        %v854 = vadd.f32 %v753, %v822
        %v855 = vadd.f32 %v754, %v823
        %v856 = vadd.f32 %v755, %v824
        %v857 = vadd.f32 %v756, %v825
        %v858 = vadd.f32 %v757, %v826
        %v859 = vadd.f32 %v758, %v827
        %v860 = vadd.f32 %v759, %v828
        %v861 = vadd.f32 %v760, %v829
        %v862 = vadd.f32 %v761, %v830
        %v863 = vld [vmem:[%s357 + $0x5] sm:$0xff]
        %v864 = vld [vmem:[%s357 + $0xd] sm:$0xff]
        %v865 = vld [vmem:[%s357 + $0x1d] sm:$0xff]
        %v866 = vld [vmem:[%s357 + $0x25] sm:$0xff]
        %v867 = vld [vmem:[%s357 + $0x35] sm:$0xff]
        %v868 = vld [vmem:[%s357 + $0x3d] sm:$0xff]
        %v869 = vld [vmem:[%s357 + $0x4d] sm:$0xff]
        %v870 = vld [vmem:[%s357 + $0x55] sm:$0xff]
        %v871 = vld [vmem:[%s357 + $0x65] sm:$0xff]
        %v872 = vld [vmem:[%s357 + $0x6d] sm:$0xff]
        %v873 = vld [vmem:[%s357 + $0x7d] sm:$0xff]
        %v874 = vld [vmem:[%s357 + $0x85] sm:$0xff]
        %v875 = vld [vmem:[%s357 + $0x95] sm:$0xff]
        %v876 = vld [vmem:[%s357 + $0x9d] sm:$0xff]
        %v877 = vld [vmem:[%s357 + $0xad] sm:$0xff]
        %v878 = vld [vmem:[%s357 + $0xb5] sm:$0xff]
        %v879 = vld [vmem:[%s357 + $0xc5] sm:$0xff]
        %v880 = vld [vmem:[%s357 + $0xcd] sm:$0xff]
        %v881 = vld [vmem:[%s357 + $0xdd] sm:$0xff]
        %v882 = vld [vmem:[%s357 + $0xe5] sm:$0xff]
        %v883 = vld [vmem:[%s357 + $0xf5] sm:$0xff]
        %v884 = vld [vmem:[%s357 + $0xfd] sm:$0xff]
        %v885 = vld [vmem:[%s357 + $0x10d] sm:$0xff]
        %v886 = vld [vmem:[%s357 + $0x115] sm:$0xff]
        %v887 = vld [vmem:[%s357 + $0x125] sm:$0xff]
        %v888 = vld [vmem:[%s357 + $0x12d] sm:$0xff]
        %v889 = vld [vmem:[%s357 + $0x13d] sm:$0xff]
        %v890 = vld [vmem:[%s357 + $0x145] sm:$0xff]
        %v891 = vld [vmem:[%s357 + $0x155] sm:$0xff]
        %v892 = vld [vmem:[%s357 + $0x15d] sm:$0xff]
        %v893 = vld [vmem:[%s357 + $0x16d] sm:$0xff]
        %v894 = vld [vmem:[%s357 + $0x175] sm:$0xff]
        %v895 = vld [vmem:[%s1 + $0x5] sm:$0x1]
        %v896 = vlaneseq
        %v897 = vshrl.u32 %v896, 7
        %v898 = vsub.s32 0, %v897
        %v899 = vrot.slane %v895, %v898
        %v900 = vmul.f32 %v863, %v899
        %v901 = vmul.f32 %v864, %v899
        %v902 = vmul.f32 %v865, %v899
        %v903 = vmul.f32 %v866, %v899
        %v904 = vmul.f32 %v867, %v899
        %v905 = vmul.f32 %v868, %v899
        %v906 = vmul.f32 %v869, %v899
        %v907 = vmul.f32 %v870, %v899
        %v908 = vmul.f32 %v871, %v899
        %v909 = vmul.f32 %v872, %v899
        %v910 = vmul.f32 %v873, %v899
        %v911 = vmul.f32 %v874, %v899
        %v912 = vmul.f32 %v875, %v899
        %v913 = vmul.f32 %v876, %v899
        %v914 = vmul.f32 %v877, %v899
        %v915 = vmul.f32 %v878, %v899
        %v916 = vmul.f32 %v879, %v899
        %v917 = vmul.f32 %v880, %v899
        %v918 = vmul.f32 %v881, %v899
        %v919 = vmul.f32 %v882, %v899
        %v920 = vmul.f32 %v883, %v899
        %v921 = vmul.f32 %v884, %v899
        %v922 = vmul.f32 %v885, %v899
        %v923 = vmul.f32 %v886, %v899
        %v924 = vmul.f32 %v887, %v899
        %v925 = vmul.f32 %v888, %v899
        %v926 = vmul.f32 %v889, %v899
        %v927 = vmul.f32 %v890, %v899
        %v928 = vmul.f32 %v891, %v899
        %v929 = vmul.f32 %v892, %v899
        %v930 = vmul.f32 %v893, %v899
        %v931 = vmul.f32 %v894, %v899
        %v932 = vadd.f32 %v831, %v900
        %v933 = vadd.f32 %v832, %v901
        %v934 = vadd.f32 %v833, %v902
        %v935 = vadd.f32 %v834, %v903
        %v936 = vadd.f32 %v835, %v904
        %v937 = vadd.f32 %v836, %v905
        %v938 = vadd.f32 %v837, %v906
        %v939 = vadd.f32 %v838, %v907
        %v940 = vadd.f32 %v839, %v908
        %v941 = vadd.f32 %v840, %v909
        %v942 = vadd.f32 %v841, %v910
        %v943 = vadd.f32 %v842, %v911
        %v944 = vadd.f32 %v843, %v912
        %v945 = vadd.f32 %v844, %v913
        %v946 = vadd.f32 %v845, %v914
        %v947 = vadd.f32 %v846, %v915
        %v948 = vadd.f32 %v847, %v916
        %v949 = vadd.f32 %v848, %v917
        %v950 = vadd.f32 %v849, %v918
        %v951 = vadd.f32 %v850, %v919
        %v952 = vadd.f32 %v851, %v920
        %v953 = vadd.f32 %v852, %v921
        %v954 = vadd.f32 %v853, %v922
        %v955 = vadd.f32 %v854, %v923
        %v956 = vadd.f32 %v855, %v924
        %v957 = vadd.f32 %v856, %v925
        %v958 = vadd.f32 %v857, %v926
        %v959 = vadd.f32 %v858, %v927
        %v960 = vadd.f32 %v859, %v928
        %v961 = vadd.f32 %v860, %v929
        %v962 = vadd.f32 %v861, %v930
        %v963 = vadd.f32 %v862, %v931
        %v964 = vld [vmem:[%s357 + $0x6] sm:$0xff]
        %v965 = vld [vmem:[%s357 + $0xe] sm:$0xff]
        %v966 = vld [vmem:[%s357 + $0x1e] sm:$0xff]
        %v967 = vld [vmem:[%s357 + $0x26] sm:$0xff]
        %v968 = vld [vmem:[%s357 + $0x36] sm:$0xff]
        %v969 = vld [vmem:[%s357 + $0x3e] sm:$0xff]
        %v970 = vld [vmem:[%s357 + $0x4e] sm:$0xff]
        %v971 = vld [vmem:[%s357 + $0x56] sm:$0xff]
        %v972 = vld [vmem:[%s357 + $0x66] sm:$0xff]
        %v973 = vld [vmem:[%s357 + $0x6e] sm:$0xff]
        %v974 = vld [vmem:[%s357 + $0x7e] sm:$0xff]
        %v975 = vld [vmem:[%s357 + $0x86] sm:$0xff]
        %v976 = vld [vmem:[%s357 + $0x96] sm:$0xff]
        %v977 = vld [vmem:[%s357 + $0x9e] sm:$0xff]
        %v978 = vld [vmem:[%s357 + $0xae] sm:$0xff]
        %v979 = vld [vmem:[%s357 + $0xb6] sm:$0xff]
        %v980 = vld [vmem:[%s357 + $0xc6] sm:$0xff]
        %v981 = vld [vmem:[%s357 + $0xce] sm:$0xff]
        %v982 = vld [vmem:[%s357 + $0xde] sm:$0xff]
        %v983 = vld [vmem:[%s357 + $0xe6] sm:$0xff]
        %v984 = vld [vmem:[%s357 + $0xf6] sm:$0xff]
        %v985 = vld [vmem:[%s357 + $0xfe] sm:$0xff]
        %v986 = vld [vmem:[%s357 + $0x10e] sm:$0xff]
        %v987 = vld [vmem:[%s357 + $0x116] sm:$0xff]
        %v988 = vld [vmem:[%s357 + $0x126] sm:$0xff]
        %v989 = vld [vmem:[%s357 + $0x12e] sm:$0xff]
        %v990 = vld [vmem:[%s357 + $0x13e] sm:$0xff]
        %v991 = vld [vmem:[%s357 + $0x146] sm:$0xff]
        %v992 = vld [vmem:[%s357 + $0x156] sm:$0xff]
        %v993 = vld [vmem:[%s357 + $0x15e] sm:$0xff]
        %v994 = vld [vmem:[%s357 + $0x16e] sm:$0xff]
        %v995 = vld [vmem:[%s357 + $0x176] sm:$0xff]
        %v996 = vld [vmem:[%s1 + $0x6] sm:$0x1]
        %v997 = vlaneseq
        %v998 = vshrl.u32 %v997, 7
        %v999 = vsub.s32 0, %v998
        %v1000 = vrot.slane %v996, %v999
        %v1001 = vmul.f32 %v964, %v1000
        %v1002 = vmul.f32 %v965, %v1000
        %v1003 = vmul.f32 %v966, %v1000
        %v1004 = vmul.f32 %v967, %v1000
        %v1005 = vmul.f32 %v968, %v1000
        %v1006 = vmul.f32 %v969, %v1000
        %v1007 = vmul.f32 %v970, %v1000
        %v1008 = vmul.f32 %v971, %v1000
        %v1009 = vmul.f32 %v972, %v1000
        %v1010 = vmul.f32 %v973, %v1000
        %v1011 = vmul.f32 %v974, %v1000
        %v1012 = vmul.f32 %v975, %v1000
        %v1013 = vmul.f32 %v976, %v1000
        %v1014 = vmul.f32 %v977, %v1000
        %v1015 = vmul.f32 %v978, %v1000
        %v1016 = vmul.f32 %v979, %v1000
        %v1017 = vmul.f32 %v980, %v1000
        %v1018 = vmul.f32 %v981, %v1000
        %v1019 = vmul.f32 %v982, %v1000
        %v1020 = vmul.f32 %v983, %v1000
        %v1021 = vmul.f32 %v984, %v1000
        %v1022 = vmul.f32 %v985, %v1000
        %v1023 = vmul.f32 %v986, %v1000
        %v1024 = vmul.f32 %v987, %v1000
        %v1025 = vmul.f32 %v988, %v1000
        %v1026 = vmul.f32 %v989, %v1000
        %v1027 = vmul.f32 %v990, %v1000
        %v1028 = vmul.f32 %v991, %v1000
        %v1029 = vmul.f32 %v992, %v1000
        %v1030 = vmul.f32 %v993, %v1000
        %v1031 = vmul.f32 %v994, %v1000
        %v1032 = vmul.f32 %v995, %v1000
        %v1033 = vadd.f32 %v932, %v1001
        %v1034 = vadd.f32 %v933, %v1002
        %v1035 = vadd.f32 %v934, %v1003
        %v1036 = vadd.f32 %v935, %v1004
        %v1037 = vadd.f32 %v936, %v1005
        %v1038 = vadd.f32 %v937, %v1006
        %v1039 = vadd.f32 %v938, %v1007
        %v1040 = vadd.f32 %v939, %v1008
        %v1041 = vadd.f32 %v940, %v1009
        %v1042 = vadd.f32 %v941, %v1010
        %v1043 = vadd.f32 %v942, %v1011
        %v1044 = vadd.f32 %v943, %v1012
        %v1045 = vadd.f32 %v944, %v1013
        %v1046 = vadd.f32 %v945, %v1014
        %v1047 = vadd.f32 %v946, %v1015
        %v1048 = vadd.f32 %v947, %v1016
        %v1049 = vadd.f32 %v948, %v1017
        %v1050 = vadd.f32 %v949, %v1018
        %v1051 = vadd.f32 %v950, %v1019
        %v1052 = vadd.f32 %v951, %v1020
        %v1053 = vadd.f32 %v952, %v1021
        %v1054 = vadd.f32 %v953, %v1022
        %v1055 = vadd.f32 %v954, %v1023
        %v1056 = vadd.f32 %v955, %v1024
        %v1057 = vadd.f32 %v956, %v1025
        %v1058 = vadd.f32 %v957, %v1026
        %v1059 = vadd.f32 %v958, %v1027
        %v1060 = vadd.f32 %v959, %v1028
        %v1061 = vadd.f32 %v960, %v1029
        %v1062 = vadd.f32 %v961, %v1030
        %v1063 = vadd.f32 %v962, %v1031
        %v1064 = vadd.f32 %v963, %v1032
        %s1065 = scalar_lea.vmem %s357, 24
        %v1066 = vld [vmem:[%s1065] sm:$0xff]
        %v1067 = vld [vmem:[%s1065 + $0x8] sm:$0xff]
        %v1068 = vld [vmem:[%s1065 + $0x18] sm:$0xff]
        %v1069 = vld [vmem:[%s1065 + $0x20] sm:$0xff]
        %v1070 = vld [vmem:[%s1065 + $0x30] sm:$0xff]
        %v1071 = vld [vmem:[%s1065 + $0x38] sm:$0xff]
        %v1072 = vld [vmem:[%s1065 + $0x48] sm:$0xff]
        %v1073 = vld [vmem:[%s1065 + $0x50] sm:$0xff]
        %v1074 = vld [vmem:[%s1065 + $0x60] sm:$0xff]
        %v1075 = vld [vmem:[%s1065 + $0x68] sm:$0xff]
        %v1076 = vld [vmem:[%s1065 + $0x78] sm:$0xff]
        %v1077 = vld [vmem:[%s1065 + $0x80] sm:$0xff]
        %v1078 = vld [vmem:[%s1065 + $0x90] sm:$0xff]
        %v1079 = vld [vmem:[%s1065 + $0x98] sm:$0xff]
        %v1080 = vld [vmem:[%s1065 + $0xa8] sm:$0xff]
        %v1081 = vld [vmem:[%s1065 + $0xb0] sm:$0xff]
        %v1082 = vld [vmem:[%s1065 + $0xc0] sm:$0xff]
        %v1083 = vld [vmem:[%s1065 + $0xc8] sm:$0xff]
        %v1084 = vld [vmem:[%s1065 + $0xd8] sm:$0xff]
        %v1085 = vld [vmem:[%s1065 + $0xe0] sm:$0xff]
        %v1086 = vld [vmem:[%s1065 + $0xf0] sm:$0xff]
        %v1087 = vld [vmem:[%s1065 + $0xf8] sm:$0xff]
        %v1088 = vld [vmem:[%s1065 + $0x108] sm:$0xff]
        %v1089 = vld [vmem:[%s1065 + $0x110] sm:$0xff]
        %v1090 = vld [vmem:[%s1065 + $0x120] sm:$0xff]
        %v1091 = vld [vmem:[%s1065 + $0x128] sm:$0xff]
        %v1092 = vld [vmem:[%s1065 + $0x138] sm:$0xff]
        %v1093 = vld [vmem:[%s1065 + $0x140] sm:$0xff]
        %v1094 = vld [vmem:[%s1065 + $0x150] sm:$0xff]
        %v1095 = vld [vmem:[%s1065 + $0x158] sm:$0xff]
        %v1096 = vld [vmem:[%s1065 + $0x168] sm:$0xff]
        %v1097 = vld [vmem:[%s1065 + $0x170] sm:$0xff]
        %v1098 = vld [vmem:[%s1 + $0x7] sm:$0x1]
        %v1099 = vlaneseq
        %v1100 = vshrl.u32 %v1099, 7
        %v1101 = vsub.s32 0, %v1100
        %v1102 = vrot.slane %v1098, %v1101
        %v1103 = vmul.f32 %v1066, %v1102
        %v1104 = vmul.f32 %v1067, %v1102
        %v1105 = vmul.f32 %v1068, %v1102
        %v1106 = vmul.f32 %v1069, %v1102
        %v1107 = vmul.f32 %v1070, %v1102
        %v1108 = vmul.f32 %v1071, %v1102
        %v1109 = vmul.f32 %v1072, %v1102
        %v1110 = vmul.f32 %v1073, %v1102
        %v1111 = vmul.f32 %v1074, %v1102
        %v1112 = vmul.f32 %v1075, %v1102
        %v1113 = vmul.f32 %v1076, %v1102
        %v1114 = vmul.f32 %v1077, %v1102
        %v1115 = vmul.f32 %v1078, %v1102
        %v1116 = vmul.f32 %v1079, %v1102
        %v1117 = vmul.f32 %v1080, %v1102
        %v1118 = vmul.f32 %v1081, %v1102
        %v1119 = vmul.f32 %v1082, %v1102
        %v1120 = vmul.f32 %v1083, %v1102
        %v1121 = vmul.f32 %v1084, %v1102
        %v1122 = vmul.f32 %v1085, %v1102
        %v1123 = vmul.f32 %v1086, %v1102
        %v1124 = vmul.f32 %v1087, %v1102
        %v1125 = vmul.f32 %v1088, %v1102
        %v1126 = vmul.f32 %v1089, %v1102
        %v1127 = vmul.f32 %v1090, %v1102
        %v1128 = vmul.f32 %v1091, %v1102
        %v1129 = vmul.f32 %v1092, %v1102
        %v1130 = vmul.f32 %v1093, %v1102
        %v1131 = vmul.f32 %v1094, %v1102
        %v1132 = vmul.f32 %v1095, %v1102
        %v1133 = vmul.f32 %v1096, %v1102
        %v1134 = vmul.f32 %v1097, %v1102
        %v1135 = vadd.f32 %v1033, %v1103
        %v1136 = vadd.f32 %v1034, %v1104
        %v1137 = vadd.f32 %v1035, %v1105
        %v1138 = vadd.f32 %v1036, %v1106
        %v1139 = vadd.f32 %v1037, %v1107
        %v1140 = vadd.f32 %v1038, %v1108
        %v1141 = vadd.f32 %v1039, %v1109
        %v1142 = vadd.f32 %v1040, %v1110
        %v1143 = vadd.f32 %v1041, %v1111
        %v1144 = vadd.f32 %v1042, %v1112
        %v1145 = vadd.f32 %v1043, %v1113
        %v1146 = vadd.f32 %v1044, %v1114
        %v1147 = vadd.f32 %v1045, %v1115
        %v1148 = vadd.f32 %v1046, %v1116
        %v1149 = vadd.f32 %v1047, %v1117
        %v1150 = vadd.f32 %v1048, %v1118
        %v1151 = vadd.f32 %v1049, %v1119
        %v1152 = vadd.f32 %v1050, %v1120
        %v1153 = vadd.f32 %v1051, %v1121
        %v1154 = vadd.f32 %v1052, %v1122
        %v1155 = vadd.f32 %v1053, %v1123
        %v1156 = vadd.f32 %v1054, %v1124
        %v1157 = vadd.f32 %v1055, %v1125
        %v1158 = vadd.f32 %v1056, %v1126
        %v1159 = vadd.f32 %v1057, %v1127
        %v1160 = vadd.f32 %v1058, %v1128
        %v1161 = vadd.f32 %v1059, %v1129
        %v1162 = vadd.f32 %v1060, %v1130
        %v1163 = vadd.f32 %v1061, %v1131
        %v1164 = vadd.f32 %v1062, %v1132
        %v1165 = vadd.f32 %v1063, %v1133
        %v1166 = vadd.f32 %v1064, %v1134
        %v1167 = vld [vmem:[%s1065 + $0x1] sm:$0xff]
        %v1168 = vld [vmem:[%s1065 + $0x9] sm:$0xff]
        %v1169 = vld [vmem:[%s1065 + $0x19] sm:$0xff]
        %v1170 = vld [vmem:[%s1065 + $0x21] sm:$0xff]
        %v1171 = vld [vmem:[%s1065 + $0x31] sm:$0xff]
        %v1172 = vld [vmem:[%s1065 + $0x39] sm:$0xff]
        %v1173 = vld [vmem:[%s1065 + $0x49] sm:$0xff]
        %v1174 = vld [vmem:[%s1065 + $0x51] sm:$0xff]
        %v1175 = vld [vmem:[%s1065 + $0x61] sm:$0xff]
        %v1176 = vld [vmem:[%s1065 + $0x69] sm:$0xff]
        %v1177 = vld [vmem:[%s1065 + $0x79] sm:$0xff]
        %v1178 = vld [vmem:[%s1065 + $0x81] sm:$0xff]
        %v1179 = vld [vmem:[%s1065 + $0x91] sm:$0xff]
        %v1180 = vld [vmem:[%s1065 + $0x99] sm:$0xff]
        %v1181 = vld [vmem:[%s1065 + $0xa9] sm:$0xff]
        %v1182 = vld [vmem:[%s1065 + $0xb1] sm:$0xff]
        %v1183 = vld [vmem:[%s1065 + $0xc1] sm:$0xff]
        %v1184 = vld [vmem:[%s1065 + $0xc9] sm:$0xff]
        %v1185 = vld [vmem:[%s1065 + $0xd9] sm:$0xff]
        %v1186 = vld [vmem:[%s1065 + $0xe1] sm:$0xff]
        %v1187 = vld [vmem:[%s1065 + $0xf1] sm:$0xff]
        %v1188 = vld [vmem:[%s1065 + $0xf9] sm:$0xff]
        %v1189 = vld [vmem:[%s1065 + $0x109] sm:$0xff]
        %v1190 = vld [vmem:[%s1065 + $0x111] sm:$0xff]
        %v1191 = vld [vmem:[%s1065 + $0x121] sm:$0xff]
        %v1192 = vld [vmem:[%s1065 + $0x129] sm:$0xff]
        %v1193 = vld [vmem:[%s1065 + $0x139] sm:$0xff]
        %v1194 = vld [vmem:[%s1065 + $0x141] sm:$0xff]
        %v1195 = vld [vmem:[%s1065 + $0x151] sm:$0xff]
        %v1196 = vld [vmem:[%s1065 + $0x159] sm:$0xff]
        %v1197 = vld [vmem:[%s1065 + $0x169] sm:$0xff]
        %v1198 = vld [vmem:[%s1065 + $0x171] sm:$0xff]
        %v1199 = vld [vmem:[%s1 + $0x8] sm:$0x1]
        %v1200 = vlaneseq
        %v1201 = vshrl.u32 %v1200, 7
        %v1202 = vsub.s32 0, %v1201
        %v1203 = vrot.slane %v1199, %v1202
        %v1204 = vmul.f32 %v1167, %v1203
        %v1205 = vmul.f32 %v1168, %v1203
        %v1206 = vmul.f32 %v1169, %v1203
        %v1207 = vmul.f32 %v1170, %v1203
        %v1208 = vmul.f32 %v1171, %v1203
        %v1209 = vmul.f32 %v1172, %v1203
        %v1210 = vmul.f32 %v1173, %v1203
        %v1211 = vmul.f32 %v1174, %v1203
        %v1212 = vmul.f32 %v1175, %v1203
        %v1213 = vmul.f32 %v1176, %v1203
        %v1214 = vmul.f32 %v1177, %v1203
        %v1215 = vmul.f32 %v1178, %v1203
        %v1216 = vmul.f32 %v1179, %v1203
        %v1217 = vmul.f32 %v1180, %v1203
        %v1218 = vmul.f32 %v1181, %v1203
        %v1219 = vmul.f32 %v1182, %v1203
        %v1220 = vmul.f32 %v1183, %v1203
        %v1221 = vmul.f32 %v1184, %v1203
        %v1222 = vmul.f32 %v1185, %v1203
        %v1223 = vmul.f32 %v1186, %v1203
        %v1224 = vmul.f32 %v1187, %v1203
        %v1225 = vmul.f32 %v1188, %v1203
        %v1226 = vmul.f32 %v1189, %v1203
        %v1227 = vmul.f32 %v1190, %v1203
        %v1228 = vmul.f32 %v1191, %v1203
        %v1229 = vmul.f32 %v1192, %v1203
        %v1230 = vmul.f32 %v1193, %v1203
        %v1231 = vmul.f32 %v1194, %v1203
        %v1232 = vmul.f32 %v1195, %v1203
        %v1233 = vmul.f32 %v1196, %v1203
        %v1234 = vmul.f32 %v1197, %v1203
        %v1235 = vmul.f32 %v1198, %v1203
        %v1236 = vadd.f32 %v1135, %v1204
        %v1237 = vadd.f32 %v1136, %v1205
        %v1238 = vadd.f32 %v1137, %v1206
        %v1239 = vadd.f32 %v1138, %v1207
        %v1240 = vadd.f32 %v1139, %v1208
        %v1241 = vadd.f32 %v1140, %v1209
        %v1242 = vadd.f32 %v1141, %v1210
        %v1243 = vadd.f32 %v1142, %v1211
        %v1244 = vadd.f32 %v1143, %v1212
        %v1245 = vadd.f32 %v1144, %v1213
        %v1246 = vadd.f32 %v1145, %v1214
        %v1247 = vadd.f32 %v1146, %v1215
        %v1248 = vadd.f32 %v1147, %v1216
        %v1249 = vadd.f32 %v1148, %v1217
        %v1250 = vadd.f32 %v1149, %v1218
        %v1251 = vadd.f32 %v1150, %v1219
        %v1252 = vadd.f32 %v1151, %v1220
        %v1253 = vadd.f32 %v1152, %v1221
        %v1254 = vadd.f32 %v1153, %v1222
        %v1255 = vadd.f32 %v1154, %v1223
        %v1256 = vadd.f32 %v1155, %v1224
        %v1257 = vadd.f32 %v1156, %v1225
        %v1258 = vadd.f32 %v1157, %v1226
        %v1259 = vadd.f32 %v1158, %v1227
        %v1260 = vadd.f32 %v1159, %v1228
        %v1261 = vadd.f32 %v1160, %v1229
        %v1262 = vadd.f32 %v1161, %v1230
        %v1263 = vadd.f32 %v1162, %v1231
        %v1264 = vadd.f32 %v1163, %v1232
        %v1265 = vadd.f32 %v1164, %v1233
        %v1266 = vadd.f32 %v1165, %v1234
        %v1267 = vadd.f32 %v1166, %v1235
        %v1268 = vld [vmem:[%s1065 + $0x2] sm:$0xff]
        %v1269 = vld [vmem:[%s1065 + $0xa] sm:$0xff]
        %v1270 = vld [vmem:[%s1065 + $0x1a] sm:$0xff]
        %v1271 = vld [vmem:[%s1065 + $0x22] sm:$0xff]
        %v1272 = vld [vmem:[%s1065 + $0x32] sm:$0xff]
        %v1273 = vld [vmem:[%s1065 + $0x3a] sm:$0xff]
        %v1274 = vld [vmem:[%s1065 + $0x4a] sm:$0xff]
        %v1275 = vld [vmem:[%s1065 + $0x52] sm:$0xff]
        %v1276 = vld [vmem:[%s1065 + $0x62] sm:$0xff]
        %v1277 = vld [vmem:[%s1065 + $0x6a] sm:$0xff]
        %v1278 = vld [vmem:[%s1065 + $0x7a] sm:$0xff]
        %v1279 = vld [vmem:[%s1065 + $0x82] sm:$0xff]
        %v1280 = vld [vmem:[%s1065 + $0x92] sm:$0xff]
        %v1281 = vld [vmem:[%s1065 + $0x9a] sm:$0xff]
        %v1282 = vld [vmem:[%s1065 + $0xaa] sm:$0xff]
        %v1283 = vld [vmem:[%s1065 + $0xb2] sm:$0xff]
        %v1284 = vld [vmem:[%s1065 + $0xc2] sm:$0xff]
        %v1285 = vld [vmem:[%s1065 + $0xca] sm:$0xff]
        %v1286 = vld [vmem:[%s1065 + $0xda] sm:$0xff]
        %v1287 = vld [vmem:[%s1065 + $0xe2] sm:$0xff]
        %v1288 = vld [vmem:[%s1065 + $0xf2] sm:$0xff]
        %v1289 = vld [vmem:[%s1065 + $0xfa] sm:$0xff]
        %v1290 = vld [vmem:[%s1065 + $0x10a] sm:$0xff]
        %v1291 = vld [vmem:[%s1065 + $0x112] sm:$0xff]
        %v1292 = vld [vmem:[%s1065 + $0x122] sm:$0xff]
        %v1293 = vld [vmem:[%s1065 + $0x12a] sm:$0xff]
        %v1294 = vld [vmem:[%s1065 + $0x13a] sm:$0xff]
        %v1295 = vld [vmem:[%s1065 + $0x142] sm:$0xff]
        %v1296 = vld [vmem:[%s1065 + $0x152] sm:$0xff]
        %v1297 = vld [vmem:[%s1065 + $0x15a] sm:$0xff]
        %v1298 = vld [vmem:[%s1065 + $0x16a] sm:$0xff]
        %v1299 = vld [vmem:[%s1065 + $0x172] sm:$0xff]
        %v1300 = vld [vmem:[%s1 + $0x9] sm:$0x1]
        %v1301 = vlaneseq
        %v1302 = vshrl.u32 %v1301, 7
        %v1303 = vsub.s32 0, %v1302
        %v1304 = vrot.slane %v1300, %v1303
        %v1305 = vmul.f32 %v1268, %v1304
        %v1306 = vmul.f32 %v1269, %v1304
        %v1307 = vmul.f32 %v1270, %v1304
        %v1308 = vmul.f32 %v1271, %v1304
        %v1309 = vmul.f32 %v1272, %v1304
        %v1310 = vmul.f32 %v1273, %v1304
        %v1311 = vmul.f32 %v1274, %v1304
        %v1312 = vmul.f32 %v1275, %v1304
        %v1313 = vmul.f32 %v1276, %v1304
        %v1314 = vmul.f32 %v1277, %v1304
        %v1315 = vmul.f32 %v1278, %v1304
        %v1316 = vmul.f32 %v1279, %v1304
        %v1317 = vmul.f32 %v1280, %v1304
        %v1318 = vmul.f32 %v1281, %v1304
        %v1319 = vmul.f32 %v1282, %v1304
        %v1320 = vmul.f32 %v1283, %v1304
        %v1321 = vmul.f32 %v1284, %v1304
        %v1322 = vmul.f32 %v1285, %v1304
        %v1323 = vmul.f32 %v1286, %v1304
        %v1324 = vmul.f32 %v1287, %v1304
        %v1325 = vmul.f32 %v1288, %v1304
        %v1326 = vmul.f32 %v1289, %v1304
        %v1327 = vmul.f32 %v1290, %v1304
        %v1328 = vmul.f32 %v1291, %v1304
        %v1329 = vmul.f32 %v1292, %v1304
        %v1330 = vmul.f32 %v1293, %v1304
        %v1331 = vmul.f32 %v1294, %v1304
        %v1332 = vmul.f32 %v1295, %v1304
        %v1333 = vmul.f32 %v1296, %v1304
        %v1334 = vmul.f32 %v1297, %v1304
        %v1335 = vmul.f32 %v1298, %v1304
        %v1336 = vmul.f32 %v1299, %v1304
        %v1337 = vadd.f32 %v1236, %v1305
        %v1338 = vadd.f32 %v1237, %v1306
        %v1339 = vadd.f32 %v1238, %v1307
        %v1340 = vadd.f32 %v1239, %v1308
        %v1341 = vadd.f32 %v1240, %v1309
        %v1342 = vadd.f32 %v1241, %v1310
        %v1343 = vadd.f32 %v1242, %v1311
        %v1344 = vadd.f32 %v1243, %v1312
        %v1345 = vadd.f32 %v1244, %v1313
        %v1346 = vadd.f32 %v1245, %v1314
        %v1347 = vadd.f32 %v1246, %v1315
        %v1348 = vadd.f32 %v1247, %v1316
        %v1349 = vadd.f32 %v1248, %v1317
        %v1350 = vadd.f32 %v1249, %v1318
        %v1351 = vadd.f32 %v1250, %v1319
        %v1352 = vadd.f32 %v1251, %v1320
        %v1353 = vadd.f32 %v1252, %v1321
        %v1354 = vadd.f32 %v1253, %v1322
        %v1355 = vadd.f32 %v1254, %v1323
        %v1356 = vadd.f32 %v1255, %v1324
        %v1357 = vadd.f32 %v1256, %v1325
        %v1358 = vadd.f32 %v1257, %v1326
        %v1359 = vadd.f32 %v1258, %v1327
        %v1360 = vadd.f32 %v1259, %v1328
        %v1361 = vadd.f32 %v1260, %v1329
        %v1362 = vadd.f32 %v1261, %v1330
        %v1363 = vadd.f32 %v1262, %v1331
        %v1364 = vadd.f32 %v1263, %v1332
        %v1365 = vadd.f32 %v1264, %v1333
        %v1366 = vadd.f32 %v1265, %v1334
        %v1367 = vadd.f32 %v1266, %v1335
        %v1368 = vadd.f32 %v1267, %v1336
        %v1369 = vld [vmem:[%s1065 + $0x3] sm:$0xff]
        %v1370 = vld [vmem:[%s1065 + $0xb] sm:$0xff]
        %v1371 = vld [vmem:[%s1065 + $0x1b] sm:$0xff]
        %v1372 = vld [vmem:[%s1065 + $0x23] sm:$0xff]
        %v1373 = vld [vmem:[%s1065 + $0x33] sm:$0xff]
        %v1374 = vld [vmem:[%s1065 + $0x3b] sm:$0xff]
        %v1375 = vld [vmem:[%s1065 + $0x4b] sm:$0xff]
        %v1376 = vld [vmem:[%s1065 + $0x53] sm:$0xff]
        %v1377 = vld [vmem:[%s1065 + $0x63] sm:$0xff]
        %v1378 = vld [vmem:[%s1065 + $0x6b] sm:$0xff]
        %v1379 = vld [vmem:[%s1065 + $0x7b] sm:$0xff]
        %v1380 = vld [vmem:[%s1065 + $0x83] sm:$0xff]
        %v1381 = vld [vmem:[%s1065 + $0x93] sm:$0xff]
        %v1382 = vld [vmem:[%s1065 + $0x9b] sm:$0xff]
        %v1383 = vld [vmem:[%s1065 + $0xab] sm:$0xff]
        %v1384 = vld [vmem:[%s1065 + $0xb3] sm:$0xff]
        %v1385 = vld [vmem:[%s1065 + $0xc3] sm:$0xff]
        %v1386 = vld [vmem:[%s1065 + $0xcb] sm:$0xff]
        %v1387 = vld [vmem:[%s1065 + $0xdb] sm:$0xff]
        %v1388 = vld [vmem:[%s1065 + $0xe3] sm:$0xff]
        %v1389 = vld [vmem:[%s1065 + $0xf3] sm:$0xff]
        %v1390 = vld [vmem:[%s1065 + $0xfb] sm:$0xff]
        %v1391 = vld [vmem:[%s1065 + $0x10b] sm:$0xff]
        %v1392 = vld [vmem:[%s1065 + $0x113] sm:$0xff]
        %v1393 = vld [vmem:[%s1065 + $0x123] sm:$0xff]
        %v1394 = vld [vmem:[%s1065 + $0x12b] sm:$0xff]
        %v1395 = vld [vmem:[%s1065 + $0x13b] sm:$0xff]
        %v1396 = vld [vmem:[%s1065 + $0x143] sm:$0xff]
        %v1397 = vld [vmem:[%s1065 + $0x153] sm:$0xff]
        %v1398 = vld [vmem:[%s1065 + $0x15b] sm:$0xff]
        %v1399 = vld [vmem:[%s1065 + $0x16b] sm:$0xff]
        %v1400 = vld [vmem:[%s1065 + $0x173] sm:$0xff]
        %v1401 = vld [vmem:[%s1 + $0xa] sm:$0x1]
        %v1402 = vlaneseq
        %v1403 = vshrl.u32 %v1402, 7
        %v1404 = vsub.s32 0, %v1403
        %v1405 = vrot.slane %v1401, %v1404
        %v1406 = vmul.f32 %v1369, %v1405
        %v1407 = vmul.f32 %v1370, %v1405
        %v1408 = vmul.f32 %v1371, %v1405
        %v1409 = vmul.f32 %v1372, %v1405
        %v1410 = vmul.f32 %v1373, %v1405
        %v1411 = vmul.f32 %v1374, %v1405
        %v1412 = vmul.f32 %v1375, %v1405
        %v1413 = vmul.f32 %v1376, %v1405
        %v1414 = vmul.f32 %v1377, %v1405
        %v1415 = vmul.f32 %v1378, %v1405
        %v1416 = vmul.f32 %v1379, %v1405
        %v1417 = vmul.f32 %v1380, %v1405
        %v1418 = vmul.f32 %v1381, %v1405
        %v1419 = vmul.f32 %v1382, %v1405
        %v1420 = vmul.f32 %v1383, %v1405
        %v1421 = vmul.f32 %v1384, %v1405
        %v1422 = vmul.f32 %v1385, %v1405
        %v1423 = vmul.f32 %v1386, %v1405
        %v1424 = vmul.f32 %v1387, %v1405
        %v1425 = vmul.f32 %v1388, %v1405
        %v1426 = vmul.f32 %v1389, %v1405
        %v1427 = vmul.f32 %v1390, %v1405
        %v1428 = vmul.f32 %v1391, %v1405
        %v1429 = vmul.f32 %v1392, %v1405
        %v1430 = vmul.f32 %v1393, %v1405
        %v1431 = vmul.f32 %v1394, %v1405
        %v1432 = vmul.f32 %v1395, %v1405
        %v1433 = vmul.f32 %v1396, %v1405
        %v1434 = vmul.f32 %v1397, %v1405
        %v1435 = vmul.f32 %v1398, %v1405
        %v1436 = vmul.f32 %v1399, %v1405
        %v1437 = vmul.f32 %v1400, %v1405
        %v1438 = vadd.f32 %v1337, %v1406
        %v1439 = vadd.f32 %v1338, %v1407
        %v1440 = vadd.f32 %v1339, %v1408
        %v1441 = vadd.f32 %v1340, %v1409
        %v1442 = vadd.f32 %v1341, %v1410
        %v1443 = vadd.f32 %v1342, %v1411
        %v1444 = vadd.f32 %v1343, %v1412
        %v1445 = vadd.f32 %v1344, %v1413
        %v1446 = vadd.f32 %v1345, %v1414
        %v1447 = vadd.f32 %v1346, %v1415
        %v1448 = vadd.f32 %v1347, %v1416
        %v1449 = vadd.f32 %v1348, %v1417
        %v1450 = vadd.f32 %v1349, %v1418
        %v1451 = vadd.f32 %v1350, %v1419
        %v1452 = vadd.f32 %v1351, %v1420
        %v1453 = vadd.f32 %v1352, %v1421
        %v1454 = vadd.f32 %v1353, %v1422
        %v1455 = vadd.f32 %v1354, %v1423
        %v1456 = vadd.f32 %v1355, %v1424
        %v1457 = vadd.f32 %v1356, %v1425
        %v1458 = vadd.f32 %v1357, %v1426
        %v1459 = vadd.f32 %v1358, %v1427
        %v1460 = vadd.f32 %v1359, %v1428
        %v1461 = vadd.f32 %v1360, %v1429
        %v1462 = vadd.f32 %v1361, %v1430
        %v1463 = vadd.f32 %v1362, %v1431
        %v1464 = vadd.f32 %v1363, %v1432
        %v1465 = vadd.f32 %v1364, %v1433
        %v1466 = vadd.f32 %v1365, %v1434
        %v1467 = vadd.f32 %v1366, %v1435
        %v1468 = vadd.f32 %v1367, %v1436
        %v1469 = vadd.f32 %v1368, %v1437
        %v1470 = vld [vmem:[%s1065 + $0x4] sm:$0xff]
        %v1471 = vld [vmem:[%s1065 + $0xc] sm:$0xff]
        %v1472 = vld [vmem:[%s1065 + $0x1c] sm:$0xff]
        %v1473 = vld [vmem:[%s1065 + $0x24] sm:$0xff]
        %v1474 = vld [vmem:[%s1065 + $0x34] sm:$0xff]
        %v1475 = vld [vmem:[%s1065 + $0x3c] sm:$0xff]
        %v1476 = vld [vmem:[%s1065 + $0x4c] sm:$0xff]
        %v1477 = vld [vmem:[%s1065 + $0x54] sm:$0xff]
        %v1478 = vld [vmem:[%s1065 + $0x64] sm:$0xff]
        %v1479 = vld [vmem:[%s1065 + $0x6c] sm:$0xff]
        %v1480 = vld [vmem:[%s1065 + $0x7c] sm:$0xff]
        %v1481 = vld [vmem:[%s1065 + $0x84] sm:$0xff]
        %v1482 = vld [vmem:[%s1065 + $0x94] sm:$0xff]
        %v1483 = vld [vmem:[%s1065 + $0x9c] sm:$0xff]
        %v1484 = vld [vmem:[%s1065 + $0xac] sm:$0xff]
        %v1485 = vld [vmem:[%s1065 + $0xb4] sm:$0xff]
        %v1486 = vld [vmem:[%s1065 + $0xc4] sm:$0xff]
        %v1487 = vld [vmem:[%s1065 + $0xcc] sm:$0xff]
        %v1488 = vld [vmem:[%s1065 + $0xdc] sm:$0xff]
        %v1489 = vld [vmem:[%s1065 + $0xe4] sm:$0xff]
        %v1490 = vld [vmem:[%s1065 + $0xf4] sm:$0xff]
        %v1491 = vld [vmem:[%s1065 + $0xfc] sm:$0xff]
        %v1492 = vld [vmem:[%s1065 + $0x10c] sm:$0xff]
        %v1493 = vld [vmem:[%s1065 + $0x114] sm:$0xff]
        %v1494 = vld [vmem:[%s1065 + $0x124] sm:$0xff]
        %v1495 = vld [vmem:[%s1065 + $0x12c] sm:$0xff]
        %v1496 = vld [vmem:[%s1065 + $0x13c] sm:$0xff]
        %v1497 = vld [vmem:[%s1065 + $0x144] sm:$0xff]
        %v1498 = vld [vmem:[%s1065 + $0x154] sm:$0xff]
        %v1499 = vld [vmem:[%s1065 + $0x15c] sm:$0xff]
        %v1500 = vld [vmem:[%s1065 + $0x16c] sm:$0xff]
        %v1501 = vld [vmem:[%s1065 + $0x174] sm:$0xff]
        %v1502 = vld [vmem:[%s1 + $0xb] sm:$0x1]
        %v1503 = vlaneseq
        %v1504 = vshrl.u32 %v1503, 7
        %v1505 = vsub.s32 0, %v1504
        %v1506 = vrot.slane %v1502, %v1505
        %v1507 = vmul.f32 %v1470, %v1506
        %v1508 = vmul.f32 %v1471, %v1506
        %v1509 = vmul.f32 %v1472, %v1506
        %v1510 = vmul.f32 %v1473, %v1506
        %v1511 = vmul.f32 %v1474, %v1506
        %v1512 = vmul.f32 %v1475, %v1506
        %v1513 = vmul.f32 %v1476, %v1506
        %v1514 = vmul.f32 %v1477, %v1506
        %v1515 = vmul.f32 %v1478, %v1506
        %v1516 = vmul.f32 %v1479, %v1506
        %v1517 = vmul.f32 %v1480, %v1506
        %v1518 = vmul.f32 %v1481, %v1506
        %v1519 = vmul.f32 %v1482, %v1506
        %v1520 = vmul.f32 %v1483, %v1506
        %v1521 = vmul.f32 %v1484, %v1506
        %v1522 = vmul.f32 %v1485, %v1506
        %v1523 = vmul.f32 %v1486, %v1506
        %v1524 = vmul.f32 %v1487, %v1506
        %v1525 = vmul.f32 %v1488, %v1506
        %v1526 = vmul.f32 %v1489, %v1506
        %v1527 = vmul.f32 %v1490, %v1506
        %v1528 = vmul.f32 %v1491, %v1506
        %v1529 = vmul.f32 %v1492, %v1506
        %v1530 = vmul.f32 %v1493, %v1506
        %v1531 = vmul.f32 %v1494, %v1506
        %v1532 = vmul.f32 %v1495, %v1506
        %v1533 = vmul.f32 %v1496, %v1506
        %v1534 = vmul.f32 %v1497, %v1506
        %v1535 = vmul.f32 %v1498, %v1506
        %v1536 = vmul.f32 %v1499, %v1506
        %v1537 = vmul.f32 %v1500, %v1506
        %v1538 = vmul.f32 %v1501, %v1506
        %v1539 = vadd.f32 %v1438, %v1507
        %v1540 = vadd.f32 %v1439, %v1508
        %v1541 = vadd.f32 %v1440, %v1509
        %v1542 = vadd.f32 %v1441, %v1510
        %v1543 = vadd.f32 %v1442, %v1511
        %v1544 = vadd.f32 %v1443, %v1512
        %v1545 = vadd.f32 %v1444, %v1513
        %v1546 = vadd.f32 %v1445, %v1514
        %v1547 = vadd.f32 %v1446, %v1515
        %v1548 = vadd.f32 %v1447, %v1516
        %v1549 = vadd.f32 %v1448, %v1517
        %v1550 = vadd.f32 %v1449, %v1518
        %v1551 = vadd.f32 %v1450, %v1519
        %v1552 = vadd.f32 %v1451, %v1520
        %v1553 = vadd.f32 %v1452, %v1521
        %v1554 = vadd.f32 %v1453, %v1522
        %v1555 = vadd.f32 %v1454, %v1523
        %v1556 = vadd.f32 %v1455, %v1524
        %v1557 = vadd.f32 %v1456, %v1525
        %v1558 = vadd.f32 %v1457, %v1526
        %v1559 = vadd.f32 %v1458, %v1527
        %v1560 = vadd.f32 %v1459, %v1528
        %v1561 = vadd.f32 %v1460, %v1529
        %v1562 = vadd.f32 %v1461, %v1530
        %v1563 = vadd.f32 %v1462, %v1531
        %v1564 = vadd.f32 %v1463, %v1532
        %v1565 = vadd.f32 %v1464, %v1533
        %v1566 = vadd.f32 %v1465, %v1534
        %v1567 = vadd.f32 %v1466, %v1535
        %v1568 = vadd.f32 %v1467, %v1536
        %v1569 = vadd.f32 %v1468, %v1537
        %v1570 = vadd.f32 %v1469, %v1538
        %v1571 = vld [vmem:[%s1065 + $0x5] sm:$0xff]
        %v1572 = vld [vmem:[%s1065 + $0xd] sm:$0xff]
        %v1573 = vld [vmem:[%s1065 + $0x1d] sm:$0xff]
        %v1574 = vld [vmem:[%s1065 + $0x25] sm:$0xff]
        %v1575 = vld [vmem:[%s1065 + $0x35] sm:$0xff]
        %v1576 = vld [vmem:[%s1065 + $0x3d] sm:$0xff]
        %v1577 = vld [vmem:[%s1065 + $0x4d] sm:$0xff]
        %v1578 = vld [vmem:[%s1065 + $0x55] sm:$0xff]
        %v1579 = vld [vmem:[%s1065 + $0x65] sm:$0xff]
        %v1580 = vld [vmem:[%s1065 + $0x6d] sm:$0xff]
        %v1581 = vld [vmem:[%s1065 + $0x7d] sm:$0xff]
        %v1582 = vld [vmem:[%s1065 + $0x85] sm:$0xff]
        %v1583 = vld [vmem:[%s1065 + $0x95] sm:$0xff]
        %v1584 = vld [vmem:[%s1065 + $0x9d] sm:$0xff]
        %v1585 = vld [vmem:[%s1065 + $0xad] sm:$0xff]
        %v1586 = vld [vmem:[%s1065 + $0xb5] sm:$0xff]
        %v1587 = vld [vmem:[%s1065 + $0xc5] sm:$0xff]
        %v1588 = vld [vmem:[%s1065 + $0xcd] sm:$0xff]
        %v1589 = vld [vmem:[%s1065 + $0xdd] sm:$0xff]
        %v1590 = vld [vmem:[%s1065 + $0xe5] sm:$0xff]
        %v1591 = vld [vmem:[%s1065 + $0xf5] sm:$0xff]
        %v1592 = vld [vmem:[%s1065 + $0xfd] sm:$0xff]
        %v1593 = vld [vmem:[%s1065 + $0x10d] sm:$0xff]
        %v1594 = vld [vmem:[%s1065 + $0x115] sm:$0xff]
        %v1595 = vld [vmem:[%s1065 + $0x125] sm:$0xff]
        %v1596 = vld [vmem:[%s1065 + $0x12d] sm:$0xff]
        %v1597 = vld [vmem:[%s1065 + $0x13d] sm:$0xff]
        %v1598 = vld [vmem:[%s1065 + $0x145] sm:$0xff]
        %v1599 = vld [vmem:[%s1065 + $0x155] sm:$0xff]
        %v1600 = vld [vmem:[%s1065 + $0x15d] sm:$0xff]
        %v1601 = vld [vmem:[%s1065 + $0x16d] sm:$0xff]
        %v1602 = vld [vmem:[%s1065 + $0x175] sm:$0xff]
        %v1603 = vld [vmem:[%s1 + $0xc] sm:$0x1]
        %v1604 = vlaneseq
        %v1605 = vshrl.u32 %v1604, 7
        %v1606 = vsub.s32 0, %v1605
        %v1607 = vrot.slane %v1603, %v1606
        %v1608 = vmul.f32 %v1571, %v1607
        %v1609 = vmul.f32 %v1572, %v1607
        %v1610 = vmul.f32 %v1573, %v1607
        %v1611 = vmul.f32 %v1574, %v1607
        %v1612 = vmul.f32 %v1575, %v1607
        %v1613 = vmul.f32 %v1576, %v1607
        %v1614 = vmul.f32 %v1577, %v1607
        %v1615 = vmul.f32 %v1578, %v1607
        %v1616 = vmul.f32 %v1579, %v1607
        %v1617 = vmul.f32 %v1580, %v1607
        %v1618 = vmul.f32 %v1581, %v1607
        %v1619 = vmul.f32 %v1582, %v1607
        %v1620 = vmul.f32 %v1583, %v1607
        %v1621 = vmul.f32 %v1584, %v1607
        %v1622 = vmul.f32 %v1585, %v1607
        %v1623 = vmul.f32 %v1586, %v1607
        %v1624 = vmul.f32 %v1587, %v1607
        %v1625 = vmul.f32 %v1588, %v1607
        %v1626 = vmul.f32 %v1589, %v1607
        %v1627 = vmul.f32 %v1590, %v1607
        %v1628 = vmul.f32 %v1591, %v1607
        %v1629 = vmul.f32 %v1592, %v1607
        %v1630 = vmul.f32 %v1593, %v1607
        %v1631 = vmul.f32 %v1594, %v1607
        %v1632 = vmul.f32 %v1595, %v1607
        %v1633 = vmul.f32 %v1596, %v1607
        %v1634 = vmul.f32 %v1597, %v1607
        %v1635 = vmul.f32 %v1598, %v1607
        %v1636 = vmul.f32 %v1599, %v1607
        %v1637 = vmul.f32 %v1600, %v1607
        %v1638 = vmul.f32 %v1601, %v1607
        %v1639 = vmul.f32 %v1602, %v1607
        %v1640 = vadd.f32 %v1539, %v1608
        %v1641 = vadd.f32 %v1540, %v1609
        %v1642 = vadd.f32 %v1541, %v1610
        %v1643 = vadd.f32 %v1542, %v1611
        %v1644 = vadd.f32 %v1543, %v1612
        %v1645 = vadd.f32 %v1544, %v1613
        %v1646 = vadd.f32 %v1545, %v1614
        %v1647 = vadd.f32 %v1546, %v1615
        %v1648 = vadd.f32 %v1547, %v1616
        %v1649 = vadd.f32 %v1548, %v1617
        %v1650 = vadd.f32 %v1549, %v1618
        %v1651 = vadd.f32 %v1550, %v1619
        %v1652 = vadd.f32 %v1551, %v1620
        %v1653 = vadd.f32 %v1552, %v1621
        %v1654 = vadd.f32 %v1553, %v1622
        %v1655 = vadd.f32 %v1554, %v1623
        %v1656 = vadd.f32 %v1555, %v1624
        %v1657 = vadd.f32 %v1556, %v1625
        %v1658 = vadd.f32 %v1557, %v1626
        %v1659 = vadd.f32 %v1558, %v1627
        %v1660 = vadd.f32 %v1559, %v1628
        %v1661 = vadd.f32 %v1560, %v1629
        %v1662 = vadd.f32 %v1561, %v1630
        %v1663 = vadd.f32 %v1562, %v1631
        %v1664 = vadd.f32 %v1563, %v1632
        %v1665 = vadd.f32 %v1564, %v1633
        %v1666 = vadd.f32 %v1565, %v1634
        %v1667 = vadd.f32 %v1566, %v1635
        %v1668 = vadd.f32 %v1567, %v1636
        %v1669 = vadd.f32 %v1568, %v1637
        %v1670 = vadd.f32 %v1569, %v1638
        %v1671 = vadd.f32 %v1570, %v1639
        %v1672 = vld [vmem:[%s1065 + $0x6] sm:$0xff]
        %v1673 = vld [vmem:[%s1065 + $0xe] sm:$0xff]
        %v1674 = vld [vmem:[%s1065 + $0x1e] sm:$0xff]
        %v1675 = vld [vmem:[%s1065 + $0x26] sm:$0xff]
        %v1676 = vld [vmem:[%s1065 + $0x36] sm:$0xff]
        %v1677 = vld [vmem:[%s1065 + $0x3e] sm:$0xff]
        %v1678 = vld [vmem:[%s1065 + $0x4e] sm:$0xff]
        %v1679 = vld [vmem:[%s1065 + $0x56] sm:$0xff]
        %v1680 = vld [vmem:[%s1065 + $0x66] sm:$0xff]
        %v1681 = vld [vmem:[%s1065 + $0x6e] sm:$0xff]
        %v1682 = vld [vmem:[%s1065 + $0x7e] sm:$0xff]
        %v1683 = vld [vmem:[%s1065 + $0x86] sm:$0xff]
        %v1684 = vld [vmem:[%s1065 + $0x96] sm:$0xff]
        %v1685 = vld [vmem:[%s1065 + $0x9e] sm:$0xff]
        %v1686 = vld [vmem:[%s1065 + $0xae] sm:$0xff]
        %v1687 = vld [vmem:[%s1065 + $0xb6] sm:$0xff]
        %v1688 = vld [vmem:[%s1065 + $0xc6] sm:$0xff]
        %v1689 = vld [vmem:[%s1065 + $0xce] sm:$0xff]
        %v1690 = vld [vmem:[%s1065 + $0xde] sm:$0xff]
        %v1691 = vld [vmem:[%s1065 + $0xe6] sm:$0xff]
        %v1692 = vld [vmem:[%s1065 + $0xf6] sm:$0xff]
        %v1693 = vld [vmem:[%s1065 + $0xfe] sm:$0xff]
        %v1694 = vld [vmem:[%s1065 + $0x10e] sm:$0xff]
        %v1695 = vld [vmem:[%s1065 + $0x116] sm:$0xff]
        %v1696 = vld [vmem:[%s1065 + $0x126] sm:$0xff]
        %v1697 = vld [vmem:[%s1065 + $0x12e] sm:$0xff]
        %v1698 = vld [vmem:[%s1065 + $0x13e] sm:$0xff]
        %v1699 = vld [vmem:[%s1065 + $0x146] sm:$0xff]
        %v1700 = vld [vmem:[%s1065 + $0x156] sm:$0xff]
        %v1701 = vld [vmem:[%s1065 + $0x15e] sm:$0xff]
        %v1702 = vld [vmem:[%s1065 + $0x16e] sm:$0xff]
        %v1703 = vld [vmem:[%s1065 + $0x176] sm:$0xff]
        %v1704 = vld [vmem:[%s1 + $0xd] sm:$0x1]
        %v1705 = vlaneseq
        %v1706 = vshrl.u32 %v1705, 7
        %v1707 = vsub.s32 0, %v1706
        %v1708 = vrot.slane %v1704, %v1707
        %v1709 = vmul.f32 %v1672, %v1708
        %v1710 = vmul.f32 %v1673, %v1708
        %v1711 = vmul.f32 %v1674, %v1708
        %v1712 = vmul.f32 %v1675, %v1708
        %v1713 = vmul.f32 %v1676, %v1708
        %v1714 = vmul.f32 %v1677, %v1708
        %v1715 = vmul.f32 %v1678, %v1708
        %v1716 = vmul.f32 %v1679, %v1708
        %v1717 = vmul.f32 %v1680, %v1708
        %v1718 = vmul.f32 %v1681, %v1708
        %v1719 = vmul.f32 %v1682, %v1708
        %v1720 = vmul.f32 %v1683, %v1708
        %v1721 = vmul.f32 %v1684, %v1708
        %v1722 = vmul.f32 %v1685, %v1708
        %v1723 = vmul.f32 %v1686, %v1708
        %v1724 = vmul.f32 %v1687, %v1708
        %v1725 = vmul.f32 %v1688, %v1708
        %v1726 = vmul.f32 %v1689, %v1708
        %v1727 = vmul.f32 %v1690, %v1708
        %v1728 = vmul.f32 %v1691, %v1708
        %v1729 = vmul.f32 %v1692, %v1708
        %v1730 = vmul.f32 %v1693, %v1708
        %v1731 = vmul.f32 %v1694, %v1708
        %v1732 = vmul.f32 %v1695, %v1708
        %v1733 = vmul.f32 %v1696, %v1708
        %v1734 = vmul.f32 %v1697, %v1708
        %v1735 = vmul.f32 %v1698, %v1708
        %v1736 = vmul.f32 %v1699, %v1708
        %v1737 = vmul.f32 %v1700, %v1708
        %v1738 = vmul.f32 %v1701, %v1708
        %v1739 = vmul.f32 %v1702, %v1708
        %v1740 = vmul.f32 %v1703, %v1708
        %v1741 = vadd.f32 %v1640, %v1709
        %v1742 = vadd.f32 %v1641, %v1710
        %v1743 = vadd.f32 %v1642, %v1711
        %v1744 = vadd.f32 %v1643, %v1712
        %v1745 = vadd.f32 %v1644, %v1713
        %v1746 = vadd.f32 %v1645, %v1714
        %v1747 = vadd.f32 %v1646, %v1715
        %v1748 = vadd.f32 %v1647, %v1716
        %v1749 = vadd.f32 %v1648, %v1717
        %v1750 = vadd.f32 %v1649, %v1718
        %v1751 = vadd.f32 %v1650, %v1719
        %v1752 = vadd.f32 %v1651, %v1720
        %v1753 = vadd.f32 %v1652, %v1721
        %v1754 = vadd.f32 %v1653, %v1722
        %v1755 = vadd.f32 %v1654, %v1723
        %v1756 = vadd.f32 %v1655, %v1724
        %v1757 = vadd.f32 %v1656, %v1725
        %v1758 = vadd.f32 %v1657, %v1726
        %v1759 = vadd.f32 %v1658, %v1727
        %v1760 = vadd.f32 %v1659, %v1728
        %v1761 = vadd.f32 %v1660, %v1729
        %v1762 = vadd.f32 %v1661, %v1730
        %v1763 = vadd.f32 %v1662, %v1731
        %v1764 = vadd.f32 %v1663, %v1732
        %v1765 = vadd.f32 %v1664, %v1733
        %v1766 = vadd.f32 %v1665, %v1734
        %v1767 = vadd.f32 %v1666, %v1735
        %v1768 = vadd.f32 %v1667, %v1736
        %v1769 = vadd.f32 %v1668, %v1737
        %v1770 = vadd.f32 %v1669, %v1738
        %v1771 = vadd.f32 %v1670, %v1739
        %v1772 = vadd.f32 %v1671, %v1740
        %s1773 = scalar_lea.vmem %s357, 48
        %v1774 = vld [vmem:[%s1773] sm:$0xff]
        %v1775 = vld [vmem:[%s1773 + $0x8] sm:$0xff]
        %v1776 = vld [vmem:[%s1773 + $0x18] sm:$0xff]
        %v1777 = vld [vmem:[%s1773 + $0x20] sm:$0xff]
        %v1778 = vld [vmem:[%s1773 + $0x30] sm:$0xff]
        %v1779 = vld [vmem:[%s1773 + $0x38] sm:$0xff]
        %v1780 = vld [vmem:[%s1773 + $0x48] sm:$0xff]
        %v1781 = vld [vmem:[%s1773 + $0x50] sm:$0xff]
        %v1782 = vld [vmem:[%s1773 + $0x60] sm:$0xff]
        %v1783 = vld [vmem:[%s1773 + $0x68] sm:$0xff]
        %v1784 = vld [vmem:[%s1773 + $0x78] sm:$0xff]
        %v1785 = vld [vmem:[%s1773 + $0x80] sm:$0xff]
        %v1786 = vld [vmem:[%s1773 + $0x90] sm:$0xff]
        %v1787 = vld [vmem:[%s1773 + $0x98] sm:$0xff]
        %v1788 = vld [vmem:[%s1773 + $0xa8] sm:$0xff]
        %v1789 = vld [vmem:[%s1773 + $0xb0] sm:$0xff]
        %v1790 = vld [vmem:[%s1773 + $0xc0] sm:$0xff]
        %v1791 = vld [vmem:[%s1773 + $0xc8] sm:$0xff]
        %v1792 = vld [vmem:[%s1773 + $0xd8] sm:$0xff]
        %v1793 = vld [vmem:[%s1773 + $0xe0] sm:$0xff]
        %v1794 = vld [vmem:[%s1773 + $0xf0] sm:$0xff]
        %v1795 = vld [vmem:[%s1773 + $0xf8] sm:$0xff]
        %v1796 = vld [vmem:[%s1773 + $0x108] sm:$0xff]
        %v1797 = vld [vmem:[%s1773 + $0x110] sm:$0xff]
        %v1798 = vld [vmem:[%s1773 + $0x120] sm:$0xff]
        %v1799 = vld [vmem:[%s1773 + $0x128] sm:$0xff]
        %v1800 = vld [vmem:[%s1773 + $0x138] sm:$0xff]
        %v1801 = vld [vmem:[%s1773 + $0x140] sm:$0xff]
        %v1802 = vld [vmem:[%s1773 + $0x150] sm:$0xff]
        %v1803 = vld [vmem:[%s1773 + $0x158] sm:$0xff]
        %v1804 = vld [vmem:[%s1773 + $0x168] sm:$0xff]
        %v1805 = vld [vmem:[%s1773 + $0x170] sm:$0xff]
        %v1806 = vld [vmem:[%s1 + $0xe] sm:$0x1]
        %v1807 = vlaneseq
        %v1808 = vshrl.u32 %v1807, 7
        %v1809 = vsub.s32 0, %v1808
        %v1810 = vrot.slane %v1806, %v1809
        %v1811 = vmul.f32 %v1774, %v1810
        %v1812 = vmul.f32 %v1775, %v1810
        %v1813 = vmul.f32 %v1776, %v1810
        %v1814 = vmul.f32 %v1777, %v1810
        %v1815 = vmul.f32 %v1778, %v1810
        %v1816 = vmul.f32 %v1779, %v1810
        %v1817 = vmul.f32 %v1780, %v1810
        %v1818 = vmul.f32 %v1781, %v1810
        %v1819 = vmul.f32 %v1782, %v1810
        %v1820 = vmul.f32 %v1783, %v1810
        %v1821 = vmul.f32 %v1784, %v1810
        %v1822 = vmul.f32 %v1785, %v1810
        %v1823 = vmul.f32 %v1786, %v1810
        %v1824 = vmul.f32 %v1787, %v1810
        %v1825 = vmul.f32 %v1788, %v1810
        %v1826 = vmul.f32 %v1789, %v1810
        %v1827 = vmul.f32 %v1790, %v1810
        %v1828 = vmul.f32 %v1791, %v1810
        %v1829 = vmul.f32 %v1792, %v1810
        %v1830 = vmul.f32 %v1793, %v1810
        %v1831 = vmul.f32 %v1794, %v1810
        %v1832 = vmul.f32 %v1795, %v1810
        %v1833 = vmul.f32 %v1796, %v1810
        %v1834 = vmul.f32 %v1797, %v1810
        %v1835 = vmul.f32 %v1798, %v1810
        %v1836 = vmul.f32 %v1799, %v1810
        %v1837 = vmul.f32 %v1800, %v1810
        %v1838 = vmul.f32 %v1801, %v1810
        %v1839 = vmul.f32 %v1802, %v1810
        %v1840 = vmul.f32 %v1803, %v1810
        %v1841 = vmul.f32 %v1804, %v1810
        %v1842 = vmul.f32 %v1805, %v1810
        %v1843 = vadd.f32 %v1741, %v1811
        %v1844 = vadd.f32 %v1742, %v1812
        %v1845 = vadd.f32 %v1743, %v1813
        %v1846 = vadd.f32 %v1744, %v1814
        %v1847 = vadd.f32 %v1745, %v1815
        %v1848 = vadd.f32 %v1746, %v1816
        %v1849 = vadd.f32 %v1747, %v1817
        %v1850 = vadd.f32 %v1748, %v1818
        %v1851 = vadd.f32 %v1749, %v1819
        %v1852 = vadd.f32 %v1750, %v1820
        %v1853 = vadd.f32 %v1751, %v1821
        %v1854 = vadd.f32 %v1752, %v1822
        %v1855 = vadd.f32 %v1753, %v1823
        %v1856 = vadd.f32 %v1754, %v1824
        %v1857 = vadd.f32 %v1755, %v1825
        %v1858 = vadd.f32 %v1756, %v1826
        %v1859 = vadd.f32 %v1757, %v1827
        %v1860 = vadd.f32 %v1758, %v1828
        %v1861 = vadd.f32 %v1759, %v1829
        %v1862 = vadd.f32 %v1760, %v1830
        %v1863 = vadd.f32 %v1761, %v1831
        %v1864 = vadd.f32 %v1762, %v1832
        %v1865 = vadd.f32 %v1763, %v1833
        %v1866 = vadd.f32 %v1764, %v1834
        %v1867 = vadd.f32 %v1765, %v1835
        %v1868 = vadd.f32 %v1766, %v1836
        %v1869 = vadd.f32 %v1767, %v1837
        %v1870 = vadd.f32 %v1768, %v1838
        %v1871 = vadd.f32 %v1769, %v1839
        %v1872 = vadd.f32 %v1770, %v1840
        %v1873 = vadd.f32 %v1771, %v1841
        %v1874 = vadd.f32 %v1772, %v1842
        %v1875 = vld [vmem:[%s1773 + $0x1] sm:$0xff]
        %v1876 = vld [vmem:[%s1773 + $0x9] sm:$0xff]
        %v1877 = vld [vmem:[%s1773 + $0x19] sm:$0xff]
        %v1878 = vld [vmem:[%s1773 + $0x21] sm:$0xff]
        %v1879 = vld [vmem:[%s1773 + $0x31] sm:$0xff]
        %v1880 = vld [vmem:[%s1773 + $0x39] sm:$0xff]
        %v1881 = vld [vmem:[%s1773 + $0x49] sm:$0xff]
        %v1882 = vld [vmem:[%s1773 + $0x51] sm:$0xff]
        %v1883 = vld [vmem:[%s1773 + $0x61] sm:$0xff]
        %v1884 = vld [vmem:[%s1773 + $0x69] sm:$0xff]
        %v1885 = vld [vmem:[%s1773 + $0x79] sm:$0xff]
        %v1886 = vld [vmem:[%s1773 + $0x81] sm:$0xff]
        %v1887 = vld [vmem:[%s1773 + $0x91] sm:$0xff]
        %v1888 = vld [vmem:[%s1773 + $0x99] sm:$0xff]
        %v1889 = vld [vmem:[%s1773 + $0xa9] sm:$0xff]
        %v1890 = vld [vmem:[%s1773 + $0xb1] sm:$0xff]
        %v1891 = vld [vmem:[%s1773 + $0xc1] sm:$0xff]
        %v1892 = vld [vmem:[%s1773 + $0xc9] sm:$0xff]
        %v1893 = vld [vmem:[%s1773 + $0xd9] sm:$0xff]
        %v1894 = vld [vmem:[%s1773 + $0xe1] sm:$0xff]
        %v1895 = vld [vmem:[%s1773 + $0xf1] sm:$0xff]
        %v1896 = vld [vmem:[%s1773 + $0xf9] sm:$0xff]
        %v1897 = vld [vmem:[%s1773 + $0x109] sm:$0xff]
        %v1898 = vld [vmem:[%s1773 + $0x111] sm:$0xff]
        %v1899 = vld [vmem:[%s1773 + $0x121] sm:$0xff]
        %v1900 = vld [vmem:[%s1773 + $0x129] sm:$0xff]
        %v1901 = vld [vmem:[%s1773 + $0x139] sm:$0xff]
        %v1902 = vld [vmem:[%s1773 + $0x141] sm:$0xff]
        %v1903 = vld [vmem:[%s1773 + $0x151] sm:$0xff]
        %v1904 = vld [vmem:[%s1773 + $0x159] sm:$0xff]
        %v1905 = vld [vmem:[%s1773 + $0x169] sm:$0xff]
        %v1906 = vld [vmem:[%s1773 + $0x171] sm:$0xff]
        %v1907 = vld [vmem:[%s1 + $0xf] sm:$0x1]
        %v1908 = vlaneseq
        %v1909 = vshrl.u32 %v1908, 7
        %v1910 = vsub.s32 0, %v1909
        %v1911 = vrot.slane %v1907, %v1910
        %v1912 = vmul.f32 %v1875, %v1911
        %v1913 = vmul.f32 %v1876, %v1911
        %v1914 = vmul.f32 %v1877, %v1911
        %v1915 = vmul.f32 %v1878, %v1911
        %v1916 = vmul.f32 %v1879, %v1911
        %v1917 = vmul.f32 %v1880, %v1911
        %v1918 = vmul.f32 %v1881, %v1911
        %v1919 = vmul.f32 %v1882, %v1911
        %v1920 = vmul.f32 %v1883, %v1911
        %v1921 = vmul.f32 %v1884, %v1911
        %v1922 = vmul.f32 %v1885, %v1911
        %v1923 = vmul.f32 %v1886, %v1911
        %v1924 = vmul.f32 %v1887, %v1911
        %v1925 = vmul.f32 %v1888, %v1911
        %v1926 = vmul.f32 %v1889, %v1911
        %v1927 = vmul.f32 %v1890, %v1911
        %v1928 = vmul.f32 %v1891, %v1911
        %v1929 = vmul.f32 %v1892, %v1911
        %v1930 = vmul.f32 %v1893, %v1911
        %v1931 = vmul.f32 %v1894, %v1911
        %v1932 = vmul.f32 %v1895, %v1911
        %v1933 = vmul.f32 %v1896, %v1911
        %v1934 = vmul.f32 %v1897, %v1911
        %v1935 = vmul.f32 %v1898, %v1911
        %v1936 = vmul.f32 %v1899, %v1911
        %v1937 = vmul.f32 %v1900, %v1911
        %v1938 = vmul.f32 %v1901, %v1911
        %v1939 = vmul.f32 %v1902, %v1911
        %v1940 = vmul.f32 %v1903, %v1911
        %v1941 = vmul.f32 %v1904, %v1911
        %v1942 = vmul.f32 %v1905, %v1911
        %v1943 = vmul.f32 %v1906, %v1911
        %v1944 = vadd.f32 %v1843, %v1912
        %v1945 = vadd.f32 %v1844, %v1913
        %v1946 = vadd.f32 %v1845, %v1914
        %v1947 = vadd.f32 %v1846, %v1915
        %v1948 = vadd.f32 %v1847, %v1916
        %v1949 = vadd.f32 %v1848, %v1917
        %v1950 = vadd.f32 %v1849, %v1918
        %v1951 = vadd.f32 %v1850, %v1919
        %v1952 = vadd.f32 %v1851, %v1920
        %v1953 = vadd.f32 %v1852, %v1921
        %v1954 = vadd.f32 %v1853, %v1922
        %v1955 = vadd.f32 %v1854, %v1923
        %v1956 = vadd.f32 %v1855, %v1924
        %v1957 = vadd.f32 %v1856, %v1925
        %v1958 = vadd.f32 %v1857, %v1926
        %v1959 = vadd.f32 %v1858, %v1927
        %v1960 = vadd.f32 %v1859, %v1928
        %v1961 = vadd.f32 %v1860, %v1929
        %v1962 = vadd.f32 %v1861, %v1930
        %v1963 = vadd.f32 %v1862, %v1931
        %v1964 = vadd.f32 %v1863, %v1932
        %v1965 = vadd.f32 %v1864, %v1933
        %v1966 = vadd.f32 %v1865, %v1934
        %v1967 = vadd.f32 %v1866, %v1935
        %v1968 = vadd.f32 %v1867, %v1936
        %v1969 = vadd.f32 %v1868, %v1937
        %v1970 = vadd.f32 %v1869, %v1938
        %v1971 = vadd.f32 %v1870, %v1939
        %v1972 = vadd.f32 %v1871, %v1940
        %v1973 = vadd.f32 %v1872, %v1941
        %v1974 = vadd.f32 %v1873, %v1942
        %v1975 = vadd.f32 %v1874, %v1943
        %v1976 = vld [vmem:[%s1773 + $0x2] sm:$0xff]
        %v1977 = vld [vmem:[%s1773 + $0xa] sm:$0xff]
        %v1978 = vld [vmem:[%s1773 + $0x1a] sm:$0xff]
        %v1979 = vld [vmem:[%s1773 + $0x22] sm:$0xff]
        %v1980 = vld [vmem:[%s1773 + $0x32] sm:$0xff]
        %v1981 = vld [vmem:[%s1773 + $0x3a] sm:$0xff]
        %v1982 = vld [vmem:[%s1773 + $0x4a] sm:$0xff]
        %v1983 = vld [vmem:[%s1773 + $0x52] sm:$0xff]
        %v1984 = vld [vmem:[%s1773 + $0x62] sm:$0xff]
        %v1985 = vld [vmem:[%s1773 + $0x6a] sm:$0xff]
        %v1986 = vld [vmem:[%s1773 + $0x7a] sm:$0xff]
        %v1987 = vld [vmem:[%s1773 + $0x82] sm:$0xff]
        %v1988 = vld [vmem:[%s1773 + $0x92] sm:$0xff]
        %v1989 = vld [vmem:[%s1773 + $0x9a] sm:$0xff]
        %v1990 = vld [vmem:[%s1773 + $0xaa] sm:$0xff]
        %v1991 = vld [vmem:[%s1773 + $0xb2] sm:$0xff]
        %v1992 = vld [vmem:[%s1773 + $0xc2] sm:$0xff]
        %v1993 = vld [vmem:[%s1773 + $0xca] sm:$0xff]
        %v1994 = vld [vmem:[%s1773 + $0xda] sm:$0xff]
        %v1995 = vld [vmem:[%s1773 + $0xe2] sm:$0xff]
        %v1996 = vld [vmem:[%s1773 + $0xf2] sm:$0xff]
        %v1997 = vld [vmem:[%s1773 + $0xfa] sm:$0xff]
        %v1998 = vld [vmem:[%s1773 + $0x10a] sm:$0xff]
        %v1999 = vld [vmem:[%s1773 + $0x112] sm:$0xff]
        %v2000 = vld [vmem:[%s1773 + $0x122] sm:$0xff]
        %v2001 = vld [vmem:[%s1773 + $0x12a] sm:$0xff]
        %v2002 = vld [vmem:[%s1773 + $0x13a] sm:$0xff]
        %v2003 = vld [vmem:[%s1773 + $0x142] sm:$0xff]
        %v2004 = vld [vmem:[%s1773 + $0x152] sm:$0xff]
        %v2005 = vld [vmem:[%s1773 + $0x15a] sm:$0xff]
        %v2006 = vld [vmem:[%s1773 + $0x16a] sm:$0xff]
        %v2007 = vld [vmem:[%s1773 + $0x172] sm:$0xff]
        %v2008 = vld [vmem:[%s1 + $0x10] sm:$0x1]
        %v2009 = vlaneseq
        %v2010 = vshrl.u32 %v2009, 7
        %v2011 = vsub.s32 0, %v2010
        %v2012 = vrot.slane %v2008, %v2011
        %v2013 = vmul.f32 %v1976, %v2012
        %v2014 = vmul.f32 %v1977, %v2012
        %v2015 = vmul.f32 %v1978, %v2012
        %v2016 = vmul.f32 %v1979, %v2012
        %v2017 = vmul.f32 %v1980, %v2012
        %v2018 = vmul.f32 %v1981, %v2012
        %v2019 = vmul.f32 %v1982, %v2012
        %v2020 = vmul.f32 %v1983, %v2012
        %v2021 = vmul.f32 %v1984, %v2012
        %v2022 = vmul.f32 %v1985, %v2012
        %v2023 = vmul.f32 %v1986, %v2012
        %v2024 = vmul.f32 %v1987, %v2012
        %v2025 = vmul.f32 %v1988, %v2012
        %v2026 = vmul.f32 %v1989, %v2012
        %v2027 = vmul.f32 %v1990, %v2012
        %v2028 = vmul.f32 %v1991, %v2012
        %v2029 = vmul.f32 %v1992, %v2012
        %v2030 = vmul.f32 %v1993, %v2012
        %v2031 = vmul.f32 %v1994, %v2012
        %v2032 = vmul.f32 %v1995, %v2012
        %v2033 = vmul.f32 %v1996, %v2012
        %v2034 = vmul.f32 %v1997, %v2012
        %v2035 = vmul.f32 %v1998, %v2012
        %v2036 = vmul.f32 %v1999, %v2012
        %v2037 = vmul.f32 %v2000, %v2012
        %v2038 = vmul.f32 %v2001, %v2012
        %v2039 = vmul.f32 %v2002, %v2012
        %v2040 = vmul.f32 %v2003, %v2012
        %v2041 = vmul.f32 %v2004, %v2012
        %v2042 = vmul.f32 %v2005, %v2012
        %v2043 = vmul.f32 %v2006, %v2012
        %v2044 = vmul.f32 %v2007, %v2012
        %v2045 = vadd.f32 %v1944, %v2013
        %v2046 = vadd.f32 %v1945, %v2014
        %v2047 = vadd.f32 %v1946, %v2015
        %v2048 = vadd.f32 %v1947, %v2016
        %v2049 = vadd.f32 %v1948, %v2017
        %v2050 = vadd.f32 %v1949, %v2018
        %v2051 = vadd.f32 %v1950, %v2019
        %v2052 = vadd.f32 %v1951, %v2020
        %v2053 = vadd.f32 %v1952, %v2021
        %v2054 = vadd.f32 %v1953, %v2022
        %v2055 = vadd.f32 %v1954, %v2023
        %v2056 = vadd.f32 %v1955, %v2024
        %v2057 = vadd.f32 %v1956, %v2025
        %v2058 = vadd.f32 %v1957, %v2026
        %v2059 = vadd.f32 %v1958, %v2027
        %v2060 = vadd.f32 %v1959, %v2028
        %v2061 = vadd.f32 %v1960, %v2029
        %v2062 = vadd.f32 %v1961, %v2030
        %v2063 = vadd.f32 %v1962, %v2031
        %v2064 = vadd.f32 %v1963, %v2032
        %v2065 = vadd.f32 %v1964, %v2033
        %v2066 = vadd.f32 %v1965, %v2034
        %v2067 = vadd.f32 %v1966, %v2035
        %v2068 = vadd.f32 %v1967, %v2036
        %v2069 = vadd.f32 %v1968, %v2037
        %v2070 = vadd.f32 %v1969, %v2038
        %v2071 = vadd.f32 %v1970, %v2039
        %v2072 = vadd.f32 %v1971, %v2040
        %v2073 = vadd.f32 %v1972, %v2041
        %v2074 = vadd.f32 %v1973, %v2042
        %v2075 = vadd.f32 %v1974, %v2043
        %v2076 = vadd.f32 %v1975, %v2044
        %v2077 = vld [vmem:[%s1773 + $0x3] sm:$0xff]
        %v2078 = vld [vmem:[%s1773 + $0xb] sm:$0xff]
        %v2079 = vld [vmem:[%s1773 + $0x1b] sm:$0xff]
        %v2080 = vld [vmem:[%s1773 + $0x23] sm:$0xff]
        %v2081 = vld [vmem:[%s1773 + $0x33] sm:$0xff]
        %v2082 = vld [vmem:[%s1773 + $0x3b] sm:$0xff]
        %v2083 = vld [vmem:[%s1773 + $0x4b] sm:$0xff]
        %v2084 = vld [vmem:[%s1773 + $0x53] sm:$0xff]
        %v2085 = vld [vmem:[%s1773 + $0x63] sm:$0xff]
        %v2086 = vld [vmem:[%s1773 + $0x6b] sm:$0xff]
        %v2087 = vld [vmem:[%s1773 + $0x7b] sm:$0xff]
        %v2088 = vld [vmem:[%s1773 + $0x83] sm:$0xff]
        %v2089 = vld [vmem:[%s1773 + $0x93] sm:$0xff]
        %v2090 = vld [vmem:[%s1773 + $0x9b] sm:$0xff]
        %v2091 = vld [vmem:[%s1773 + $0xab] sm:$0xff]
        %v2092 = vld [vmem:[%s1773 + $0xb3] sm:$0xff]
        %v2093 = vld [vmem:[%s1773 + $0xc3] sm:$0xff]
        %v2094 = vld [vmem:[%s1773 + $0xcb] sm:$0xff]
        %v2095 = vld [vmem:[%s1773 + $0xdb] sm:$0xff]
        %v2096 = vld [vmem:[%s1773 + $0xe3] sm:$0xff]
        %v2097 = vld [vmem:[%s1773 + $0xf3] sm:$0xff]
        %v2098 = vld [vmem:[%s1773 + $0xfb] sm:$0xff]
        %v2099 = vld [vmem:[%s1773 + $0x10b] sm:$0xff]
        %v2100 = vld [vmem:[%s1773 + $0x113] sm:$0xff]
        %v2101 = vld [vmem:[%s1773 + $0x123] sm:$0xff]
        %v2102 = vld [vmem:[%s1773 + $0x12b] sm:$0xff]
        %v2103 = vld [vmem:[%s1773 + $0x13b] sm:$0xff]
        %v2104 = vld [vmem:[%s1773 + $0x143] sm:$0xff]
        %v2105 = vld [vmem:[%s1773 + $0x153] sm:$0xff]
        %v2106 = vld [vmem:[%s1773 + $0x15b] sm:$0xff]
        %v2107 = vld [vmem:[%s1773 + $0x16b] sm:$0xff]
        %v2108 = vld [vmem:[%s1773 + $0x173] sm:$0xff]
        %v2109 = vld [vmem:[%s1 + $0x11] sm:$0x1]
        %v2110 = vlaneseq
        %v2111 = vshrl.u32 %v2110, 7
        %v2112 = vsub.s32 0, %v2111
        %v2113 = vrot.slane %v2109, %v2112
        %v2114 = vmul.f32 %v2077, %v2113
        %v2115 = vmul.f32 %v2078, %v2113
        %v2116 = vmul.f32 %v2079, %v2113
        %v2117 = vmul.f32 %v2080, %v2113
        %v2118 = vmul.f32 %v2081, %v2113
        %v2119 = vmul.f32 %v2082, %v2113
        %v2120 = vmul.f32 %v2083, %v2113
        %v2121 = vmul.f32 %v2084, %v2113
        %v2122 = vmul.f32 %v2085, %v2113
        %v2123 = vmul.f32 %v2086, %v2113
        %v2124 = vmul.f32 %v2087, %v2113
        %v2125 = vmul.f32 %v2088, %v2113
        %v2126 = vmul.f32 %v2089, %v2113
        %v2127 = vmul.f32 %v2090, %v2113
        %v2128 = vmul.f32 %v2091, %v2113
        %v2129 = vmul.f32 %v2092, %v2113
        %v2130 = vmul.f32 %v2093, %v2113
        %v2131 = vmul.f32 %v2094, %v2113
        %v2132 = vmul.f32 %v2095, %v2113
        %v2133 = vmul.f32 %v2096, %v2113
        %v2134 = vmul.f32 %v2097, %v2113
        %v2135 = vmul.f32 %v2098, %v2113
        %v2136 = vmul.f32 %v2099, %v2113
        %v2137 = vmul.f32 %v2100, %v2113
        %v2138 = vmul.f32 %v2101, %v2113
        %v2139 = vmul.f32 %v2102, %v2113
        %v2140 = vmul.f32 %v2103, %v2113
        %v2141 = vmul.f32 %v2104, %v2113
        %v2142 = vmul.f32 %v2105, %v2113
        %v2143 = vmul.f32 %v2106, %v2113
        %v2144 = vmul.f32 %v2107, %v2113
        %v2145 = vmul.f32 %v2108, %v2113
        %v2146 = vadd.f32 %v2045, %v2114
        %v2147 = vadd.f32 %v2046, %v2115
        %v2148 = vadd.f32 %v2047, %v2116
        %v2149 = vadd.f32 %v2048, %v2117
        %v2150 = vadd.f32 %v2049, %v2118
        %v2151 = vadd.f32 %v2050, %v2119
        %v2152 = vadd.f32 %v2051, %v2120
        %v2153 = vadd.f32 %v2052, %v2121
        %v2154 = vadd.f32 %v2053, %v2122
        %v2155 = vadd.f32 %v2054, %v2123
        %v2156 = vadd.f32 %v2055, %v2124
        %v2157 = vadd.f32 %v2056, %v2125
        %v2158 = vadd.f32 %v2057, %v2126
        %v2159 = vadd.f32 %v2058, %v2127
        %v2160 = vadd.f32 %v2059, %v2128
        %v2161 = vadd.f32 %v2060, %v2129
        %v2162 = vadd.f32 %v2061, %v2130
        %v2163 = vadd.f32 %v2062, %v2131
        %v2164 = vadd.f32 %v2063, %v2132
        %v2165 = vadd.f32 %v2064, %v2133
        %v2166 = vadd.f32 %v2065, %v2134
        %v2167 = vadd.f32 %v2066, %v2135
        %v2168 = vadd.f32 %v2067, %v2136
        %v2169 = vadd.f32 %v2068, %v2137
        %v2170 = vadd.f32 %v2069, %v2138
        %v2171 = vadd.f32 %v2070, %v2139
        %v2172 = vadd.f32 %v2071, %v2140
        %v2173 = vadd.f32 %v2072, %v2141
        %v2174 = vadd.f32 %v2073, %v2142
        %v2175 = vadd.f32 %v2074, %v2143
        %v2176 = vadd.f32 %v2075, %v2144
        %v2177 = vadd.f32 %v2076, %v2145
        %v2178 = vld [vmem:[%s1773 + $0x4] sm:$0xff]
        %v2179 = vld [vmem:[%s1773 + $0xc] sm:$0xff]
        %v2180 = vld [vmem:[%s1773 + $0x1c] sm:$0xff]
        %v2181 = vld [vmem:[%s1773 + $0x24] sm:$0xff]
        %v2182 = vld [vmem:[%s1773 + $0x34] sm:$0xff]
        %v2183 = vld [vmem:[%s1773 + $0x3c] sm:$0xff]
        %v2184 = vld [vmem:[%s1773 + $0x4c] sm:$0xff]
        %v2185 = vld [vmem:[%s1773 + $0x54] sm:$0xff]
        %v2186 = vld [vmem:[%s1773 + $0x64] sm:$0xff]
        %v2187 = vld [vmem:[%s1773 + $0x6c] sm:$0xff]
        %v2188 = vld [vmem:[%s1773 + $0x7c] sm:$0xff]
        %v2189 = vld [vmem:[%s1773 + $0x84] sm:$0xff]
        %v2190 = vld [vmem:[%s1773 + $0x94] sm:$0xff]
        %v2191 = vld [vmem:[%s1773 + $0x9c] sm:$0xff]
        %v2192 = vld [vmem:[%s1773 + $0xac] sm:$0xff]
        %v2193 = vld [vmem:[%s1773 + $0xb4] sm:$0xff]
        %v2194 = vld [vmem:[%s1773 + $0xc4] sm:$0xff]
        %v2195 = vld [vmem:[%s1773 + $0xcc] sm:$0xff]
        %v2196 = vld [vmem:[%s1773 + $0xdc] sm:$0xff]
        %v2197 = vld [vmem:[%s1773 + $0xe4] sm:$0xff]
        %v2198 = vld [vmem:[%s1773 + $0xf4] sm:$0xff]
        %v2199 = vld [vmem:[%s1773 + $0xfc] sm:$0xff]
        %v2200 = vld [vmem:[%s1773 + $0x10c] sm:$0xff]
        %v2201 = vld [vmem:[%s1773 + $0x114] sm:$0xff]
        %v2202 = vld [vmem:[%s1773 + $0x124] sm:$0xff]
        %v2203 = vld [vmem:[%s1773 + $0x12c] sm:$0xff]
        %v2204 = vld [vmem:[%s1773 + $0x13c] sm:$0xff]
        %v2205 = vld [vmem:[%s1773 + $0x144] sm:$0xff]
        %v2206 = vld [vmem:[%s1773 + $0x154] sm:$0xff]
        %v2207 = vld [vmem:[%s1773 + $0x15c] sm:$0xff]
        %v2208 = vld [vmem:[%s1773 + $0x16c] sm:$0xff]
        %v2209 = vld [vmem:[%s1773 + $0x174] sm:$0xff]
        %v2210 = vld [vmem:[%s1 + $0x12] sm:$0x1]
        %v2211 = vlaneseq
        %v2212 = vshrl.u32 %v2211, 7
        %v2213 = vsub.s32 0, %v2212
        %v2214 = vrot.slane %v2210, %v2213
        %v2215 = vmul.f32 %v2178, %v2214
        %v2216 = vmul.f32 %v2179, %v2214
        %v2217 = vmul.f32 %v2180, %v2214
        %v2218 = vmul.f32 %v2181, %v2214
        %v2219 = vmul.f32 %v2182, %v2214
        %v2220 = vmul.f32 %v2183, %v2214
        %v2221 = vmul.f32 %v2184, %v2214
        %v2222 = vmul.f32 %v2185, %v2214
        %v2223 = vmul.f32 %v2186, %v2214
        %v2224 = vmul.f32 %v2187, %v2214
        %v2225 = vmul.f32 %v2188, %v2214
        %v2226 = vmul.f32 %v2189, %v2214
        %v2227 = vmul.f32 %v2190, %v2214
        %v2228 = vmul.f32 %v2191, %v2214
        %v2229 = vmul.f32 %v2192, %v2214
        %v2230 = vmul.f32 %v2193, %v2214
        %v2231 = vmul.f32 %v2194, %v2214
        %v2232 = vmul.f32 %v2195, %v2214
        %v2233 = vmul.f32 %v2196, %v2214
        %v2234 = vmul.f32 %v2197, %v2214
        %v2235 = vmul.f32 %v2198, %v2214
        %v2236 = vmul.f32 %v2199, %v2214
        %v2237 = vmul.f32 %v2200, %v2214
        %v2238 = vmul.f32 %v2201, %v2214
        %v2239 = vmul.f32 %v2202, %v2214
        %v2240 = vmul.f32 %v2203, %v2214
        %v2241 = vmul.f32 %v2204, %v2214
        %v2242 = vmul.f32 %v2205, %v2214
        %v2243 = vmul.f32 %v2206, %v2214
        %v2244 = vmul.f32 %v2207, %v2214
        %v2245 = vmul.f32 %v2208, %v2214
        %v2246 = vmul.f32 %v2209, %v2214
        %v2247 = vadd.f32 %v2146, %v2215
        %v2248 = vadd.f32 %v2147, %v2216
        %v2249 = vadd.f32 %v2148, %v2217
        %v2250 = vadd.f32 %v2149, %v2218
        %v2251 = vadd.f32 %v2150, %v2219
        %v2252 = vadd.f32 %v2151, %v2220
        %v2253 = vadd.f32 %v2152, %v2221
        %v2254 = vadd.f32 %v2153, %v2222
        %v2255 = vadd.f32 %v2154, %v2223
        %v2256 = vadd.f32 %v2155, %v2224
        %v2257 = vadd.f32 %v2156, %v2225
        %v2258 = vadd.f32 %v2157, %v2226
        %v2259 = vadd.f32 %v2158, %v2227
        %v2260 = vadd.f32 %v2159, %v2228
        %v2261 = vadd.f32 %v2160, %v2229
        %v2262 = vadd.f32 %v2161, %v2230
        %v2263 = vadd.f32 %v2162, %v2231
        %v2264 = vadd.f32 %v2163, %v2232
        %v2265 = vadd.f32 %v2164, %v2233
        %v2266 = vadd.f32 %v2165, %v2234
        %v2267 = vadd.f32 %v2166, %v2235
        %v2268 = vadd.f32 %v2167, %v2236
        %v2269 = vadd.f32 %v2168, %v2237
        %v2270 = vadd.f32 %v2169, %v2238
        %v2271 = vadd.f32 %v2170, %v2239
        %v2272 = vadd.f32 %v2171, %v2240
        %v2273 = vadd.f32 %v2172, %v2241
        %v2274 = vadd.f32 %v2173, %v2242
        %v2275 = vadd.f32 %v2174, %v2243
        %v2276 = vadd.f32 %v2175, %v2244
        %v2277 = vadd.f32 %v2176, %v2245
        %v2278 = vadd.f32 %v2177, %v2246
        %v2279 = vld [vmem:[%s1773 + $0x5] sm:$0xff]
        %v2280 = vld [vmem:[%s1773 + $0xd] sm:$0xff]
        %v2281 = vld [vmem:[%s1773 + $0x1d] sm:$0xff]
        %v2282 = vld [vmem:[%s1773 + $0x25] sm:$0xff]
        %v2283 = vld [vmem:[%s1773 + $0x35] sm:$0xff]
        %v2284 = vld [vmem:[%s1773 + $0x3d] sm:$0xff]
        %v2285 = vld [vmem:[%s1773 + $0x4d] sm:$0xff]
        %v2286 = vld [vmem:[%s1773 + $0x55] sm:$0xff]
        %v2287 = vld [vmem:[%s1773 + $0x65] sm:$0xff]
        %v2288 = vld [vmem:[%s1773 + $0x6d] sm:$0xff]
        %v2289 = vld [vmem:[%s1773 + $0x7d] sm:$0xff]
        %v2290 = vld [vmem:[%s1773 + $0x85] sm:$0xff]
        %v2291 = vld [vmem:[%s1773 + $0x95] sm:$0xff]
        %v2292 = vld [vmem:[%s1773 + $0x9d] sm:$0xff]
        %v2293 = vld [vmem:[%s1773 + $0xad] sm:$0xff]
        %v2294 = vld [vmem:[%s1773 + $0xb5] sm:$0xff]
        %v2295 = vld [vmem:[%s1773 + $0xc5] sm:$0xff]
        %v2296 = vld [vmem:[%s1773 + $0xcd] sm:$0xff]
        %v2297 = vld [vmem:[%s1773 + $0xdd] sm:$0xff]
        %v2298 = vld [vmem:[%s1773 + $0xe5] sm:$0xff]
        %v2299 = vld [vmem:[%s1773 + $0xf5] sm:$0xff]
        %v2300 = vld [vmem:[%s1773 + $0xfd] sm:$0xff]
        %v2301 = vld [vmem:[%s1773 + $0x10d] sm:$0xff]
        %v2302 = vld [vmem:[%s1773 + $0x115] sm:$0xff]
        %v2303 = vld [vmem:[%s1773 + $0x125] sm:$0xff]
        %v2304 = vld [vmem:[%s1773 + $0x12d] sm:$0xff]
        %v2305 = vld [vmem:[%s1773 + $0x13d] sm:$0xff]
        %v2306 = vld [vmem:[%s1773 + $0x145] sm:$0xff]
        %v2307 = vld [vmem:[%s1773 + $0x155] sm:$0xff]
        %v2308 = vld [vmem:[%s1773 + $0x15d] sm:$0xff]
        %v2309 = vld [vmem:[%s1773 + $0x16d] sm:$0xff]
        %v2310 = vld [vmem:[%s1773 + $0x175] sm:$0xff]
        %v2311 = vld [vmem:[%s1 + $0x13] sm:$0x1]
        %v2312 = vlaneseq
        %v2313 = vshrl.u32 %v2312, 7
        %v2314 = vsub.s32 0, %v2313
        %v2315 = vrot.slane %v2311, %v2314
        %v2316 = vmul.f32 %v2279, %v2315
        %v2317 = vmul.f32 %v2280, %v2315
        %v2318 = vmul.f32 %v2281, %v2315
        %v2319 = vmul.f32 %v2282, %v2315
        %v2320 = vmul.f32 %v2283, %v2315
        %v2321 = vmul.f32 %v2284, %v2315
        %v2322 = vmul.f32 %v2285, %v2315
        %v2323 = vmul.f32 %v2286, %v2315
        %v2324 = vmul.f32 %v2287, %v2315
        %v2325 = vmul.f32 %v2288, %v2315
        %v2326 = vmul.f32 %v2289, %v2315
        %v2327 = vmul.f32 %v2290, %v2315
        %v2328 = vmul.f32 %v2291, %v2315
        %v2329 = vmul.f32 %v2292, %v2315
        %v2330 = vmul.f32 %v2293, %v2315
        %v2331 = vmul.f32 %v2294, %v2315
        %v2332 = vmul.f32 %v2295, %v2315
        %v2333 = vmul.f32 %v2296, %v2315
        %v2334 = vmul.f32 %v2297, %v2315
        %v2335 = vmul.f32 %v2298, %v2315
        %v2336 = vmul.f32 %v2299, %v2315
        %v2337 = vmul.f32 %v2300, %v2315
        %v2338 = vmul.f32 %v2301, %v2315
        %v2339 = vmul.f32 %v2302, %v2315
        %v2340 = vmul.f32 %v2303, %v2315
        %v2341 = vmul.f32 %v2304, %v2315
        %v2342 = vmul.f32 %v2305, %v2315
        %v2343 = vmul.f32 %v2306, %v2315
        %v2344 = vmul.f32 %v2307, %v2315
        %v2345 = vmul.f32 %v2308, %v2315
        %v2346 = vmul.f32 %v2309, %v2315
        %v2347 = vmul.f32 %v2310, %v2315
        %v2348 = vadd.f32 %v2247, %v2316
        %v2349 = vadd.f32 %v2248, %v2317
        %v2350 = vadd.f32 %v2249, %v2318
        %v2351 = vadd.f32 %v2250, %v2319
        %v2352 = vadd.f32 %v2251, %v2320
        %v2353 = vadd.f32 %v2252, %v2321
        %v2354 = vadd.f32 %v2253, %v2322
        %v2355 = vadd.f32 %v2254, %v2323
        %v2356 = vadd.f32 %v2255, %v2324
        %v2357 = vadd.f32 %v2256, %v2325
        %v2358 = vadd.f32 %v2257, %v2326
        %v2359 = vadd.f32 %v2258, %v2327
        %v2360 = vadd.f32 %v2259, %v2328
        %v2361 = vadd.f32 %v2260, %v2329
        %v2362 = vadd.f32 %v2261, %v2330
        %v2363 = vadd.f32 %v2262, %v2331
        %v2364 = vadd.f32 %v2263, %v2332
        %v2365 = vadd.f32 %v2264, %v2333
        %v2366 = vadd.f32 %v2265, %v2334
        %v2367 = vadd.f32 %v2266, %v2335
        %v2368 = vadd.f32 %v2267, %v2336
        %v2369 = vadd.f32 %v2268, %v2337
        %v2370 = vadd.f32 %v2269, %v2338
        %v2371 = vadd.f32 %v2270, %v2339
        %v2372 = vadd.f32 %v2271, %v2340
        %v2373 = vadd.f32 %v2272, %v2341
        %v2374 = vadd.f32 %v2273, %v2342
        %v2375 = vadd.f32 %v2274, %v2343
        %v2376 = vadd.f32 %v2275, %v2344
        %v2377 = vadd.f32 %v2276, %v2345
        %v2378 = vadd.f32 %v2277, %v2346
        %v2379 = vadd.f32 %v2278, %v2347
        %v2380 = vld [vmem:[%s1773 + $0x6] sm:$0xff]
        %v2381 = vld [vmem:[%s1773 + $0xe] sm:$0xff]
        %v2382 = vld [vmem:[%s1773 + $0x1e] sm:$0xff]
        %v2383 = vld [vmem:[%s1773 + $0x26] sm:$0xff]
        %v2384 = vld [vmem:[%s1773 + $0x36] sm:$0xff]
        %v2385 = vld [vmem:[%s1773 + $0x3e] sm:$0xff]
        %v2386 = vld [vmem:[%s1773 + $0x4e] sm:$0xff]
        %v2387 = vld [vmem:[%s1773 + $0x56] sm:$0xff]
        %v2388 = vld [vmem:[%s1773 + $0x66] sm:$0xff]
        %v2389 = vld [vmem:[%s1773 + $0x6e] sm:$0xff]
        %v2390 = vld [vmem:[%s1773 + $0x7e] sm:$0xff]
        %v2391 = vld [vmem:[%s1773 + $0x86] sm:$0xff]
        %v2392 = vld [vmem:[%s1773 + $0x96] sm:$0xff]
        %v2393 = vld [vmem:[%s1773 + $0x9e] sm:$0xff]
        %v2394 = vld [vmem:[%s1773 + $0xae] sm:$0xff]
        %v2395 = vld [vmem:[%s1773 + $0xb6] sm:$0xff]
        %v2396 = vld [vmem:[%s1773 + $0xc6] sm:$0xff]
        %v2397 = vld [vmem:[%s1773 + $0xce] sm:$0xff]
        %v2398 = vld [vmem:[%s1773 + $0xde] sm:$0xff]
        %v2399 = vld [vmem:[%s1773 + $0xe6] sm:$0xff]
        %v2400 = vld [vmem:[%s1773 + $0xf6] sm:$0xff]
        %v2401 = vld [vmem:[%s1773 + $0xfe] sm:$0xff]
        %v2402 = vld [vmem:[%s1773 + $0x10e] sm:$0xff]
        %v2403 = vld [vmem:[%s1773 + $0x116] sm:$0xff]
        %v2404 = vld [vmem:[%s1773 + $0x126] sm:$0xff]
        %v2405 = vld [vmem:[%s1773 + $0x12e] sm:$0xff]
        %v2406 = vld [vmem:[%s1773 + $0x13e] sm:$0xff]
        %v2407 = vld [vmem:[%s1773 + $0x146] sm:$0xff]
        %v2408 = vld [vmem:[%s1773 + $0x156] sm:$0xff]
        %v2409 = vld [vmem:[%s1773 + $0x15e] sm:$0xff]
        %v2410 = vld [vmem:[%s1773 + $0x16e] sm:$0xff]
        %v2411 = vld [vmem:[%s1773 + $0x176] sm:$0xff]
        %v2412 = vld [vmem:[%s1 + $0x14] sm:$0x1]
        %v2413 = vlaneseq
        %v2414 = vshrl.u32 %v2413, 7
        %v2415 = vsub.s32 0, %v2414
        %v2416 = vrot.slane %v2412, %v2415
        %v2417 = vmul.f32 %v2380, %v2416
        %v2418 = vmul.f32 %v2381, %v2416
        %v2419 = vmul.f32 %v2382, %v2416
        %v2420 = vmul.f32 %v2383, %v2416
        %v2421 = vmul.f32 %v2384, %v2416
        %v2422 = vmul.f32 %v2385, %v2416
        %v2423 = vmul.f32 %v2386, %v2416
        %v2424 = vmul.f32 %v2387, %v2416
        %v2425 = vmul.f32 %v2388, %v2416
        %v2426 = vmul.f32 %v2389, %v2416
        %v2427 = vmul.f32 %v2390, %v2416
        %v2428 = vmul.f32 %v2391, %v2416
        %v2429 = vmul.f32 %v2392, %v2416
        %v2430 = vmul.f32 %v2393, %v2416
        %v2431 = vmul.f32 %v2394, %v2416
        %v2432 = vmul.f32 %v2395, %v2416
        %v2433 = vmul.f32 %v2396, %v2416
        %v2434 = vmul.f32 %v2397, %v2416
        %v2435 = vmul.f32 %v2398, %v2416
        %v2436 = vmul.f32 %v2399, %v2416
        %v2437 = vmul.f32 %v2400, %v2416
        %v2438 = vmul.f32 %v2401, %v2416
        %v2439 = vmul.f32 %v2402, %v2416
        %v2440 = vmul.f32 %v2403, %v2416
        %v2441 = vmul.f32 %v2404, %v2416
        %v2442 = vmul.f32 %v2405, %v2416
        %v2443 = vmul.f32 %v2406, %v2416
        %v2444 = vmul.f32 %v2407, %v2416
        %v2445 = vmul.f32 %v2408, %v2416
        %v2446 = vmul.f32 %v2409, %v2416
        %v2447 = vmul.f32 %v2410, %v2416
        %v2448 = vmul.f32 %v2411, %v2416
        %v2449 = vadd.f32 %v2348, %v2417
        %v2450 = vadd.f32 %v2349, %v2418
        %v2451 = vadd.f32 %v2350, %v2419
        %v2452 = vadd.f32 %v2351, %v2420
        %v2453 = vadd.f32 %v2352, %v2421
        %v2454 = vadd.f32 %v2353, %v2422
        %v2455 = vadd.f32 %v2354, %v2423
        %v2456 = vadd.f32 %v2355, %v2424
        %v2457 = vadd.f32 %v2356, %v2425
        %v2458 = vadd.f32 %v2357, %v2426
        %v2459 = vadd.f32 %v2358, %v2427
        %v2460 = vadd.f32 %v2359, %v2428
        %v2461 = vadd.f32 %v2360, %v2429
        %v2462 = vadd.f32 %v2361, %v2430
        %v2463 = vadd.f32 %v2362, %v2431
        %v2464 = vadd.f32 %v2363, %v2432
        %v2465 = vadd.f32 %v2364, %v2433
        %v2466 = vadd.f32 %v2365, %v2434
        %v2467 = vadd.f32 %v2366, %v2435
        %v2468 = vadd.f32 %v2367, %v2436
        %v2469 = vadd.f32 %v2368, %v2437
        %v2470 = vadd.f32 %v2369, %v2438
        %v2471 = vadd.f32 %v2370, %v2439
        %v2472 = vadd.f32 %v2371, %v2440
        %v2473 = vadd.f32 %v2372, %v2441
        %v2474 = vadd.f32 %v2373, %v2442
        %v2475 = vadd.f32 %v2374, %v2443
        %v2476 = vadd.f32 %v2375, %v2444
        %v2477 = vadd.f32 %v2376, %v2445
        %v2478 = vadd.f32 %v2377, %v2446
        %v2479 = vadd.f32 %v2378, %v2447
        %v2480 = vadd.f32 %v2379, %v2448
        %s2481 = scalar_lea.vmem %s357, 72
        %v2482 = vld [vmem:[%s2481] sm:$0xff]
        %v2483 = vld [vmem:[%s2481 + $0x8] sm:$0xff]
        %v2484 = vld [vmem:[%s2481 + $0x18] sm:$0xff]
        %v2485 = vld [vmem:[%s2481 + $0x20] sm:$0xff]
        %v2486 = vld [vmem:[%s2481 + $0x30] sm:$0xff]
        %v2487 = vld [vmem:[%s2481 + $0x38] sm:$0xff]
        %v2488 = vld [vmem:[%s2481 + $0x48] sm:$0xff]
        %v2489 = vld [vmem:[%s2481 + $0x50] sm:$0xff]
        %v2490 = vld [vmem:[%s2481 + $0x60] sm:$0xff]
        %v2491 = vld [vmem:[%s2481 + $0x68] sm:$0xff]
        %v2492 = vld [vmem:[%s2481 + $0x78] sm:$0xff]
        %v2493 = vld [vmem:[%s2481 + $0x80] sm:$0xff]
        %v2494 = vld [vmem:[%s2481 + $0x90] sm:$0xff]
        %v2495 = vld [vmem:[%s2481 + $0x98] sm:$0xff]
        %v2496 = vld [vmem:[%s2481 + $0xa8] sm:$0xff]
        %v2497 = vld [vmem:[%s2481 + $0xb0] sm:$0xff]
        %v2498 = vld [vmem:[%s2481 + $0xc0] sm:$0xff]
        %v2499 = vld [vmem:[%s2481 + $0xc8] sm:$0xff]
        %v2500 = vld [vmem:[%s2481 + $0xd8] sm:$0xff]
        %v2501 = vld [vmem:[%s2481 + $0xe0] sm:$0xff]
        %v2502 = vld [vmem:[%s2481 + $0xf0] sm:$0xff]
        %v2503 = vld [vmem:[%s2481 + $0xf8] sm:$0xff]
        %v2504 = vld [vmem:[%s2481 + $0x108] sm:$0xff]
        %v2505 = vld [vmem:[%s2481 + $0x110] sm:$0xff]
        %v2506 = vld [vmem:[%s2481 + $0x120] sm:$0xff]
        %v2507 = vld [vmem:[%s2481 + $0x128] sm:$0xff]
        %v2508 = vld [vmem:[%s2481 + $0x138] sm:$0xff]
        %v2509 = vld [vmem:[%s2481 + $0x140] sm:$0xff]
        %v2510 = vld [vmem:[%s2481 + $0x150] sm:$0xff]
        %v2511 = vld [vmem:[%s2481 + $0x158] sm:$0xff]
        %v2512 = vld [vmem:[%s2481 + $0x168] sm:$0xff]
        %v2513 = vld [vmem:[%s2481 + $0x170] sm:$0xff]
        %v2514 = vld [vmem:[%s1 + $0x15] sm:$0x1]
        %v2515 = vlaneseq
        %v2516 = vshrl.u32 %v2515, 7
        %v2517 = vsub.s32 0, %v2516
        %v2518 = vrot.slane %v2514, %v2517
        %v2519 = vmul.f32 %v2482, %v2518
        %v2520 = vmul.f32 %v2483, %v2518
        %v2521 = vmul.f32 %v2484, %v2518
        %v2522 = vmul.f32 %v2485, %v2518
        %v2523 = vmul.f32 %v2486, %v2518
        %v2524 = vmul.f32 %v2487, %v2518
        %v2525 = vmul.f32 %v2488, %v2518
        %v2526 = vmul.f32 %v2489, %v2518
        %v2527 = vmul.f32 %v2490, %v2518
        %v2528 = vmul.f32 %v2491, %v2518
        %v2529 = vmul.f32 %v2492, %v2518
        %v2530 = vmul.f32 %v2493, %v2518
        %v2531 = vmul.f32 %v2494, %v2518
        %v2532 = vmul.f32 %v2495, %v2518
        %v2533 = vmul.f32 %v2496, %v2518
        %v2534 = vmul.f32 %v2497, %v2518
        %v2535 = vmul.f32 %v2498, %v2518
        %v2536 = vmul.f32 %v2499, %v2518
        %v2537 = vmul.f32 %v2500, %v2518
        %v2538 = vmul.f32 %v2501, %v2518
        %v2539 = vmul.f32 %v2502, %v2518
        %v2540 = vmul.f32 %v2503, %v2518
        %v2541 = vmul.f32 %v2504, %v2518
        %v2542 = vmul.f32 %v2505, %v2518
        %v2543 = vmul.f32 %v2506, %v2518
        %v2544 = vmul.f32 %v2507, %v2518
        %v2545 = vmul.f32 %v2508, %v2518
        %v2546 = vmul.f32 %v2509, %v2518
        %v2547 = vmul.f32 %v2510, %v2518
        %v2548 = vmul.f32 %v2511, %v2518
        %v2549 = vmul.f32 %v2512, %v2518
        %v2550 = vmul.f32 %v2513, %v2518
        %v2551 = vadd.f32 %v2449, %v2519
        %v2552 = vadd.f32 %v2450, %v2520
        %v2553 = vadd.f32 %v2451, %v2521
        %v2554 = vadd.f32 %v2452, %v2522
        %v2555 = vadd.f32 %v2453, %v2523
        %v2556 = vadd.f32 %v2454, %v2524
        %v2557 = vadd.f32 %v2455, %v2525
        %v2558 = vadd.f32 %v2456, %v2526
        %v2559 = vadd.f32 %v2457, %v2527
        %v2560 = vadd.f32 %v2458, %v2528
        %v2561 = vadd.f32 %v2459, %v2529
        %v2562 = vadd.f32 %v2460, %v2530
        %v2563 = vadd.f32 %v2461, %v2531
        %v2564 = vadd.f32 %v2462, %v2532
        %v2565 = vadd.f32 %v2463, %v2533
        %v2566 = vadd.f32 %v2464, %v2534
        %v2567 = vadd.f32 %v2465, %v2535
        %v2568 = vadd.f32 %v2466, %v2536
        %v2569 = vadd.f32 %v2467, %v2537
        %v2570 = vadd.f32 %v2468, %v2538
        %v2571 = vadd.f32 %v2469, %v2539
        %v2572 = vadd.f32 %v2470, %v2540
        %v2573 = vadd.f32 %v2471, %v2541
        %v2574 = vadd.f32 %v2472, %v2542
        %v2575 = vadd.f32 %v2473, %v2543
        %v2576 = vadd.f32 %v2474, %v2544
        %v2577 = vadd.f32 %v2475, %v2545
        %v2578 = vadd.f32 %v2476, %v2546
        %v2579 = vadd.f32 %v2477, %v2547
        %v2580 = vadd.f32 %v2478, %v2548
        %v2581 = vadd.f32 %v2479, %v2549
        %v2582 = vadd.f32 %v2480, %v2550
        %v2583 = vld [vmem:[%s2481 + $0x1] sm:$0xff]
        %v2584 = vld [vmem:[%s2481 + $0x9] sm:$0xff]
        %v2585 = vld [vmem:[%s2481 + $0x19] sm:$0xff]
        %v2586 = vld [vmem:[%s2481 + $0x21] sm:$0xff]
        %v2587 = vld [vmem:[%s2481 + $0x31] sm:$0xff]
        %v2588 = vld [vmem:[%s2481 + $0x39] sm:$0xff]
        %v2589 = vld [vmem:[%s2481 + $0x49] sm:$0xff]
        %v2590 = vld [vmem:[%s2481 + $0x51] sm:$0xff]
        %v2591 = vld [vmem:[%s2481 + $0x61] sm:$0xff]
        %v2592 = vld [vmem:[%s2481 + $0x69] sm:$0xff]
        %v2593 = vld [vmem:[%s2481 + $0x79] sm:$0xff]
        %v2594 = vld [vmem:[%s2481 + $0x81] sm:$0xff]
        %v2595 = vld [vmem:[%s2481 + $0x91] sm:$0xff]
        %v2596 = vld [vmem:[%s2481 + $0x99] sm:$0xff]
        %v2597 = vld [vmem:[%s2481 + $0xa9] sm:$0xff]
        %v2598 = vld [vmem:[%s2481 + $0xb1] sm:$0xff]
        %v2599 = vld [vmem:[%s2481 + $0xc1] sm:$0xff]
        %v2600 = vld [vmem:[%s2481 + $0xc9] sm:$0xff]
        %v2601 = vld [vmem:[%s2481 + $0xd9] sm:$0xff]
        %v2602 = vld [vmem:[%s2481 + $0xe1] sm:$0xff]
        %v2603 = vld [vmem:[%s2481 + $0xf1] sm:$0xff]
        %v2604 = vld [vmem:[%s2481 + $0xf9] sm:$0xff]
        %v2605 = vld [vmem:[%s2481 + $0x109] sm:$0xff]
        %v2606 = vld [vmem:[%s2481 + $0x111] sm:$0xff]
        %v2607 = vld [vmem:[%s2481 + $0x121] sm:$0xff]
        %v2608 = vld [vmem:[%s2481 + $0x129] sm:$0xff]
        %v2609 = vld [vmem:[%s2481 + $0x139] sm:$0xff]
        %v2610 = vld [vmem:[%s2481 + $0x141] sm:$0xff]
        %v2611 = vld [vmem:[%s2481 + $0x151] sm:$0xff]
        %v2612 = vld [vmem:[%s2481 + $0x159] sm:$0xff]
        %v2613 = vld [vmem:[%s2481 + $0x169] sm:$0xff]
        %v2614 = vld [vmem:[%s2481 + $0x171] sm:$0xff]
        %v2615 = vld [vmem:[%s1 + $0x16] sm:$0x1]
        %v2616 = vlaneseq
        %v2617 = vshrl.u32 %v2616, 7
        %v2618 = vsub.s32 0, %v2617
        %v2619 = vrot.slane %v2615, %v2618
        %v2620 = vmul.f32 %v2583, %v2619
        %v2621 = vmul.f32 %v2584, %v2619
        %v2622 = vmul.f32 %v2585, %v2619
        %v2623 = vmul.f32 %v2586, %v2619
        %v2624 = vmul.f32 %v2587, %v2619
        %v2625 = vmul.f32 %v2588, %v2619
        %v2626 = vmul.f32 %v2589, %v2619
        %v2627 = vmul.f32 %v2590, %v2619
        %v2628 = vmul.f32 %v2591, %v2619
        %v2629 = vmul.f32 %v2592, %v2619
        %v2630 = vmul.f32 %v2593, %v2619
        %v2631 = vmul.f32 %v2594, %v2619
        %v2632 = vmul.f32 %v2595, %v2619
        %v2633 = vmul.f32 %v2596, %v2619
        %v2634 = vmul.f32 %v2597, %v2619
        %v2635 = vmul.f32 %v2598, %v2619
        %v2636 = vmul.f32 %v2599, %v2619
        %v2637 = vmul.f32 %v2600, %v2619
        %v2638 = vmul.f32 %v2601, %v2619
        %v2639 = vmul.f32 %v2602, %v2619
        %v2640 = vmul.f32 %v2603, %v2619
        %v2641 = vmul.f32 %v2604, %v2619
        %v2642 = vmul.f32 %v2605, %v2619
        %v2643 = vmul.f32 %v2606, %v2619
        %v2644 = vmul.f32 %v2607, %v2619
        %v2645 = vmul.f32 %v2608, %v2619
        %v2646 = vmul.f32 %v2609, %v2619
        %v2647 = vmul.f32 %v2610, %v2619
        %v2648 = vmul.f32 %v2611, %v2619
        %v2649 = vmul.f32 %v2612, %v2619
        %v2650 = vmul.f32 %v2613, %v2619
        %v2651 = vmul.f32 %v2614, %v2619
        %v2652 = vadd.f32 %v2551, %v2620
        %v2653 = vadd.f32 %v2552, %v2621
        %v2654 = vadd.f32 %v2553, %v2622
        %v2655 = vadd.f32 %v2554, %v2623
        %v2656 = vadd.f32 %v2555, %v2624
        %v2657 = vadd.f32 %v2556, %v2625
        %v2658 = vadd.f32 %v2557, %v2626
        %v2659 = vadd.f32 %v2558, %v2627
        %v2660 = vadd.f32 %v2559, %v2628
        %v2661 = vadd.f32 %v2560, %v2629
        %v2662 = vadd.f32 %v2561, %v2630
        %v2663 = vadd.f32 %v2562, %v2631
        %v2664 = vadd.f32 %v2563, %v2632
        %v2665 = vadd.f32 %v2564, %v2633
        %v2666 = vadd.f32 %v2565, %v2634
        %v2667 = vadd.f32 %v2566, %v2635
        %v2668 = vadd.f32 %v2567, %v2636
        %v2669 = vadd.f32 %v2568, %v2637
        %v2670 = vadd.f32 %v2569, %v2638
        %v2671 = vadd.f32 %v2570, %v2639
        %v2672 = vadd.f32 %v2571, %v2640
        %v2673 = vadd.f32 %v2572, %v2641
        %v2674 = vadd.f32 %v2573, %v2642
        %v2675 = vadd.f32 %v2574, %v2643
        %v2676 = vadd.f32 %v2575, %v2644
        %v2677 = vadd.f32 %v2576, %v2645
        %v2678 = vadd.f32 %v2577, %v2646
        %v2679 = vadd.f32 %v2578, %v2647
        %v2680 = vadd.f32 %v2579, %v2648
        %v2681 = vadd.f32 %v2580, %v2649
        %v2682 = vadd.f32 %v2581, %v2650
        %v2683 = vadd.f32 %v2582, %v2651
        %v2684 = vld [vmem:[%s2481 + $0x2] sm:$0xff]
        %v2685 = vld [vmem:[%s2481 + $0xa] sm:$0xff]
        %v2686 = vld [vmem:[%s2481 + $0x1a] sm:$0xff]
        %v2687 = vld [vmem:[%s2481 + $0x22] sm:$0xff]
        %v2688 = vld [vmem:[%s2481 + $0x32] sm:$0xff]
        %v2689 = vld [vmem:[%s2481 + $0x3a] sm:$0xff]
        %v2690 = vld [vmem:[%s2481 + $0x4a] sm:$0xff]
        %v2691 = vld [vmem:[%s2481 + $0x52] sm:$0xff]
        %v2692 = vld [vmem:[%s2481 + $0x62] sm:$0xff]
        %v2693 = vld [vmem:[%s2481 + $0x6a] sm:$0xff]
        %v2694 = vld [vmem:[%s2481 + $0x7a] sm:$0xff]
        %v2695 = vld [vmem:[%s2481 + $0x82] sm:$0xff]
        %v2696 = vld [vmem:[%s2481 + $0x92] sm:$0xff]
        %v2697 = vld [vmem:[%s2481 + $0x9a] sm:$0xff]
        %v2698 = vld [vmem:[%s2481 + $0xaa] sm:$0xff]
        %v2699 = vld [vmem:[%s2481 + $0xb2] sm:$0xff]
        %v2700 = vld [vmem:[%s2481 + $0xc2] sm:$0xff]
        %v2701 = vld [vmem:[%s2481 + $0xca] sm:$0xff]
        %v2702 = vld [vmem:[%s2481 + $0xda] sm:$0xff]
        %v2703 = vld [vmem:[%s2481 + $0xe2] sm:$0xff]
        %v2704 = vld [vmem:[%s2481 + $0xf2] sm:$0xff]
        %v2705 = vld [vmem:[%s2481 + $0xfa] sm:$0xff]
        %v2706 = vld [vmem:[%s2481 + $0x10a] sm:$0xff]
        %v2707 = vld [vmem:[%s2481 + $0x112] sm:$0xff]
        %v2708 = vld [vmem:[%s2481 + $0x122] sm:$0xff]
        %v2709 = vld [vmem:[%s2481 + $0x12a] sm:$0xff]
        %v2710 = vld [vmem:[%s2481 + $0x13a] sm:$0xff]
        %v2711 = vld [vmem:[%s2481 + $0x142] sm:$0xff]
        %v2712 = vld [vmem:[%s2481 + $0x152] sm:$0xff]
        %v2713 = vld [vmem:[%s2481 + $0x15a] sm:$0xff]
        %v2714 = vld [vmem:[%s2481 + $0x16a] sm:$0xff]
        %v2715 = vld [vmem:[%s2481 + $0x172] sm:$0xff]
        %v2716 = vld [vmem:[%s1 + $0x17] sm:$0x1]
        %v2717 = vlaneseq
        %v2718 = vshrl.u32 %v2717, 7
        %v2719 = vsub.s32 0, %v2718
        %v2720 = vrot.slane %v2716, %v2719
        %v2721 = vmul.f32 %v2684, %v2720
        %v2722 = vmul.f32 %v2685, %v2720
        %v2723 = vmul.f32 %v2686, %v2720
        %v2724 = vmul.f32 %v2687, %v2720
        %v2725 = vmul.f32 %v2688, %v2720
        %v2726 = vmul.f32 %v2689, %v2720
        %v2727 = vmul.f32 %v2690, %v2720
        %v2728 = vmul.f32 %v2691, %v2720
        %v2729 = vmul.f32 %v2692, %v2720
        %v2730 = vmul.f32 %v2693, %v2720
        %v2731 = vmul.f32 %v2694, %v2720
        %v2732 = vmul.f32 %v2695, %v2720
        %v2733 = vmul.f32 %v2696, %v2720
        %v2734 = vmul.f32 %v2697, %v2720
        %v2735 = vmul.f32 %v2698, %v2720
        %v2736 = vmul.f32 %v2699, %v2720
        %v2737 = vmul.f32 %v2700, %v2720
        %v2738 = vmul.f32 %v2701, %v2720
        %v2739 = vmul.f32 %v2702, %v2720
        %v2740 = vmul.f32 %v2703, %v2720
        %v2741 = vmul.f32 %v2704, %v2720
        %v2742 = vmul.f32 %v2705, %v2720
        %v2743 = vmul.f32 %v2706, %v2720
        %v2744 = vmul.f32 %v2707, %v2720
        %v2745 = vmul.f32 %v2708, %v2720
        %v2746 = vmul.f32 %v2709, %v2720
        %v2747 = vmul.f32 %v2710, %v2720
        %v2748 = vmul.f32 %v2711, %v2720
        %v2749 = vmul.f32 %v2712, %v2720
        %v2750 = vmul.f32 %v2713, %v2720
        %v2751 = vmul.f32 %v2714, %v2720
        %v2752 = vmul.f32 %v2715, %v2720
        %v2753 = vadd.f32 %v2652, %v2721
        %v2754 = vadd.f32 %v2653, %v2722
        %v2755 = vadd.f32 %v2654, %v2723
        %v2756 = vadd.f32 %v2655, %v2724
        %v2757 = vadd.f32 %v2656, %v2725
        %v2758 = vadd.f32 %v2657, %v2726
        %v2759 = vadd.f32 %v2658, %v2727
        %v2760 = vadd.f32 %v2659, %v2728
        %v2761 = vadd.f32 %v2660, %v2729
        %v2762 = vadd.f32 %v2661, %v2730
        %v2763 = vadd.f32 %v2662, %v2731
        %v2764 = vadd.f32 %v2663, %v2732
        %v2765 = vadd.f32 %v2664, %v2733
        %v2766 = vadd.f32 %v2665, %v2734
        %v2767 = vadd.f32 %v2666, %v2735
        %v2768 = vadd.f32 %v2667, %v2736
        %v2769 = vadd.f32 %v2668, %v2737
        %v2770 = vadd.f32 %v2669, %v2738
        %v2771 = vadd.f32 %v2670, %v2739
        %v2772 = vadd.f32 %v2671, %v2740
        %v2773 = vadd.f32 %v2672, %v2741
        %v2774 = vadd.f32 %v2673, %v2742
        %v2775 = vadd.f32 %v2674, %v2743
        %v2776 = vadd.f32 %v2675, %v2744
        %v2777 = vadd.f32 %v2676, %v2745
        %v2778 = vadd.f32 %v2677, %v2746
        %v2779 = vadd.f32 %v2678, %v2747
        %v2780 = vadd.f32 %v2679, %v2748
        %v2781 = vadd.f32 %v2680, %v2749
        %v2782 = vadd.f32 %v2681, %v2750
        %v2783 = vadd.f32 %v2682, %v2751
        %v2784 = vadd.f32 %v2683, %v2752
        %v2785 = vld [vmem:[%s2481 + $0x3] sm:$0xff]
        %v2786 = vld [vmem:[%s2481 + $0xb] sm:$0xff]
        %v2787 = vld [vmem:[%s2481 + $0x1b] sm:$0xff]
        %v2788 = vld [vmem:[%s2481 + $0x23] sm:$0xff]
        %v2789 = vld [vmem:[%s2481 + $0x33] sm:$0xff]
        %v2790 = vld [vmem:[%s2481 + $0x3b] sm:$0xff]
        %v2791 = vld [vmem:[%s2481 + $0x4b] sm:$0xff]
        %v2792 = vld [vmem:[%s2481 + $0x53] sm:$0xff]
        %v2793 = vld [vmem:[%s2481 + $0x63] sm:$0xff]
        %v2794 = vld [vmem:[%s2481 + $0x6b] sm:$0xff]
        %v2795 = vld [vmem:[%s2481 + $0x7b] sm:$0xff]
        %v2796 = vld [vmem:[%s2481 + $0x83] sm:$0xff]
        %v2797 = vld [vmem:[%s2481 + $0x93] sm:$0xff]
        %v2798 = vld [vmem:[%s2481 + $0x9b] sm:$0xff]
        %v2799 = vld [vmem:[%s2481 + $0xab] sm:$0xff]
        %v2800 = vld [vmem:[%s2481 + $0xb3] sm:$0xff]
        %v2801 = vld [vmem:[%s2481 + $0xc3] sm:$0xff]
        %v2802 = vld [vmem:[%s2481 + $0xcb] sm:$0xff]
        %v2803 = vld [vmem:[%s2481 + $0xdb] sm:$0xff]
        %v2804 = vld [vmem:[%s2481 + $0xe3] sm:$0xff]
        %v2805 = vld [vmem:[%s2481 + $0xf3] sm:$0xff]
        %v2806 = vld [vmem:[%s2481 + $0xfb] sm:$0xff]
        %v2807 = vld [vmem:[%s2481 + $0x10b] sm:$0xff]
        %v2808 = vld [vmem:[%s2481 + $0x113] sm:$0xff]
        %v2809 = vld [vmem:[%s2481 + $0x123] sm:$0xff]
        %v2810 = vld [vmem:[%s2481 + $0x12b] sm:$0xff]
        %v2811 = vld [vmem:[%s2481 + $0x13b] sm:$0xff]
        %v2812 = vld [vmem:[%s2481 + $0x143] sm:$0xff]
        %v2813 = vld [vmem:[%s2481 + $0x153] sm:$0xff]
        %v2814 = vld [vmem:[%s2481 + $0x15b] sm:$0xff]
        %v2815 = vld [vmem:[%s2481 + $0x16b] sm:$0xff]
        %v2816 = vld [vmem:[%s2481 + $0x173] sm:$0xff]
        %v2817 = vld [vmem:[%s1 + $0x18] sm:$0x1]
        %v2818 = vlaneseq
        %v2819 = vshrl.u32 %v2818, 7
        %v2820 = vsub.s32 0, %v2819
        %v2821 = vrot.slane %v2817, %v2820
        %v2822 = vmul.f32 %v2785, %v2821
        %v2823 = vmul.f32 %v2786, %v2821
        %v2824 = vmul.f32 %v2787, %v2821
        %v2825 = vmul.f32 %v2788, %v2821
        %v2826 = vmul.f32 %v2789, %v2821
        %v2827 = vmul.f32 %v2790, %v2821
        %v2828 = vmul.f32 %v2791, %v2821
        %v2829 = vmul.f32 %v2792, %v2821
        %v2830 = vmul.f32 %v2793, %v2821
        %v2831 = vmul.f32 %v2794, %v2821
        %v2832 = vmul.f32 %v2795, %v2821
        %v2833 = vmul.f32 %v2796, %v2821
        %v2834 = vmul.f32 %v2797, %v2821
        %v2835 = vmul.f32 %v2798, %v2821
        %v2836 = vmul.f32 %v2799, %v2821
        %v2837 = vmul.f32 %v2800, %v2821
        %v2838 = vmul.f32 %v2801, %v2821
        %v2839 = vmul.f32 %v2802, %v2821
        %v2840 = vmul.f32 %v2803, %v2821
        %v2841 = vmul.f32 %v2804, %v2821
        %v2842 = vmul.f32 %v2805, %v2821
        %v2843 = vmul.f32 %v2806, %v2821
        %v2844 = vmul.f32 %v2807, %v2821
        %v2845 = vmul.f32 %v2808, %v2821
        %v2846 = vmul.f32 %v2809, %v2821
        %v2847 = vmul.f32 %v2810, %v2821
        %v2848 = vmul.f32 %v2811, %v2821
        %v2849 = vmul.f32 %v2812, %v2821
        %v2850 = vmul.f32 %v2813, %v2821
        %v2851 = vmul.f32 %v2814, %v2821
        %v2852 = vmul.f32 %v2815, %v2821
        %v2853 = vmul.f32 %v2816, %v2821
        %v2854 = vadd.f32 %v2753, %v2822
        %v2855 = vadd.f32 %v2754, %v2823
        %v2856 = vadd.f32 %v2755, %v2824
        %v2857 = vadd.f32 %v2756, %v2825
        %v2858 = vadd.f32 %v2757, %v2826
        %v2859 = vadd.f32 %v2758, %v2827
        %v2860 = vadd.f32 %v2759, %v2828
        %v2861 = vadd.f32 %v2760, %v2829
        %v2862 = vadd.f32 %v2761, %v2830
        %v2863 = vadd.f32 %v2762, %v2831
        %v2864 = vadd.f32 %v2763, %v2832
        %v2865 = vadd.f32 %v2764, %v2833
        %v2866 = vadd.f32 %v2765, %v2834
        %v2867 = vadd.f32 %v2766, %v2835
        %v2868 = vadd.f32 %v2767, %v2836
        %v2869 = vadd.f32 %v2768, %v2837
        %v2870 = vadd.f32 %v2769, %v2838
        %v2871 = vadd.f32 %v2770, %v2839
        %v2872 = vadd.f32 %v2771, %v2840
        %v2873 = vadd.f32 %v2772, %v2841
        %v2874 = vadd.f32 %v2773, %v2842
        %v2875 = vadd.f32 %v2774, %v2843
        %v2876 = vadd.f32 %v2775, %v2844
        %v2877 = vadd.f32 %v2776, %v2845
        %v2878 = vadd.f32 %v2777, %v2846
        %v2879 = vadd.f32 %v2778, %v2847
        %v2880 = vadd.f32 %v2779, %v2848
        %v2881 = vadd.f32 %v2780, %v2849
        %v2882 = vadd.f32 %v2781, %v2850
        %v2883 = vadd.f32 %v2782, %v2851
        %v2884 = vadd.f32 %v2783, %v2852
        %v2885 = vadd.f32 %v2784, %v2853
        %v2886 = vld [vmem:[%s2481 + $0x4] sm:$0xff]
        %v2887 = vld [vmem:[%s2481 + $0xc] sm:$0xff]
        %v2888 = vld [vmem:[%s2481 + $0x1c] sm:$0xff]
        %v2889 = vld [vmem:[%s2481 + $0x24] sm:$0xff]
        %v2890 = vld [vmem:[%s2481 + $0x34] sm:$0xff]
        %v2891 = vld [vmem:[%s2481 + $0x3c] sm:$0xff]
        %v2892 = vld [vmem:[%s2481 + $0x4c] sm:$0xff]
        %v2893 = vld [vmem:[%s2481 + $0x54] sm:$0xff]
        %v2894 = vld [vmem:[%s2481 + $0x64] sm:$0xff]
        %v2895 = vld [vmem:[%s2481 + $0x6c] sm:$0xff]
        %v2896 = vld [vmem:[%s2481 + $0x7c] sm:$0xff]
        %v2897 = vld [vmem:[%s2481 + $0x84] sm:$0xff]
        %v2898 = vld [vmem:[%s2481 + $0x94] sm:$0xff]
        %v2899 = vld [vmem:[%s2481 + $0x9c] sm:$0xff]
        %v2900 = vld [vmem:[%s2481 + $0xac] sm:$0xff]
        %v2901 = vld [vmem:[%s2481 + $0xb4] sm:$0xff]
        %v2902 = vld [vmem:[%s2481 + $0xc4] sm:$0xff]
        %v2903 = vld [vmem:[%s2481 + $0xcc] sm:$0xff]
        %v2904 = vld [vmem:[%s2481 + $0xdc] sm:$0xff]
        %v2905 = vld [vmem:[%s2481 + $0xe4] sm:$0xff]
        %v2906 = vld [vmem:[%s2481 + $0xf4] sm:$0xff]
        %v2907 = vld [vmem:[%s2481 + $0xfc] sm:$0xff]
        %v2908 = vld [vmem:[%s2481 + $0x10c] sm:$0xff]
        %v2909 = vld [vmem:[%s2481 + $0x114] sm:$0xff]
        %v2910 = vld [vmem:[%s2481 + $0x124] sm:$0xff]
        %v2911 = vld [vmem:[%s2481 + $0x12c] sm:$0xff]
        %v2912 = vld [vmem:[%s2481 + $0x13c] sm:$0xff]
        %v2913 = vld [vmem:[%s2481 + $0x144] sm:$0xff]
        %v2914 = vld [vmem:[%s2481 + $0x154] sm:$0xff]
        %v2915 = vld [vmem:[%s2481 + $0x15c] sm:$0xff]
        %v2916 = vld [vmem:[%s2481 + $0x16c] sm:$0xff]
        %v2917 = vld [vmem:[%s2481 + $0x174] sm:$0xff]
        %v2918 = vld [vmem:[%s1 + $0x19] sm:$0x1]
        %v2919 = vlaneseq
        %v2920 = vshrl.u32 %v2919, 7
        %v2921 = vsub.s32 0, %v2920
        %v2922 = vrot.slane %v2918, %v2921
        %v2923 = vmul.f32 %v2886, %v2922
        %v2924 = vmul.f32 %v2887, %v2922
        %v2925 = vmul.f32 %v2888, %v2922
        %v2926 = vmul.f32 %v2889, %v2922
        %v2927 = vmul.f32 %v2890, %v2922
        %v2928 = vmul.f32 %v2891, %v2922
        %v2929 = vmul.f32 %v2892, %v2922
        %v2930 = vmul.f32 %v2893, %v2922
        %v2931 = vmul.f32 %v2894, %v2922
        %v2932 = vmul.f32 %v2895, %v2922
        %v2933 = vmul.f32 %v2896, %v2922
        %v2934 = vmul.f32 %v2897, %v2922
        %v2935 = vmul.f32 %v2898, %v2922
        %v2936 = vmul.f32 %v2899, %v2922
        %v2937 = vmul.f32 %v2900, %v2922
        %v2938 = vmul.f32 %v2901, %v2922
        %v2939 = vmul.f32 %v2902, %v2922
        %v2940 = vmul.f32 %v2903, %v2922
        %v2941 = vmul.f32 %v2904, %v2922
        %v2942 = vmul.f32 %v2905, %v2922
        %v2943 = vmul.f32 %v2906, %v2922
        %v2944 = vmul.f32 %v2907, %v2922
        %v2945 = vmul.f32 %v2908, %v2922
        %v2946 = vmul.f32 %v2909, %v2922
        %v2947 = vmul.f32 %v2910, %v2922
        %v2948 = vmul.f32 %v2911, %v2922
        %v2949 = vmul.f32 %v2912, %v2922
        %v2950 = vmul.f32 %v2913, %v2922
        %v2951 = vmul.f32 %v2914, %v2922
        %v2952 = vmul.f32 %v2915, %v2922
        %v2953 = vmul.f32 %v2916, %v2922
        %v2954 = vmul.f32 %v2917, %v2922
        %v2955 = vadd.f32 %v2854, %v2923
        %v2956 = vadd.f32 %v2855, %v2924
        %v2957 = vadd.f32 %v2856, %v2925
        %v2958 = vadd.f32 %v2857, %v2926
        %v2959 = vadd.f32 %v2858, %v2927
        %v2960 = vadd.f32 %v2859, %v2928
        %v2961 = vadd.f32 %v2860, %v2929
        %v2962 = vadd.f32 %v2861, %v2930
        %v2963 = vadd.f32 %v2862, %v2931
        %v2964 = vadd.f32 %v2863, %v2932
        %v2965 = vadd.f32 %v2864, %v2933
        %v2966 = vadd.f32 %v2865, %v2934
        %v2967 = vadd.f32 %v2866, %v2935
        %v2968 = vadd.f32 %v2867, %v2936
        %v2969 = vadd.f32 %v2868, %v2937
        %v2970 = vadd.f32 %v2869, %v2938
        %v2971 = vadd.f32 %v2870, %v2939
        %v2972 = vadd.f32 %v2871, %v2940
        %v2973 = vadd.f32 %v2872, %v2941
        %v2974 = vadd.f32 %v2873, %v2942
        %v2975 = vadd.f32 %v2874, %v2943
        %v2976 = vadd.f32 %v2875, %v2944
        %v2977 = vadd.f32 %v2876, %v2945
        %v2978 = vadd.f32 %v2877, %v2946
        %v2979 = vadd.f32 %v2878, %v2947
        %v2980 = vadd.f32 %v2879, %v2948
        %v2981 = vadd.f32 %v2880, %v2949
        %v2982 = vadd.f32 %v2881, %v2950
        %v2983 = vadd.f32 %v2882, %v2951
        %v2984 = vadd.f32 %v2883, %v2952
        %v2985 = vadd.f32 %v2884, %v2953
        %v2986 = vadd.f32 %v2885, %v2954
        %v2987 = vld [vmem:[%s2481 + $0x5] sm:$0xff]
        %v2988 = vld [vmem:[%s2481 + $0xd] sm:$0xff]
        %v2989 = vld [vmem:[%s2481 + $0x1d] sm:$0xff]
        %v2990 = vld [vmem:[%s2481 + $0x25] sm:$0xff]
        %v2991 = vld [vmem:[%s2481 + $0x35] sm:$0xff]
        %v2992 = vld [vmem:[%s2481 + $0x3d] sm:$0xff]
        %v2993 = vld [vmem:[%s2481 + $0x4d] sm:$0xff]
        %v2994 = vld [vmem:[%s2481 + $0x55] sm:$0xff]
        %v2995 = vld [vmem:[%s2481 + $0x65] sm:$0xff]
        %v2996 = vld [vmem:[%s2481 + $0x6d] sm:$0xff]
        %v2997 = vld [vmem:[%s2481 + $0x7d] sm:$0xff]
        %v2998 = vld [vmem:[%s2481 + $0x85] sm:$0xff]
        %v2999 = vld [vmem:[%s2481 + $0x95] sm:$0xff]
        %v3000 = vld [vmem:[%s2481 + $0x9d] sm:$0xff]
        %v3001 = vld [vmem:[%s2481 + $0xad] sm:$0xff]
        %v3002 = vld [vmem:[%s2481 + $0xb5] sm:$0xff]
        %v3003 = vld [vmem:[%s2481 + $0xc5] sm:$0xff]
        %v3004 = vld [vmem:[%s2481 + $0xcd] sm:$0xff]
        %v3005 = vld [vmem:[%s2481 + $0xdd] sm:$0xff]
        %v3006 = vld [vmem:[%s2481 + $0xe5] sm:$0xff]
        %v3007 = vld [vmem:[%s2481 + $0xf5] sm:$0xff]
        %v3008 = vld [vmem:[%s2481 + $0xfd] sm:$0xff]
        %v3009 = vld [vmem:[%s2481 + $0x10d] sm:$0xff]
        %v3010 = vld [vmem:[%s2481 + $0x115] sm:$0xff]
        %v3011 = vld [vmem:[%s2481 + $0x125] sm:$0xff]
        %v3012 = vld [vmem:[%s2481 + $0x12d] sm:$0xff]
        %v3013 = vld [vmem:[%s2481 + $0x13d] sm:$0xff]
        %v3014 = vld [vmem:[%s2481 + $0x145] sm:$0xff]
        %v3015 = vld [vmem:[%s2481 + $0x155] sm:$0xff]
        %v3016 = vld [vmem:[%s2481 + $0x15d] sm:$0xff]
        %v3017 = vld [vmem:[%s2481 + $0x16d] sm:$0xff]
        %v3018 = vld [vmem:[%s2481 + $0x175] sm:$0xff]
        %v3019 = vld [vmem:[%s1 + $0x1a] sm:$0x1]
        %v3020 = vlaneseq
        %v3021 = vshrl.u32 %v3020, 7
        %v3022 = vsub.s32 0, %v3021
        %v3023 = vrot.slane %v3019, %v3022
        %v3024 = vmul.f32 %v2987, %v3023
        %v3025 = vmul.f32 %v2988, %v3023
        %v3026 = vmul.f32 %v2989, %v3023
        %v3027 = vmul.f32 %v2990, %v3023
        %v3028 = vmul.f32 %v2991, %v3023
        %v3029 = vmul.f32 %v2992, %v3023
        %v3030 = vmul.f32 %v2993, %v3023
        %v3031 = vmul.f32 %v2994, %v3023
        %v3032 = vmul.f32 %v2995, %v3023
        %v3033 = vmul.f32 %v2996, %v3023
        %v3034 = vmul.f32 %v2997, %v3023
        %v3035 = vmul.f32 %v2998, %v3023
        %v3036 = vmul.f32 %v2999, %v3023
        %v3037 = vmul.f32 %v3000, %v3023
        %v3038 = vmul.f32 %v3001, %v3023
        %v3039 = vmul.f32 %v3002, %v3023
        %v3040 = vmul.f32 %v3003, %v3023
        %v3041 = vmul.f32 %v3004, %v3023
        %v3042 = vmul.f32 %v3005, %v3023
        %v3043 = vmul.f32 %v3006, %v3023
        %v3044 = vmul.f32 %v3007, %v3023
        %v3045 = vmul.f32 %v3008, %v3023
        %v3046 = vmul.f32 %v3009, %v3023
        %v3047 = vmul.f32 %v3010, %v3023
        %v3048 = vmul.f32 %v3011, %v3023
        %v3049 = vmul.f32 %v3012, %v3023
        %v3050 = vmul.f32 %v3013, %v3023
        %v3051 = vmul.f32 %v3014, %v3023
        %v3052 = vmul.f32 %v3015, %v3023
        %v3053 = vmul.f32 %v3016, %v3023
        %v3054 = vmul.f32 %v3017, %v3023
        %v3055 = vmul.f32 %v3018, %v3023
        %v3056 = vadd.f32 %v2955, %v3024
        %v3057 = vadd.f32 %v2956, %v3025
        %v3058 = vadd.f32 %v2957, %v3026
        %v3059 = vadd.f32 %v2958, %v3027
        %v3060 = vadd.f32 %v2959, %v3028
        %v3061 = vadd.f32 %v2960, %v3029
        %v3062 = vadd.f32 %v2961, %v3030
        %v3063 = vadd.f32 %v2962, %v3031
        %v3064 = vadd.f32 %v2963, %v3032
        %v3065 = vadd.f32 %v2964, %v3033
        %v3066 = vadd.f32 %v2965, %v3034
        %v3067 = vadd.f32 %v2966, %v3035
        %v3068 = vadd.f32 %v2967, %v3036
        %v3069 = vadd.f32 %v2968, %v3037
        %v3070 = vadd.f32 %v2969, %v3038
        %v3071 = vadd.f32 %v2970, %v3039
        %v3072 = vadd.f32 %v2971, %v3040
        %v3073 = vadd.f32 %v2972, %v3041
        %v3074 = vadd.f32 %v2973, %v3042
        %v3075 = vadd.f32 %v2974, %v3043
        %v3076 = vadd.f32 %v2975, %v3044
        %v3077 = vadd.f32 %v2976, %v3045
        %v3078 = vadd.f32 %v2977, %v3046
        %v3079 = vadd.f32 %v2978, %v3047
        %v3080 = vadd.f32 %v2979, %v3048
        %v3081 = vadd.f32 %v2980, %v3049
        %v3082 = vadd.f32 %v2981, %v3050
        %v3083 = vadd.f32 %v2982, %v3051
        %v3084 = vadd.f32 %v2983, %v3052
        %v3085 = vadd.f32 %v2984, %v3053
        %v3086 = vadd.f32 %v2985, %v3054
        %v3087 = vadd.f32 %v2986, %v3055
        %v3088 = vld [vmem:[%s2481 + $0x6] sm:$0xff]
        %v3089 = vld [vmem:[%s2481 + $0xe] sm:$0xff]
        %v3090 = vld [vmem:[%s2481 + $0x1e] sm:$0xff]
        %v3091 = vld [vmem:[%s2481 + $0x26] sm:$0xff]
        %v3092 = vld [vmem:[%s2481 + $0x36] sm:$0xff]
        %v3093 = vld [vmem:[%s2481 + $0x3e] sm:$0xff]
        %v3094 = vld [vmem:[%s2481 + $0x4e] sm:$0xff]
        %v3095 = vld [vmem:[%s2481 + $0x56] sm:$0xff]
        %v3096 = vld [vmem:[%s2481 + $0x66] sm:$0xff]
        %v3097 = vld [vmem:[%s2481 + $0x6e] sm:$0xff]
        %v3098 = vld [vmem:[%s2481 + $0x7e] sm:$0xff]
        %v3099 = vld [vmem:[%s2481 + $0x86] sm:$0xff]
        %v3100 = vld [vmem:[%s2481 + $0x96] sm:$0xff]
        %v3101 = vld [vmem:[%s2481 + $0x9e] sm:$0xff]
        %v3102 = vld [vmem:[%s2481 + $0xae] sm:$0xff]
        %v3103 = vld [vmem:[%s2481 + $0xb6] sm:$0xff]
        %v3104 = vld [vmem:[%s2481 + $0xc6] sm:$0xff]
        %v3105 = vld [vmem:[%s2481 + $0xce] sm:$0xff]
        %v3106 = vld [vmem:[%s2481 + $0xde] sm:$0xff]
        %v3107 = vld [vmem:[%s2481 + $0xe6] sm:$0xff]
        %v3108 = vld [vmem:[%s2481 + $0xf6] sm:$0xff]
        %v3109 = vld [vmem:[%s2481 + $0xfe] sm:$0xff]
        %v3110 = vld [vmem:[%s2481 + $0x10e] sm:$0xff]
        %v3111 = vld [vmem:[%s2481 + $0x116] sm:$0xff]
        %v3112 = vld [vmem:[%s2481 + $0x126] sm:$0xff]
        %v3113 = vld [vmem:[%s2481 + $0x12e] sm:$0xff]
        %v3114 = vld [vmem:[%s2481 + $0x13e] sm:$0xff]
        %v3115 = vld [vmem:[%s2481 + $0x146] sm:$0xff]
        %v3116 = vld [vmem:[%s2481 + $0x156] sm:$0xff]
        %v3117 = vld [vmem:[%s2481 + $0x15e] sm:$0xff]
        %v3118 = vld [vmem:[%s2481 + $0x16e] sm:$0xff]
        %v3119 = vld [vmem:[%s2481 + $0x176] sm:$0xff]
        %v3120 = vld [vmem:[%s1 + $0x1b] sm:$0x1]
        %v3121 = vlaneseq
        %v3122 = vshrl.u32 %v3121, 7
        %v3123 = vsub.s32 0, %v3122
        %v3124 = vrot.slane %v3120, %v3123
        %v3125 = vmul.f32 %v3088, %v3124
        %v3126 = vmul.f32 %v3089, %v3124
        %v3127 = vmul.f32 %v3090, %v3124
        %v3128 = vmul.f32 %v3091, %v3124
        %v3129 = vmul.f32 %v3092, %v3124
        %v3130 = vmul.f32 %v3093, %v3124
        %v3131 = vmul.f32 %v3094, %v3124
        %v3132 = vmul.f32 %v3095, %v3124
        %v3133 = vmul.f32 %v3096, %v3124
        %v3134 = vmul.f32 %v3097, %v3124
        %v3135 = vmul.f32 %v3098, %v3124
        %v3136 = vmul.f32 %v3099, %v3124
        %v3137 = vmul.f32 %v3100, %v3124
        %v3138 = vmul.f32 %v3101, %v3124
        %v3139 = vmul.f32 %v3102, %v3124
        %v3140 = vmul.f32 %v3103, %v3124
        %v3141 = vmul.f32 %v3104, %v3124
        %v3142 = vmul.f32 %v3105, %v3124
        %v3143 = vmul.f32 %v3106, %v3124
        %v3144 = vmul.f32 %v3107, %v3124
        %v3145 = vmul.f32 %v3108, %v3124
        %v3146 = vmul.f32 %v3109, %v3124
        %v3147 = vmul.f32 %v3110, %v3124
        %v3148 = vmul.f32 %v3111, %v3124
        %v3149 = vmul.f32 %v3112, %v3124
        %v3150 = vmul.f32 %v3113, %v3124
        %v3151 = vmul.f32 %v3114, %v3124
        %v3152 = vmul.f32 %v3115, %v3124
        %v3153 = vmul.f32 %v3116, %v3124
        %v3154 = vmul.f32 %v3117, %v3124
        %v3155 = vmul.f32 %v3118, %v3124
        %v3156 = vmul.f32 %v3119, %v3124
        %v3157 = vadd.f32 %v3056, %v3125
        %v3158 = vadd.f32 %v3057, %v3126
        %v3159 = vadd.f32 %v3058, %v3127
        %v3160 = vadd.f32 %v3059, %v3128
        %v3161 = vadd.f32 %v3060, %v3129
        %v3162 = vadd.f32 %v3061, %v3130
        %v3163 = vadd.f32 %v3062, %v3131
        %v3164 = vadd.f32 %v3063, %v3132
        %v3165 = vadd.f32 %v3064, %v3133
        %v3166 = vadd.f32 %v3065, %v3134
        %v3167 = vadd.f32 %v3066, %v3135
        %v3168 = vadd.f32 %v3067, %v3136
        %v3169 = vadd.f32 %v3068, %v3137
        %v3170 = vadd.f32 %v3069, %v3138
        %v3171 = vadd.f32 %v3070, %v3139
        %v3172 = vadd.f32 %v3071, %v3140
        %v3173 = vadd.f32 %v3072, %v3141
        %v3174 = vadd.f32 %v3073, %v3142
        %v3175 = vadd.f32 %v3074, %v3143
        %v3176 = vadd.f32 %v3075, %v3144
        %v3177 = vadd.f32 %v3076, %v3145
        %v3178 = vadd.f32 %v3077, %v3146
        %v3179 = vadd.f32 %v3078, %v3147
        %v3180 = vadd.f32 %v3079, %v3148
        %v3181 = vadd.f32 %v3080, %v3149
        %v3182 = vadd.f32 %v3081, %v3150
        %v3183 = vadd.f32 %v3082, %v3151
        %v3184 = vadd.f32 %v3083, %v3152
        %v3185 = vadd.f32 %v3084, %v3153
        %v3186 = vadd.f32 %v3085, %v3154
        %v3187 = vadd.f32 %v3086, %v3155
        %v3188 = vadd.f32 %v3087, %v3156
        %s3189 = scalar_lea.vmem %s357, 96
        %v3190 = vld [vmem:[%s3189] sm:$0xff]
        %v3191 = vld [vmem:[%s3189 + $0x8] sm:$0xff]
        %v3192 = vld [vmem:[%s3189 + $0x18] sm:$0xff]
        %v3193 = vld [vmem:[%s3189 + $0x20] sm:$0xff]
        %v3194 = vld [vmem:[%s3189 + $0x30] sm:$0xff]
        %v3195 = vld [vmem:[%s3189 + $0x38] sm:$0xff]
        %v3196 = vld [vmem:[%s3189 + $0x48] sm:$0xff]
        %v3197 = vld [vmem:[%s3189 + $0x50] sm:$0xff]
        %v3198 = vld [vmem:[%s3189 + $0x60] sm:$0xff]
        %v3199 = vld [vmem:[%s3189 + $0x68] sm:$0xff]
        %v3200 = vld [vmem:[%s3189 + $0x78] sm:$0xff]
        %v3201 = vld [vmem:[%s3189 + $0x80] sm:$0xff]
        %v3202 = vld [vmem:[%s3189 + $0x90] sm:$0xff]
        %v3203 = vld [vmem:[%s3189 + $0x98] sm:$0xff]
        %v3204 = vld [vmem:[%s3189 + $0xa8] sm:$0xff]
        %v3205 = vld [vmem:[%s3189 + $0xb0] sm:$0xff]
        %v3206 = vld [vmem:[%s3189 + $0xc0] sm:$0xff]
        %v3207 = vld [vmem:[%s3189 + $0xc8] sm:$0xff]
        %v3208 = vld [vmem:[%s3189 + $0xd8] sm:$0xff]
        %v3209 = vld [vmem:[%s3189 + $0xe0] sm:$0xff]
        %v3210 = vld [vmem:[%s3189 + $0xf0] sm:$0xff]
        %v3211 = vld [vmem:[%s3189 + $0xf8] sm:$0xff]
        %v3212 = vld [vmem:[%s3189 + $0x108] sm:$0xff]
        %v3213 = vld [vmem:[%s3189 + $0x110] sm:$0xff]
        %v3214 = vld [vmem:[%s3189 + $0x120] sm:$0xff]
        %v3215 = vld [vmem:[%s3189 + $0x128] sm:$0xff]
        %v3216 = vld [vmem:[%s3189 + $0x138] sm:$0xff]
        %v3217 = vld [vmem:[%s3189 + $0x140] sm:$0xff]
        %v3218 = vld [vmem:[%s3189 + $0x150] sm:$0xff]
        %v3219 = vld [vmem:[%s3189 + $0x158] sm:$0xff]
        %v3220 = vld [vmem:[%s3189 + $0x168] sm:$0xff]
        %v3221 = vld [vmem:[%s3189 + $0x170] sm:$0xff]
        %v3222 = vld [vmem:[%s1 + $0x1c] sm:$0x1]
        %v3223 = vlaneseq
        %v3224 = vshrl.u32 %v3223, 7
        %v3225 = vsub.s32 0, %v3224
        %v3226 = vrot.slane %v3222, %v3225
        %v3227 = vmul.f32 %v3190, %v3226
        %v3228 = vmul.f32 %v3191, %v3226
        %v3229 = vmul.f32 %v3192, %v3226
        %v3230 = vmul.f32 %v3193, %v3226
        %v3231 = vmul.f32 %v3194, %v3226
        %v3232 = vmul.f32 %v3195, %v3226
        %v3233 = vmul.f32 %v3196, %v3226
        %v3234 = vmul.f32 %v3197, %v3226
        %v3235 = vmul.f32 %v3198, %v3226
        %v3236 = vmul.f32 %v3199, %v3226
        %v3237 = vmul.f32 %v3200, %v3226
        %v3238 = vmul.f32 %v3201, %v3226
        %v3239 = vmul.f32 %v3202, %v3226
        %v3240 = vmul.f32 %v3203, %v3226
        %v3241 = vmul.f32 %v3204, %v3226
        %v3242 = vmul.f32 %v3205, %v3226
        %v3243 = vmul.f32 %v3206, %v3226
        %v3244 = vmul.f32 %v3207, %v3226
        %v3245 = vmul.f32 %v3208, %v3226
        %v3246 = vmul.f32 %v3209, %v3226
        %v3247 = vmul.f32 %v3210, %v3226
        %v3248 = vmul.f32 %v3211, %v3226
        %v3249 = vmul.f32 %v3212, %v3226
        %v3250 = vmul.f32 %v3213, %v3226
        %v3251 = vmul.f32 %v3214, %v3226
        %v3252 = vmul.f32 %v3215, %v3226
        %v3253 = vmul.f32 %v3216, %v3226
        %v3254 = vmul.f32 %v3217, %v3226
        %v3255 = vmul.f32 %v3218, %v3226
        %v3256 = vmul.f32 %v3219, %v3226
        %v3257 = vmul.f32 %v3220, %v3226
        %v3258 = vmul.f32 %v3221, %v3226
        %v3259 = vadd.f32 %v3157, %v3227
        %v3260 = vadd.f32 %v3158, %v3228
        %v3261 = vadd.f32 %v3159, %v3229
        %v3262 = vadd.f32 %v3160, %v3230
        %v3263 = vadd.f32 %v3161, %v3231
        %v3264 = vadd.f32 %v3162, %v3232
        %v3265 = vadd.f32 %v3163, %v3233
        %v3266 = vadd.f32 %v3164, %v3234
        %v3267 = vadd.f32 %v3165, %v3235
        %v3268 = vadd.f32 %v3166, %v3236
        %v3269 = vadd.f32 %v3167, %v3237
        %v3270 = vadd.f32 %v3168, %v3238
        %v3271 = vadd.f32 %v3169, %v3239
        %v3272 = vadd.f32 %v3170, %v3240
        %v3273 = vadd.f32 %v3171, %v3241
        %v3274 = vadd.f32 %v3172, %v3242
        %v3275 = vadd.f32 %v3173, %v3243
        %v3276 = vadd.f32 %v3174, %v3244
        %v3277 = vadd.f32 %v3175, %v3245
        %v3278 = vadd.f32 %v3176, %v3246
        %v3279 = vadd.f32 %v3177, %v3247
        %v3280 = vadd.f32 %v3178, %v3248
        %v3281 = vadd.f32 %v3179, %v3249
        %v3282 = vadd.f32 %v3180, %v3250
        %v3283 = vadd.f32 %v3181, %v3251
        %v3284 = vadd.f32 %v3182, %v3252
        %v3285 = vadd.f32 %v3183, %v3253
        %v3286 = vadd.f32 %v3184, %v3254
        %v3287 = vadd.f32 %v3185, %v3255
        %v3288 = vadd.f32 %v3186, %v3256
        %v3289 = vadd.f32 %v3187, %v3257
        %v3290 = vadd.f32 %v3188, %v3258
        %v3291 = vld [vmem:[%s3189 + $0x1] sm:$0xff]
        %v3292 = vld [vmem:[%s3189 + $0x9] sm:$0xff]
        %v3293 = vld [vmem:[%s3189 + $0x19] sm:$0xff]
        %v3294 = vld [vmem:[%s3189 + $0x21] sm:$0xff]
        %v3295 = vld [vmem:[%s3189 + $0x31] sm:$0xff]
        %v3296 = vld [vmem:[%s3189 + $0x39] sm:$0xff]
        %v3297 = vld [vmem:[%s3189 + $0x49] sm:$0xff]
        %v3298 = vld [vmem:[%s3189 + $0x51] sm:$0xff]
        %v3299 = vld [vmem:[%s3189 + $0x61] sm:$0xff]
        %v3300 = vld [vmem:[%s3189 + $0x69] sm:$0xff]
        %v3301 = vld [vmem:[%s3189 + $0x79] sm:$0xff]
        %v3302 = vld [vmem:[%s3189 + $0x81] sm:$0xff]
        %v3303 = vld [vmem:[%s3189 + $0x91] sm:$0xff]
        %v3304 = vld [vmem:[%s3189 + $0x99] sm:$0xff]
        %v3305 = vld [vmem:[%s3189 + $0xa9] sm:$0xff]
        %v3306 = vld [vmem:[%s3189 + $0xb1] sm:$0xff]
        %v3307 = vld [vmem:[%s3189 + $0xc1] sm:$0xff]
        %v3308 = vld [vmem:[%s3189 + $0xc9] sm:$0xff]
        %v3309 = vld [vmem:[%s3189 + $0xd9] sm:$0xff]
        %v3310 = vld [vmem:[%s3189 + $0xe1] sm:$0xff]
        %v3311 = vld [vmem:[%s3189 + $0xf1] sm:$0xff]
        %v3312 = vld [vmem:[%s3189 + $0xf9] sm:$0xff]
        %v3313 = vld [vmem:[%s3189 + $0x109] sm:$0xff]
        %v3314 = vld [vmem:[%s3189 + $0x111] sm:$0xff]
        %v3315 = vld [vmem:[%s3189 + $0x121] sm:$0xff]
        %v3316 = vld [vmem:[%s3189 + $0x129] sm:$0xff]
        %v3317 = vld [vmem:[%s3189 + $0x139] sm:$0xff]
        %v3318 = vld [vmem:[%s3189 + $0x141] sm:$0xff]
        %v3319 = vld [vmem:[%s3189 + $0x151] sm:$0xff]
        %v3320 = vld [vmem:[%s3189 + $0x159] sm:$0xff]
        %v3321 = vld [vmem:[%s3189 + $0x169] sm:$0xff]
        %v3322 = vld [vmem:[%s3189 + $0x171] sm:$0xff]
        %v3323 = vld [vmem:[%s1 + $0x1d] sm:$0x1]
        %v3324 = vlaneseq
        %v3325 = vshrl.u32 %v3324, 7
        %v3326 = vsub.s32 0, %v3325
        %v3327 = vrot.slane %v3323, %v3326
        %v3328 = vmul.f32 %v3291, %v3327
        %v3329 = vmul.f32 %v3292, %v3327
        %v3330 = vmul.f32 %v3293, %v3327
        %v3331 = vmul.f32 %v3294, %v3327
        %v3332 = vmul.f32 %v3295, %v3327
        %v3333 = vmul.f32 %v3296, %v3327
        %v3334 = vmul.f32 %v3297, %v3327
        %v3335 = vmul.f32 %v3298, %v3327
        %v3336 = vmul.f32 %v3299, %v3327
        %v3337 = vmul.f32 %v3300, %v3327
        %v3338 = vmul.f32 %v3301, %v3327
        %v3339 = vmul.f32 %v3302, %v3327
        %v3340 = vmul.f32 %v3303, %v3327
        %v3341 = vmul.f32 %v3304, %v3327
        %v3342 = vmul.f32 %v3305, %v3327
        %v3343 = vmul.f32 %v3306, %v3327
        %v3344 = vmul.f32 %v3307, %v3327
        %v3345 = vmul.f32 %v3308, %v3327
        %v3346 = vmul.f32 %v3309, %v3327
        %v3347 = vmul.f32 %v3310, %v3327
        %v3348 = vmul.f32 %v3311, %v3327
        %v3349 = vmul.f32 %v3312, %v3327
        %v3350 = vmul.f32 %v3313, %v3327
        %v3351 = vmul.f32 %v3314, %v3327
        %v3352 = vmul.f32 %v3315, %v3327
        %v3353 = vmul.f32 %v3316, %v3327
        %v3354 = vmul.f32 %v3317, %v3327
        %v3355 = vmul.f32 %v3318, %v3327
        %v3356 = vmul.f32 %v3319, %v3327
        %v3357 = vmul.f32 %v3320, %v3327
        %v3358 = vmul.f32 %v3321, %v3327
        %v3359 = vmul.f32 %v3322, %v3327
        %v3360 = vadd.f32 %v3259, %v3328
        %v3361 = vadd.f32 %v3260, %v3329
        %v3362 = vadd.f32 %v3261, %v3330
        %v3363 = vadd.f32 %v3262, %v3331
        %v3364 = vadd.f32 %v3263, %v3332
        %v3365 = vadd.f32 %v3264, %v3333
        %v3366 = vadd.f32 %v3265, %v3334
        %v3367 = vadd.f32 %v3266, %v3335
        %v3368 = vadd.f32 %v3267, %v3336
        %v3369 = vadd.f32 %v3268, %v3337
        %v3370 = vadd.f32 %v3269, %v3338
        %v3371 = vadd.f32 %v3270, %v3339
        %v3372 = vadd.f32 %v3271, %v3340
        %v3373 = vadd.f32 %v3272, %v3341
        %v3374 = vadd.f32 %v3273, %v3342
        %v3375 = vadd.f32 %v3274, %v3343
        %v3376 = vadd.f32 %v3275, %v3344
        %v3377 = vadd.f32 %v3276, %v3345
        %v3378 = vadd.f32 %v3277, %v3346
        %v3379 = vadd.f32 %v3278, %v3347
        %v3380 = vadd.f32 %v3279, %v3348
        %v3381 = vadd.f32 %v3280, %v3349
        %v3382 = vadd.f32 %v3281, %v3350
        %v3383 = vadd.f32 %v3282, %v3351
        %v3384 = vadd.f32 %v3283, %v3352
        %v3385 = vadd.f32 %v3284, %v3353
        %v3386 = vadd.f32 %v3285, %v3354
        %v3387 = vadd.f32 %v3286, %v3355
        %v3388 = vadd.f32 %v3287, %v3356
        %v3389 = vadd.f32 %v3288, %v3357
        %v3390 = vadd.f32 %v3289, %v3358
        %v3391 = vadd.f32 %v3290, %v3359
        %v3392 = vld [vmem:[%s3189 + $0x2] sm:$0xff]
        %v3393 = vld [vmem:[%s3189 + $0xa] sm:$0xff]
        %v3394 = vld [vmem:[%s3189 + $0x1a] sm:$0xff]
        %v3395 = vld [vmem:[%s3189 + $0x22] sm:$0xff]
        %v3396 = vld [vmem:[%s3189 + $0x32] sm:$0xff]
        %v3397 = vld [vmem:[%s3189 + $0x3a] sm:$0xff]
        %v3398 = vld [vmem:[%s3189 + $0x4a] sm:$0xff]
        %v3399 = vld [vmem:[%s3189 + $0x52] sm:$0xff]
        %v3400 = vld [vmem:[%s3189 + $0x62] sm:$0xff]
        %v3401 = vld [vmem:[%s3189 + $0x6a] sm:$0xff]
        %v3402 = vld [vmem:[%s3189 + $0x7a] sm:$0xff]
        %v3403 = vld [vmem:[%s3189 + $0x82] sm:$0xff]
        %v3404 = vld [vmem:[%s3189 + $0x92] sm:$0xff]
        %v3405 = vld [vmem:[%s3189 + $0x9a] sm:$0xff]
        %v3406 = vld [vmem:[%s3189 + $0xaa] sm:$0xff]
        %v3407 = vld [vmem:[%s3189 + $0xb2] sm:$0xff]
        %v3408 = vld [vmem:[%s3189 + $0xc2] sm:$0xff]
        %v3409 = vld [vmem:[%s3189 + $0xca] sm:$0xff]
        %v3410 = vld [vmem:[%s3189 + $0xda] sm:$0xff]
        %v3411 = vld [vmem:[%s3189 + $0xe2] sm:$0xff]
        %v3412 = vld [vmem:[%s3189 + $0xf2] sm:$0xff]
        %v3413 = vld [vmem:[%s3189 + $0xfa] sm:$0xff]
        %v3414 = vld [vmem:[%s3189 + $0x10a] sm:$0xff]
        %v3415 = vld [vmem:[%s3189 + $0x112] sm:$0xff]
        %v3416 = vld [vmem:[%s3189 + $0x122] sm:$0xff]
        %v3417 = vld [vmem:[%s3189 + $0x12a] sm:$0xff]
        %v3418 = vld [vmem:[%s3189 + $0x13a] sm:$0xff]
        %v3419 = vld [vmem:[%s3189 + $0x142] sm:$0xff]
        %v3420 = vld [vmem:[%s3189 + $0x152] sm:$0xff]
        %v3421 = vld [vmem:[%s3189 + $0x15a] sm:$0xff]
        %v3422 = vld [vmem:[%s3189 + $0x16a] sm:$0xff]
        %v3423 = vld [vmem:[%s3189 + $0x172] sm:$0xff]
        %v3424 = vld [vmem:[%s1 + $0x1e] sm:$0x1]
        %v3425 = vlaneseq
        %v3426 = vshrl.u32 %v3425, 7
        %v3427 = vsub.s32 0, %v3426
        %v3428 = vrot.slane %v3424, %v3427
        %v3429 = vmul.f32 %v3392, %v3428
        %v3430 = vmul.f32 %v3393, %v3428
        %v3431 = vmul.f32 %v3394, %v3428
        %v3432 = vmul.f32 %v3395, %v3428
        %v3433 = vmul.f32 %v3396, %v3428
        %v3434 = vmul.f32 %v3397, %v3428
        %v3435 = vmul.f32 %v3398, %v3428
        %v3436 = vmul.f32 %v3399, %v3428
        %v3437 = vmul.f32 %v3400, %v3428
        %v3438 = vmul.f32 %v3401, %v3428
        %v3439 = vmul.f32 %v3402, %v3428
        %v3440 = vmul.f32 %v3403, %v3428
        %v3441 = vmul.f32 %v3404, %v3428
        %v3442 = vmul.f32 %v3405, %v3428
        %v3443 = vmul.f32 %v3406, %v3428
        %v3444 = vmul.f32 %v3407, %v3428
        %v3445 = vmul.f32 %v3408, %v3428
        %v3446 = vmul.f32 %v3409, %v3428
        %v3447 = vmul.f32 %v3410, %v3428
        %v3448 = vmul.f32 %v3411, %v3428
        %v3449 = vmul.f32 %v3412, %v3428
        %v3450 = vmul.f32 %v3413, %v3428
        %v3451 = vmul.f32 %v3414, %v3428
        %v3452 = vmul.f32 %v3415, %v3428
        %v3453 = vmul.f32 %v3416, %v3428
        %v3454 = vmul.f32 %v3417, %v3428
        %v3455 = vmul.f32 %v3418, %v3428
        %v3456 = vmul.f32 %v3419, %v3428
        %v3457 = vmul.f32 %v3420, %v3428
        %v3458 = vmul.f32 %v3421, %v3428
        %v3459 = vmul.f32 %v3422, %v3428
        %v3460 = vmul.f32 %v3423, %v3428
        %v3461 = vadd.f32 %v3360, %v3429
        %v3462 = vadd.f32 %v3361, %v3430
        %v3463 = vadd.f32 %v3362, %v3431
        %v3464 = vadd.f32 %v3363, %v3432
        %v3465 = vadd.f32 %v3364, %v3433
        %v3466 = vadd.f32 %v3365, %v3434
        %v3467 = vadd.f32 %v3366, %v3435
        %v3468 = vadd.f32 %v3367, %v3436
        %v3469 = vadd.f32 %v3368, %v3437
        %v3470 = vadd.f32 %v3369, %v3438
        %v3471 = vadd.f32 %v3370, %v3439
        %v3472 = vadd.f32 %v3371, %v3440
        %v3473 = vadd.f32 %v3372, %v3441
        %v3474 = vadd.f32 %v3373, %v3442
        %v3475 = vadd.f32 %v3374, %v3443
        %v3476 = vadd.f32 %v3375, %v3444
        %v3477 = vadd.f32 %v3376, %v3445
        %v3478 = vadd.f32 %v3377, %v3446
        %v3479 = vadd.f32 %v3378, %v3447
        %v3480 = vadd.f32 %v3379, %v3448
        %v3481 = vadd.f32 %v3380, %v3449
        %v3482 = vadd.f32 %v3381, %v3450
        %v3483 = vadd.f32 %v3382, %v3451
        %v3484 = vadd.f32 %v3383, %v3452
        %v3485 = vadd.f32 %v3384, %v3453
        %v3486 = vadd.f32 %v3385, %v3454
        %v3487 = vadd.f32 %v3386, %v3455
        %v3488 = vadd.f32 %v3387, %v3456
        %v3489 = vadd.f32 %v3388, %v3457
        %v3490 = vadd.f32 %v3389, %v3458
        %v3491 = vadd.f32 %v3390, %v3459
        %v3492 = vadd.f32 %v3391, %v3460
        %v3493 = vld [vmem:[%s3189 + $0x3] sm:$0xff]
        %v3494 = vld [vmem:[%s3189 + $0xb] sm:$0xff]
        %v3495 = vld [vmem:[%s3189 + $0x1b] sm:$0xff]
        %v3496 = vld [vmem:[%s3189 + $0x23] sm:$0xff]
        %v3497 = vld [vmem:[%s3189 + $0x33] sm:$0xff]
        %v3498 = vld [vmem:[%s3189 + $0x3b] sm:$0xff]
        %v3499 = vld [vmem:[%s3189 + $0x4b] sm:$0xff]
        %v3500 = vld [vmem:[%s3189 + $0x53] sm:$0xff]
        %v3501 = vld [vmem:[%s3189 + $0x63] sm:$0xff]
        %v3502 = vld [vmem:[%s3189 + $0x6b] sm:$0xff]
        %v3503 = vld [vmem:[%s3189 + $0x7b] sm:$0xff]
        %v3504 = vld [vmem:[%s3189 + $0x83] sm:$0xff]
        %v3505 = vld [vmem:[%s3189 + $0x93] sm:$0xff]
        %v3506 = vld [vmem:[%s3189 + $0x9b] sm:$0xff]
        %v3507 = vld [vmem:[%s3189 + $0xab] sm:$0xff]
        %v3508 = vld [vmem:[%s3189 + $0xb3] sm:$0xff]
        %v3509 = vld [vmem:[%s3189 + $0xc3] sm:$0xff]
        %v3510 = vld [vmem:[%s3189 + $0xcb] sm:$0xff]
        %v3511 = vld [vmem:[%s3189 + $0xdb] sm:$0xff]
        %v3512 = vld [vmem:[%s3189 + $0xe3] sm:$0xff]
        %v3513 = vld [vmem:[%s3189 + $0xf3] sm:$0xff]
        %v3514 = vld [vmem:[%s3189 + $0xfb] sm:$0xff]
        %v3515 = vld [vmem:[%s3189 + $0x10b] sm:$0xff]
        %v3516 = vld [vmem:[%s3189 + $0x113] sm:$0xff]
        %v3517 = vld [vmem:[%s3189 + $0x123] sm:$0xff]
        %v3518 = vld [vmem:[%s3189 + $0x12b] sm:$0xff]
        %v3519 = vld [vmem:[%s3189 + $0x13b] sm:$0xff]
        %v3520 = vld [vmem:[%s3189 + $0x143] sm:$0xff]
        %v3521 = vld [vmem:[%s3189 + $0x153] sm:$0xff]
        %v3522 = vld [vmem:[%s3189 + $0x15b] sm:$0xff]
        %v3523 = vld [vmem:[%s3189 + $0x16b] sm:$0xff]
        %v3524 = vld [vmem:[%s3189 + $0x173] sm:$0xff]
        %v3525 = vld [vmem:[%s1 + $0x1f] sm:$0x1]
        %v3526 = vlaneseq
        %v3527 = vshrl.u32 %v3526, 7
        %v3528 = vsub.s32 0, %v3527
        %v3529 = vrot.slane %v3525, %v3528
        %v3530 = vmul.f32 %v3493, %v3529
        %v3531 = vmul.f32 %v3494, %v3529
        %v3532 = vmul.f32 %v3495, %v3529
        %v3533 = vmul.f32 %v3496, %v3529
        %v3534 = vmul.f32 %v3497, %v3529
        %v3535 = vmul.f32 %v3498, %v3529
        %v3536 = vmul.f32 %v3499, %v3529
        %v3537 = vmul.f32 %v3500, %v3529
        %v3538 = vmul.f32 %v3501, %v3529
        %v3539 = vmul.f32 %v3502, %v3529
        %v3540 = vmul.f32 %v3503, %v3529
        %v3541 = vmul.f32 %v3504, %v3529
        %v3542 = vmul.f32 %v3505, %v3529
        %v3543 = vmul.f32 %v3506, %v3529
        %v3544 = vmul.f32 %v3507, %v3529
        %v3545 = vmul.f32 %v3508, %v3529
        %v3546 = vmul.f32 %v3509, %v3529
        %v3547 = vmul.f32 %v3510, %v3529
        %v3548 = vmul.f32 %v3511, %v3529
        %v3549 = vmul.f32 %v3512, %v3529
        %v3550 = vmul.f32 %v3513, %v3529
        %v3551 = vmul.f32 %v3514, %v3529
        %v3552 = vmul.f32 %v3515, %v3529
        %v3553 = vmul.f32 %v3516, %v3529
        %v3554 = vmul.f32 %v3517, %v3529
        %v3555 = vmul.f32 %v3518, %v3529
        %v3556 = vmul.f32 %v3519, %v3529
        %v3557 = vmul.f32 %v3520, %v3529
        %v3558 = vmul.f32 %v3521, %v3529
        %v3559 = vmul.f32 %v3522, %v3529
        %v3560 = vmul.f32 %v3523, %v3529
        %v3561 = vmul.f32 %v3524, %v3529
        %v3562 = vadd.f32 %v3461, %v3530
        %v3563 = vadd.f32 %v3462, %v3531
        %v3564 = vadd.f32 %v3463, %v3532
        %v3565 = vadd.f32 %v3464, %v3533
        %v3566 = vadd.f32 %v3465, %v3534
        %v3567 = vadd.f32 %v3466, %v3535
        %v3568 = vadd.f32 %v3467, %v3536
        %v3569 = vadd.f32 %v3468, %v3537
        %v3570 = vadd.f32 %v3469, %v3538
        %v3571 = vadd.f32 %v3470, %v3539
        %v3572 = vadd.f32 %v3471, %v3540
        %v3573 = vadd.f32 %v3472, %v3541
        %v3574 = vadd.f32 %v3473, %v3542
        %v3575 = vadd.f32 %v3474, %v3543
        %v3576 = vadd.f32 %v3475, %v3544
        %v3577 = vadd.f32 %v3476, %v3545
        %v3578 = vadd.f32 %v3477, %v3546
        %v3579 = vadd.f32 %v3478, %v3547
        %v3580 = vadd.f32 %v3479, %v3548
        %v3581 = vadd.f32 %v3480, %v3549
        %v3582 = vadd.f32 %v3481, %v3550
        %v3583 = vadd.f32 %v3482, %v3551
        %v3584 = vadd.f32 %v3483, %v3552
        %v3585 = vadd.f32 %v3484, %v3553
        %v3586 = vadd.f32 %v3485, %v3554
        %v3587 = vadd.f32 %v3486, %v3555
        %v3588 = vadd.f32 %v3487, %v3556
        %v3589 = vadd.f32 %v3488, %v3557
        %v3590 = vadd.f32 %v3489, %v3558
        %v3591 = vadd.f32 %v3490, %v3559
        %v3592 = vadd.f32 %v3491, %v3560
        %v3593 = vadd.f32 %v3492, %v3561
        %v3594 = vld [vmem:[%s3189 + $0x4] sm:$0xff]
        %v3595 = vld [vmem:[%s3189 + $0xc] sm:$0xff]
        %v3596 = vld [vmem:[%s3189 + $0x1c] sm:$0xff]
        %v3597 = vld [vmem:[%s3189 + $0x24] sm:$0xff]
        %v3598 = vld [vmem:[%s3189 + $0x34] sm:$0xff]
        %v3599 = vld [vmem:[%s3189 + $0x3c] sm:$0xff]
        %v3600 = vld [vmem:[%s3189 + $0x4c] sm:$0xff]
        %v3601 = vld [vmem:[%s3189 + $0x54] sm:$0xff]
        %v3602 = vld [vmem:[%s3189 + $0x64] sm:$0xff]
        %v3603 = vld [vmem:[%s3189 + $0x6c] sm:$0xff]
        %v3604 = vld [vmem:[%s3189 + $0x7c] sm:$0xff]
        %v3605 = vld [vmem:[%s3189 + $0x84] sm:$0xff]
        %v3606 = vld [vmem:[%s3189 + $0x94] sm:$0xff]
        %v3607 = vld [vmem:[%s3189 + $0x9c] sm:$0xff]
        %v3608 = vld [vmem:[%s3189 + $0xac] sm:$0xff]
        %v3609 = vld [vmem:[%s3189 + $0xb4] sm:$0xff]
        %v3610 = vld [vmem:[%s3189 + $0xc4] sm:$0xff]
        %v3611 = vld [vmem:[%s3189 + $0xcc] sm:$0xff]
        %v3612 = vld [vmem:[%s3189 + $0xdc] sm:$0xff]
        %v3613 = vld [vmem:[%s3189 + $0xe4] sm:$0xff]
        %v3614 = vld [vmem:[%s3189 + $0xf4] sm:$0xff]
        %v3615 = vld [vmem:[%s3189 + $0xfc] sm:$0xff]
        %v3616 = vld [vmem:[%s3189 + $0x10c] sm:$0xff]
        %v3617 = vld [vmem:[%s3189 + $0x114] sm:$0xff]
        %v3618 = vld [vmem:[%s3189 + $0x124] sm:$0xff]
        %v3619 = vld [vmem:[%s3189 + $0x12c] sm:$0xff]
        %v3620 = vld [vmem:[%s3189 + $0x13c] sm:$0xff]
        %v3621 = vld [vmem:[%s3189 + $0x144] sm:$0xff]
        %v3622 = vld [vmem:[%s3189 + $0x154] sm:$0xff]
        %v3623 = vld [vmem:[%s3189 + $0x15c] sm:$0xff]
        %v3624 = vld [vmem:[%s3189 + $0x16c] sm:$0xff]
        %v3625 = vld [vmem:[%s3189 + $0x174] sm:$0xff]
        %v3626 = vld [vmem:[%s1 + $0x20] sm:$0x1]
        %v3627 = vlaneseq
        %v3628 = vshrl.u32 %v3627, 7
        %v3629 = vsub.s32 0, %v3628
        %v3630 = vrot.slane %v3626, %v3629
        %v3631 = vmul.f32 %v3594, %v3630
        %v3632 = vmul.f32 %v3595, %v3630
        %v3633 = vmul.f32 %v3596, %v3630
        %v3634 = vmul.f32 %v3597, %v3630
        %v3635 = vmul.f32 %v3598, %v3630
        %v3636 = vmul.f32 %v3599, %v3630
        %v3637 = vmul.f32 %v3600, %v3630
        %v3638 = vmul.f32 %v3601, %v3630
        %v3639 = vmul.f32 %v3602, %v3630
        %v3640 = vmul.f32 %v3603, %v3630
        %v3641 = vmul.f32 %v3604, %v3630
        %v3642 = vmul.f32 %v3605, %v3630
        %v3643 = vmul.f32 %v3606, %v3630
        %v3644 = vmul.f32 %v3607, %v3630
        %v3645 = vmul.f32 %v3608, %v3630
        %v3646 = vmul.f32 %v3609, %v3630
        %v3647 = vmul.f32 %v3610, %v3630
        %v3648 = vmul.f32 %v3611, %v3630
        %v3649 = vmul.f32 %v3612, %v3630
        %v3650 = vmul.f32 %v3613, %v3630
        %v3651 = vmul.f32 %v3614, %v3630
        %v3652 = vmul.f32 %v3615, %v3630
        %v3653 = vmul.f32 %v3616, %v3630
        %v3654 = vmul.f32 %v3617, %v3630
        %v3655 = vmul.f32 %v3618, %v3630
        %v3656 = vmul.f32 %v3619, %v3630
        %v3657 = vmul.f32 %v3620, %v3630
        %v3658 = vmul.f32 %v3621, %v3630
        %v3659 = vmul.f32 %v3622, %v3630
        %v3660 = vmul.f32 %v3623, %v3630
        %v3661 = vmul.f32 %v3624, %v3630
        %v3662 = vmul.f32 %v3625, %v3630
        %v3663 = vadd.f32 %v3562, %v3631
        %v3664 = vadd.f32 %v3563, %v3632
        %v3665 = vadd.f32 %v3564, %v3633
        %v3666 = vadd.f32 %v3565, %v3634
        %v3667 = vadd.f32 %v3566, %v3635
        %v3668 = vadd.f32 %v3567, %v3636
        %v3669 = vadd.f32 %v3568, %v3637
        %v3670 = vadd.f32 %v3569, %v3638
        %v3671 = vadd.f32 %v3570, %v3639
        %v3672 = vadd.f32 %v3571, %v3640
        %v3673 = vadd.f32 %v3572, %v3641
        %v3674 = vadd.f32 %v3573, %v3642
        %v3675 = vadd.f32 %v3574, %v3643
        %v3676 = vadd.f32 %v3575, %v3644
        %v3677 = vadd.f32 %v3576, %v3645
        %v3678 = vadd.f32 %v3577, %v3646
        %v3679 = vadd.f32 %v3578, %v3647
        %v3680 = vadd.f32 %v3579, %v3648
        %v3681 = vadd.f32 %v3580, %v3649
        %v3682 = vadd.f32 %v3581, %v3650
        %v3683 = vadd.f32 %v3582, %v3651
        %v3684 = vadd.f32 %v3583, %v3652
        %v3685 = vadd.f32 %v3584, %v3653
        %v3686 = vadd.f32 %v3585, %v3654
        %v3687 = vadd.f32 %v3586, %v3655
        %v3688 = vadd.f32 %v3587, %v3656
        %v3689 = vadd.f32 %v3588, %v3657
        %v3690 = vadd.f32 %v3589, %v3658
        %v3691 = vadd.f32 %v3590, %v3659
        %v3692 = vadd.f32 %v3591, %v3660
        %v3693 = vadd.f32 %v3592, %v3661
        %v3694 = vadd.f32 %v3593, %v3662
        %v3695 = vld [vmem:[%s3189 + $0x5] sm:$0xff]
        %v3696 = vld [vmem:[%s3189 + $0xd] sm:$0xff]
        %v3697 = vld [vmem:[%s3189 + $0x1d] sm:$0xff]
        %v3698 = vld [vmem:[%s3189 + $0x25] sm:$0xff]
        %v3699 = vld [vmem:[%s3189 + $0x35] sm:$0xff]
        %v3700 = vld [vmem:[%s3189 + $0x3d] sm:$0xff]
        %v3701 = vld [vmem:[%s3189 + $0x4d] sm:$0xff]
        %v3702 = vld [vmem:[%s3189 + $0x55] sm:$0xff]
        %v3703 = vld [vmem:[%s3189 + $0x65] sm:$0xff]
        %v3704 = vld [vmem:[%s3189 + $0x6d] sm:$0xff]
        %v3705 = vld [vmem:[%s3189 + $0x7d] sm:$0xff]
        %v3706 = vld [vmem:[%s3189 + $0x85] sm:$0xff]
        %v3707 = vld [vmem:[%s3189 + $0x95] sm:$0xff]
        %v3708 = vld [vmem:[%s3189 + $0x9d] sm:$0xff]
        %v3709 = vld [vmem:[%s3189 + $0xad] sm:$0xff]
        %v3710 = vld [vmem:[%s3189 + $0xb5] sm:$0xff]
        %v3711 = vld [vmem:[%s3189 + $0xc5] sm:$0xff]
        %v3712 = vld [vmem:[%s3189 + $0xcd] sm:$0xff]
        %v3713 = vld [vmem:[%s3189 + $0xdd] sm:$0xff]
        %v3714 = vld [vmem:[%s3189 + $0xe5] sm:$0xff]
        %v3715 = vld [vmem:[%s3189 + $0xf5] sm:$0xff]
        %v3716 = vld [vmem:[%s3189 + $0xfd] sm:$0xff]
        %v3717 = vld [vmem:[%s3189 + $0x10d] sm:$0xff]
        %v3718 = vld [vmem:[%s3189 + $0x115] sm:$0xff]
        %v3719 = vld [vmem:[%s3189 + $0x125] sm:$0xff]
        %v3720 = vld [vmem:[%s3189 + $0x12d] sm:$0xff]
        %v3721 = vld [vmem:[%s3189 + $0x13d] sm:$0xff]
        %v3722 = vld [vmem:[%s3189 + $0x145] sm:$0xff]
        %v3723 = vld [vmem:[%s3189 + $0x155] sm:$0xff]
        %v3724 = vld [vmem:[%s3189 + $0x15d] sm:$0xff]
        %v3725 = vld [vmem:[%s3189 + $0x16d] sm:$0xff]
        %v3726 = vld [vmem:[%s3189 + $0x175] sm:$0xff]
        %v3727 = vld [vmem:[%s1 + $0x21] sm:$0x1]
        %v3728 = vlaneseq
        %v3729 = vshrl.u32 %v3728, 7
        %v3730 = vsub.s32 0, %v3729
        %v3731 = vrot.slane %v3727, %v3730
        %v3732 = vmul.f32 %v3695, %v3731
        %v3733 = vmul.f32 %v3696, %v3731
        %v3734 = vmul.f32 %v3697, %v3731
        %v3735 = vmul.f32 %v3698, %v3731
        %v3736 = vmul.f32 %v3699, %v3731
        %v3737 = vmul.f32 %v3700, %v3731
        %v3738 = vmul.f32 %v3701, %v3731
        %v3739 = vmul.f32 %v3702, %v3731
        %v3740 = vmul.f32 %v3703, %v3731
        %v3741 = vmul.f32 %v3704, %v3731
        %v3742 = vmul.f32 %v3705, %v3731
        %v3743 = vmul.f32 %v3706, %v3731
        %v3744 = vmul.f32 %v3707, %v3731
        %v3745 = vmul.f32 %v3708, %v3731
        %v3746 = vmul.f32 %v3709, %v3731
        %v3747 = vmul.f32 %v3710, %v3731
        %v3748 = vmul.f32 %v3711, %v3731
        %v3749 = vmul.f32 %v3712, %v3731
        %v3750 = vmul.f32 %v3713, %v3731
        %v3751 = vmul.f32 %v3714, %v3731
        %v3752 = vmul.f32 %v3715, %v3731
        %v3753 = vmul.f32 %v3716, %v3731
        %v3754 = vmul.f32 %v3717, %v3731
        %v3755 = vmul.f32 %v3718, %v3731
        %v3756 = vmul.f32 %v3719, %v3731
        %v3757 = vmul.f32 %v3720, %v3731
        %v3758 = vmul.f32 %v3721, %v3731
        %v3759 = vmul.f32 %v3722, %v3731
        %v3760 = vmul.f32 %v3723, %v3731
        %v3761 = vmul.f32 %v3724, %v3731
        %v3762 = vmul.f32 %v3725, %v3731
        %v3763 = vmul.f32 %v3726, %v3731
        %v3764 = vadd.f32 %v3663, %v3732
        %v3765 = vadd.f32 %v3664, %v3733
        %v3766 = vadd.f32 %v3665, %v3734
        %v3767 = vadd.f32 %v3666, %v3735
        %v3768 = vadd.f32 %v3667, %v3736
        %v3769 = vadd.f32 %v3668, %v3737
        %v3770 = vadd.f32 %v3669, %v3738
        %v3771 = vadd.f32 %v3670, %v3739
        %v3772 = vadd.f32 %v3671, %v3740
        %v3773 = vadd.f32 %v3672, %v3741
        %v3774 = vadd.f32 %v3673, %v3742
        %v3775 = vadd.f32 %v3674, %v3743
        %v3776 = vadd.f32 %v3675, %v3744
        %v3777 = vadd.f32 %v3676, %v3745
        %v3778 = vadd.f32 %v3677, %v3746
        %v3779 = vadd.f32 %v3678, %v3747
        %v3780 = vadd.f32 %v3679, %v3748
        %v3781 = vadd.f32 %v3680, %v3749
        %v3782 = vadd.f32 %v3681, %v3750
        %v3783 = vadd.f32 %v3682, %v3751
        %v3784 = vadd.f32 %v3683, %v3752
        %v3785 = vadd.f32 %v3684, %v3753
        %v3786 = vadd.f32 %v3685, %v3754
        %v3787 = vadd.f32 %v3686, %v3755
        %v3788 = vadd.f32 %v3687, %v3756
        %v3789 = vadd.f32 %v3688, %v3757
        %v3790 = vadd.f32 %v3689, %v3758
        %v3791 = vadd.f32 %v3690, %v3759
        %v3792 = vadd.f32 %v3691, %v3760
        %v3793 = vadd.f32 %v3692, %v3761
        %v3794 = vadd.f32 %v3693, %v3762
        %v3795 = vadd.f32 %v3694, %v3763
        %v3796 = vld [vmem:[%s3189 + $0x6] sm:$0xff]
        %v3797 = vld [vmem:[%s3189 + $0xe] sm:$0xff]
        %v3798 = vld [vmem:[%s3189 + $0x1e] sm:$0xff]
        %v3799 = vld [vmem:[%s3189 + $0x26] sm:$0xff]
        %v3800 = vld [vmem:[%s3189 + $0x36] sm:$0xff]
        %v3801 = vld [vmem:[%s3189 + $0x3e] sm:$0xff]
        %v3802 = vld [vmem:[%s3189 + $0x4e] sm:$0xff]
        %v3803 = vld [vmem:[%s3189 + $0x56] sm:$0xff]
        %v3804 = vld [vmem:[%s3189 + $0x66] sm:$0xff]
        %v3805 = vld [vmem:[%s3189 + $0x6e] sm:$0xff]
        %v3806 = vld [vmem:[%s3189 + $0x7e] sm:$0xff]
        %v3807 = vld [vmem:[%s3189 + $0x86] sm:$0xff]
        %v3808 = vld [vmem:[%s3189 + $0x96] sm:$0xff]
        %v3809 = vld [vmem:[%s3189 + $0x9e] sm:$0xff]
        %v3810 = vld [vmem:[%s3189 + $0xae] sm:$0xff]
        %v3811 = vld [vmem:[%s3189 + $0xb6] sm:$0xff]
        %v3812 = vld [vmem:[%s3189 + $0xc6] sm:$0xff]
        %v3813 = vld [vmem:[%s3189 + $0xce] sm:$0xff]
        %v3814 = vld [vmem:[%s3189 + $0xde] sm:$0xff]
        %v3815 = vld [vmem:[%s3189 + $0xe6] sm:$0xff]
        %v3816 = vld [vmem:[%s3189 + $0xf6] sm:$0xff]
        %v3817 = vld [vmem:[%s3189 + $0xfe] sm:$0xff]
        %v3818 = vld [vmem:[%s3189 + $0x10e] sm:$0xff]
        %v3819 = vld [vmem:[%s3189 + $0x116] sm:$0xff]
        %v3820 = vld [vmem:[%s3189 + $0x126] sm:$0xff]
        %v3821 = vld [vmem:[%s3189 + $0x12e] sm:$0xff]
        %v3822 = vld [vmem:[%s3189 + $0x13e] sm:$0xff]
        %v3823 = vld [vmem:[%s3189 + $0x146] sm:$0xff]
        %v3824 = vld [vmem:[%s3189 + $0x156] sm:$0xff]
        %v3825 = vld [vmem:[%s3189 + $0x15e] sm:$0xff]
        %v3826 = vld [vmem:[%s3189 + $0x16e] sm:$0xff]
        %v3827 = vld [vmem:[%s3189 + $0x176] sm:$0xff]
        %v3828 = vld [vmem:[%s1 + $0x22] sm:$0x1]
        %v3829 = vlaneseq
        %v3830 = vshrl.u32 %v3829, 7
        %v3831 = vsub.s32 0, %v3830
        %v3832 = vrot.slane %v3828, %v3831
        %v3833 = vmul.f32 %v3796, %v3832
        %v3834 = vmul.f32 %v3797, %v3832
        %v3835 = vmul.f32 %v3798, %v3832
        %v3836 = vmul.f32 %v3799, %v3832
        %v3837 = vmul.f32 %v3800, %v3832
        %v3838 = vmul.f32 %v3801, %v3832
        %v3839 = vmul.f32 %v3802, %v3832
        %v3840 = vmul.f32 %v3803, %v3832
        %v3841 = vmul.f32 %v3804, %v3832
        %v3842 = vmul.f32 %v3805, %v3832
        %v3843 = vmul.f32 %v3806, %v3832
        %v3844 = vmul.f32 %v3807, %v3832
        %v3845 = vmul.f32 %v3808, %v3832
        %v3846 = vmul.f32 %v3809, %v3832
        %v3847 = vmul.f32 %v3810, %v3832
        %v3848 = vmul.f32 %v3811, %v3832
        %v3849 = vmul.f32 %v3812, %v3832
        %v3850 = vmul.f32 %v3813, %v3832
        %v3851 = vmul.f32 %v3814, %v3832
        %v3852 = vmul.f32 %v3815, %v3832
        %v3853 = vmul.f32 %v3816, %v3832
        %v3854 = vmul.f32 %v3817, %v3832
        %v3855 = vmul.f32 %v3818, %v3832
        %v3856 = vmul.f32 %v3819, %v3832
        %v3857 = vmul.f32 %v3820, %v3832
        %v3858 = vmul.f32 %v3821, %v3832
        %v3859 = vmul.f32 %v3822, %v3832
        %v3860 = vmul.f32 %v3823, %v3832
        %v3861 = vmul.f32 %v3824, %v3832
        %v3862 = vmul.f32 %v3825, %v3832
        %v3863 = vmul.f32 %v3826, %v3832
        %v3864 = vmul.f32 %v3827, %v3832
        %v3865 = vadd.f32 %v3764, %v3833
        %v3866 = vadd.f32 %v3765, %v3834
        %v3867 = vadd.f32 %v3766, %v3835
        %v3868 = vadd.f32 %v3767, %v3836
        %v3869 = vadd.f32 %v3768, %v3837
        %v3870 = vadd.f32 %v3769, %v3838
        %v3871 = vadd.f32 %v3770, %v3839
        %v3872 = vadd.f32 %v3771, %v3840
        %v3873 = vadd.f32 %v3772, %v3841
        %v3874 = vadd.f32 %v3773, %v3842
        %v3875 = vadd.f32 %v3774, %v3843
        %v3876 = vadd.f32 %v3775, %v3844
        %v3877 = vadd.f32 %v3776, %v3845
        %v3878 = vadd.f32 %v3777, %v3846
        %v3879 = vadd.f32 %v3778, %v3847
        %v3880 = vadd.f32 %v3779, %v3848
        %v3881 = vadd.f32 %v3780, %v3849
        %v3882 = vadd.f32 %v3781, %v3850
        %v3883 = vadd.f32 %v3782, %v3851
        %v3884 = vadd.f32 %v3783, %v3852
        %v3885 = vadd.f32 %v3784, %v3853
        %v3886 = vadd.f32 %v3785, %v3854
        %v3887 = vadd.f32 %v3786, %v3855
        %v3888 = vadd.f32 %v3787, %v3856
        %v3889 = vadd.f32 %v3788, %v3857
        %v3890 = vadd.f32 %v3789, %v3858
        %v3891 = vadd.f32 %v3790, %v3859
        %v3892 = vadd.f32 %v3791, %v3860
        %v3893 = vadd.f32 %v3792, %v3861
        %v3894 = vadd.f32 %v3793, %v3862
        %v3895 = vadd.f32 %v3794, %v3863
        %v3896 = vadd.f32 %v3795, %v3864
        %s3897 = scalar_lea.vmem %s357, 120
        %v3898 = vld [vmem:[%s3897] sm:$0xff]
        %v3899 = vld [vmem:[%s3897 + $0x8] sm:$0xff]
        %v3900 = vld [vmem:[%s3897 + $0x18] sm:$0xff]
        %v3901 = vld [vmem:[%s3897 + $0x20] sm:$0xff]
        %v3902 = vld [vmem:[%s3897 + $0x30] sm:$0xff]
        %v3903 = vld [vmem:[%s3897 + $0x38] sm:$0xff]
        %v3904 = vld [vmem:[%s3897 + $0x48] sm:$0xff]
        %v3905 = vld [vmem:[%s3897 + $0x50] sm:$0xff]
        %v3906 = vld [vmem:[%s3897 + $0x60] sm:$0xff]
        %v3907 = vld [vmem:[%s3897 + $0x68] sm:$0xff]
        %v3908 = vld [vmem:[%s3897 + $0x78] sm:$0xff]
        %v3909 = vld [vmem:[%s3897 + $0x80] sm:$0xff]
        %v3910 = vld [vmem:[%s3897 + $0x90] sm:$0xff]
        %v3911 = vld [vmem:[%s3897 + $0x98] sm:$0xff]
        %v3912 = vld [vmem:[%s3897 + $0xa8] sm:$0xff]
        %v3913 = vld [vmem:[%s3897 + $0xb0] sm:$0xff]
        %v3914 = vld [vmem:[%s3897 + $0xc0] sm:$0xff]
        %v3915 = vld [vmem:[%s3897 + $0xc8] sm:$0xff]
        %v3916 = vld [vmem:[%s3897 + $0xd8] sm:$0xff]
        %v3917 = vld [vmem:[%s3897 + $0xe0] sm:$0xff]
        %v3918 = vld [vmem:[%s3897 + $0xf0] sm:$0xff]
        %v3919 = vld [vmem:[%s3897 + $0xf8] sm:$0xff]
        %v3920 = vld [vmem:[%s3897 + $0x108] sm:$0xff]
        %v3921 = vld [vmem:[%s3897 + $0x110] sm:$0xff]
        %v3922 = vld [vmem:[%s3897 + $0x120] sm:$0xff]
        %v3923 = vld [vmem:[%s3897 + $0x128] sm:$0xff]
        %v3924 = vld [vmem:[%s3897 + $0x138] sm:$0xff]
        %v3925 = vld [vmem:[%s3897 + $0x140] sm:$0xff]
        %v3926 = vld [vmem:[%s3897 + $0x150] sm:$0xff]
        %v3927 = vld [vmem:[%s3897 + $0x158] sm:$0xff]
        %v3928 = vld [vmem:[%s3897 + $0x168] sm:$0xff]
        %v3929 = vld [vmem:[%s3897 + $0x170] sm:$0xff]
        %v3930 = vld [vmem:[%s1 + $0x23] sm:$0x1]
        %v3931 = vlaneseq
        %v3932 = vshrl.u32 %v3931, 7
        %v3933 = vsub.s32 0, %v3932
        %v3934 = vrot.slane %v3930, %v3933
        %v3935 = vmul.f32 %v3898, %v3934
        %v3936 = vmul.f32 %v3899, %v3934
        %v3937 = vmul.f32 %v3900, %v3934
        %v3938 = vmul.f32 %v3901, %v3934
        %v3939 = vmul.f32 %v3902, %v3934
        %v3940 = vmul.f32 %v3903, %v3934
        %v3941 = vmul.f32 %v3904, %v3934
        %v3942 = vmul.f32 %v3905, %v3934
        %v3943 = vmul.f32 %v3906, %v3934
        %v3944 = vmul.f32 %v3907, %v3934
        %v3945 = vmul.f32 %v3908, %v3934
        %v3946 = vmul.f32 %v3909, %v3934
        %v3947 = vmul.f32 %v3910, %v3934
        %v3948 = vmul.f32 %v3911, %v3934
        %v3949 = vmul.f32 %v3912, %v3934
        %v3950 = vmul.f32 %v3913, %v3934
        %v3951 = vmul.f32 %v3914, %v3934
        %v3952 = vmul.f32 %v3915, %v3934
        %v3953 = vmul.f32 %v3916, %v3934
        %v3954 = vmul.f32 %v3917, %v3934
        %v3955 = vmul.f32 %v3918, %v3934
        %v3956 = vmul.f32 %v3919, %v3934
        %v3957 = vmul.f32 %v3920, %v3934
        %v3958 = vmul.f32 %v3921, %v3934
        %v3959 = vmul.f32 %v3922, %v3934
        %v3960 = vmul.f32 %v3923, %v3934
        %v3961 = vmul.f32 %v3924, %v3934
        %v3962 = vmul.f32 %v3925, %v3934
        %v3963 = vmul.f32 %v3926, %v3934
        %v3964 = vmul.f32 %v3927, %v3934
        %v3965 = vmul.f32 %v3928, %v3934
        %v3966 = vmul.f32 %v3929, %v3934
        %v3967 = vadd.f32 %v3865, %v3935
        %v3968 = vadd.f32 %v3866, %v3936
        %v3969 = vadd.f32 %v3867, %v3937
        %v3970 = vadd.f32 %v3868, %v3938
        %v3971 = vadd.f32 %v3869, %v3939
        %v3972 = vadd.f32 %v3870, %v3940
        %v3973 = vadd.f32 %v3871, %v3941
        %v3974 = vadd.f32 %v3872, %v3942
        %v3975 = vadd.f32 %v3873, %v3943
        %v3976 = vadd.f32 %v3874, %v3944
        %v3977 = vadd.f32 %v3875, %v3945
        %v3978 = vadd.f32 %v3876, %v3946
        %v3979 = vadd.f32 %v3877, %v3947
        %v3980 = vadd.f32 %v3878, %v3948
        %v3981 = vadd.f32 %v3879, %v3949
        %v3982 = vadd.f32 %v3880, %v3950
        %v3983 = vadd.f32 %v3881, %v3951
        %v3984 = vadd.f32 %v3882, %v3952
        %v3985 = vadd.f32 %v3883, %v3953
        %v3986 = vadd.f32 %v3884, %v3954
        %v3987 = vadd.f32 %v3885, %v3955
        %v3988 = vadd.f32 %v3886, %v3956
        %v3989 = vadd.f32 %v3887, %v3957
        %v3990 = vadd.f32 %v3888, %v3958
        %v3991 = vadd.f32 %v3889, %v3959
        %v3992 = vadd.f32 %v3890, %v3960
        %v3993 = vadd.f32 %v3891, %v3961
        %v3994 = vadd.f32 %v3892, %v3962
        %v3995 = vadd.f32 %v3893, %v3963
        %v3996 = vadd.f32 %v3894, %v3964
        %v3997 = vadd.f32 %v3895, %v3965
        %v3998 = vadd.f32 %v3896, %v3966
        %v3999 = vld [vmem:[%s3897 + $0x1] sm:$0xff]
        %v4000 = vld [vmem:[%s3897 + $0x9] sm:$0xff]
        %v4001 = vld [vmem:[%s3897 + $0x19] sm:$0xff]
        %v4002 = vld [vmem:[%s3897 + $0x21] sm:$0xff]
        %v4003 = vld [vmem:[%s3897 + $0x31] sm:$0xff]
        %v4004 = vld [vmem:[%s3897 + $0x39] sm:$0xff]
        %v4005 = vld [vmem:[%s3897 + $0x49] sm:$0xff]
        %v4006 = vld [vmem:[%s3897 + $0x51] sm:$0xff]
        %v4007 = vld [vmem:[%s3897 + $0x61] sm:$0xff]
        %v4008 = vld [vmem:[%s3897 + $0x69] sm:$0xff]
        %v4009 = vld [vmem:[%s3897 + $0x79] sm:$0xff]
        %v4010 = vld [vmem:[%s3897 + $0x81] sm:$0xff]
        %v4011 = vld [vmem:[%s3897 + $0x91] sm:$0xff]
        %v4012 = vld [vmem:[%s3897 + $0x99] sm:$0xff]
        %v4013 = vld [vmem:[%s3897 + $0xa9] sm:$0xff]
        %v4014 = vld [vmem:[%s3897 + $0xb1] sm:$0xff]
        %v4015 = vld [vmem:[%s3897 + $0xc1] sm:$0xff]
        %v4016 = vld [vmem:[%s3897 + $0xc9] sm:$0xff]
        %v4017 = vld [vmem:[%s3897 + $0xd9] sm:$0xff]
        %v4018 = vld [vmem:[%s3897 + $0xe1] sm:$0xff]
        %v4019 = vld [vmem:[%s3897 + $0xf1] sm:$0xff]
        %v4020 = vld [vmem:[%s3897 + $0xf9] sm:$0xff]
        %v4021 = vld [vmem:[%s3897 + $0x109] sm:$0xff]
        %v4022 = vld [vmem:[%s3897 + $0x111] sm:$0xff]
        %v4023 = vld [vmem:[%s3897 + $0x121] sm:$0xff]
        %v4024 = vld [vmem:[%s3897 + $0x129] sm:$0xff]
        %v4025 = vld [vmem:[%s3897 + $0x139] sm:$0xff]
        %v4026 = vld [vmem:[%s3897 + $0x141] sm:$0xff]
        %v4027 = vld [vmem:[%s3897 + $0x151] sm:$0xff]
        %v4028 = vld [vmem:[%s3897 + $0x159] sm:$0xff]
        %v4029 = vld [vmem:[%s3897 + $0x169] sm:$0xff]
        %v4030 = vld [vmem:[%s3897 + $0x171] sm:$0xff]
        %v4031 = vld [vmem:[%s1 + $0x24] sm:$0x1]
        %v4032 = vlaneseq
        %v4033 = vshrl.u32 %v4032, 7
        %v4034 = vsub.s32 0, %v4033
        %v4035 = vrot.slane %v4031, %v4034
        %v4036 = vmul.f32 %v3999, %v4035
        %v4037 = vmul.f32 %v4000, %v4035
        %v4038 = vmul.f32 %v4001, %v4035
        %v4039 = vmul.f32 %v4002, %v4035
        %v4040 = vmul.f32 %v4003, %v4035
        %v4041 = vmul.f32 %v4004, %v4035
        %v4042 = vmul.f32 %v4005, %v4035
        %v4043 = vmul.f32 %v4006, %v4035
        %v4044 = vmul.f32 %v4007, %v4035
        %v4045 = vmul.f32 %v4008, %v4035
        %v4046 = vmul.f32 %v4009, %v4035
        %v4047 = vmul.f32 %v4010, %v4035
        %v4048 = vmul.f32 %v4011, %v4035
        %v4049 = vmul.f32 %v4012, %v4035
        %v4050 = vmul.f32 %v4013, %v4035
        %v4051 = vmul.f32 %v4014, %v4035
        %v4052 = vmul.f32 %v4015, %v4035
        %v4053 = vmul.f32 %v4016, %v4035
        %v4054 = vmul.f32 %v4017, %v4035
        %v4055 = vmul.f32 %v4018, %v4035
        %v4056 = vmul.f32 %v4019, %v4035
        %v4057 = vmul.f32 %v4020, %v4035
        %v4058 = vmul.f32 %v4021, %v4035
        %v4059 = vmul.f32 %v4022, %v4035
        %v4060 = vmul.f32 %v4023, %v4035
        %v4061 = vmul.f32 %v4024, %v4035
        %v4062 = vmul.f32 %v4025, %v4035
        %v4063 = vmul.f32 %v4026, %v4035
        %v4064 = vmul.f32 %v4027, %v4035
        %v4065 = vmul.f32 %v4028, %v4035
        %v4066 = vmul.f32 %v4029, %v4035
        %v4067 = vmul.f32 %v4030, %v4035
        %v4068 = vadd.f32 %v3967, %v4036
        %v4069 = vadd.f32 %v3968, %v4037
        %v4070 = vadd.f32 %v3969, %v4038
        %v4071 = vadd.f32 %v3970, %v4039
        %v4072 = vadd.f32 %v3971, %v4040
        %v4073 = vadd.f32 %v3972, %v4041
        %v4074 = vadd.f32 %v3973, %v4042
        %v4075 = vadd.f32 %v3974, %v4043
        %v4076 = vadd.f32 %v3975, %v4044
        %v4077 = vadd.f32 %v3976, %v4045
        %v4078 = vadd.f32 %v3977, %v4046
        %v4079 = vadd.f32 %v3978, %v4047
        %v4080 = vadd.f32 %v3979, %v4048
        %v4081 = vadd.f32 %v3980, %v4049
        %v4082 = vadd.f32 %v3981, %v4050
        %v4083 = vadd.f32 %v3982, %v4051
        %v4084 = vadd.f32 %v3983, %v4052
        %v4085 = vadd.f32 %v3984, %v4053
        %v4086 = vadd.f32 %v3985, %v4054
        %v4087 = vadd.f32 %v3986, %v4055
        %v4088 = vadd.f32 %v3987, %v4056
        %v4089 = vadd.f32 %v3988, %v4057
        %v4090 = vadd.f32 %v3989, %v4058
        %v4091 = vadd.f32 %v3990, %v4059
        %v4092 = vadd.f32 %v3991, %v4060
        %v4093 = vadd.f32 %v3992, %v4061
        %v4094 = vadd.f32 %v3993, %v4062
        %v4095 = vadd.f32 %v3994, %v4063
        %v4096 = vadd.f32 %v3995, %v4064
        %v4097 = vadd.f32 %v3996, %v4065
        %v4098 = vadd.f32 %v3997, %v4066
        %v4099 = vadd.f32 %v3998, %v4067
        %v4100 = vld [vmem:[%s3897 + $0x2] sm:$0xff]
        %v4101 = vld [vmem:[%s3897 + $0xa] sm:$0xff]
        %v4102 = vld [vmem:[%s3897 + $0x1a] sm:$0xff]
        %v4103 = vld [vmem:[%s3897 + $0x22] sm:$0xff]
        %v4104 = vld [vmem:[%s3897 + $0x32] sm:$0xff]
        %v4105 = vld [vmem:[%s3897 + $0x3a] sm:$0xff]
        %v4106 = vld [vmem:[%s3897 + $0x4a] sm:$0xff]
        %v4107 = vld [vmem:[%s3897 + $0x52] sm:$0xff]
        %v4108 = vld [vmem:[%s3897 + $0x62] sm:$0xff]
        %v4109 = vld [vmem:[%s3897 + $0x6a] sm:$0xff]
        %v4110 = vld [vmem:[%s3897 + $0x7a] sm:$0xff]
        %v4111 = vld [vmem:[%s3897 + $0x82] sm:$0xff]
        %v4112 = vld [vmem:[%s3897 + $0x92] sm:$0xff]
        %v4113 = vld [vmem:[%s3897 + $0x9a] sm:$0xff]
        %v4114 = vld [vmem:[%s3897 + $0xaa] sm:$0xff]
        %v4115 = vld [vmem:[%s3897 + $0xb2] sm:$0xff]
        %v4116 = vld [vmem:[%s3897 + $0xc2] sm:$0xff]
        %v4117 = vld [vmem:[%s3897 + $0xca] sm:$0xff]
        %v4118 = vld [vmem:[%s3897 + $0xda] sm:$0xff]
        %v4119 = vld [vmem:[%s3897 + $0xe2] sm:$0xff]
        %v4120 = vld [vmem:[%s3897 + $0xf2] sm:$0xff]
        %v4121 = vld [vmem:[%s3897 + $0xfa] sm:$0xff]
        %v4122 = vld [vmem:[%s3897 + $0x10a] sm:$0xff]
        %v4123 = vld [vmem:[%s3897 + $0x112] sm:$0xff]
        %v4124 = vld [vmem:[%s3897 + $0x122] sm:$0xff]
        %v4125 = vld [vmem:[%s3897 + $0x12a] sm:$0xff]
        %v4126 = vld [vmem:[%s3897 + $0x13a] sm:$0xff]
        %v4127 = vld [vmem:[%s3897 + $0x142] sm:$0xff]
        %v4128 = vld [vmem:[%s3897 + $0x152] sm:$0xff]
        %v4129 = vld [vmem:[%s3897 + $0x15a] sm:$0xff]
        %v4130 = vld [vmem:[%s3897 + $0x16a] sm:$0xff]
        %v4131 = vld [vmem:[%s3897 + $0x172] sm:$0xff]
        %v4132 = vld [vmem:[%s1 + $0x25] sm:$0x1]
        %v4133 = vlaneseq
        %v4134 = vshrl.u32 %v4133, 7
        %v4135 = vsub.s32 0, %v4134
        %v4136 = vrot.slane %v4132, %v4135
        %v4137 = vmul.f32 %v4100, %v4136
        %v4138 = vmul.f32 %v4101, %v4136
        %v4139 = vmul.f32 %v4102, %v4136
        %v4140 = vmul.f32 %v4103, %v4136
        %v4141 = vmul.f32 %v4104, %v4136
        %v4142 = vmul.f32 %v4105, %v4136
        %v4143 = vmul.f32 %v4106, %v4136
        %v4144 = vmul.f32 %v4107, %v4136
        %v4145 = vmul.f32 %v4108, %v4136
        %v4146 = vmul.f32 %v4109, %v4136
        %v4147 = vmul.f32 %v4110, %v4136
        %v4148 = vmul.f32 %v4111, %v4136
        %v4149 = vmul.f32 %v4112, %v4136
        %v4150 = vmul.f32 %v4113, %v4136
        %v4151 = vmul.f32 %v4114, %v4136
        %v4152 = vmul.f32 %v4115, %v4136
        %v4153 = vmul.f32 %v4116, %v4136
        %v4154 = vmul.f32 %v4117, %v4136
        %v4155 = vmul.f32 %v4118, %v4136
        %v4156 = vmul.f32 %v4119, %v4136
        %v4157 = vmul.f32 %v4120, %v4136
        %v4158 = vmul.f32 %v4121, %v4136
        %v4159 = vmul.f32 %v4122, %v4136
        %v4160 = vmul.f32 %v4123, %v4136
        %v4161 = vmul.f32 %v4124, %v4136
        %v4162 = vmul.f32 %v4125, %v4136
        %v4163 = vmul.f32 %v4126, %v4136
        %v4164 = vmul.f32 %v4127, %v4136
        %v4165 = vmul.f32 %v4128, %v4136
        %v4166 = vmul.f32 %v4129, %v4136
        %v4167 = vmul.f32 %v4130, %v4136
        %v4168 = vmul.f32 %v4131, %v4136
        %v4169 = vadd.f32 %v4068, %v4137
        %v4170 = vadd.f32 %v4069, %v4138
        %v4171 = vadd.f32 %v4070, %v4139
        %v4172 = vadd.f32 %v4071, %v4140
        %v4173 = vadd.f32 %v4072, %v4141
        %v4174 = vadd.f32 %v4073, %v4142
        %v4175 = vadd.f32 %v4074, %v4143
        %v4176 = vadd.f32 %v4075, %v4144
        %v4177 = vadd.f32 %v4076, %v4145
        %v4178 = vadd.f32 %v4077, %v4146
        %v4179 = vadd.f32 %v4078, %v4147
        %v4180 = vadd.f32 %v4079, %v4148
        %v4181 = vadd.f32 %v4080, %v4149
        %v4182 = vadd.f32 %v4081, %v4150
        %v4183 = vadd.f32 %v4082, %v4151
        %v4184 = vadd.f32 %v4083, %v4152
        %v4185 = vadd.f32 %v4084, %v4153
        %v4186 = vadd.f32 %v4085, %v4154
        %v4187 = vadd.f32 %v4086, %v4155
        %v4188 = vadd.f32 %v4087, %v4156
        %v4189 = vadd.f32 %v4088, %v4157
        %v4190 = vadd.f32 %v4089, %v4158
        %v4191 = vadd.f32 %v4090, %v4159
        %v4192 = vadd.f32 %v4091, %v4160
        %v4193 = vadd.f32 %v4092, %v4161
        %v4194 = vadd.f32 %v4093, %v4162
        %v4195 = vadd.f32 %v4094, %v4163
        %v4196 = vadd.f32 %v4095, %v4164
        %v4197 = vadd.f32 %v4096, %v4165
        %v4198 = vadd.f32 %v4097, %v4166
        %v4199 = vadd.f32 %v4098, %v4167
        %v4200 = vadd.f32 %v4099, %v4168
        %v4201 = vld [vmem:[%s3897 + $0x3] sm:$0xff]
        %v4202 = vld [vmem:[%s3897 + $0xb] sm:$0xff]
        %v4203 = vld [vmem:[%s3897 + $0x1b] sm:$0xff]
        %v4204 = vld [vmem:[%s3897 + $0x23] sm:$0xff]
        %v4205 = vld [vmem:[%s3897 + $0x33] sm:$0xff]
        %v4206 = vld [vmem:[%s3897 + $0x3b] sm:$0xff]
        %v4207 = vld [vmem:[%s3897 + $0x4b] sm:$0xff]
        %v4208 = vld [vmem:[%s3897 + $0x53] sm:$0xff]
        %v4209 = vld [vmem:[%s3897 + $0x63] sm:$0xff]
        %v4210 = vld [vmem:[%s3897 + $0x6b] sm:$0xff]
        %v4211 = vld [vmem:[%s3897 + $0x7b] sm:$0xff]
        %v4212 = vld [vmem:[%s3897 + $0x83] sm:$0xff]
        %v4213 = vld [vmem:[%s3897 + $0x93] sm:$0xff]
        %v4214 = vld [vmem:[%s3897 + $0x9b] sm:$0xff]
        %v4215 = vld [vmem:[%s3897 + $0xab] sm:$0xff]
        %v4216 = vld [vmem:[%s3897 + $0xb3] sm:$0xff]
        %v4217 = vld [vmem:[%s3897 + $0xc3] sm:$0xff]
        %v4218 = vld [vmem:[%s3897 + $0xcb] sm:$0xff]
        %v4219 = vld [vmem:[%s3897 + $0xdb] sm:$0xff]
        %v4220 = vld [vmem:[%s3897 + $0xe3] sm:$0xff]
        %v4221 = vld [vmem:[%s3897 + $0xf3] sm:$0xff]
        %v4222 = vld [vmem:[%s3897 + $0xfb] sm:$0xff]
        %v4223 = vld [vmem:[%s3897 + $0x10b] sm:$0xff]
        %v4224 = vld [vmem:[%s3897 + $0x113] sm:$0xff]
        %v4225 = vld [vmem:[%s3897 + $0x123] sm:$0xff]
        %v4226 = vld [vmem:[%s3897 + $0x12b] sm:$0xff]
        %v4227 = vld [vmem:[%s3897 + $0x13b] sm:$0xff]
        %v4228 = vld [vmem:[%s3897 + $0x143] sm:$0xff]
        %v4229 = vld [vmem:[%s3897 + $0x153] sm:$0xff]
        %v4230 = vld [vmem:[%s3897 + $0x15b] sm:$0xff]
        %v4231 = vld [vmem:[%s3897 + $0x16b] sm:$0xff]
        %v4232 = vld [vmem:[%s3897 + $0x173] sm:$0xff]
        %v4233 = vld [vmem:[%s1 + $0x26] sm:$0x1]
        %v4234 = vlaneseq
        %v4235 = vshrl.u32 %v4234, 7
        %v4236 = vsub.s32 0, %v4235
        %v4237 = vrot.slane %v4233, %v4236
        %v4238 = vmul.f32 %v4201, %v4237
        %v4239 = vmul.f32 %v4202, %v4237
        %v4240 = vmul.f32 %v4203, %v4237
        %v4241 = vmul.f32 %v4204, %v4237
        %v4242 = vmul.f32 %v4205, %v4237
        %v4243 = vmul.f32 %v4206, %v4237
        %v4244 = vmul.f32 %v4207, %v4237
        %v4245 = vmul.f32 %v4208, %v4237
        %v4246 = vmul.f32 %v4209, %v4237
        %v4247 = vmul.f32 %v4210, %v4237
        %v4248 = vmul.f32 %v4211, %v4237
        %v4249 = vmul.f32 %v4212, %v4237
        %v4250 = vmul.f32 %v4213, %v4237
        %v4251 = vmul.f32 %v4214, %v4237
        %v4252 = vmul.f32 %v4215, %v4237
        %v4253 = vmul.f32 %v4216, %v4237
        %v4254 = vmul.f32 %v4217, %v4237
        %v4255 = vmul.f32 %v4218, %v4237
        %v4256 = vmul.f32 %v4219, %v4237
        %v4257 = vmul.f32 %v4220, %v4237
        %v4258 = vmul.f32 %v4221, %v4237
        %v4259 = vmul.f32 %v4222, %v4237
        %v4260 = vmul.f32 %v4223, %v4237
        %v4261 = vmul.f32 %v4224, %v4237
        %v4262 = vmul.f32 %v4225, %v4237
        %v4263 = vmul.f32 %v4226, %v4237
        %v4264 = vmul.f32 %v4227, %v4237
        %v4265 = vmul.f32 %v4228, %v4237
        %v4266 = vmul.f32 %v4229, %v4237
        %v4267 = vmul.f32 %v4230, %v4237
        %v4268 = vmul.f32 %v4231, %v4237
        %v4269 = vmul.f32 %v4232, %v4237
        %v4270 = vadd.f32 %v4169, %v4238
        %v4271 = vadd.f32 %v4170, %v4239
        %v4272 = vadd.f32 %v4171, %v4240
        %v4273 = vadd.f32 %v4172, %v4241
        %v4274 = vadd.f32 %v4173, %v4242
        %v4275 = vadd.f32 %v4174, %v4243
        %v4276 = vadd.f32 %v4175, %v4244
        %v4277 = vadd.f32 %v4176, %v4245
        %v4278 = vadd.f32 %v4177, %v4246
        %v4279 = vadd.f32 %v4178, %v4247
        %v4280 = vadd.f32 %v4179, %v4248
        %v4281 = vadd.f32 %v4180, %v4249
        %v4282 = vadd.f32 %v4181, %v4250
        %v4283 = vadd.f32 %v4182, %v4251
        %v4284 = vadd.f32 %v4183, %v4252
        %v4285 = vadd.f32 %v4184, %v4253
        %v4286 = vadd.f32 %v4185, %v4254
        %v4287 = vadd.f32 %v4186, %v4255
        %v4288 = vadd.f32 %v4187, %v4256
        %v4289 = vadd.f32 %v4188, %v4257
        %v4290 = vadd.f32 %v4189, %v4258
        %v4291 = vadd.f32 %v4190, %v4259
        %v4292 = vadd.f32 %v4191, %v4260
        %v4293 = vadd.f32 %v4192, %v4261
        %v4294 = vadd.f32 %v4193, %v4262
        %v4295 = vadd.f32 %v4194, %v4263
        %v4296 = vadd.f32 %v4195, %v4264
        %v4297 = vadd.f32 %v4196, %v4265
        %v4298 = vadd.f32 %v4197, %v4266
        %v4299 = vadd.f32 %v4198, %v4267
        %v4300 = vadd.f32 %v4199, %v4268
        %v4301 = vadd.f32 %v4200, %v4269
        %v4302 = vld [vmem:[%s3897 + $0x4] sm:$0xff]
        %v4303 = vld [vmem:[%s3897 + $0xc] sm:$0xff]
        %v4304 = vld [vmem:[%s3897 + $0x1c] sm:$0xff]
        %v4305 = vld [vmem:[%s3897 + $0x24] sm:$0xff]
        %v4306 = vld [vmem:[%s3897 + $0x34] sm:$0xff]
        %v4307 = vld [vmem:[%s3897 + $0x3c] sm:$0xff]
        %v4308 = vld [vmem:[%s3897 + $0x4c] sm:$0xff]
        %v4309 = vld [vmem:[%s3897 + $0x54] sm:$0xff]
        %v4310 = vld [vmem:[%s3897 + $0x64] sm:$0xff]
        %v4311 = vld [vmem:[%s3897 + $0x6c] sm:$0xff]
        %v4312 = vld [vmem:[%s3897 + $0x7c] sm:$0xff]
        %v4313 = vld [vmem:[%s3897 + $0x84] sm:$0xff]
        %v4314 = vld [vmem:[%s3897 + $0x94] sm:$0xff]
        %v4315 = vld [vmem:[%s3897 + $0x9c] sm:$0xff]
        %v4316 = vld [vmem:[%s3897 + $0xac] sm:$0xff]
        %v4317 = vld [vmem:[%s3897 + $0xb4] sm:$0xff]
        %v4318 = vld [vmem:[%s3897 + $0xc4] sm:$0xff]
        %v4319 = vld [vmem:[%s3897 + $0xcc] sm:$0xff]
        %v4320 = vld [vmem:[%s3897 + $0xdc] sm:$0xff]
        %v4321 = vld [vmem:[%s3897 + $0xe4] sm:$0xff]
        %v4322 = vld [vmem:[%s3897 + $0xf4] sm:$0xff]
        %v4323 = vld [vmem:[%s3897 + $0xfc] sm:$0xff]
        %v4324 = vld [vmem:[%s3897 + $0x10c] sm:$0xff]
        %v4325 = vld [vmem:[%s3897 + $0x114] sm:$0xff]
        %v4326 = vld [vmem:[%s3897 + $0x124] sm:$0xff]
        %v4327 = vld [vmem:[%s3897 + $0x12c] sm:$0xff]
        %v4328 = vld [vmem:[%s3897 + $0x13c] sm:$0xff]
        %v4329 = vld [vmem:[%s3897 + $0x144] sm:$0xff]
        %v4330 = vld [vmem:[%s3897 + $0x154] sm:$0xff]
        %v4331 = vld [vmem:[%s3897 + $0x15c] sm:$0xff]
        %v4332 = vld [vmem:[%s3897 + $0x16c] sm:$0xff]
        %v4333 = vld [vmem:[%s3897 + $0x174] sm:$0xff]
        %v4334 = vld [vmem:[%s1 + $0x27] sm:$0x1]
        %v4335 = vlaneseq
        %v4336 = vshrl.u32 %v4335, 7
        %v4337 = vsub.s32 0, %v4336
        %v4338 = vrot.slane %v4334, %v4337
        %v4339 = vmul.f32 %v4302, %v4338
        %v4340 = vmul.f32 %v4303, %v4338
        %v4341 = vmul.f32 %v4304, %v4338
        %v4342 = vmul.f32 %v4305, %v4338
        %v4343 = vmul.f32 %v4306, %v4338
        %v4344 = vmul.f32 %v4307, %v4338
        %v4345 = vmul.f32 %v4308, %v4338
        %v4346 = vmul.f32 %v4309, %v4338
        %v4347 = vmul.f32 %v4310, %v4338
        %v4348 = vmul.f32 %v4311, %v4338
        %v4349 = vmul.f32 %v4312, %v4338
        %v4350 = vmul.f32 %v4313, %v4338
        %v4351 = vmul.f32 %v4314, %v4338
        %v4352 = vmul.f32 %v4315, %v4338
        %v4353 = vmul.f32 %v4316, %v4338
        %v4354 = vmul.f32 %v4317, %v4338
        %v4355 = vmul.f32 %v4318, %v4338
        %v4356 = vmul.f32 %v4319, %v4338
        %v4357 = vmul.f32 %v4320, %v4338
        %v4358 = vmul.f32 %v4321, %v4338
        %v4359 = vmul.f32 %v4322, %v4338
        %v4360 = vmul.f32 %v4323, %v4338
        %v4361 = vmul.f32 %v4324, %v4338
        %v4362 = vmul.f32 %v4325, %v4338
        %v4363 = vmul.f32 %v4326, %v4338
        %v4364 = vmul.f32 %v4327, %v4338
        %v4365 = vmul.f32 %v4328, %v4338
        %v4366 = vmul.f32 %v4329, %v4338
        %v4367 = vmul.f32 %v4330, %v4338
        %v4368 = vmul.f32 %v4331, %v4338
        %v4369 = vmul.f32 %v4332, %v4338
        %v4370 = vmul.f32 %v4333, %v4338
        %v4371 = vadd.f32 %v4270, %v4339
        %v4372 = vadd.f32 %v4271, %v4340
        %v4373 = vadd.f32 %v4272, %v4341
        %v4374 = vadd.f32 %v4273, %v4342
        %v4375 = vadd.f32 %v4274, %v4343
        %v4376 = vadd.f32 %v4275, %v4344
        %v4377 = vadd.f32 %v4276, %v4345
        %v4378 = vadd.f32 %v4277, %v4346
        %v4379 = vadd.f32 %v4278, %v4347
        %v4380 = vadd.f32 %v4279, %v4348
        %v4381 = vadd.f32 %v4280, %v4349
        %v4382 = vadd.f32 %v4281, %v4350
        %v4383 = vadd.f32 %v4282, %v4351
        %v4384 = vadd.f32 %v4283, %v4352
        %v4385 = vadd.f32 %v4284, %v4353
        %v4386 = vadd.f32 %v4285, %v4354
        %v4387 = vadd.f32 %v4286, %v4355
        %v4388 = vadd.f32 %v4287, %v4356
        %v4389 = vadd.f32 %v4288, %v4357
        %v4390 = vadd.f32 %v4289, %v4358
        %v4391 = vadd.f32 %v4290, %v4359
        %v4392 = vadd.f32 %v4291, %v4360
        %v4393 = vadd.f32 %v4292, %v4361
        %v4394 = vadd.f32 %v4293, %v4362
        %v4395 = vadd.f32 %v4294, %v4363
        %v4396 = vadd.f32 %v4295, %v4364
        %v4397 = vadd.f32 %v4296, %v4365
        %v4398 = vadd.f32 %v4297, %v4366
        %v4399 = vadd.f32 %v4298, %v4367
        %v4400 = vadd.f32 %v4299, %v4368
        %v4401 = vadd.f32 %v4300, %v4369
        %v4402 = vadd.f32 %v4301, %v4370
        %v4403 = vld [vmem:[%s3897 + $0x5] sm:$0xff]
        %v4404 = vld [vmem:[%s3897 + $0xd] sm:$0xff]
        %v4405 = vld [vmem:[%s3897 + $0x1d] sm:$0xff]
        %v4406 = vld [vmem:[%s3897 + $0x25] sm:$0xff]
        %v4407 = vld [vmem:[%s3897 + $0x35] sm:$0xff]
        %v4408 = vld [vmem:[%s3897 + $0x3d] sm:$0xff]
        %v4409 = vld [vmem:[%s3897 + $0x4d] sm:$0xff]
        %v4410 = vld [vmem:[%s3897 + $0x55] sm:$0xff]
        %v4411 = vld [vmem:[%s3897 + $0x65] sm:$0xff]
        %v4412 = vld [vmem:[%s3897 + $0x6d] sm:$0xff]
        %v4413 = vld [vmem:[%s3897 + $0x7d] sm:$0xff]
        %v4414 = vld [vmem:[%s3897 + $0x85] sm:$0xff]
        %v4415 = vld [vmem:[%s3897 + $0x95] sm:$0xff]
        %v4416 = vld [vmem:[%s3897 + $0x9d] sm:$0xff]
        %v4417 = vld [vmem:[%s3897 + $0xad] sm:$0xff]
        %v4418 = vld [vmem:[%s3897 + $0xb5] sm:$0xff]
        %v4419 = vld [vmem:[%s3897 + $0xc5] sm:$0xff]
        %v4420 = vld [vmem:[%s3897 + $0xcd] sm:$0xff]
        %v4421 = vld [vmem:[%s3897 + $0xdd] sm:$0xff]
        %v4422 = vld [vmem:[%s3897 + $0xe5] sm:$0xff]
        %v4423 = vld [vmem:[%s3897 + $0xf5] sm:$0xff]
        %v4424 = vld [vmem:[%s3897 + $0xfd] sm:$0xff]
        %v4425 = vld [vmem:[%s3897 + $0x10d] sm:$0xff]
        %v4426 = vld [vmem:[%s3897 + $0x115] sm:$0xff]
        %v4427 = vld [vmem:[%s3897 + $0x125] sm:$0xff]
        %v4428 = vld [vmem:[%s3897 + $0x12d] sm:$0xff]
        %v4429 = vld [vmem:[%s3897 + $0x13d] sm:$0xff]
        %v4430 = vld [vmem:[%s3897 + $0x145] sm:$0xff]
        %v4431 = vld [vmem:[%s3897 + $0x155] sm:$0xff]
        %v4432 = vld [vmem:[%s3897 + $0x15d] sm:$0xff]
        %v4433 = vld [vmem:[%s3897 + $0x16d] sm:$0xff]
        %v4434 = vld [vmem:[%s3897 + $0x175] sm:$0xff]
        %v4435 = vld [vmem:[%s1 + $0x28] sm:$0x1]
        %v4436 = vlaneseq
        %v4437 = vshrl.u32 %v4436, 7
        %v4438 = vsub.s32 0, %v4437
        %v4439 = vrot.slane %v4435, %v4438
        %v4440 = vmul.f32 %v4403, %v4439
        %v4441 = vmul.f32 %v4404, %v4439
        %v4442 = vmul.f32 %v4405, %v4439
        %v4443 = vmul.f32 %v4406, %v4439
        %v4444 = vmul.f32 %v4407, %v4439
        %v4445 = vmul.f32 %v4408, %v4439
        %v4446 = vmul.f32 %v4409, %v4439
        %v4447 = vmul.f32 %v4410, %v4439
        %v4448 = vmul.f32 %v4411, %v4439
        %v4449 = vmul.f32 %v4412, %v4439
        %v4450 = vmul.f32 %v4413, %v4439
        %v4451 = vmul.f32 %v4414, %v4439
        %v4452 = vmul.f32 %v4415, %v4439
        %v4453 = vmul.f32 %v4416, %v4439
        %v4454 = vmul.f32 %v4417, %v4439
        %v4455 = vmul.f32 %v4418, %v4439
        %v4456 = vmul.f32 %v4419, %v4439
        %v4457 = vmul.f32 %v4420, %v4439
        %v4458 = vmul.f32 %v4421, %v4439
        %v4459 = vmul.f32 %v4422, %v4439
        %v4460 = vmul.f32 %v4423, %v4439
        %v4461 = vmul.f32 %v4424, %v4439
        %v4462 = vmul.f32 %v4425, %v4439
        %v4463 = vmul.f32 %v4426, %v4439
        %v4464 = vmul.f32 %v4427, %v4439
        %v4465 = vmul.f32 %v4428, %v4439
        %v4466 = vmul.f32 %v4429, %v4439
        %v4467 = vmul.f32 %v4430, %v4439
        %v4468 = vmul.f32 %v4431, %v4439
        %v4469 = vmul.f32 %v4432, %v4439
        %v4470 = vmul.f32 %v4433, %v4439
        %v4471 = vmul.f32 %v4434, %v4439
        %v4472 = vadd.f32 %v4371, %v4440
        %v4473 = vadd.f32 %v4372, %v4441
        %v4474 = vadd.f32 %v4373, %v4442
        %v4475 = vadd.f32 %v4374, %v4443
        %v4476 = vadd.f32 %v4375, %v4444
        %v4477 = vadd.f32 %v4376, %v4445
        %v4478 = vadd.f32 %v4377, %v4446
        %v4479 = vadd.f32 %v4378, %v4447
        %v4480 = vadd.f32 %v4379, %v4448
        %v4481 = vadd.f32 %v4380, %v4449
        %v4482 = vadd.f32 %v4381, %v4450
        %v4483 = vadd.f32 %v4382, %v4451
        %v4484 = vadd.f32 %v4383, %v4452
        %v4485 = vadd.f32 %v4384, %v4453
        %v4486 = vadd.f32 %v4385, %v4454
        %v4487 = vadd.f32 %v4386, %v4455
        %v4488 = vadd.f32 %v4387, %v4456
        %v4489 = vadd.f32 %v4388, %v4457
        %v4490 = vadd.f32 %v4389, %v4458
        %v4491 = vadd.f32 %v4390, %v4459
        %v4492 = vadd.f32 %v4391, %v4460
        %v4493 = vadd.f32 %v4392, %v4461
        %v4494 = vadd.f32 %v4393, %v4462
        %v4495 = vadd.f32 %v4394, %v4463
        %v4496 = vadd.f32 %v4395, %v4464
        %v4497 = vadd.f32 %v4396, %v4465
        %v4498 = vadd.f32 %v4397, %v4466
        %v4499 = vadd.f32 %v4398, %v4467
        %v4500 = vadd.f32 %v4399, %v4468
        %v4501 = vadd.f32 %v4400, %v4469
        %v4502 = vadd.f32 %v4401, %v4470
        %v4503 = vadd.f32 %v4402, %v4471
        %v4504 = vld [vmem:[%s3897 + $0x6] sm:$0xff]
        %v4505 = vld [vmem:[%s3897 + $0xe] sm:$0xff]
        %v4506 = vld [vmem:[%s3897 + $0x1e] sm:$0xff]
        %v4507 = vld [vmem:[%s3897 + $0x26] sm:$0xff]
        %v4508 = vld [vmem:[%s3897 + $0x36] sm:$0xff]
        %v4509 = vld [vmem:[%s3897 + $0x3e] sm:$0xff]
        %v4510 = vld [vmem:[%s3897 + $0x4e] sm:$0xff]
        %v4511 = vld [vmem:[%s3897 + $0x56] sm:$0xff]
        %v4512 = vld [vmem:[%s3897 + $0x66] sm:$0xff]
        %v4513 = vld [vmem:[%s3897 + $0x6e] sm:$0xff]
        %v4514 = vld [vmem:[%s3897 + $0x7e] sm:$0xff]
        %v4515 = vld [vmem:[%s3897 + $0x86] sm:$0xff]
        %v4516 = vld [vmem:[%s3897 + $0x96] sm:$0xff]
        %v4517 = vld [vmem:[%s3897 + $0x9e] sm:$0xff]
        %v4518 = vld [vmem:[%s3897 + $0xae] sm:$0xff]
        %v4519 = vld [vmem:[%s3897 + $0xb6] sm:$0xff]
        %v4520 = vld [vmem:[%s3897 + $0xc6] sm:$0xff]
        %v4521 = vld [vmem:[%s3897 + $0xce] sm:$0xff]
        %v4522 = vld [vmem:[%s3897 + $0xde] sm:$0xff]
        %v4523 = vld [vmem:[%s3897 + $0xe6] sm:$0xff]
        %v4524 = vld [vmem:[%s3897 + $0xf6] sm:$0xff]
        %v4525 = vld [vmem:[%s3897 + $0xfe] sm:$0xff]
        %v4526 = vld [vmem:[%s3897 + $0x10e] sm:$0xff]
        %v4527 = vld [vmem:[%s3897 + $0x116] sm:$0xff]
        %v4528 = vld [vmem:[%s3897 + $0x126] sm:$0xff]
        %v4529 = vld [vmem:[%s3897 + $0x12e] sm:$0xff]
        %v4530 = vld [vmem:[%s3897 + $0x13e] sm:$0xff]
        %v4531 = vld [vmem:[%s3897 + $0x146] sm:$0xff]
        %v4532 = vld [vmem:[%s3897 + $0x156] sm:$0xff]
        %v4533 = vld [vmem:[%s3897 + $0x15e] sm:$0xff]
        %v4534 = vld [vmem:[%s3897 + $0x16e] sm:$0xff]
        %v4535 = vld [vmem:[%s3897 + $0x176] sm:$0xff]
        %v4536 = vld [vmem:[%s1 + $0x29] sm:$0x1]
        %v4537 = vlaneseq
        %v4538 = vshrl.u32 %v4537, 7
        %v4539 = vsub.s32 0, %v4538
        %v4540 = vrot.slane %v4536, %v4539
        %v4541 = vmul.f32 %v4504, %v4540
        %v4542 = vmul.f32 %v4505, %v4540
        %v4543 = vmul.f32 %v4506, %v4540
        %v4544 = vmul.f32 %v4507, %v4540
        %v4545 = vmul.f32 %v4508, %v4540
        %v4546 = vmul.f32 %v4509, %v4540
        %v4547 = vmul.f32 %v4510, %v4540
        %v4548 = vmul.f32 %v4511, %v4540
        %v4549 = vmul.f32 %v4512, %v4540
        %v4550 = vmul.f32 %v4513, %v4540
        %v4551 = vmul.f32 %v4514, %v4540
        %v4552 = vmul.f32 %v4515, %v4540
        %v4553 = vmul.f32 %v4516, %v4540
        %v4554 = vmul.f32 %v4517, %v4540
        %v4555 = vmul.f32 %v4518, %v4540
        %v4556 = vmul.f32 %v4519, %v4540
        %v4557 = vmul.f32 %v4520, %v4540
        %v4558 = vmul.f32 %v4521, %v4540
        %v4559 = vmul.f32 %v4522, %v4540
        %v4560 = vmul.f32 %v4523, %v4540
        %v4561 = vmul.f32 %v4524, %v4540
        %v4562 = vmul.f32 %v4525, %v4540
        %v4563 = vmul.f32 %v4526, %v4540
        %v4564 = vmul.f32 %v4527, %v4540
        %v4565 = vmul.f32 %v4528, %v4540
        %v4566 = vmul.f32 %v4529, %v4540
        %v4567 = vmul.f32 %v4530, %v4540
        %v4568 = vmul.f32 %v4531, %v4540
        %v4569 = vmul.f32 %v4532, %v4540
        %v4570 = vmul.f32 %v4533, %v4540
        %v4571 = vmul.f32 %v4534, %v4540
        %v4572 = vmul.f32 %v4535, %v4540
        %v4573 = vadd.f32 %v4472, %v4541
        %v4574 = vadd.f32 %v4473, %v4542
        %v4575 = vadd.f32 %v4474, %v4543
        %v4576 = vadd.f32 %v4475, %v4544
        %v4577 = vadd.f32 %v4476, %v4545
        %v4578 = vadd.f32 %v4477, %v4546
        %v4579 = vadd.f32 %v4478, %v4547
        %v4580 = vadd.f32 %v4479, %v4548
        %v4581 = vadd.f32 %v4480, %v4549
        %v4582 = vadd.f32 %v4481, %v4550
        %v4583 = vadd.f32 %v4482, %v4551
        %v4584 = vadd.f32 %v4483, %v4552
        %v4585 = vadd.f32 %v4484, %v4553
        %v4586 = vadd.f32 %v4485, %v4554
        %v4587 = vadd.f32 %v4486, %v4555
        %v4588 = vadd.f32 %v4487, %v4556
        %v4589 = vadd.f32 %v4488, %v4557
        %v4590 = vadd.f32 %v4489, %v4558
        %v4591 = vadd.f32 %v4490, %v4559
        %v4592 = vadd.f32 %v4491, %v4560
        %v4593 = vadd.f32 %v4492, %v4561
        %v4594 = vadd.f32 %v4493, %v4562
        %v4595 = vadd.f32 %v4494, %v4563
        %v4596 = vadd.f32 %v4495, %v4564
        %v4597 = vadd.f32 %v4496, %v4565
        %v4598 = vadd.f32 %v4497, %v4566
        %v4599 = vadd.f32 %v4498, %v4567
        %v4600 = vadd.f32 %v4499, %v4568
        %v4601 = vadd.f32 %v4500, %v4569
        %v4602 = vadd.f32 %v4501, %v4570
        %v4603 = vadd.f32 %v4502, %v4571
        %v4604 = vadd.f32 %v4503, %v4572
        %s4605 = scalar_lea.vmem %s357, 144
        %v4606 = vld [vmem:[%s4605] sm:$0xff]
        %v4607 = vld [vmem:[%s4605 + $0x8] sm:$0xff]
        %v4608 = vld [vmem:[%s4605 + $0x18] sm:$0xff]
        %v4609 = vld [vmem:[%s4605 + $0x20] sm:$0xff]
        %v4610 = vld [vmem:[%s4605 + $0x30] sm:$0xff]
        %v4611 = vld [vmem:[%s4605 + $0x38] sm:$0xff]
        %v4612 = vld [vmem:[%s4605 + $0x48] sm:$0xff]
        %v4613 = vld [vmem:[%s4605 + $0x50] sm:$0xff]
        %v4614 = vld [vmem:[%s4605 + $0x60] sm:$0xff]
        %v4615 = vld [vmem:[%s4605 + $0x68] sm:$0xff]
        %v4616 = vld [vmem:[%s4605 + $0x78] sm:$0xff]
        %v4617 = vld [vmem:[%s4605 + $0x80] sm:$0xff]
        %v4618 = vld [vmem:[%s4605 + $0x90] sm:$0xff]
        %v4619 = vld [vmem:[%s4605 + $0x98] sm:$0xff]
        %v4620 = vld [vmem:[%s4605 + $0xa8] sm:$0xff]
        %v4621 = vld [vmem:[%s4605 + $0xb0] sm:$0xff]
        %v4622 = vld [vmem:[%s4605 + $0xc0] sm:$0xff]
        %v4623 = vld [vmem:[%s4605 + $0xc8] sm:$0xff]
        %v4624 = vld [vmem:[%s4605 + $0xd8] sm:$0xff]
        %v4625 = vld [vmem:[%s4605 + $0xe0] sm:$0xff]
        %v4626 = vld [vmem:[%s4605 + $0xf0] sm:$0xff]
        %v4627 = vld [vmem:[%s4605 + $0xf8] sm:$0xff]
        %v4628 = vld [vmem:[%s4605 + $0x108] sm:$0xff]
        %v4629 = vld [vmem:[%s4605 + $0x110] sm:$0xff]
        %v4630 = vld [vmem:[%s4605 + $0x120] sm:$0xff]
        %v4631 = vld [vmem:[%s4605 + $0x128] sm:$0xff]
        %v4632 = vld [vmem:[%s4605 + $0x138] sm:$0xff]
        %v4633 = vld [vmem:[%s4605 + $0x140] sm:$0xff]
        %v4634 = vld [vmem:[%s4605 + $0x150] sm:$0xff]
        %v4635 = vld [vmem:[%s4605 + $0x158] sm:$0xff]
        %v4636 = vld [vmem:[%s4605 + $0x168] sm:$0xff]
        %v4637 = vld [vmem:[%s4605 + $0x170] sm:$0xff]
        %v4638 = vld [vmem:[%s1 + $0x2a] sm:$0x1]
        %v4639 = vlaneseq
        %v4640 = vshrl.u32 %v4639, 7
        %v4641 = vsub.s32 0, %v4640
        %v4642 = vrot.slane %v4638, %v4641
        %v4643 = vmul.f32 %v4606, %v4642
        %v4644 = vmul.f32 %v4607, %v4642
        %v4645 = vmul.f32 %v4608, %v4642
        %v4646 = vmul.f32 %v4609, %v4642
        %v4647 = vmul.f32 %v4610, %v4642
        %v4648 = vmul.f32 %v4611, %v4642
        %v4649 = vmul.f32 %v4612, %v4642
        %v4650 = vmul.f32 %v4613, %v4642
        %v4651 = vmul.f32 %v4614, %v4642
        %v4652 = vmul.f32 %v4615, %v4642
        %v4653 = vmul.f32 %v4616, %v4642
        %v4654 = vmul.f32 %v4617, %v4642
        %v4655 = vmul.f32 %v4618, %v4642
        %v4656 = vmul.f32 %v4619, %v4642
        %v4657 = vmul.f32 %v4620, %v4642
        %v4658 = vmul.f32 %v4621, %v4642
        %v4659 = vmul.f32 %v4622, %v4642
        %v4660 = vmul.f32 %v4623, %v4642
        %v4661 = vmul.f32 %v4624, %v4642
        %v4662 = vmul.f32 %v4625, %v4642
        %v4663 = vmul.f32 %v4626, %v4642
        %v4664 = vmul.f32 %v4627, %v4642
        %v4665 = vmul.f32 %v4628, %v4642
        %v4666 = vmul.f32 %v4629, %v4642
        %v4667 = vmul.f32 %v4630, %v4642
        %v4668 = vmul.f32 %v4631, %v4642
        %v4669 = vmul.f32 %v4632, %v4642
        %v4670 = vmul.f32 %v4633, %v4642
        %v4671 = vmul.f32 %v4634, %v4642
        %v4672 = vmul.f32 %v4635, %v4642
        %v4673 = vmul.f32 %v4636, %v4642
        %v4674 = vmul.f32 %v4637, %v4642
        %v4675 = vadd.f32 %v4573, %v4643
        %v4676 = vadd.f32 %v4574, %v4644
        %v4677 = vadd.f32 %v4575, %v4645
        %v4678 = vadd.f32 %v4576, %v4646
        %v4679 = vadd.f32 %v4577, %v4647
        %v4680 = vadd.f32 %v4578, %v4648
        %v4681 = vadd.f32 %v4579, %v4649
        %v4682 = vadd.f32 %v4580, %v4650
        %v4683 = vadd.f32 %v4581, %v4651
        %v4684 = vadd.f32 %v4582, %v4652
        %v4685 = vadd.f32 %v4583, %v4653
        %v4686 = vadd.f32 %v4584, %v4654
        %v4687 = vadd.f32 %v4585, %v4655
        %v4688 = vadd.f32 %v4586, %v4656
        %v4689 = vadd.f32 %v4587, %v4657
        %v4690 = vadd.f32 %v4588, %v4658
        %v4691 = vadd.f32 %v4589, %v4659
        %v4692 = vadd.f32 %v4590, %v4660
        %v4693 = vadd.f32 %v4591, %v4661
        %v4694 = vadd.f32 %v4592, %v4662
        %v4695 = vadd.f32 %v4593, %v4663
        %v4696 = vadd.f32 %v4594, %v4664
        %v4697 = vadd.f32 %v4595, %v4665
        %v4698 = vadd.f32 %v4596, %v4666
        %v4699 = vadd.f32 %v4597, %v4667
        %v4700 = vadd.f32 %v4598, %v4668
        %v4701 = vadd.f32 %v4599, %v4669
        %v4702 = vadd.f32 %v4600, %v4670
        %v4703 = vadd.f32 %v4601, %v4671
        %v4704 = vadd.f32 %v4602, %v4672
        %v4705 = vadd.f32 %v4603, %v4673
        %v4706 = vadd.f32 %v4604, %v4674
        %v4707 = vld [vmem:[%s4605 + $0x1] sm:$0xff]
        %v4708 = vld [vmem:[%s4605 + $0x9] sm:$0xff]
        %v4709 = vld [vmem:[%s4605 + $0x19] sm:$0xff]
        %v4710 = vld [vmem:[%s4605 + $0x21] sm:$0xff]
        %v4711 = vld [vmem:[%s4605 + $0x31] sm:$0xff]
        %v4712 = vld [vmem:[%s4605 + $0x39] sm:$0xff]
        %v4713 = vld [vmem:[%s4605 + $0x49] sm:$0xff]
        %v4714 = vld [vmem:[%s4605 + $0x51] sm:$0xff]
        %v4715 = vld [vmem:[%s4605 + $0x61] sm:$0xff]
        %v4716 = vld [vmem:[%s4605 + $0x69] sm:$0xff]
        %v4717 = vld [vmem:[%s4605 + $0x79] sm:$0xff]
        %v4718 = vld [vmem:[%s4605 + $0x81] sm:$0xff]
        %v4719 = vld [vmem:[%s4605 + $0x91] sm:$0xff]
        %v4720 = vld [vmem:[%s4605 + $0x99] sm:$0xff]
        %v4721 = vld [vmem:[%s4605 + $0xa9] sm:$0xff]
        %v4722 = vld [vmem:[%s4605 + $0xb1] sm:$0xff]
        %v4723 = vld [vmem:[%s4605 + $0xc1] sm:$0xff]
        %v4724 = vld [vmem:[%s4605 + $0xc9] sm:$0xff]
        %v4725 = vld [vmem:[%s4605 + $0xd9] sm:$0xff]
        %v4726 = vld [vmem:[%s4605 + $0xe1] sm:$0xff]
        %v4727 = vld [vmem:[%s4605 + $0xf1] sm:$0xff]
        %v4728 = vld [vmem:[%s4605 + $0xf9] sm:$0xff]
        %v4729 = vld [vmem:[%s4605 + $0x109] sm:$0xff]
        %v4730 = vld [vmem:[%s4605 + $0x111] sm:$0xff]
        %v4731 = vld [vmem:[%s4605 + $0x121] sm:$0xff]
        %v4732 = vld [vmem:[%s4605 + $0x129] sm:$0xff]
        %v4733 = vld [vmem:[%s4605 + $0x139] sm:$0xff]
        %v4734 = vld [vmem:[%s4605 + $0x141] sm:$0xff]
        %v4735 = vld [vmem:[%s4605 + $0x151] sm:$0xff]
        %v4736 = vld [vmem:[%s4605 + $0x159] sm:$0xff]
        %v4737 = vld [vmem:[%s4605 + $0x169] sm:$0xff]
        %v4738 = vld [vmem:[%s4605 + $0x171] sm:$0xff]
        %v4739 = vld [vmem:[%s1 + $0x2b] sm:$0x1]
        %v4740 = vlaneseq
        %v4741 = vshrl.u32 %v4740, 7
        %v4742 = vsub.s32 0, %v4741
        %v4743 = vrot.slane %v4739, %v4742
        %v4744 = vmul.f32 %v4707, %v4743
        %v4745 = vmul.f32 %v4708, %v4743
        %v4746 = vmul.f32 %v4709, %v4743
        %v4747 = vmul.f32 %v4710, %v4743
        %v4748 = vmul.f32 %v4711, %v4743
        %v4749 = vmul.f32 %v4712, %v4743
        %v4750 = vmul.f32 %v4713, %v4743
        %v4751 = vmul.f32 %v4714, %v4743
        %v4752 = vmul.f32 %v4715, %v4743
        %v4753 = vmul.f32 %v4716, %v4743
        %v4754 = vmul.f32 %v4717, %v4743
        %v4755 = vmul.f32 %v4718, %v4743
        %v4756 = vmul.f32 %v4719, %v4743
        %v4757 = vmul.f32 %v4720, %v4743
        %v4758 = vmul.f32 %v4721, %v4743
        %v4759 = vmul.f32 %v4722, %v4743
        %v4760 = vmul.f32 %v4723, %v4743
        %v4761 = vmul.f32 %v4724, %v4743
        %v4762 = vmul.f32 %v4725, %v4743
        %v4763 = vmul.f32 %v4726, %v4743
        %v4764 = vmul.f32 %v4727, %v4743
        %v4765 = vmul.f32 %v4728, %v4743
        %v4766 = vmul.f32 %v4729, %v4743
        %v4767 = vmul.f32 %v4730, %v4743
        %v4768 = vmul.f32 %v4731, %v4743
        %v4769 = vmul.f32 %v4732, %v4743
        %v4770 = vmul.f32 %v4733, %v4743
        %v4771 = vmul.f32 %v4734, %v4743
        %v4772 = vmul.f32 %v4735, %v4743
        %v4773 = vmul.f32 %v4736, %v4743
        %v4774 = vmul.f32 %v4737, %v4743
        %v4775 = vmul.f32 %v4738, %v4743
        %v4776 = vadd.f32 %v4675, %v4744
        %v4777 = vadd.f32 %v4676, %v4745
        %v4778 = vadd.f32 %v4677, %v4746
        %v4779 = vadd.f32 %v4678, %v4747
        %v4780 = vadd.f32 %v4679, %v4748
        %v4781 = vadd.f32 %v4680, %v4749
        %v4782 = vadd.f32 %v4681, %v4750
        %v4783 = vadd.f32 %v4682, %v4751
        %v4784 = vadd.f32 %v4683, %v4752
        %v4785 = vadd.f32 %v4684, %v4753
        %v4786 = vadd.f32 %v4685, %v4754
        %v4787 = vadd.f32 %v4686, %v4755
        %v4788 = vadd.f32 %v4687, %v4756
        %v4789 = vadd.f32 %v4688, %v4757
        %v4790 = vadd.f32 %v4689, %v4758
        %v4791 = vadd.f32 %v4690, %v4759
        %v4792 = vadd.f32 %v4691, %v4760
        %v4793 = vadd.f32 %v4692, %v4761
        %v4794 = vadd.f32 %v4693, %v4762
        %v4795 = vadd.f32 %v4694, %v4763
        %v4796 = vadd.f32 %v4695, %v4764
        %v4797 = vadd.f32 %v4696, %v4765
        %v4798 = vadd.f32 %v4697, %v4766
        %v4799 = vadd.f32 %v4698, %v4767
        %v4800 = vadd.f32 %v4699, %v4768
        %v4801 = vadd.f32 %v4700, %v4769
        %v4802 = vadd.f32 %v4701, %v4770
        %v4803 = vadd.f32 %v4702, %v4771
        %v4804 = vadd.f32 %v4703, %v4772
        %v4805 = vadd.f32 %v4704, %v4773
        %v4806 = vadd.f32 %v4705, %v4774
        %v4807 = vadd.f32 %v4706, %v4775
        %v4808 = vld [vmem:[%s4605 + $0x2] sm:$0xff]
        %v4809 = vld [vmem:[%s4605 + $0xa] sm:$0xff]
        %v4810 = vld [vmem:[%s4605 + $0x1a] sm:$0xff]
        %v4811 = vld [vmem:[%s4605 + $0x22] sm:$0xff]
        %v4812 = vld [vmem:[%s4605 + $0x32] sm:$0xff]
        %v4813 = vld [vmem:[%s4605 + $0x3a] sm:$0xff]
        %v4814 = vld [vmem:[%s4605 + $0x4a] sm:$0xff]
        %v4815 = vld [vmem:[%s4605 + $0x52] sm:$0xff]
        %v4816 = vld [vmem:[%s4605 + $0x62] sm:$0xff]
        %v4817 = vld [vmem:[%s4605 + $0x6a] sm:$0xff]
        %v4818 = vld [vmem:[%s4605 + $0x7a] sm:$0xff]
        %v4819 = vld [vmem:[%s4605 + $0x82] sm:$0xff]
        %v4820 = vld [vmem:[%s4605 + $0x92] sm:$0xff]
        %v4821 = vld [vmem:[%s4605 + $0x9a] sm:$0xff]
        %v4822 = vld [vmem:[%s4605 + $0xaa] sm:$0xff]
        %v4823 = vld [vmem:[%s4605 + $0xb2] sm:$0xff]
        %v4824 = vld [vmem:[%s4605 + $0xc2] sm:$0xff]
        %v4825 = vld [vmem:[%s4605 + $0xca] sm:$0xff]
        %v4826 = vld [vmem:[%s4605 + $0xda] sm:$0xff]
        %v4827 = vld [vmem:[%s4605 + $0xe2] sm:$0xff]
        %v4828 = vld [vmem:[%s4605 + $0xf2] sm:$0xff]
        %v4829 = vld [vmem:[%s4605 + $0xfa] sm:$0xff]
        %v4830 = vld [vmem:[%s4605 + $0x10a] sm:$0xff]
        %v4831 = vld [vmem:[%s4605 + $0x112] sm:$0xff]
        %v4832 = vld [vmem:[%s4605 + $0x122] sm:$0xff]
        %v4833 = vld [vmem:[%s4605 + $0x12a] sm:$0xff]
        %v4834 = vld [vmem:[%s4605 + $0x13a] sm:$0xff]
        %v4835 = vld [vmem:[%s4605 + $0x142] sm:$0xff]
        %v4836 = vld [vmem:[%s4605 + $0x152] sm:$0xff]
        %v4837 = vld [vmem:[%s4605 + $0x15a] sm:$0xff]
        %v4838 = vld [vmem:[%s4605 + $0x16a] sm:$0xff]
        %v4839 = vld [vmem:[%s4605 + $0x172] sm:$0xff]
        %v4840 = vld [vmem:[%s1 + $0x2c] sm:$0x1]
        %v4841 = vlaneseq
        %v4842 = vshrl.u32 %v4841, 7
        %v4843 = vsub.s32 0, %v4842
        %v4844 = vrot.slane %v4840, %v4843
        %v4845 = vmul.f32 %v4808, %v4844
        %v4846 = vmul.f32 %v4809, %v4844
        %v4847 = vmul.f32 %v4810, %v4844
        %v4848 = vmul.f32 %v4811, %v4844
        %v4849 = vmul.f32 %v4812, %v4844
        %v4850 = vmul.f32 %v4813, %v4844
        %v4851 = vmul.f32 %v4814, %v4844
        %v4852 = vmul.f32 %v4815, %v4844
        %v4853 = vmul.f32 %v4816, %v4844
        %v4854 = vmul.f32 %v4817, %v4844
        %v4855 = vmul.f32 %v4818, %v4844
        %v4856 = vmul.f32 %v4819, %v4844
        %v4857 = vmul.f32 %v4820, %v4844
        %v4858 = vmul.f32 %v4821, %v4844
        %v4859 = vmul.f32 %v4822, %v4844
        %v4860 = vmul.f32 %v4823, %v4844
        %v4861 = vmul.f32 %v4824, %v4844
        %v4862 = vmul.f32 %v4825, %v4844
        %v4863 = vmul.f32 %v4826, %v4844
        %v4864 = vmul.f32 %v4827, %v4844
        %v4865 = vmul.f32 %v4828, %v4844
        %v4866 = vmul.f32 %v4829, %v4844
        %v4867 = vmul.f32 %v4830, %v4844
        %v4868 = vmul.f32 %v4831, %v4844
        %v4869 = vmul.f32 %v4832, %v4844
        %v4870 = vmul.f32 %v4833, %v4844
        %v4871 = vmul.f32 %v4834, %v4844
        %v4872 = vmul.f32 %v4835, %v4844
        %v4873 = vmul.f32 %v4836, %v4844
        %v4874 = vmul.f32 %v4837, %v4844
        %v4875 = vmul.f32 %v4838, %v4844
        %v4876 = vmul.f32 %v4839, %v4844
        %v4877 = vadd.f32 %v4776, %v4845
        %v4878 = vadd.f32 %v4777, %v4846
        %v4879 = vadd.f32 %v4778, %v4847
        %v4880 = vadd.f32 %v4779, %v4848
        %v4881 = vadd.f32 %v4780, %v4849
        %v4882 = vadd.f32 %v4781, %v4850
        %v4883 = vadd.f32 %v4782, %v4851
        %v4884 = vadd.f32 %v4783, %v4852
        %v4885 = vadd.f32 %v4784, %v4853
        %v4886 = vadd.f32 %v4785, %v4854
        %v4887 = vadd.f32 %v4786, %v4855
        %v4888 = vadd.f32 %v4787, %v4856
        %v4889 = vadd.f32 %v4788, %v4857
        %v4890 = vadd.f32 %v4789, %v4858
        %v4891 = vadd.f32 %v4790, %v4859
        %v4892 = vadd.f32 %v4791, %v4860
        %v4893 = vadd.f32 %v4792, %v4861
        %v4894 = vadd.f32 %v4793, %v4862
        %v4895 = vadd.f32 %v4794, %v4863
        %v4896 = vadd.f32 %v4795, %v4864
        %v4897 = vadd.f32 %v4796, %v4865
        %v4898 = vadd.f32 %v4797, %v4866
        %v4899 = vadd.f32 %v4798, %v4867
        %v4900 = vadd.f32 %v4799, %v4868
        %v4901 = vadd.f32 %v4800, %v4869
        %v4902 = vadd.f32 %v4801, %v4870
        %v4903 = vadd.f32 %v4802, %v4871
        %v4904 = vadd.f32 %v4803, %v4872
        %v4905 = vadd.f32 %v4804, %v4873
        %v4906 = vadd.f32 %v4805, %v4874
        %v4907 = vadd.f32 %v4806, %v4875
        %v4908 = vadd.f32 %v4807, %v4876
        %v4909 = vld [vmem:[%s4605 + $0x3] sm:$0xff]
        %v4910 = vld [vmem:[%s4605 + $0xb] sm:$0xff]
        %v4911 = vld [vmem:[%s4605 + $0x1b] sm:$0xff]
        %v4912 = vld [vmem:[%s4605 + $0x23] sm:$0xff]
        %v4913 = vld [vmem:[%s4605 + $0x33] sm:$0xff]
        %v4914 = vld [vmem:[%s4605 + $0x3b] sm:$0xff]
        %v4915 = vld [vmem:[%s4605 + $0x4b] sm:$0xff]
        %v4916 = vld [vmem:[%s4605 + $0x53] sm:$0xff]
        %v4917 = vld [vmem:[%s4605 + $0x63] sm:$0xff]
        %v4918 = vld [vmem:[%s4605 + $0x6b] sm:$0xff]
        %v4919 = vld [vmem:[%s4605 + $0x7b] sm:$0xff]
        %v4920 = vld [vmem:[%s4605 + $0x83] sm:$0xff]
        %v4921 = vld [vmem:[%s4605 + $0x93] sm:$0xff]
        %v4922 = vld [vmem:[%s4605 + $0x9b] sm:$0xff]
        %v4923 = vld [vmem:[%s4605 + $0xab] sm:$0xff]
        %v4924 = vld [vmem:[%s4605 + $0xb3] sm:$0xff]
        %v4925 = vld [vmem:[%s4605 + $0xc3] sm:$0xff]
        %v4926 = vld [vmem:[%s4605 + $0xcb] sm:$0xff]
        %v4927 = vld [vmem:[%s4605 + $0xdb] sm:$0xff]
        %v4928 = vld [vmem:[%s4605 + $0xe3] sm:$0xff]
        %v4929 = vld [vmem:[%s4605 + $0xf3] sm:$0xff]
        %v4930 = vld [vmem:[%s4605 + $0xfb] sm:$0xff]
        %v4931 = vld [vmem:[%s4605 + $0x10b] sm:$0xff]
        %v4932 = vld [vmem:[%s4605 + $0x113] sm:$0xff]
        %v4933 = vld [vmem:[%s4605 + $0x123] sm:$0xff]
        %v4934 = vld [vmem:[%s4605 + $0x12b] sm:$0xff]
        %v4935 = vld [vmem:[%s4605 + $0x13b] sm:$0xff]
        %v4936 = vld [vmem:[%s4605 + $0x143] sm:$0xff]
        %v4937 = vld [vmem:[%s4605 + $0x153] sm:$0xff]
        %v4938 = vld [vmem:[%s4605 + $0x15b] sm:$0xff]
        %v4939 = vld [vmem:[%s4605 + $0x16b] sm:$0xff]
        %v4940 = vld [vmem:[%s4605 + $0x173] sm:$0xff]
        %v4941 = vld [vmem:[%s1 + $0x2d] sm:$0x1]
        %v4942 = vlaneseq
        %v4943 = vshrl.u32 %v4942, 7
        %v4944 = vsub.s32 0, %v4943
        %v4945 = vrot.slane %v4941, %v4944
        %v4946 = vmul.f32 %v4909, %v4945
        %v4947 = vmul.f32 %v4910, %v4945
        %v4948 = vmul.f32 %v4911, %v4945
        %v4949 = vmul.f32 %v4912, %v4945
        %v4950 = vmul.f32 %v4913, %v4945
        %v4951 = vmul.f32 %v4914, %v4945
        %v4952 = vmul.f32 %v4915, %v4945
        %v4953 = vmul.f32 %v4916, %v4945
        %v4954 = vmul.f32 %v4917, %v4945
        %v4955 = vmul.f32 %v4918, %v4945
        %v4956 = vmul.f32 %v4919, %v4945
        %v4957 = vmul.f32 %v4920, %v4945
        %v4958 = vmul.f32 %v4921, %v4945
        %v4959 = vmul.f32 %v4922, %v4945
        %v4960 = vmul.f32 %v4923, %v4945
        %v4961 = vmul.f32 %v4924, %v4945
        %v4962 = vmul.f32 %v4925, %v4945
        %v4963 = vmul.f32 %v4926, %v4945
        %v4964 = vmul.f32 %v4927, %v4945
        %v4965 = vmul.f32 %v4928, %v4945
        %v4966 = vmul.f32 %v4929, %v4945
        %v4967 = vmul.f32 %v4930, %v4945
        %v4968 = vmul.f32 %v4931, %v4945
        %v4969 = vmul.f32 %v4932, %v4945
        %v4970 = vmul.f32 %v4933, %v4945
        %v4971 = vmul.f32 %v4934, %v4945
        %v4972 = vmul.f32 %v4935, %v4945
        %v4973 = vmul.f32 %v4936, %v4945
        %v4974 = vmul.f32 %v4937, %v4945
        %v4975 = vmul.f32 %v4938, %v4945
        %v4976 = vmul.f32 %v4939, %v4945
        %v4977 = vmul.f32 %v4940, %v4945
        %v4978 = vadd.f32 %v4877, %v4946
        %v4979 = vadd.f32 %v4878, %v4947
        %v4980 = vadd.f32 %v4879, %v4948
        %v4981 = vadd.f32 %v4880, %v4949
        %v4982 = vadd.f32 %v4881, %v4950
        %v4983 = vadd.f32 %v4882, %v4951
        %v4984 = vadd.f32 %v4883, %v4952
        %v4985 = vadd.f32 %v4884, %v4953
        %v4986 = vadd.f32 %v4885, %v4954
        %v4987 = vadd.f32 %v4886, %v4955
        %v4988 = vadd.f32 %v4887, %v4956
        %v4989 = vadd.f32 %v4888, %v4957
        %v4990 = vadd.f32 %v4889, %v4958
        %v4991 = vadd.f32 %v4890, %v4959
        %v4992 = vadd.f32 %v4891, %v4960
        %v4993 = vadd.f32 %v4892, %v4961
        %v4994 = vadd.f32 %v4893, %v4962
        %v4995 = vadd.f32 %v4894, %v4963
        %v4996 = vadd.f32 %v4895, %v4964
        %v4997 = vadd.f32 %v4896, %v4965
        %v4998 = vadd.f32 %v4897, %v4966
        %v4999 = vadd.f32 %v4898, %v4967
        %v5000 = vadd.f32 %v4899, %v4968
        %v5001 = vadd.f32 %v4900, %v4969
        %v5002 = vadd.f32 %v4901, %v4970
        %v5003 = vadd.f32 %v4902, %v4971
        %v5004 = vadd.f32 %v4903, %v4972
        %v5005 = vadd.f32 %v4904, %v4973
        %v5006 = vadd.f32 %v4905, %v4974
        %v5007 = vadd.f32 %v4906, %v4975
        %v5008 = vadd.f32 %v4907, %v4976
        %v5009 = vadd.f32 %v4908, %v4977
        %v5010 = vld [vmem:[%s4605 + $0x4] sm:$0xff]
        %v5011 = vld [vmem:[%s4605 + $0xc] sm:$0xff]
        %v5012 = vld [vmem:[%s4605 + $0x1c] sm:$0xff]
        %v5013 = vld [vmem:[%s4605 + $0x24] sm:$0xff]
        %v5014 = vld [vmem:[%s4605 + $0x34] sm:$0xff]
        %v5015 = vld [vmem:[%s4605 + $0x3c] sm:$0xff]
        %v5016 = vld [vmem:[%s4605 + $0x4c] sm:$0xff]
        %v5017 = vld [vmem:[%s4605 + $0x54] sm:$0xff]
        %v5018 = vld [vmem:[%s4605 + $0x64] sm:$0xff]
        %v5019 = vld [vmem:[%s4605 + $0x6c] sm:$0xff]
        %v5020 = vld [vmem:[%s4605 + $0x7c] sm:$0xff]
        %v5021 = vld [vmem:[%s4605 + $0x84] sm:$0xff]
        %v5022 = vld [vmem:[%s4605 + $0x94] sm:$0xff]
        %v5023 = vld [vmem:[%s4605 + $0x9c] sm:$0xff]
        %v5024 = vld [vmem:[%s4605 + $0xac] sm:$0xff]
        %v5025 = vld [vmem:[%s4605 + $0xb4] sm:$0xff]
        %v5026 = vld [vmem:[%s4605 + $0xc4] sm:$0xff]
        %v5027 = vld [vmem:[%s4605 + $0xcc] sm:$0xff]
        %v5028 = vld [vmem:[%s4605 + $0xdc] sm:$0xff]
        %v5029 = vld [vmem:[%s4605 + $0xe4] sm:$0xff]
        %v5030 = vld [vmem:[%s4605 + $0xf4] sm:$0xff]
        %v5031 = vld [vmem:[%s4605 + $0xfc] sm:$0xff]
        %v5032 = vld [vmem:[%s4605 + $0x10c] sm:$0xff]
        %v5033 = vld [vmem:[%s4605 + $0x114] sm:$0xff]
        %v5034 = vld [vmem:[%s4605 + $0x124] sm:$0xff]
        %v5035 = vld [vmem:[%s4605 + $0x12c] sm:$0xff]
        %v5036 = vld [vmem:[%s4605 + $0x13c] sm:$0xff]
        %v5037 = vld [vmem:[%s4605 + $0x144] sm:$0xff]
        %v5038 = vld [vmem:[%s4605 + $0x154] sm:$0xff]
        %v5039 = vld [vmem:[%s4605 + $0x15c] sm:$0xff]
        %v5040 = vld [vmem:[%s4605 + $0x16c] sm:$0xff]
        %v5041 = vld [vmem:[%s4605 + $0x174] sm:$0xff]
        %v5042 = vld [vmem:[%s1 + $0x2e] sm:$0x1]
        %v5043 = vlaneseq
        %v5044 = vshrl.u32 %v5043, 7
        %v5045 = vsub.s32 0, %v5044
        %v5046 = vrot.slane %v5042, %v5045
        %v5047 = vmul.f32 %v5010, %v5046
        %v5048 = vmul.f32 %v5011, %v5046
        %v5049 = vmul.f32 %v5012, %v5046
        %v5050 = vmul.f32 %v5013, %v5046
        %v5051 = vmul.f32 %v5014, %v5046
        %v5052 = vmul.f32 %v5015, %v5046
        %v5053 = vmul.f32 %v5016, %v5046
        %v5054 = vmul.f32 %v5017, %v5046
        %v5055 = vmul.f32 %v5018, %v5046
        %v5056 = vmul.f32 %v5019, %v5046
        %v5057 = vmul.f32 %v5020, %v5046
        %v5058 = vmul.f32 %v5021, %v5046
        %v5059 = vmul.f32 %v5022, %v5046
        %v5060 = vmul.f32 %v5023, %v5046
        %v5061 = vmul.f32 %v5024, %v5046
        %v5062 = vmul.f32 %v5025, %v5046
        %v5063 = vmul.f32 %v5026, %v5046
        %v5064 = vmul.f32 %v5027, %v5046
        %v5065 = vmul.f32 %v5028, %v5046
        %v5066 = vmul.f32 %v5029, %v5046
        %v5067 = vmul.f32 %v5030, %v5046
        %v5068 = vmul.f32 %v5031, %v5046
        %v5069 = vmul.f32 %v5032, %v5046
        %v5070 = vmul.f32 %v5033, %v5046
        %v5071 = vmul.f32 %v5034, %v5046
        %v5072 = vmul.f32 %v5035, %v5046
        %v5073 = vmul.f32 %v5036, %v5046
        %v5074 = vmul.f32 %v5037, %v5046
        %v5075 = vmul.f32 %v5038, %v5046
        %v5076 = vmul.f32 %v5039, %v5046
        %v5077 = vmul.f32 %v5040, %v5046
        %v5078 = vmul.f32 %v5041, %v5046
        %v5079 = vadd.f32 %v4978, %v5047
        %v5080 = vadd.f32 %v4979, %v5048
        %v5081 = vadd.f32 %v4980, %v5049
        %v5082 = vadd.f32 %v4981, %v5050
        %v5083 = vadd.f32 %v4982, %v5051
        %v5084 = vadd.f32 %v4983, %v5052
        %v5085 = vadd.f32 %v4984, %v5053
        %v5086 = vadd.f32 %v4985, %v5054
        %v5087 = vadd.f32 %v4986, %v5055
        %v5088 = vadd.f32 %v4987, %v5056
        %v5089 = vadd.f32 %v4988, %v5057
        %v5090 = vadd.f32 %v4989, %v5058
        %v5091 = vadd.f32 %v4990, %v5059
        %v5092 = vadd.f32 %v4991, %v5060
        %v5093 = vadd.f32 %v4992, %v5061
        %v5094 = vadd.f32 %v4993, %v5062
        %v5095 = vadd.f32 %v4994, %v5063
        %v5096 = vadd.f32 %v4995, %v5064
        %v5097 = vadd.f32 %v4996, %v5065
        %v5098 = vadd.f32 %v4997, %v5066
        %v5099 = vadd.f32 %v4998, %v5067
        %v5100 = vadd.f32 %v4999, %v5068
        %v5101 = vadd.f32 %v5000, %v5069
        %v5102 = vadd.f32 %v5001, %v5070
        %v5103 = vadd.f32 %v5002, %v5071
        %v5104 = vadd.f32 %v5003, %v5072
        %v5105 = vadd.f32 %v5004, %v5073
        %v5106 = vadd.f32 %v5005, %v5074
        %v5107 = vadd.f32 %v5006, %v5075
        %v5108 = vadd.f32 %v5007, %v5076
        %v5109 = vadd.f32 %v5008, %v5077
        %v5110 = vadd.f32 %v5009, %v5078
        %v5111 = vld [vmem:[%s4605 + $0x5] sm:$0xff]
        %v5112 = vld [vmem:[%s4605 + $0xd] sm:$0xff]
        %v5113 = vld [vmem:[%s4605 + $0x1d] sm:$0xff]
        %v5114 = vld [vmem:[%s4605 + $0x25] sm:$0xff]
        %v5115 = vld [vmem:[%s4605 + $0x35] sm:$0xff]
        %v5116 = vld [vmem:[%s4605 + $0x3d] sm:$0xff]
        %v5117 = vld [vmem:[%s4605 + $0x4d] sm:$0xff]
        %v5118 = vld [vmem:[%s4605 + $0x55] sm:$0xff]
        %v5119 = vld [vmem:[%s4605 + $0x65] sm:$0xff]
        %v5120 = vld [vmem:[%s4605 + $0x6d] sm:$0xff]
        %v5121 = vld [vmem:[%s4605 + $0x7d] sm:$0xff]
        %v5122 = vld [vmem:[%s4605 + $0x85] sm:$0xff]
        %v5123 = vld [vmem:[%s4605 + $0x95] sm:$0xff]
        %v5124 = vld [vmem:[%s4605 + $0x9d] sm:$0xff]
        %v5125 = vld [vmem:[%s4605 + $0xad] sm:$0xff]
        %v5126 = vld [vmem:[%s4605 + $0xb5] sm:$0xff]
        %v5127 = vld [vmem:[%s4605 + $0xc5] sm:$0xff]
        %v5128 = vld [vmem:[%s4605 + $0xcd] sm:$0xff]
        %v5129 = vld [vmem:[%s4605 + $0xdd] sm:$0xff]
        %v5130 = vld [vmem:[%s4605 + $0xe5] sm:$0xff]
        %v5131 = vld [vmem:[%s4605 + $0xf5] sm:$0xff]
        %v5132 = vld [vmem:[%s4605 + $0xfd] sm:$0xff]
        %v5133 = vld [vmem:[%s4605 + $0x10d] sm:$0xff]
        %v5134 = vld [vmem:[%s4605 + $0x115] sm:$0xff]
        %v5135 = vld [vmem:[%s4605 + $0x125] sm:$0xff]
        %v5136 = vld [vmem:[%s4605 + $0x12d] sm:$0xff]
        %v5137 = vld [vmem:[%s4605 + $0x13d] sm:$0xff]
        %v5138 = vld [vmem:[%s4605 + $0x145] sm:$0xff]
        %v5139 = vld [vmem:[%s4605 + $0x155] sm:$0xff]
        %v5140 = vld [vmem:[%s4605 + $0x15d] sm:$0xff]
        %v5141 = vld [vmem:[%s4605 + $0x16d] sm:$0xff]
        %v5142 = vld [vmem:[%s4605 + $0x175] sm:$0xff]
        %v5143 = vld [vmem:[%s1 + $0x2f] sm:$0x1]
        %v5144 = vlaneseq
        %v5145 = vshrl.u32 %v5144, 7
        %v5146 = vsub.s32 0, %v5145
        %v5147 = vrot.slane %v5143, %v5146
        %v5148 = vmul.f32 %v5111, %v5147
        %v5149 = vmul.f32 %v5112, %v5147
        %v5150 = vmul.f32 %v5113, %v5147
        %v5151 = vmul.f32 %v5114, %v5147
        %v5152 = vmul.f32 %v5115, %v5147
        %v5153 = vmul.f32 %v5116, %v5147
        %v5154 = vmul.f32 %v5117, %v5147
        %v5155 = vmul.f32 %v5118, %v5147
        %v5156 = vmul.f32 %v5119, %v5147
        %v5157 = vmul.f32 %v5120, %v5147
        %v5158 = vmul.f32 %v5121, %v5147
        %v5159 = vmul.f32 %v5122, %v5147
        %v5160 = vmul.f32 %v5123, %v5147
        %v5161 = vmul.f32 %v5124, %v5147
        %v5162 = vmul.f32 %v5125, %v5147
        %v5163 = vmul.f32 %v5126, %v5147
        %v5164 = vmul.f32 %v5127, %v5147
        %v5165 = vmul.f32 %v5128, %v5147
        %v5166 = vmul.f32 %v5129, %v5147
        %v5167 = vmul.f32 %v5130, %v5147
        %v5168 = vmul.f32 %v5131, %v5147
        %v5169 = vmul.f32 %v5132, %v5147
        %v5170 = vmul.f32 %v5133, %v5147
        %v5171 = vmul.f32 %v5134, %v5147
        %v5172 = vmul.f32 %v5135, %v5147
        %v5173 = vmul.f32 %v5136, %v5147
        %v5174 = vmul.f32 %v5137, %v5147
        %v5175 = vmul.f32 %v5138, %v5147
        %v5176 = vmul.f32 %v5139, %v5147
        %v5177 = vmul.f32 %v5140, %v5147
        %v5178 = vmul.f32 %v5141, %v5147
        %v5179 = vmul.f32 %v5142, %v5147
        %v5180 = vadd.f32 %v5079, %v5148
        %v5181 = vadd.f32 %v5080, %v5149
        %v5182 = vadd.f32 %v5081, %v5150
        %v5183 = vadd.f32 %v5082, %v5151
        %v5184 = vadd.f32 %v5083, %v5152
        %v5185 = vadd.f32 %v5084, %v5153
        %v5186 = vadd.f32 %v5085, %v5154
        %v5187 = vadd.f32 %v5086, %v5155
        %v5188 = vadd.f32 %v5087, %v5156
        %v5189 = vadd.f32 %v5088, %v5157
        %v5190 = vadd.f32 %v5089, %v5158
        %v5191 = vadd.f32 %v5090, %v5159
        %v5192 = vadd.f32 %v5091, %v5160
        %v5193 = vadd.f32 %v5092, %v5161
        %v5194 = vadd.f32 %v5093, %v5162
        %v5195 = vadd.f32 %v5094, %v5163
        %v5196 = vadd.f32 %v5095, %v5164
        %v5197 = vadd.f32 %v5096, %v5165
        %v5198 = vadd.f32 %v5097, %v5166
        %v5199 = vadd.f32 %v5098, %v5167
        %v5200 = vadd.f32 %v5099, %v5168
        %v5201 = vadd.f32 %v5100, %v5169
        %v5202 = vadd.f32 %v5101, %v5170
        %v5203 = vadd.f32 %v5102, %v5171
        %v5204 = vadd.f32 %v5103, %v5172
        %v5205 = vadd.f32 %v5104, %v5173
        %v5206 = vadd.f32 %v5105, %v5174
        %v5207 = vadd.f32 %v5106, %v5175
        %v5208 = vadd.f32 %v5107, %v5176
        %v5209 = vadd.f32 %v5108, %v5177
        %v5210 = vadd.f32 %v5109, %v5178
        %v5211 = vadd.f32 %v5110, %v5179
        %v5212 = vld [vmem:[%s4605 + $0x6] sm:$0xff]
        %v5213 = vld [vmem:[%s4605 + $0xe] sm:$0xff]
        %v5214 = vld [vmem:[%s4605 + $0x1e] sm:$0xff]
        %v5215 = vld [vmem:[%s4605 + $0x26] sm:$0xff]
        %v5216 = vld [vmem:[%s4605 + $0x36] sm:$0xff]
        %v5217 = vld [vmem:[%s4605 + $0x3e] sm:$0xff]
        %v5218 = vld [vmem:[%s4605 + $0x4e] sm:$0xff]
        %v5219 = vld [vmem:[%s4605 + $0x56] sm:$0xff]
        %v5220 = vld [vmem:[%s4605 + $0x66] sm:$0xff]
        %v5221 = vld [vmem:[%s4605 + $0x6e] sm:$0xff]
        %v5222 = vld [vmem:[%s4605 + $0x7e] sm:$0xff]
        %v5223 = vld [vmem:[%s4605 + $0x86] sm:$0xff]
        %v5224 = vld [vmem:[%s4605 + $0x96] sm:$0xff]
        %v5225 = vld [vmem:[%s4605 + $0x9e] sm:$0xff]
        %v5226 = vld [vmem:[%s4605 + $0xae] sm:$0xff]
        %v5227 = vld [vmem:[%s4605 + $0xb6] sm:$0xff]
        %v5228 = vld [vmem:[%s4605 + $0xc6] sm:$0xff]
        %v5229 = vld [vmem:[%s4605 + $0xce] sm:$0xff]
        %v5230 = vld [vmem:[%s4605 + $0xde] sm:$0xff]
        %v5231 = vld [vmem:[%s4605 + $0xe6] sm:$0xff]
        %v5232 = vld [vmem:[%s4605 + $0xf6] sm:$0xff]
        %v5233 = vld [vmem:[%s4605 + $0xfe] sm:$0xff]
        %v5234 = vld [vmem:[%s4605 + $0x10e] sm:$0xff]
        %v5235 = vld [vmem:[%s4605 + $0x116] sm:$0xff]
        %v5236 = vld [vmem:[%s4605 + $0x126] sm:$0xff]
        %v5237 = vld [vmem:[%s4605 + $0x12e] sm:$0xff]
        %v5238 = vld [vmem:[%s4605 + $0x13e] sm:$0xff]
        %v5239 = vld [vmem:[%s4605 + $0x146] sm:$0xff]
        %v5240 = vld [vmem:[%s4605 + $0x156] sm:$0xff]
        %v5241 = vld [vmem:[%s4605 + $0x15e] sm:$0xff]
        %v5242 = vld [vmem:[%s4605 + $0x16e] sm:$0xff]
        %v5243 = vld [vmem:[%s4605 + $0x176] sm:$0xff]
        %v5244 = vld [vmem:[%s1 + $0x30] sm:$0x1]
        %v5245 = vlaneseq
        %v5246 = vshrl.u32 %v5245, 7
        %v5247 = vsub.s32 0, %v5246
        %v5248 = vrot.slane %v5244, %v5247
        %v5249 = vmul.f32 %v5212, %v5248
        %v5250 = vmul.f32 %v5213, %v5248
        %v5251 = vmul.f32 %v5214, %v5248
        %v5252 = vmul.f32 %v5215, %v5248
        %v5253 = vmul.f32 %v5216, %v5248
        %v5254 = vmul.f32 %v5217, %v5248
        %v5255 = vmul.f32 %v5218, %v5248
        %v5256 = vmul.f32 %v5219, %v5248
        %v5257 = vmul.f32 %v5220, %v5248
        %v5258 = vmul.f32 %v5221, %v5248
        %v5259 = vmul.f32 %v5222, %v5248
        %v5260 = vmul.f32 %v5223, %v5248
        %v5261 = vmul.f32 %v5224, %v5248
        %v5262 = vmul.f32 %v5225, %v5248
        %v5263 = vmul.f32 %v5226, %v5248
        %v5264 = vmul.f32 %v5227, %v5248
        %v5265 = vmul.f32 %v5228, %v5248
        %v5266 = vmul.f32 %v5229, %v5248
        %v5267 = vmul.f32 %v5230, %v5248
        %v5268 = vmul.f32 %v5231, %v5248
        %v5269 = vmul.f32 %v5232, %v5248
        %v5270 = vmul.f32 %v5233, %v5248
        %v5271 = vmul.f32 %v5234, %v5248
        %v5272 = vmul.f32 %v5235, %v5248
        %v5273 = vmul.f32 %v5236, %v5248
        %v5274 = vmul.f32 %v5237, %v5248
        %v5275 = vmul.f32 %v5238, %v5248
        %v5276 = vmul.f32 %v5239, %v5248
        %v5277 = vmul.f32 %v5240, %v5248
        %v5278 = vmul.f32 %v5241, %v5248
        %v5279 = vmul.f32 %v5242, %v5248
        %v5280 = vmul.f32 %v5243, %v5248
        %v5281 = vadd.f32 %v5180, %v5249
        %v5282 = vadd.f32 %v5181, %v5250
        %v5283 = vadd.f32 %v5182, %v5251
        %v5284 = vadd.f32 %v5183, %v5252
        %v5285 = vadd.f32 %v5184, %v5253
        %v5286 = vadd.f32 %v5185, %v5254
        %v5287 = vadd.f32 %v5186, %v5255
        %v5288 = vadd.f32 %v5187, %v5256
        %v5289 = vadd.f32 %v5188, %v5257
        %v5290 = vadd.f32 %v5189, %v5258
        %v5291 = vadd.f32 %v5190, %v5259
        %v5292 = vadd.f32 %v5191, %v5260
        %v5293 = vadd.f32 %v5192, %v5261
        %v5294 = vadd.f32 %v5193, %v5262
        %v5295 = vadd.f32 %v5194, %v5263
        %v5296 = vadd.f32 %v5195, %v5264
        %v5297 = vadd.f32 %v5196, %v5265
        %v5298 = vadd.f32 %v5197, %v5266
        %v5299 = vadd.f32 %v5198, %v5267
        %v5300 = vadd.f32 %v5199, %v5268
        %v5301 = vadd.f32 %v5200, %v5269
        %v5302 = vadd.f32 %v5201, %v5270
        %v5303 = vadd.f32 %v5202, %v5271
        %v5304 = vadd.f32 %v5203, %v5272
        %v5305 = vadd.f32 %v5204, %v5273
        %v5306 = vadd.f32 %v5205, %v5274
        %v5307 = vadd.f32 %v5206, %v5275
        %v5308 = vadd.f32 %v5207, %v5276
        %v5309 = vadd.f32 %v5208, %v5277
        %v5310 = vadd.f32 %v5209, %v5278
        %v5311 = vadd.f32 %v5210, %v5279
        %v5312 = vadd.f32 %v5211, %v5280
        %v5313 = vld [vmem:[%s2] sm:$0x1]
        %v5315 = vlaneseq
        %v5316 = vshrl.u32 %v5315, 7
        %v5317 = vsub.s32 0, %v5316
        %v5318 = vrot.slane %v5313, %v5317
        %v5320 = vadd.f32 %v5281, %v5318
        %v5321 = vadd.f32 %v5282, %v5318
        %v5322 = vadd.f32 %v5283, %v5318
        %v5323 = vadd.f32 %v5284, %v5318
        %v5324 = vadd.f32 %v5285, %v5318
        %v5325 = vadd.f32 %v5286, %v5318
        %v5326 = vadd.f32 %v5287, %v5318
        %v5327 = vadd.f32 %v5288, %v5318
        %v5328 = vadd.f32 %v5289, %v5318
        %v5329 = vadd.f32 %v5290, %v5318
        %v5330 = vadd.f32 %v5291, %v5318
        %v5331 = vadd.f32 %v5292, %v5318
        %v5332 = vadd.f32 %v5293, %v5318
        %v5333 = vadd.f32 %v5294, %v5318
        %v5334 = vadd.f32 %v5295, %v5318
        %v5335 = vadd.f32 %v5296, %v5318
        %v5336 = vadd.f32 %v5297, %v5318
        %v5337 = vadd.f32 %v5298, %v5318
        %v5338 = vadd.f32 %v5299, %v5318
        %v5339 = vadd.f32 %v5300, %v5318
        %v5340 = vadd.f32 %v5301, %v5318
        %v5341 = vadd.f32 %v5302, %v5318
        %v5342 = vadd.f32 %v5303, %v5318
        %v5343 = vadd.f32 %v5304, %v5318
        %v5344 = vadd.f32 %v5305, %v5318
        %v5345 = vadd.f32 %v5306, %v5318
        %v5346 = vadd.f32 %v5307, %v5318
        %v5347 = vadd.f32 %v5308, %v5318
        %v5348 = vadd.f32 %v5309, %v5318
        %v5349 = vadd.f32 %v5310, %v5318
        %v5350 = vadd.f32 %v5311, %v5318
        %v5351 = vadd.f32 %v5312, %v5318
        %vm5352 = vcmask 523264
        %v5353 = vsel %vm5352, %v5320, 0.0
        %5354 = vadd.xlane.f32.xlu0 %v5353
        %v5355 = vpop.xlane.xlu0 %5354
        %v5356 = vsel %vm5352, %v5321, 0.0
        %5357 = vadd.xlane.f32.xlu0 %v5356
        %v5358 = vpop.xlane.xlu0 %5357
        %v5359 = vsel %vm5352, %v5322, 0.0
        %5360 = vadd.xlane.f32.xlu0 %v5359
        %v5361 = vpop.xlane.xlu0 %5360
        %v5362 = vsel %vm5352, %v5323, 0.0
        %5363 = vadd.xlane.f32.xlu0 %v5362
        %v5364 = vpop.xlane.xlu0 %5363
        %v5365 = vsel %vm5352, %v5324, 0.0
        %5366 = vadd.xlane.f32.xlu0 %v5365
        %v5367 = vpop.xlane.xlu0 %5366
        %v5368 = vsel %vm5352, %v5325, 0.0
        %5369 = vadd.xlane.f32.xlu0 %v5368
        %v5370 = vpop.xlane.xlu0 %5369
        %v5371 = vsel %vm5352, %v5326, 0.0
        %5372 = vadd.xlane.f32.xlu0 %v5371
        %v5373 = vpop.xlane.xlu0 %5372
        %v5374 = vsel %vm5352, %v5327, 0.0
        %5375 = vadd.xlane.f32.xlu0 %v5374
        %v5376 = vpop.xlane.xlu0 %5375
        %v5377 = vsel %vm5352, %v5328, 0.0
        %5378 = vadd.xlane.f32.xlu0 %v5377
        %v5379 = vpop.xlane.xlu0 %5378
        %v5380 = vsel %vm5352, %v5329, 0.0
        %5381 = vadd.xlane.f32.xlu0 %v5380
        %v5382 = vpop.xlane.xlu0 %5381
        %v5383 = vsel %vm5352, %v5330, 0.0
        %5384 = vadd.xlane.f32.xlu0 %v5383
        %v5385 = vpop.xlane.xlu0 %5384
        %v5386 = vsel %vm5352, %v5331, 0.0
        %5387 = vadd.xlane.f32.xlu0 %v5386
        %v5388 = vpop.xlane.xlu0 %5387
        %v5389 = vsel %vm5352, %v5332, 0.0
        %5390 = vadd.xlane.f32.xlu0 %v5389
        %v5391 = vpop.xlane.xlu0 %5390
        %v5392 = vsel %vm5352, %v5333, 0.0
        %5393 = vadd.xlane.f32.xlu0 %v5392
        %v5394 = vpop.xlane.xlu0 %5393
        %v5395 = vsel %vm5352, %v5334, 0.0
        %5396 = vadd.xlane.f32.xlu0 %v5395
        %v5397 = vpop.xlane.xlu0 %5396
        %v5398 = vsel %vm5352, %v5335, 0.0
        %5399 = vadd.xlane.f32.xlu0 %v5398
        %v5400 = vpop.xlane.xlu0 %5399
        %v5401 = vsel %vm5352, %v5336, 0.0
        %5402 = vadd.xlane.f32.xlu0 %v5401
        %v5403 = vpop.xlane.xlu0 %5402
        %v5404 = vsel %vm5352, %v5337, 0.0
        %5405 = vadd.xlane.f32.xlu0 %v5404
        %v5406 = vpop.xlane.xlu0 %5405
        %v5407 = vsel %vm5352, %v5338, 0.0
        %5408 = vadd.xlane.f32.xlu0 %v5407
        %v5409 = vpop.xlane.xlu0 %5408
        %v5410 = vsel %vm5352, %v5339, 0.0
        %5411 = vadd.xlane.f32.xlu0 %v5410
        %v5412 = vpop.xlane.xlu0 %5411
        %v5413 = vsel %vm5352, %v5340, 0.0
        %5414 = vadd.xlane.f32.xlu0 %v5413
        %v5415 = vpop.xlane.xlu0 %5414
        %v5416 = vsel %vm5352, %v5341, 0.0
        %5417 = vadd.xlane.f32.xlu0 %v5416
        %v5418 = vpop.xlane.xlu0 %5417
        %v5419 = vsel %vm5352, %v5342, 0.0
        %5420 = vadd.xlane.f32.xlu0 %v5419
        %v5421 = vpop.xlane.xlu0 %5420
        %v5422 = vsel %vm5352, %v5343, 0.0
        %5423 = vadd.xlane.f32.xlu0 %v5422
        %v5424 = vpop.xlane.xlu0 %5423
        %v5425 = vsel %vm5352, %v5344, 0.0
        %5426 = vadd.xlane.f32.xlu0 %v5425
        %v5427 = vpop.xlane.xlu0 %5426
        %v5428 = vsel %vm5352, %v5345, 0.0
        %5429 = vadd.xlane.f32.xlu0 %v5428
        %v5430 = vpop.xlane.xlu0 %5429
        %v5431 = vsel %vm5352, %v5346, 0.0
        %5432 = vadd.xlane.f32.xlu0 %v5431
        %v5433 = vpop.xlane.xlu0 %5432
        %v5434 = vsel %vm5352, %v5347, 0.0
        %5435 = vadd.xlane.f32.xlu0 %v5434
        %v5436 = vpop.xlane.xlu0 %5435
        %v5437 = vsel %vm5352, %v5348, 0.0
        %5438 = vadd.xlane.f32.xlu0 %v5437
        %v5439 = vpop.xlane.xlu0 %5438
        %v5440 = vsel %vm5352, %v5349, 0.0
        %5441 = vadd.xlane.f32.xlu0 %v5440
        %v5442 = vpop.xlane.xlu0 %5441
        %v5443 = vsel %vm5352, %v5350, 0.0
        %5444 = vadd.xlane.f32.xlu0 %v5443
        %v5445 = vpop.xlane.xlu0 %5444
        %v5446 = vsel %vm5352, %v5351, 0.0
        %5447 = vadd.xlane.f32.xlu0 %v5446
        %v5448 = vpop.xlane.xlu0 %5447
        %v5449 = vrcp.pop 64.0
        %v5450 = vmul.f32 %v5355, %v5449
        %v5451 = vmul.f32 %v5358, %v5449
        %v5452 = vmul.f32 %v5361, %v5449
        %v5453 = vmul.f32 %v5364, %v5449
        %v5454 = vmul.f32 %v5367, %v5449
        %v5455 = vmul.f32 %v5370, %v5449
        %v5456 = vmul.f32 %v5373, %v5449
        %v5457 = vmul.f32 %v5376, %v5449
        %v5458 = vmul.f32 %v5379, %v5449
        %v5459 = vmul.f32 %v5382, %v5449
        %v5460 = vmul.f32 %v5385, %v5449
        %v5461 = vmul.f32 %v5388, %v5449
        %v5462 = vmul.f32 %v5391, %v5449
        %v5463 = vmul.f32 %v5394, %v5449
        %v5464 = vmul.f32 %v5397, %v5449
        %v5465 = vmul.f32 %v5400, %v5449
        %v5466 = vmul.f32 %v5403, %v5449
        %v5467 = vmul.f32 %v5406, %v5449
        %v5468 = vmul.f32 %v5409, %v5449
        %v5469 = vmul.f32 %v5412, %v5449
        %v5470 = vmul.f32 %v5415, %v5449
        %v5471 = vmul.f32 %v5418, %v5449
        %v5472 = vmul.f32 %v5421, %v5449
        %v5473 = vmul.f32 %v5424, %v5449
        %v5474 = vmul.f32 %v5427, %v5449
        %v5475 = vmul.f32 %v5430, %v5449
        %v5476 = vmul.f32 %v5433, %v5449
        %v5477 = vmul.f32 %v5436, %v5449
        %v5478 = vmul.f32 %v5439, %v5449
        %v5479 = vmul.f32 %v5442, %v5449
        %v5480 = vmul.f32 %v5445, %v5449
        %v5481 = vmul.f32 %v5448, %v5449
        %v5482 = vsub.f32 %v5320, %v5450
        %v5483 = vsub.f32 %v5321, %v5451
        %v5484 = vsub.f32 %v5322, %v5452
        %v5485 = vsub.f32 %v5323, %v5453
        %v5486 = vsub.f32 %v5324, %v5454
        %v5487 = vsub.f32 %v5325, %v5455
        %v5488 = vsub.f32 %v5326, %v5456
        %v5489 = vsub.f32 %v5327, %v5457
        %v5490 = vsub.f32 %v5328, %v5458
        %v5491 = vsub.f32 %v5329, %v5459
        %v5492 = vsub.f32 %v5330, %v5460
        %v5493 = vsub.f32 %v5331, %v5461
        %v5494 = vsub.f32 %v5332, %v5462
        %v5495 = vsub.f32 %v5333, %v5463
        %v5496 = vsub.f32 %v5334, %v5464
        %v5497 = vsub.f32 %v5335, %v5465
        %v5498 = vsub.f32 %v5336, %v5466
        %v5499 = vsub.f32 %v5337, %v5467
        %v5500 = vsub.f32 %v5338, %v5468
        %v5501 = vsub.f32 %v5339, %v5469
        %v5502 = vsub.f32 %v5340, %v5470
        %v5503 = vsub.f32 %v5341, %v5471
        %v5504 = vsub.f32 %v5342, %v5472
        %v5505 = vsub.f32 %v5343, %v5473
        %v5506 = vsub.f32 %v5344, %v5474
        %v5507 = vsub.f32 %v5345, %v5475
        %v5508 = vsub.f32 %v5346, %v5476
        %v5509 = vsub.f32 %v5347, %v5477
        %v5510 = vsub.f32 %v5348, %v5478
        %v5511 = vsub.f32 %v5349, %v5479
        %v5512 = vsub.f32 %v5350, %v5480
        %v5513 = vsub.f32 %v5351, %v5481
        %v5514 = vmul.f32 %v5482, %v5482
        %v5515 = vmul.f32 %v5483, %v5483
        %v5516 = vmul.f32 %v5484, %v5484
        %v5517 = vmul.f32 %v5485, %v5485
        %v5518 = vmul.f32 %v5486, %v5486
        %v5519 = vmul.f32 %v5487, %v5487
        %v5520 = vmul.f32 %v5488, %v5488
        %v5521 = vmul.f32 %v5489, %v5489
        %v5522 = vmul.f32 %v5490, %v5490
        %v5523 = vmul.f32 %v5491, %v5491
        %v5524 = vmul.f32 %v5492, %v5492
        %v5525 = vmul.f32 %v5493, %v5493
        %v5526 = vmul.f32 %v5494, %v5494
        %v5527 = vmul.f32 %v5495, %v5495
        %v5528 = vmul.f32 %v5496, %v5496
        %v5529 = vmul.f32 %v5497, %v5497
        %v5530 = vmul.f32 %v5498, %v5498
        %v5531 = vmul.f32 %v5499, %v5499
        %v5532 = vmul.f32 %v5500, %v5500
        %v5533 = vmul.f32 %v5501, %v5501
        %v5534 = vmul.f32 %v5502, %v5502
        %v5535 = vmul.f32 %v5503, %v5503
        %v5536 = vmul.f32 %v5504, %v5504
        %v5537 = vmul.f32 %v5505, %v5505
        %v5538 = vmul.f32 %v5506, %v5506
        %v5539 = vmul.f32 %v5507, %v5507
        %v5540 = vmul.f32 %v5508, %v5508
        %v5541 = vmul.f32 %v5509, %v5509
        %v5542 = vmul.f32 %v5510, %v5510
        %v5543 = vmul.f32 %v5511, %v5511
        %v5544 = vmul.f32 %v5512, %v5512
        %v5545 = vmul.f32 %v5513, %v5513
        %v5546 = vsel %vm5352, %v5514, 0.0
        %5547 = vadd.xlane.f32.xlu0 %v5546
        %v5548 = vpop.xlane.xlu0 %5547
        %v5549 = vsel %vm5352, %v5515, 0.0
        %5550 = vadd.xlane.f32.xlu0 %v5549
        %v5551 = vpop.xlane.xlu0 %5550
        %v5552 = vsel %vm5352, %v5516, 0.0
        %5553 = vadd.xlane.f32.xlu0 %v5552
        %v5554 = vpop.xlane.xlu0 %5553
        %v5555 = vsel %vm5352, %v5517, 0.0
        %5556 = vadd.xlane.f32.xlu0 %v5555
        %v5557 = vpop.xlane.xlu0 %5556
        %v5558 = vsel %vm5352, %v5518, 0.0
        %5559 = vadd.xlane.f32.xlu0 %v5558
        %v5560 = vpop.xlane.xlu0 %5559
        %v5561 = vsel %vm5352, %v5519, 0.0
        %5562 = vadd.xlane.f32.xlu0 %v5561
        %v5563 = vpop.xlane.xlu0 %5562
        %v5564 = vsel %vm5352, %v5520, 0.0
        %5565 = vadd.xlane.f32.xlu0 %v5564
        %v5566 = vpop.xlane.xlu0 %5565
        %v5567 = vsel %vm5352, %v5521, 0.0
        %5568 = vadd.xlane.f32.xlu0 %v5567
        %v5569 = vpop.xlane.xlu0 %5568
        %v5570 = vsel %vm5352, %v5522, 0.0
        %5571 = vadd.xlane.f32.xlu0 %v5570
        %v5572 = vpop.xlane.xlu0 %5571
        %v5573 = vsel %vm5352, %v5523, 0.0
        %5574 = vadd.xlane.f32.xlu0 %v5573
        %v5575 = vpop.xlane.xlu0 %5574
        %v5576 = vsel %vm5352, %v5524, 0.0
        %5577 = vadd.xlane.f32.xlu0 %v5576
        %v5578 = vpop.xlane.xlu0 %5577
        %v5579 = vsel %vm5352, %v5525, 0.0
        %5580 = vadd.xlane.f32.xlu0 %v5579
        %v5581 = vpop.xlane.xlu0 %5580
        %v5582 = vsel %vm5352, %v5526, 0.0
        %5583 = vadd.xlane.f32.xlu0 %v5582
        %v5584 = vpop.xlane.xlu0 %5583
        %v5585 = vsel %vm5352, %v5527, 0.0
        %5586 = vadd.xlane.f32.xlu0 %v5585
        %v5587 = vpop.xlane.xlu0 %5586
        %v5588 = vsel %vm5352, %v5528, 0.0
        %5589 = vadd.xlane.f32.xlu0 %v5588
        %v5590 = vpop.xlane.xlu0 %5589
        %v5591 = vsel %vm5352, %v5529, 0.0
        %5592 = vadd.xlane.f32.xlu0 %v5591
        %v5593 = vpop.xlane.xlu0 %5592
        %v5594 = vsel %vm5352, %v5530, 0.0
        %5595 = vadd.xlane.f32.xlu0 %v5594
        %v5596 = vpop.xlane.xlu0 %5595
        %v5597 = vsel %vm5352, %v5531, 0.0
        %5598 = vadd.xlane.f32.xlu0 %v5597
        %v5599 = vpop.xlane.xlu0 %5598
        %v5600 = vsel %vm5352, %v5532, 0.0
        %5601 = vadd.xlane.f32.xlu0 %v5600
        %v5602 = vpop.xlane.xlu0 %5601
        %v5603 = vsel %vm5352, %v5533, 0.0
        %5604 = vadd.xlane.f32.xlu0 %v5603
        %v5605 = vpop.xlane.xlu0 %5604
        %v5606 = vsel %vm5352, %v5534, 0.0
        %5607 = vadd.xlane.f32.xlu0 %v5606
        %v5608 = vpop.xlane.xlu0 %5607
        %v5609 = vsel %vm5352, %v5535, 0.0
        %5610 = vadd.xlane.f32.xlu0 %v5609
        %v5611 = vpop.xlane.xlu0 %5610
        %v5612 = vsel %vm5352, %v5536, 0.0
        %5613 = vadd.xlane.f32.xlu0 %v5612
        %v5614 = vpop.xlane.xlu0 %5613
        %v5615 = vsel %vm5352, %v5537, 0.0
        %5616 = vadd.xlane.f32.xlu0 %v5615
        %v5617 = vpop.xlane.xlu0 %5616
        %v5618 = vsel %vm5352, %v5538, 0.0
        %5619 = vadd.xlane.f32.xlu0 %v5618
        %v5620 = vpop.xlane.xlu0 %5619
        %v5621 = vsel %vm5352, %v5539, 0.0
        %5622 = vadd.xlane.f32.xlu0 %v5621
        %v5623 = vpop.xlane.xlu0 %5622
        %v5624 = vsel %vm5352, %v5540, 0.0
        %5625 = vadd.xlane.f32.xlu0 %v5624
        %v5626 = vpop.xlane.xlu0 %5625
        %v5627 = vsel %vm5352, %v5541, 0.0
        %5628 = vadd.xlane.f32.xlu0 %v5627
        %v5629 = vpop.xlane.xlu0 %5628
        %v5630 = vsel %vm5352, %v5542, 0.0
        %5631 = vadd.xlane.f32.xlu0 %v5630
        %v5632 = vpop.xlane.xlu0 %5631
        %v5633 = vsel %vm5352, %v5543, 0.0
        %5634 = vadd.xlane.f32.xlu0 %v5633
        %v5635 = vpop.xlane.xlu0 %5634
        %v5636 = vsel %vm5352, %v5544, 0.0
        %5637 = vadd.xlane.f32.xlu0 %v5636
        %v5638 = vpop.xlane.xlu0 %5637
        %v5639 = vsel %vm5352, %v5545, 0.0
        %5640 = vadd.xlane.f32.xlu0 %v5639
        %v5641 = vpop.xlane.xlu0 %5640
        %v5642 = vmul.f32 %v5548, %v5449
        %v5643 = vmul.f32 %v5551, %v5449
        %v5644 = vmul.f32 %v5554, %v5449
        %v5645 = vmul.f32 %v5557, %v5449
        %v5646 = vmul.f32 %v5560, %v5449
        %v5647 = vmul.f32 %v5563, %v5449
        %v5648 = vmul.f32 %v5566, %v5449
        %v5649 = vmul.f32 %v5569, %v5449
        %v5650 = vmul.f32 %v5572, %v5449
        %v5651 = vmul.f32 %v5575, %v5449
        %v5652 = vmul.f32 %v5578, %v5449
        %v5653 = vmul.f32 %v5581, %v5449
        %v5654 = vmul.f32 %v5584, %v5449
        %v5655 = vmul.f32 %v5587, %v5449
        %v5656 = vmul.f32 %v5590, %v5449
        %v5657 = vmul.f32 %v5593, %v5449
        %v5658 = vmul.f32 %v5596, %v5449
        %v5659 = vmul.f32 %v5599, %v5449
        %v5660 = vmul.f32 %v5602, %v5449
        %v5661 = vmul.f32 %v5605, %v5449
        %v5662 = vmul.f32 %v5608, %v5449
        %v5663 = vmul.f32 %v5611, %v5449
        %v5664 = vmul.f32 %v5614, %v5449
        %v5665 = vmul.f32 %v5617, %v5449
        %v5666 = vmul.f32 %v5620, %v5449
        %v5667 = vmul.f32 %v5623, %v5449
        %v5668 = vmul.f32 %v5626, %v5449
        %v5669 = vmul.f32 %v5629, %v5449
        %v5670 = vmul.f32 %v5632, %v5449
        %v5671 = vmul.f32 %v5635, %v5449
        %v5672 = vmul.f32 %v5638, %v5449
        %v5673 = vmul.f32 %v5641, %v5449
        %v5674 = vadd.f32 %v5642, 1e-06
        %v5675 = vadd.f32 %v5643, 1e-06
        %v5676 = vadd.f32 %v5644, 1e-06
        %v5677 = vadd.f32 %v5645, 1e-06
        %v5678 = vadd.f32 %v5646, 1e-06
        %v5679 = vadd.f32 %v5647, 1e-06
        %v5680 = vadd.f32 %v5648, 1e-06
        %v5681 = vadd.f32 %v5649, 1e-06
        %v5682 = vadd.f32 %v5650, 1e-06
        %v5683 = vadd.f32 %v5651, 1e-06
        %v5684 = vadd.f32 %v5652, 1e-06
        %v5685 = vadd.f32 %v5653, 1e-06
        %v5686 = vadd.f32 %v5654, 1e-06
        %v5687 = vadd.f32 %v5655, 1e-06
        %v5688 = vadd.f32 %v5656, 1e-06
        %v5689 = vadd.f32 %v5657, 1e-06
        %v5690 = vadd.f32 %v5658, 1e-06
        %v5691 = vadd.f32 %v5659, 1e-06
        %v5692 = vadd.f32 %v5660, 1e-06
        %v5693 = vadd.f32 %v5661, 1e-06
        %v5694 = vadd.f32 %v5662, 1e-06
        %v5695 = vadd.f32 %v5663, 1e-06
        %v5696 = vadd.f32 %v5664, 1e-06
        %v5697 = vadd.f32 %v5665, 1e-06
        %v5698 = vadd.f32 %v5666, 1e-06
        %v5699 = vadd.f32 %v5667, 1e-06
        %v5700 = vadd.f32 %v5668, 1e-06
        %v5701 = vadd.f32 %v5669, 1e-06
        %v5702 = vadd.f32 %v5670, 1e-06
        %v5703 = vadd.f32 %v5671, 1e-06
        %v5704 = vadd.f32 %v5672, 1e-06
        %v5705 = vadd.f32 %v5673, 1e-06
        %v5706 = vrsqrt.pop %v5674
        %v5707 = vrsqrt.pop %v5675
        %v5708 = vrsqrt.pop %v5676
        %v5709 = vrsqrt.pop %v5677
        %v5710 = vrsqrt.pop %v5678
        %v5711 = vrsqrt.pop %v5679
        %v5712 = vrsqrt.pop %v5680
        %v5713 = vrsqrt.pop %v5681
        %v5714 = vrsqrt.pop %v5682
        %v5715 = vrsqrt.pop %v5683
        %v5716 = vrsqrt.pop %v5684
        %v5717 = vrsqrt.pop %v5685
        %v5718 = vrsqrt.pop %v5686
        %v5719 = vrsqrt.pop %v5687
        %v5720 = vrsqrt.pop %v5688
        %v5721 = vrsqrt.pop %v5689
        %v5722 = vrsqrt.pop %v5690
        %v5723 = vrsqrt.pop %v5691
        %v5724 = vrsqrt.pop %v5692
        %v5725 = vrsqrt.pop %v5693
        %v5726 = vrsqrt.pop %v5694
        %v5727 = vrsqrt.pop %v5695
        %v5728 = vrsqrt.pop %v5696
        %v5729 = vrsqrt.pop %v5697
        %v5730 = vrsqrt.pop %v5698
        %v5731 = vrsqrt.pop %v5699
        %v5732 = vrsqrt.pop %v5700
        %v5733 = vrsqrt.pop %v5701
        %v5734 = vrsqrt.pop %v5702
        %v5735 = vrsqrt.pop %v5703
        %v5736 = vrsqrt.pop %v5704
        %v5737 = vrsqrt.pop %v5705
        %v5738 = vmul.f32 %v5482, %v5706
        %v5739 = vmul.f32 %v5483, %v5707
        %v5740 = vmul.f32 %v5484, %v5708
        %v5741 = vmul.f32 %v5485, %v5709
        %v5742 = vmul.f32 %v5486, %v5710
        %v5743 = vmul.f32 %v5487, %v5711
        %v5744 = vmul.f32 %v5488, %v5712
        %v5745 = vmul.f32 %v5489, %v5713
        %v5746 = vmul.f32 %v5490, %v5714
        %v5747 = vmul.f32 %v5491, %v5715
        %v5748 = vmul.f32 %v5492, %v5716
        %v5749 = vmul.f32 %v5493, %v5717
        %v5750 = vmul.f32 %v5494, %v5718
        %v5751 = vmul.f32 %v5495, %v5719
        %v5752 = vmul.f32 %v5496, %v5720
        %v5753 = vmul.f32 %v5497, %v5721
        %v5754 = vmul.f32 %v5498, %v5722
        %v5755 = vmul.f32 %v5499, %v5723
        %v5756 = vmul.f32 %v5500, %v5724
        %v5757 = vmul.f32 %v5501, %v5725
        %v5758 = vmul.f32 %v5502, %v5726
        %v5759 = vmul.f32 %v5503, %v5727
        %v5760 = vmul.f32 %v5504, %v5728
        %v5761 = vmul.f32 %v5505, %v5729
        %v5762 = vmul.f32 %v5506, %v5730
        %v5763 = vmul.f32 %v5507, %v5731
        %v5764 = vmul.f32 %v5508, %v5732
        %v5765 = vmul.f32 %v5509, %v5733
        %v5766 = vmul.f32 %v5510, %v5734
        %v5767 = vmul.f32 %v5511, %v5735
        %v5768 = vmul.f32 %v5512, %v5736
        %v5769 = vmul.f32 %v5513, %v5737
        %v5770 = vld [vmem:[%s3] sm:$0x1]
        %v5772 = vlaneseq
        %v5773 = vshrl.u32 %v5772, 7
        %v5774 = vsub.s32 0, %v5773
        %v5775 = vrot.slane %v5770, %v5774
        %v5777 = vmul.f32 %v5738, %v5775
        %v5778 = vmul.f32 %v5739, %v5775
        %v5779 = vmul.f32 %v5740, %v5775
        %v5780 = vmul.f32 %v5741, %v5775
        %v5781 = vmul.f32 %v5742, %v5775
        %v5782 = vmul.f32 %v5743, %v5775
        %v5783 = vmul.f32 %v5744, %v5775
        %v5784 = vmul.f32 %v5745, %v5775
        %v5785 = vmul.f32 %v5746, %v5775
        %v5786 = vmul.f32 %v5747, %v5775
        %v5787 = vmul.f32 %v5748, %v5775
        %v5788 = vmul.f32 %v5749, %v5775
        %v5789 = vmul.f32 %v5750, %v5775
        %v5790 = vmul.f32 %v5751, %v5775
        %v5791 = vmul.f32 %v5752, %v5775
        %v5792 = vmul.f32 %v5753, %v5775
        %v5793 = vmul.f32 %v5754, %v5775
        %v5794 = vmul.f32 %v5755, %v5775
        %v5795 = vmul.f32 %v5756, %v5775
        %v5796 = vmul.f32 %v5757, %v5775
        %v5797 = vmul.f32 %v5758, %v5775
        %v5798 = vmul.f32 %v5759, %v5775
        %v5799 = vmul.f32 %v5760, %v5775
        %v5800 = vmul.f32 %v5761, %v5775
        %v5801 = vmul.f32 %v5762, %v5775
        %v5802 = vmul.f32 %v5763, %v5775
        %v5803 = vmul.f32 %v5764, %v5775
        %v5804 = vmul.f32 %v5765, %v5775
        %v5805 = vmul.f32 %v5766, %v5775
        %v5806 = vmul.f32 %v5767, %v5775
        %v5807 = vmul.f32 %v5768, %v5775
        %v5808 = vmul.f32 %v5769, %v5775
        %v5809 = vld [vmem:[%s4] sm:$0x1]
        %v5811 = vlaneseq
        %v5812 = vshrl.u32 %v5811, 7
        %v5813 = vsub.s32 0, %v5812
        %v5814 = vrot.slane %v5809, %v5813
        %v5816 = vadd.f32 %v5777, %v5814
        %v5817 = vadd.f32 %v5778, %v5814
        %v5818 = vadd.f32 %v5779, %v5814
        %v5819 = vadd.f32 %v5780, %v5814
        %v5820 = vadd.f32 %v5781, %v5814
        %v5821 = vadd.f32 %v5782, %v5814
        %v5822 = vadd.f32 %v5783, %v5814
        %v5823 = vadd.f32 %v5784, %v5814
        %v5824 = vadd.f32 %v5785, %v5814
        %v5825 = vadd.f32 %v5786, %v5814
        %v5826 = vadd.f32 %v5787, %v5814
        %v5827 = vadd.f32 %v5788, %v5814
        %v5828 = vadd.f32 %v5789, %v5814
        %v5829 = vadd.f32 %v5790, %v5814
        %v5830 = vadd.f32 %v5791, %v5814
        %v5831 = vadd.f32 %v5792, %v5814
        %v5832 = vadd.f32 %v5793, %v5814
        %v5833 = vadd.f32 %v5794, %v5814
        %v5834 = vadd.f32 %v5795, %v5814
        %v5835 = vadd.f32 %v5796, %v5814
        %v5836 = vadd.f32 %v5797, %v5814
        %v5837 = vadd.f32 %v5798, %v5814
        %v5838 = vadd.f32 %v5799, %v5814
        %v5839 = vadd.f32 %v5800, %v5814
        %v5840 = vadd.f32 %v5801, %v5814
        %v5841 = vadd.f32 %v5802, %v5814
        %v5842 = vadd.f32 %v5803, %v5814
        %v5843 = vadd.f32 %v5804, %v5814
        %v5844 = vadd.f32 %v5805, %v5814
        %v5845 = vadd.f32 %v5806, %v5814
        %v5846 = vadd.f32 %v5807, %v5814
        %v5847 = vadd.f32 %v5808, %v5814
        %v5848 = vld [vmem:[%s5] sm:$0xff]
        %v5849 = vld [vmem:[%s5 + $0x8] sm:$0xff]
        %v5850 = vld [vmem:[%s5 + $0x10] sm:$0xff]
        %v5851 = vld [vmem:[%s5 + $0x18] sm:$0xff]
        %v5852 = vld [vmem:[%s5 + $0x20] sm:$0xff]
        %v5853 = vld [vmem:[%s5 + $0x28] sm:$0xff]
        %v5854 = vld [vmem:[%s5 + $0x30] sm:$0xff]
        %v5855 = vld [vmem:[%s5 + $0x38] sm:$0xff]
        %v5856 = vld [vmem:[%s5 + $0x40] sm:$0xff]
        %v5857 = vld [vmem:[%s5 + $0x48] sm:$0xff]
        %v5858 = vld [vmem:[%s5 + $0x50] sm:$0xff]
        %v5859 = vld [vmem:[%s5 + $0x58] sm:$0xff]
        %v5860 = vld [vmem:[%s5 + $0x60] sm:$0xff]
        %v5861 = vld [vmem:[%s5 + $0x68] sm:$0xff]
        %v5862 = vld [vmem:[%s5 + $0x70] sm:$0xff]
        %v5863 = vld [vmem:[%s5 + $0x78] sm:$0xff]
        %v5864 = vld [vmem:[%s6] sm:$0x3]
        %v5866 = vlaneseq
        %v5867 = vshrl.u32 %v5866, 7
        %v5868 = vsub.s32 0, %v5867
        %v5869 = vrot.slane %v5864, %v5868
        %v5870 = vlaneseq
        %v5871 = vshrl.u32 %v5870, 7
        %v5872 = vsub.s32 1, %v5871
        %v5873 = vrot.slane %v5864, %v5872
        %v5877 = vsel %vm5352, %v5816, 0
        %v5880 = vsel %vm5352, %v5817, 0
        %v5883 = vsel %vm5352, %v5818, 0
        %v5886 = vsel %vm5352, %v5819, 0
        %v5889 = vsel %vm5352, %v5820, 0
        %v5892 = vsel %vm5352, %v5821, 0
        %v5895 = vsel %vm5352, %v5822, 0
        %v5898 = vsel %vm5352, %v5823, 0
        %v5901 = vsel %vm5352, %v5824, 0
        %v5904 = vsel %vm5352, %v5825, 0
        %v5907 = vsel %vm5352, %v5826, 0
        %v5910 = vsel %vm5352, %v5827, 0
        %v5913 = vsel %vm5352, %v5828, 0
        %v5916 = vsel %vm5352, %v5829, 0
        %v5919 = vsel %vm5352, %v5830, 0
        %v5922 = vsel %vm5352, %v5831, 0
        %v5925 = vsel %vm5352, %v5832, 0
        %v5928 = vsel %vm5352, %v5833, 0
        %v5931 = vsel %vm5352, %v5834, 0
        %v5934 = vsel %vm5352, %v5835, 0
        %v5937 = vsel %vm5352, %v5836, 0
        %v5940 = vsel %vm5352, %v5837, 0
        %v5943 = vsel %vm5352, %v5838, 0
        %v5946 = vsel %vm5352, %v5839, 0
        %v5949 = vsel %vm5352, %v5840, 0
        %v5952 = vsel %vm5352, %v5841, 0
        %v5955 = vsel %vm5352, %v5842, 0
        %v5958 = vsel %vm5352, %v5843, 0
        %v5961 = vsel %vm5352, %v5844, 0
        %v5964 = vsel %vm5352, %v5845, 0
        %v5967 = vsel %vm5352, %v5846, 0
        %v5970 = vsel %vm5352, %v5847, 0
        %5972 = vmatprep.subr.mxu0 %v5849
        %5973 = vmatpush1.msra.mxu0 %v5848
        %5974 = vmatprep.subr.mxu0 %v5851
        %5975 = vmatpush1.msra.mxu0 %v5850
        %5976 = vmatprep.subr.mxu0 %v5853
        %5977 = vmatpush1.msra.mxu0 %v5852
        %5978 = vmatprep.subr.mxu0 %v5855
        %5979 = vmatpush1.msra.mxu0 %v5854
        %5980 = vmatprep.subr.mxu0 %v5857
        %5981 = vmatpush1.msra.mxu0 %v5856
        %5982 = vmatprep.subr.mxu0 %v5859
        %5983 = vmatpush1.msra.mxu0 %v5858
        %5984 = vmatprep.subr.mxu0 %v5861
        %5985 = vmatpush1.msra.mxu0 %v5860
        %5986 = vmatprep.subr.mxu0 %v5863
        %5987 = vmatpush1.msra.mxu0 %v5862
        %5988 = vmatprep.subr.mxu0 0.0
        %5989 = vmatpush1.msra.mxu0 0.0
        %5990 = vmatprep.subr.mxu0 0.0
        %5991 = vmatpush1.msra.mxu0 0.0
        %5992 = vmatprep.subr.mxu0 0.0
        %5993 = vmatpush1.msra.mxu0 0.0
        %5994 = vmatprep.subr.mxu0 0.0
        %5995 = vmatpush1.msra.mxu0 0.0
        %5996 = vmatprep.subr.mxu0 0.0
        %5997 = vmatpush1.msra.mxu0 0.0
        %5998 = vmatprep.subr.mxu0 0.0
        %5999 = vmatpush1.msra.mxu0 0.0
        %6000 = vmatprep.subr.mxu0 0.0
        %6001 = vmatpush1.msra.mxu0 0.0
        %6002 = vmatprep.subr.mxu0 0.0
        %6003 = vmatpush1.msra.mxu0 0.0
        %6004 = vmatprep.subr.mxu0 0.0
        %6005 = vmatpush1.msra.mxu0 0.0
        %6006 = vmatprep.subr.mxu0 0.0
        %6007 = vmatpush1.msra.mxu0 0.0
        %6008 = vmatprep.subr.mxu0 0.0
        %6009 = vmatpush1.msra.mxu0 0.0
        %6010 = vmatprep.subr.mxu0 0.0
        %6011 = vmatpush1.msra.mxu0 0.0
        %6012 = vmatprep.subr.mxu0 0.0
        %6013 = vmatpush1.msra.mxu0 0.0
        %6014 = vmatprep.subr.mxu0 0.0
        %6015 = vmatpush1.msra.mxu0 0.0
        %6016 = vmatprep.subr.mxu0 0.0
        %6017 = vmatpush1.msra.mxu0 0.0
        %6018 = vmatprep.subr.mxu0 0.0
        %6019 = vmatpush1.msra.mxu0 0.0
        %6020 = vmatprep.subr.mxu0 0.0
        %6021 = vmatpush1.msra.mxu0 0.0
        %6022 = vmatprep.subr.mxu0 0.0
        %6023 = vmatpush1.msra.mxu0 0.0
        %6024 = vmatprep.subr.mxu0 0.0
        %6025 = vmatpush1.msra.mxu0 0.0
        %6026 = vmatprep.subr.mxu0 0.0
        %6027 = vmatpush1.msra.mxu0 0.0
        %6028 = vmatprep.subr.mxu0 0.0
        %6029 = vmatpush1.msra.mxu0 0.0
        %6030 = vmatprep.subr.mxu0 0.0
        %6031 = vmatpush1.msra.mxu0 0.0
        %6032 = vmatprep.subr.mxu0 0.0
        %6033 = vmatpush1.msra.mxu0 0.0
        %6034 = vmatprep.subr.mxu0 0.0
        %6035 = vmatpush1.msra.mxu0 0.0
        %6036 = vmatprep.mubr.f32.mxu0 0.0
        %6037 = vmatmul.mubr.f32.gmra.mrb[0].mxu0 %v5877
        %v6038 = vpop.f32.mrb[0].mxu0
        %v6039 = vadd.f32 %v5869, %v6038
        %v6040 = vpop.f32.mrb[0].mxu0
        %v6041 = vadd.f32 %v5873, %v6040
        %6042 = vmatprep.mubr.f32.mxu0 0.0
        %6043 = vmatmul.mubr.f32.gmra.mrb[0].mxu0 %v5880
        %v6044 = vpop.f32.mrb[0].mxu0
        %v6045 = vadd.f32 %v5869, %v6044
        %v6046 = vpop.f32.mrb[0].mxu0
        %v6047 = vadd.f32 %v5873, %v6046
        %6048 = vmatprep.mubr.f32.mxu0 0.0
        %6049 = vmatmul.mubr.f32.gmra.mrb[0].mxu0 %v5883
        %v6050 = vpop.f32.mrb[0].mxu0
        %v6051 = vadd.f32 %v5869, %v6050
        %v6052 = vpop.f32.mrb[0].mxu0
        %v6053 = vadd.f32 %v5873, %v6052
        %6054 = vmatprep.mubr.f32.mxu0 0.0
        %6055 = vmatmul.mubr.f32.gmra.mrb[0].mxu0 %v5886
        %v6056 = vpop.f32.mrb[0].mxu0
        %v6057 = vadd.f32 %v5869, %v6056
        %v6058 = vpop.f32.mrb[0].mxu0
        %v6059 = vadd.f32 %v5873, %v6058
        %6060 = vmatprep.mubr.f32.mxu0 0.0
        %6061 = vmatmul.mubr.f32.gmra.mrb[0].mxu0 %v5889
        %v6062 = vpop.f32.mrb[0].mxu0
        %v6063 = vadd.f32 %v5869, %v6062
        %v6064 = vpop.f32.mrb[0].mxu0
        %v6065 = vadd.f32 %v5873, %v6064
        %6066 = vmatprep.mubr.f32.mxu0 0.0
        %6067 = vmatmul.mubr.f32.gmra.mrb[0].mxu0 %v5892
        %v6068 = vpop.f32.mrb[0].mxu0
        %v6069 = vadd.f32 %v5869, %v6068
        %v6070 = vpop.f32.mrb[0].mxu0
        %v6071 = vadd.f32 %v5873, %v6070
        %6072 = vmatprep.mubr.f32.mxu0 0.0
        %6073 = vmatmul.mubr.f32.gmra.mrb[0].mxu0 %v5895
        %v6074 = vpop.f32.mrb[0].mxu0
        %v6075 = vadd.f32 %v5869, %v6074
        %v6076 = vpop.f32.mrb[0].mxu0
        %v6077 = vadd.f32 %v5873, %v6076
        %6078 = vmatprep.mubr.f32.mxu0 0.0
        %6079 = vmatmul.mubr.f32.gmra.mrb[0].mxu0 %v5898
        %v6080 = vpop.f32.mrb[0].mxu0
        %v6081 = vadd.f32 %v5869, %v6080
        %v6082 = vpop.f32.mrb[0].mxu0
        %v6083 = vadd.f32 %v5873, %v6082
        %6084 = vmatprep.mubr.f32.mxu0 0.0
        %6085 = vmatmul.mubr.f32.gmra.mrb[0].mxu0 %v5901
        %v6086 = vpop.f32.mrb[0].mxu0
        %v6087 = vadd.f32 %v5869, %v6086
        %v6088 = vpop.f32.mrb[0].mxu0
        %v6089 = vadd.f32 %v5873, %v6088
        %6090 = vmatprep.mubr.f32.mxu0 0.0
        %6091 = vmatmul.mubr.f32.gmra.mrb[0].mxu0 %v5904
        %v6092 = vpop.f32.mrb[0].mxu0
        %v6093 = vadd.f32 %v5869, %v6092
        %v6094 = vpop.f32.mrb[0].mxu0
        %v6095 = vadd.f32 %v5873, %v6094
        %6096 = vmatprep.mubr.f32.mxu0 0.0
        %6097 = vmatmul.mubr.f32.gmra.mrb[0].mxu0 %v5907
        %v6098 = vpop.f32.mrb[0].mxu0
        %v6099 = vadd.f32 %v5869, %v6098
        %v6100 = vpop.f32.mrb[0].mxu0
        %v6101 = vadd.f32 %v5873, %v6100
        %6102 = vmatprep.mubr.f32.mxu0 0.0
        %6103 = vmatmul.mubr.f32.gmra.mrb[0].mxu0 %v5910
        %v6104 = vpop.f32.mrb[0].mxu0
        %v6105 = vadd.f32 %v5869, %v6104
        %v6106 = vpop.f32.mrb[0].mxu0
        %v6107 = vadd.f32 %v5873, %v6106
        %6108 = vmatprep.mubr.f32.mxu0 0.0
        %6109 = vmatmul.mubr.f32.gmra.mrb[0].mxu0 %v5913
        %v6110 = vpop.f32.mrb[0].mxu0
        %v6111 = vadd.f32 %v5869, %v6110
        %v6112 = vpop.f32.mrb[0].mxu0
        %v6113 = vadd.f32 %v5873, %v6112
        %6114 = vmatprep.mubr.f32.mxu0 0.0
        %6115 = vmatmul.mubr.f32.gmra.mrb[0].mxu0 %v5916
        %v6116 = vpop.f32.mrb[0].mxu0
        %v6117 = vadd.f32 %v5869, %v6116
        %v6118 = vpop.f32.mrb[0].mxu0
        %v6119 = vadd.f32 %v5873, %v6118
        %6120 = vmatprep.mubr.f32.mxu0 0.0
        %6121 = vmatmul.mubr.f32.gmra.mrb[0].mxu0 %v5919
        %v6122 = vpop.f32.mrb[0].mxu0
        %v6123 = vadd.f32 %v5869, %v6122
        %v6124 = vpop.f32.mrb[0].mxu0
        %v6125 = vadd.f32 %v5873, %v6124
        %6126 = vmatprep.mubr.f32.mxu0 0.0
        %6127 = vmatmul.mubr.f32.gmra.mrb[0].mxu0 %v5922
        %v6128 = vpop.f32.mrb[0].mxu0
        %v6129 = vadd.f32 %v5869, %v6128
        %v6130 = vpop.f32.mrb[0].mxu0
        %v6131 = vadd.f32 %v5873, %v6130
        %6132 = vmatprep.mubr.f32.mxu0 0.0
        %6133 = vmatmul.mubr.f32.gmra.mrb[0].mxu0 %v5925
        %v6134 = vpop.f32.mrb[0].mxu0
        %v6135 = vadd.f32 %v5869, %v6134
        %v6136 = vpop.f32.mrb[0].mxu0
        %v6137 = vadd.f32 %v5873, %v6136
        %6138 = vmatprep.mubr.f32.mxu0 0.0
        %6139 = vmatmul.mubr.f32.gmra.mrb[0].mxu0 %v5928
        %v6140 = vpop.f32.mrb[0].mxu0
        %v6141 = vadd.f32 %v5869, %v6140
        %v6142 = vpop.f32.mrb[0].mxu0
        %v6143 = vadd.f32 %v5873, %v6142
        %6144 = vmatprep.mubr.f32.mxu0 0.0
        %6145 = vmatmul.mubr.f32.gmra.mrb[0].mxu0 %v5931
        %v6146 = vpop.f32.mrb[0].mxu0
        %v6147 = vadd.f32 %v5869, %v6146
        %v6148 = vpop.f32.mrb[0].mxu0
        %v6149 = vadd.f32 %v5873, %v6148
        %6150 = vmatprep.mubr.f32.mxu0 0.0
        %6151 = vmatmul.mubr.f32.gmra.mrb[0].mxu0 %v5934
        %v6152 = vpop.f32.mrb[0].mxu0
        %v6153 = vadd.f32 %v5869, %v6152
        %v6154 = vpop.f32.mrb[0].mxu0
        %v6155 = vadd.f32 %v5873, %v6154
        %6156 = vmatprep.mubr.f32.mxu0 0.0
        %6157 = vmatmul.mubr.f32.gmra.mrb[0].mxu0 %v5937
        %v6158 = vpop.f32.mrb[0].mxu0
        %v6159 = vadd.f32 %v5869, %v6158
        %v6160 = vpop.f32.mrb[0].mxu0
        %v6161 = vadd.f32 %v5873, %v6160
        %6162 = vmatprep.mubr.f32.mxu0 0.0
        %6163 = vmatmul.mubr.f32.gmra.mrb[0].mxu0 %v5940
        %v6164 = vpop.f32.mrb[0].mxu0
        %v6165 = vadd.f32 %v5869, %v6164
        %v6166 = vpop.f32.mrb[0].mxu0
        %v6167 = vadd.f32 %v5873, %v6166
        %6168 = vmatprep.mubr.f32.mxu0 0.0
        %6169 = vmatmul.mubr.f32.gmra.mrb[0].mxu0 %v5943
        %v6170 = vpop.f32.mrb[0].mxu0
        %v6171 = vadd.f32 %v5869, %v6170
        %v6172 = vpop.f32.mrb[0].mxu0
        %v6173 = vadd.f32 %v5873, %v6172
        %6174 = vmatprep.mubr.f32.mxu0 0.0
        %6175 = vmatmul.mubr.f32.gmra.mrb[0].mxu0 %v5946
        %v6176 = vpop.f32.mrb[0].mxu0
        %v6177 = vadd.f32 %v5869, %v6176
        %v6178 = vpop.f32.mrb[0].mxu0
        %v6179 = vadd.f32 %v5873, %v6178
        %6180 = vmatprep.mubr.f32.mxu0 0.0
        %6181 = vmatmul.mubr.f32.gmra.mrb[0].mxu0 %v5949
        %v6182 = vpop.f32.mrb[0].mxu0
        %v6183 = vadd.f32 %v5869, %v6182
        %v6184 = vpop.f32.mrb[0].mxu0
        %v6185 = vadd.f32 %v5873, %v6184
        %6186 = vmatprep.mubr.f32.mxu0 0.0
        %6187 = vmatmul.mubr.f32.gmra.mrb[0].mxu0 %v5952
        %v6188 = vpop.f32.mrb[0].mxu0
        %v6189 = vadd.f32 %v5869, %v6188
        %v6190 = vpop.f32.mrb[0].mxu0
        %v6191 = vadd.f32 %v5873, %v6190
        %6192 = vmatprep.mubr.f32.mxu0 0.0
        %6193 = vmatmul.mubr.f32.gmra.mrb[0].mxu0 %v5955
        %v6194 = vpop.f32.mrb[0].mxu0
        %v6195 = vadd.f32 %v5869, %v6194
        %v6196 = vpop.f32.mrb[0].mxu0
        %v6197 = vadd.f32 %v5873, %v6196
        %6198 = vmatprep.mubr.f32.mxu0 0.0
        %6199 = vmatmul.mubr.f32.gmra.mrb[0].mxu0 %v5958
        %v6200 = vpop.f32.mrb[0].mxu0
        %v6201 = vadd.f32 %v5869, %v6200
        %v6202 = vpop.f32.mrb[0].mxu0
        %v6203 = vadd.f32 %v5873, %v6202
        %6204 = vmatprep.mubr.f32.mxu0 0.0
        %6205 = vmatmul.mubr.f32.gmra.mrb[0].mxu0 %v5961
        %v6206 = vpop.f32.mrb[0].mxu0
        %v6207 = vadd.f32 %v5869, %v6206
        %v6208 = vpop.f32.mrb[0].mxu0
        %v6209 = vadd.f32 %v5873, %v6208
        %6210 = vmatprep.mubr.f32.mxu0 0.0
        %6211 = vmatmul.mubr.f32.gmra.mrb[0].mxu0 %v5964
        %v6212 = vpop.f32.mrb[0].mxu0
        %v6213 = vadd.f32 %v5869, %v6212
        %v6214 = vpop.f32.mrb[0].mxu0
        %v6215 = vadd.f32 %v5873, %v6214
        %6216 = vmatprep.mubr.f32.mxu0 0.0
        %6217 = vmatmul.mubr.f32.gmra.mrb[0].mxu0 %v5967
        %v6218 = vpop.f32.mrb[0].mxu0
        %v6219 = vadd.f32 %v5869, %v6218
        %v6220 = vpop.f32.mrb[0].mxu0
        %v6221 = vadd.f32 %v5873, %v6220
        %6222 = vmatprep.mubr.f32.mxu0 0.0
        %6223 = vmatmul.mubr.f32.gmra.mrb[0].mxu0 %v5970
        %v6224 = vpop.f32.mrb[0].mxu0
        %v6225 = vadd.f32 %v5869, %v6224
        %v6226 = vpop.f32.mrb[0].mxu0
        %v6227 = vadd.f32 %v5873, %v6226
        %6228 = vdwg.mxu0
        %v6229 = vmul.f32 %v6039, 0.5
        %v6230 = vmul.f32 %v6041, 0.5
        %v6231 = vmul.f32 %v6045, 0.5
        %v6232 = vmul.f32 %v6047, 0.5
        %v6233 = vmul.f32 %v6051, 0.5
        %v6234 = vmul.f32 %v6053, 0.5
        %v6235 = vmul.f32 %v6057, 0.5
        %v6236 = vmul.f32 %v6059, 0.5
        %v6237 = vmul.f32 %v6063, 0.5
        %v6238 = vmul.f32 %v6065, 0.5
        %v6239 = vmul.f32 %v6069, 0.5
        %v6240 = vmul.f32 %v6071, 0.5
        %v6241 = vmul.f32 %v6075, 0.5
        %v6242 = vmul.f32 %v6077, 0.5
        %v6243 = vmul.f32 %v6081, 0.5
        %v6244 = vmul.f32 %v6083, 0.5
        %v6245 = vmul.f32 %v6087, 0.5
        %v6246 = vmul.f32 %v6089, 0.5
        %v6247 = vmul.f32 %v6093, 0.5
        %v6248 = vmul.f32 %v6095, 0.5
        %v6249 = vmul.f32 %v6099, 0.5
        %v6250 = vmul.f32 %v6101, 0.5
        %v6251 = vmul.f32 %v6105, 0.5
        %v6252 = vmul.f32 %v6107, 0.5
        %v6253 = vmul.f32 %v6111, 0.5
        %v6254 = vmul.f32 %v6113, 0.5
        %v6255 = vmul.f32 %v6117, 0.5
        %v6256 = vmul.f32 %v6119, 0.5
        %v6257 = vmul.f32 %v6123, 0.5
        %v6258 = vmul.f32 %v6125, 0.5
        %v6259 = vmul.f32 %v6129, 0.5
        %v6260 = vmul.f32 %v6131, 0.5
        %v6261 = vmul.f32 %v6135, 0.5
        %v6262 = vmul.f32 %v6137, 0.5
        %v6263 = vmul.f32 %v6141, 0.5
        %v6264 = vmul.f32 %v6143, 0.5
        %v6265 = vmul.f32 %v6147, 0.5
        %v6266 = vmul.f32 %v6149, 0.5
        %v6267 = vmul.f32 %v6153, 0.5
        %v6268 = vmul.f32 %v6155, 0.5
        %v6269 = vmul.f32 %v6159, 0.5
        %v6270 = vmul.f32 %v6161, 0.5
        %v6271 = vmul.f32 %v6165, 0.5
        %v6272 = vmul.f32 %v6167, 0.5
        %v6273 = vmul.f32 %v6171, 0.5
        %v6274 = vmul.f32 %v6173, 0.5
        %v6275 = vmul.f32 %v6177, 0.5
        %v6276 = vmul.f32 %v6179, 0.5
        %v6277 = vmul.f32 %v6183, 0.5
        %v6278 = vmul.f32 %v6185, 0.5
        %v6279 = vmul.f32 %v6189, 0.5
        %v6280 = vmul.f32 %v6191, 0.5
        %v6281 = vmul.f32 %v6195, 0.5
        %v6282 = vmul.f32 %v6197, 0.5
        %v6283 = vmul.f32 %v6201, 0.5
        %v6284 = vmul.f32 %v6203, 0.5
        %v6285 = vmul.f32 %v6207, 0.5
        %v6286 = vmul.f32 %v6209, 0.5
        %v6287 = vmul.f32 %v6213, 0.5
        %v6288 = vmul.f32 %v6215, 0.5
        %v6289 = vmul.f32 %v6219, 0.5
        %v6290 = vmul.f32 %v6221, 0.5
        %v6291 = vmul.f32 %v6225, 0.5
        %v6292 = vmul.f32 %v6227, 0.5
        %v6293 = vmul.f32 %v6039, 0.044715
        %v6294 = vmul.f32 %v6041, 0.044715
        %v6295 = vmul.f32 %v6045, 0.044715
        %v6296 = vmul.f32 %v6047, 0.044715
        %v6297 = vmul.f32 %v6051, 0.044715
        %v6298 = vmul.f32 %v6053, 0.044715
        %v6299 = vmul.f32 %v6057, 0.044715
        %v6300 = vmul.f32 %v6059, 0.044715
        %v6301 = vmul.f32 %v6063, 0.044715
        %v6302 = vmul.f32 %v6065, 0.044715
        %v6303 = vmul.f32 %v6069, 0.044715
        %v6304 = vmul.f32 %v6071, 0.044715
        %v6305 = vmul.f32 %v6075, 0.044715
        %v6306 = vmul.f32 %v6077, 0.044715
        %v6307 = vmul.f32 %v6081, 0.044715
        %v6308 = vmul.f32 %v6083, 0.044715
        %v6309 = vmul.f32 %v6087, 0.044715
        %v6310 = vmul.f32 %v6089, 0.044715
        %v6311 = vmul.f32 %v6093, 0.044715
        %v6312 = vmul.f32 %v6095, 0.044715
        %v6313 = vmul.f32 %v6099, 0.044715
        %v6314 = vmul.f32 %v6101, 0.044715
        %v6315 = vmul.f32 %v6105, 0.044715
        %v6316 = vmul.f32 %v6107, 0.044715
        %v6317 = vmul.f32 %v6111, 0.044715
        %v6318 = vmul.f32 %v6113, 0.044715
        %v6319 = vmul.f32 %v6117, 0.044715
        %v6320 = vmul.f32 %v6119, 0.044715
        %v6321 = vmul.f32 %v6123, 0.044715
        %v6322 = vmul.f32 %v6125, 0.044715
        %v6323 = vmul.f32 %v6129, 0.044715
        %v6324 = vmul.f32 %v6131, 0.044715
        %v6325 = vmul.f32 %v6135, 0.044715
        %v6326 = vmul.f32 %v6137, 0.044715
        %v6327 = vmul.f32 %v6141, 0.044715
        %v6328 = vmul.f32 %v6143, 0.044715
        %v6329 = vmul.f32 %v6147, 0.044715
        %v6330 = vmul.f32 %v6149, 0.044715
        %v6331 = vmul.f32 %v6153, 0.044715
        %v6332 = vmul.f32 %v6155, 0.044715
        %v6333 = vmul.f32 %v6159, 0.044715
        %v6334 = vmul.f32 %v6161, 0.044715
        %v6335 = vmul.f32 %v6165, 0.044715
        %v6336 = vmul.f32 %v6167, 0.044715
        %v6337 = vmul.f32 %v6171, 0.044715
        %v6338 = vmul.f32 %v6173, 0.044715
        %v6339 = vmul.f32 %v6177, 0.044715
        %v6340 = vmul.f32 %v6179, 0.044715
        %v6341 = vmul.f32 %v6183, 0.044715
        %v6342 = vmul.f32 %v6185, 0.044715
        %v6343 = vmul.f32 %v6189, 0.044715
        %v6344 = vmul.f32 %v6191, 0.044715
        %v6345 = vmul.f32 %v6195, 0.044715
        %v6346 = vmul.f32 %v6197, 0.044715
        %v6347 = vmul.f32 %v6201, 0.044715
        %v6348 = vmul.f32 %v6203, 0.044715
        %v6349 = vmul.f32 %v6207, 0.044715
        %v6350 = vmul.f32 %v6209, 0.044715
        %v6351 = vmul.f32 %v6213, 0.044715
        %v6352 = vmul.f32 %v6215, 0.044715
        %v6353 = vmul.f32 %v6219, 0.044715
        %v6354 = vmul.f32 %v6221, 0.044715
        %v6355 = vmul.f32 %v6225, 0.044715
        %v6356 = vmul.f32 %v6227, 0.044715
        %v6357 = vmul.f32 %v6293, %v6039
        %v6358 = vmul.f32 %v6294, %v6041
        %v6359 = vmul.f32 %v6295, %v6045
        %v6360 = vmul.f32 %v6296, %v6047
        %v6361 = vmul.f32 %v6297, %v6051
        %v6362 = vmul.f32 %v6298, %v6053
        %v6363 = vmul.f32 %v6299, %v6057
        %v6364 = vmul.f32 %v6300, %v6059
        %v6365 = vmul.f32 %v6301, %v6063
        %v6366 = vmul.f32 %v6302, %v6065
        %v6367 = vmul.f32 %v6303, %v6069
        %v6368 = vmul.f32 %v6304, %v6071
        %v6369 = vmul.f32 %v6305, %v6075
        %v6370 = vmul.f32 %v6306, %v6077
        %v6371 = vmul.f32 %v6307, %v6081
        %v6372 = vmul.f32 %v6308, %v6083
        %v6373 = vmul.f32 %v6309, %v6087
        %v6374 = vmul.f32 %v6310, %v6089
        %v6375 = vmul.f32 %v6311, %v6093
        %v6376 = vmul.f32 %v6312, %v6095
        %v6377 = vmul.f32 %v6313, %v6099
        %v6378 = vmul.f32 %v6314, %v6101
        %v6379 = vmul.f32 %v6315, %v6105
        %v6380 = vmul.f32 %v6316, %v6107
        %v6381 = vmul.f32 %v6317, %v6111
        %v6382 = vmul.f32 %v6318, %v6113
        %v6383 = vmul.f32 %v6319, %v6117
        %v6384 = vmul.f32 %v6320, %v6119
        %v6385 = vmul.f32 %v6321, %v6123
        %v6386 = vmul.f32 %v6322, %v6125
        %v6387 = vmul.f32 %v6323, %v6129
        %v6388 = vmul.f32 %v6324, %v6131
        %v6389 = vmul.f32 %v6325, %v6135
        %v6390 = vmul.f32 %v6326, %v6137
        %v6391 = vmul.f32 %v6327, %v6141
        %v6392 = vmul.f32 %v6328, %v6143
        %v6393 = vmul.f32 %v6329, %v6147
        %v6394 = vmul.f32 %v6330, %v6149
        %v6395 = vmul.f32 %v6331, %v6153
        %v6396 = vmul.f32 %v6332, %v6155
        %v6397 = vmul.f32 %v6333, %v6159
        %v6398 = vmul.f32 %v6334, %v6161
        %v6399 = vmul.f32 %v6335, %v6165
        %v6400 = vmul.f32 %v6336, %v6167
        %v6401 = vmul.f32 %v6337, %v6171
        %v6402 = vmul.f32 %v6338, %v6173
        %v6403 = vmul.f32 %v6339, %v6177
        %v6404 = vmul.f32 %v6340, %v6179
        %v6405 = vmul.f32 %v6341, %v6183
        %v6406 = vmul.f32 %v6342, %v6185
        %v6407 = vmul.f32 %v6343, %v6189
        %v6408 = vmul.f32 %v6344, %v6191
        %v6409 = vmul.f32 %v6345, %v6195
        %v6410 = vmul.f32 %v6346, %v6197
        %v6411 = vmul.f32 %v6347, %v6201
        %v6412 = vmul.f32 %v6348, %v6203
        %v6413 = vmul.f32 %v6349, %v6207
        %v6414 = vmul.f32 %v6350, %v6209
        %v6415 = vmul.f32 %v6351, %v6213
        %v6416 = vmul.f32 %v6352, %v6215
        %v6417 = vmul.f32 %v6353, %v6219
        %v6418 = vmul.f32 %v6354, %v6221
        %v6419 = vmul.f32 %v6355, %v6225
        %v6420 = vmul.f32 %v6356, %v6227
        %v6421 = vmul.f32 %v6357, %v6039
        %v6422 = vmul.f32 %v6358, %v6041
        %v6423 = vmul.f32 %v6359, %v6045
        %v6424 = vmul.f32 %v6360, %v6047
        %v6425 = vmul.f32 %v6361, %v6051
        %v6426 = vmul.f32 %v6362, %v6053
        %v6427 = vmul.f32 %v6363, %v6057
        %v6428 = vmul.f32 %v6364, %v6059
        %v6429 = vmul.f32 %v6365, %v6063
        %v6430 = vmul.f32 %v6366, %v6065
        %v6431 = vmul.f32 %v6367, %v6069
        %v6432 = vmul.f32 %v6368, %v6071
        %v6433 = vmul.f32 %v6369, %v6075
        %v6434 = vmul.f32 %v6370, %v6077
        %v6435 = vmul.f32 %v6371, %v6081
        %v6436 = vmul.f32 %v6372, %v6083
        %v6437 = vmul.f32 %v6373, %v6087
        %v6438 = vmul.f32 %v6374, %v6089
        %v6439 = vmul.f32 %v6375, %v6093
        %v6440 = vmul.f32 %v6376, %v6095
        %v6441 = vmul.f32 %v6377, %v6099
        %v6442 = vmul.f32 %v6378, %v6101
        %v6443 = vmul.f32 %v6379, %v6105
        %v6444 = vmul.f32 %v6380, %v6107
        %v6445 = vmul.f32 %v6381, %v6111
        %v6446 = vmul.f32 %v6382, %v6113
        %v6447 = vmul.f32 %v6383, %v6117
        %v6448 = vmul.f32 %v6384, %v6119
        %v6449 = vmul.f32 %v6385, %v6123
        %v6450 = vmul.f32 %v6386, %v6125
        %v6451 = vmul.f32 %v6387, %v6129
        %v6452 = vmul.f32 %v6388, %v6131
        %v6453 = vmul.f32 %v6389, %v6135
        %v6454 = vmul.f32 %v6390, %v6137
        %v6455 = vmul.f32 %v6391, %v6141
        %v6456 = vmul.f32 %v6392, %v6143
        %v6457 = vmul.f32 %v6393, %v6147
        %v6458 = vmul.f32 %v6394, %v6149
        %v6459 = vmul.f32 %v6395, %v6153
        %v6460 = vmul.f32 %v6396, %v6155
        %v6461 = vmul.f32 %v6397, %v6159
        %v6462 = vmul.f32 %v6398, %v6161
        %v6463 = vmul.f32 %v6399, %v6165
        %v6464 = vmul.f32 %v6400, %v6167
        %v6465 = vmul.f32 %v6401, %v6171
        %v6466 = vmul.f32 %v6402, %v6173
        %v6467 = vmul.f32 %v6403, %v6177
        %v6468 = vmul.f32 %v6404, %v6179
        %v6469 = vmul.f32 %v6405, %v6183
        %v6470 = vmul.f32 %v6406, %v6185
        %v6471 = vmul.f32 %v6407, %v6189
        %v6472 = vmul.f32 %v6408, %v6191
        %v6473 = vmul.f32 %v6409, %v6195
        %v6474 = vmul.f32 %v6410, %v6197
        %v6475 = vmul.f32 %v6411, %v6201
        %v6476 = vmul.f32 %v6412, %v6203
        %v6477 = vmul.f32 %v6413, %v6207
        %v6478 = vmul.f32 %v6414, %v6209
        %v6479 = vmul.f32 %v6415, %v6213
        %v6480 = vmul.f32 %v6416, %v6215
        %v6481 = vmul.f32 %v6417, %v6219
        %v6482 = vmul.f32 %v6418, %v6221
        %v6483 = vmul.f32 %v6419, %v6225
        %v6484 = vmul.f32 %v6420, %v6227
        %v6485 = vadd.f32 %v6039, %v6421
        %v6486 = vadd.f32 %v6041, %v6422
        %v6487 = vadd.f32 %v6045, %v6423
        %v6488 = vadd.f32 %v6047, %v6424
        %v6489 = vadd.f32 %v6051, %v6425
        %v6490 = vadd.f32 %v6053, %v6426
        %v6491 = vadd.f32 %v6057, %v6427
        %v6492 = vadd.f32 %v6059, %v6428
        %v6493 = vadd.f32 %v6063, %v6429
        %v6494 = vadd.f32 %v6065, %v6430
        %v6495 = vadd.f32 %v6069, %v6431
        %v6496 = vadd.f32 %v6071, %v6432
        %v6497 = vadd.f32 %v6075, %v6433
        %v6498 = vadd.f32 %v6077, %v6434
        %v6499 = vadd.f32 %v6081, %v6435
        %v6500 = vadd.f32 %v6083, %v6436
        %v6501 = vadd.f32 %v6087, %v6437
        %v6502 = vadd.f32 %v6089, %v6438
        %v6503 = vadd.f32 %v6093, %v6439
        %v6504 = vadd.f32 %v6095, %v6440
        %v6505 = vadd.f32 %v6099, %v6441
        %v6506 = vadd.f32 %v6101, %v6442
        %v6507 = vadd.f32 %v6105, %v6443
        %v6508 = vadd.f32 %v6107, %v6444
        %v6509 = vadd.f32 %v6111, %v6445
        %v6510 = vadd.f32 %v6113, %v6446
        %v6511 = vadd.f32 %v6117, %v6447
        %v6512 = vadd.f32 %v6119, %v6448
        %v6513 = vadd.f32 %v6123, %v6449
        %v6514 = vadd.f32 %v6125, %v6450
        %v6515 = vadd.f32 %v6129, %v6451
        %v6516 = vadd.f32 %v6131, %v6452
        %v6517 = vadd.f32 %v6135, %v6453
        %v6518 = vadd.f32 %v6137, %v6454
        %v6519 = vadd.f32 %v6141, %v6455
        %v6520 = vadd.f32 %v6143, %v6456
        %v6521 = vadd.f32 %v6147, %v6457
        %v6522 = vadd.f32 %v6149, %v6458
        %v6523 = vadd.f32 %v6153, %v6459
        %v6524 = vadd.f32 %v6155, %v6460
        %v6525 = vadd.f32 %v6159, %v6461
        %v6526 = vadd.f32 %v6161, %v6462
        %v6527 = vadd.f32 %v6165, %v6463
        %v6528 = vadd.f32 %v6167, %v6464
        %v6529 = vadd.f32 %v6171, %v6465
        %v6530 = vadd.f32 %v6173, %v6466
        %v6531 = vadd.f32 %v6177, %v6467
        %v6532 = vadd.f32 %v6179, %v6468
        %v6533 = vadd.f32 %v6183, %v6469
        %v6534 = vadd.f32 %v6185, %v6470
        %v6535 = vadd.f32 %v6189, %v6471
        %v6536 = vadd.f32 %v6191, %v6472
        %v6537 = vadd.f32 %v6195, %v6473
        %v6538 = vadd.f32 %v6197, %v6474
        %v6539 = vadd.f32 %v6201, %v6475
        %v6540 = vadd.f32 %v6203, %v6476
        %v6541 = vadd.f32 %v6207, %v6477
        %v6542 = vadd.f32 %v6209, %v6478
        %v6543 = vadd.f32 %v6213, %v6479
        %v6544 = vadd.f32 %v6215, %v6480
        %v6545 = vadd.f32 %v6219, %v6481
        %v6546 = vadd.f32 %v6221, %v6482
        %v6547 = vadd.f32 %v6225, %v6483
        %v6548 = vadd.f32 %v6227, %v6484
        %v6549 = vmul.f32 %v6485, 0.7978846
        %v6550 = vmul.f32 %v6486, 0.7978846
        %v6551 = vmul.f32 %v6487, 0.7978846
        %v6552 = vmul.f32 %v6488, 0.7978846
        %v6553 = vmul.f32 %v6489, 0.7978846
        %v6554 = vmul.f32 %v6490, 0.7978846
        %v6555 = vmul.f32 %v6491, 0.7978846
        %v6556 = vmul.f32 %v6492, 0.7978846
        %v6557 = vmul.f32 %v6493, 0.7978846
        %v6558 = vmul.f32 %v6494, 0.7978846
        %v6559 = vmul.f32 %v6495, 0.7978846
        %v6560 = vmul.f32 %v6496, 0.7978846
        %v6561 = vmul.f32 %v6497, 0.7978846
        %v6562 = vmul.f32 %v6498, 0.7978846
        %v6563 = vmul.f32 %v6499, 0.7978846
        %v6564 = vmul.f32 %v6500, 0.7978846
        %v6565 = vmul.f32 %v6501, 0.7978846
        %v6566 = vmul.f32 %v6502, 0.7978846
        %v6567 = vmul.f32 %v6503, 0.7978846
        %v6568 = vmul.f32 %v6504, 0.7978846
        %v6569 = vmul.f32 %v6505, 0.7978846
        %v6570 = vmul.f32 %v6506, 0.7978846
        %v6571 = vmul.f32 %v6507, 0.7978846
        %v6572 = vmul.f32 %v6508, 0.7978846
        %v6573 = vmul.f32 %v6509, 0.7978846
        %v6574 = vmul.f32 %v6510, 0.7978846
        %v6575 = vmul.f32 %v6511, 0.7978846
        %v6576 = vmul.f32 %v6512, 0.7978846
        %v6577 = vmul.f32 %v6513, 0.7978846
        %v6578 = vmul.f32 %v6514, 0.7978846
        %v6579 = vmul.f32 %v6515, 0.7978846
        %v6580 = vmul.f32 %v6516, 0.7978846
        %v6581 = vmul.f32 %v6517, 0.7978846
        %v6582 = vmul.f32 %v6518, 0.7978846
        %v6583 = vmul.f32 %v6519, 0.7978846
        %v6584 = vmul.f32 %v6520, 0.7978846
        %v6585 = vmul.f32 %v6521, 0.7978846
        %v6586 = vmul.f32 %v6522, 0.7978846
        %v6587 = vmul.f32 %v6523, 0.7978846
        %v6588 = vmul.f32 %v6524, 0.7978846
        %v6589 = vmul.f32 %v6525, 0.7978846
        %v6590 = vmul.f32 %v6526, 0.7978846
        %v6591 = vmul.f32 %v6527, 0.7978846
        %v6592 = vmul.f32 %v6528, 0.7978846
        %v6593 = vmul.f32 %v6529, 0.7978846
        %v6594 = vmul.f32 %v6530, 0.7978846
        %v6595 = vmul.f32 %v6531, 0.7978846
        %v6596 = vmul.f32 %v6532, 0.7978846
        %v6597 = vmul.f32 %v6533, 0.7978846
        %v6598 = vmul.f32 %v6534, 0.7978846
        %v6599 = vmul.f32 %v6535, 0.7978846
        %v6600 = vmul.f32 %v6536, 0.7978846
        %v6601 = vmul.f32 %v6537, 0.7978846
        %v6602 = vmul.f32 %v6538, 0.7978846
        %v6603 = vmul.f32 %v6539, 0.7978846
        %v6604 = vmul.f32 %v6540, 0.7978846
        %v6605 = vmul.f32 %v6541, 0.7978846
        %v6606 = vmul.f32 %v6542, 0.7978846
        %v6607 = vmul.f32 %v6543, 0.7978846
        %v6608 = vmul.f32 %v6544, 0.7978846
        %v6609 = vmul.f32 %v6545, 0.7978846
        %v6610 = vmul.f32 %v6546, 0.7978846
        %v6611 = vmul.f32 %v6547, 0.7978846
        %v6612 = vmul.f32 %v6548, 0.7978846
        %v6613 = vtanh.pop %v6549
        %v6614 = vtanh.pop %v6550
        %v6615 = vtanh.pop %v6551
        %v6616 = vtanh.pop %v6552
        %v6617 = vtanh.pop %v6553
        %v6618 = vtanh.pop %v6554
        %v6619 = vtanh.pop %v6555
        %v6620 = vtanh.pop %v6556
        %v6621 = vtanh.pop %v6557
        %v6622 = vtanh.pop %v6558
        %v6623 = vtanh.pop %v6559
        %v6624 = vtanh.pop %v6560
        %v6625 = vtanh.pop %v6561
        %v6626 = vtanh.pop %v6562
        %v6627 = vtanh.pop %v6563
        %v6628 = vtanh.pop %v6564
        %v6629 = vtanh.pop %v6565
        %v6630 = vtanh.pop %v6566
        %v6631 = vtanh.pop %v6567
        %v6632 = vtanh.pop %v6568
        %v6633 = vtanh.pop %v6569
        %v6634 = vtanh.pop %v6570
        %v6635 = vtanh.pop %v6571
        %v6636 = vtanh.pop %v6572
        %v6637 = vtanh.pop %v6573
        %v6638 = vtanh.pop %v6574
        %v6639 = vtanh.pop %v6575
        %v6640 = vtanh.pop %v6576
        %v6641 = vtanh.pop %v6577
        %v6642 = vtanh.pop %v6578
        %v6643 = vtanh.pop %v6579
        %v6644 = vtanh.pop %v6580
        %v6645 = vtanh.pop %v6581
        %v6646 = vtanh.pop %v6582
        %v6647 = vtanh.pop %v6583
        %v6648 = vtanh.pop %v6584
        %v6649 = vtanh.pop %v6585
        %v6650 = vtanh.pop %v6586
        %v6651 = vtanh.pop %v6587
        %v6652 = vtanh.pop %v6588
        %v6653 = vtanh.pop %v6589
        %v6654 = vtanh.pop %v6590
        %v6655 = vtanh.pop %v6591
        %v6656 = vtanh.pop %v6592
        %v6657 = vtanh.pop %v6593
        %v6658 = vtanh.pop %v6594
        %v6659 = vtanh.pop %v6595
        %v6660 = vtanh.pop %v6596
        %v6661 = vtanh.pop %v6597
        %v6662 = vtanh.pop %v6598
        %v6663 = vtanh.pop %v6599
        %v6664 = vtanh.pop %v6600
        %v6665 = vtanh.pop %v6601
        %v6666 = vtanh.pop %v6602
        %v6667 = vtanh.pop %v6603
        %v6668 = vtanh.pop %v6604
        %v6669 = vtanh.pop %v6605
        %v6670 = vtanh.pop %v6606
        %v6671 = vtanh.pop %v6607
        %v6672 = vtanh.pop %v6608
        %v6673 = vtanh.pop %v6609
        %v6674 = vtanh.pop %v6610
        %v6675 = vtanh.pop %v6611
        %v6676 = vtanh.pop %v6612
        %v6677 = vadd.f32 %v6613, 1.0
        %v6678 = vadd.f32 %v6614, 1.0
        %v6679 = vadd.f32 %v6615, 1.0
        %v6680 = vadd.f32 %v6616, 1.0
        %v6681 = vadd.f32 %v6617, 1.0
        %v6682 = vadd.f32 %v6618, 1.0
        %v6683 = vadd.f32 %v6619, 1.0
        %v6684 = vadd.f32 %v6620, 1.0
        %v6685 = vadd.f32 %v6621, 1.0
        %v6686 = vadd.f32 %v6622, 1.0
        %v6687 = vadd.f32 %v6623, 1.0
        %v6688 = vadd.f32 %v6624, 1.0
        %v6689 = vadd.f32 %v6625, 1.0
        %v6690 = vadd.f32 %v6626, 1.0
        %v6691 = vadd.f32 %v6627, 1.0
        %v6692 = vadd.f32 %v6628, 1.0
        %v6693 = vadd.f32 %v6629, 1.0
        %v6694 = vadd.f32 %v6630, 1.0
        %v6695 = vadd.f32 %v6631, 1.0
        %v6696 = vadd.f32 %v6632, 1.0
        %v6697 = vadd.f32 %v6633, 1.0
        %v6698 = vadd.f32 %v6634, 1.0
        %v6699 = vadd.f32 %v6635, 1.0
        %v6700 = vadd.f32 %v6636, 1.0
        %v6701 = vadd.f32 %v6637, 1.0
        %v6702 = vadd.f32 %v6638, 1.0
        %v6703 = vadd.f32 %v6639, 1.0
        %v6704 = vadd.f32 %v6640, 1.0
        %v6705 = vadd.f32 %v6641, 1.0
        %v6706 = vadd.f32 %v6642, 1.0
        %v6707 = vadd.f32 %v6643, 1.0
        %v6708 = vadd.f32 %v6644, 1.0
        %v6709 = vadd.f32 %v6645, 1.0
        %v6710 = vadd.f32 %v6646, 1.0
        %v6711 = vadd.f32 %v6647, 1.0
        %v6712 = vadd.f32 %v6648, 1.0
        %v6713 = vadd.f32 %v6649, 1.0
        %v6714 = vadd.f32 %v6650, 1.0
        %v6715 = vadd.f32 %v6651, 1.0
        %v6716 = vadd.f32 %v6652, 1.0
        %v6717 = vadd.f32 %v6653, 1.0
        %v6718 = vadd.f32 %v6654, 1.0
        %v6719 = vadd.f32 %v6655, 1.0
        %v6720 = vadd.f32 %v6656, 1.0
        %v6721 = vadd.f32 %v6657, 1.0
        %v6722 = vadd.f32 %v6658, 1.0
        %v6723 = vadd.f32 %v6659, 1.0
        %v6724 = vadd.f32 %v6660, 1.0
        %v6725 = vadd.f32 %v6661, 1.0
        %v6726 = vadd.f32 %v6662, 1.0
        %v6727 = vadd.f32 %v6663, 1.0
        %v6728 = vadd.f32 %v6664, 1.0
        %v6729 = vadd.f32 %v6665, 1.0
        %v6730 = vadd.f32 %v6666, 1.0
        %v6731 = vadd.f32 %v6667, 1.0
        %v6732 = vadd.f32 %v6668, 1.0
        %v6733 = vadd.f32 %v6669, 1.0
        %v6734 = vadd.f32 %v6670, 1.0
        %v6735 = vadd.f32 %v6671, 1.0
        %v6736 = vadd.f32 %v6672, 1.0
        %v6737 = vadd.f32 %v6673, 1.0
        %v6738 = vadd.f32 %v6674, 1.0
        %v6739 = vadd.f32 %v6675, 1.0
        %v6740 = vadd.f32 %v6676, 1.0
        %v6741 = vmul.f32 %v6229, %v6677
        %v6742 = vmul.f32 %v6230, %v6678
        %v6743 = vmul.f32 %v6231, %v6679
        %v6744 = vmul.f32 %v6232, %v6680
        %v6745 = vmul.f32 %v6233, %v6681
        %v6746 = vmul.f32 %v6234, %v6682
        %v6747 = vmul.f32 %v6235, %v6683
        %v6748 = vmul.f32 %v6236, %v6684
        %v6749 = vmul.f32 %v6237, %v6685
        %v6750 = vmul.f32 %v6238, %v6686
        %v6751 = vmul.f32 %v6239, %v6687
        %v6752 = vmul.f32 %v6240, %v6688
        %v6753 = vmul.f32 %v6241, %v6689
        %v6754 = vmul.f32 %v6242, %v6690
        %v6755 = vmul.f32 %v6243, %v6691
        %v6756 = vmul.f32 %v6244, %v6692
        %v6757 = vmul.f32 %v6245, %v6693
        %v6758 = vmul.f32 %v6246, %v6694
        %v6759 = vmul.f32 %v6247, %v6695
        %v6760 = vmul.f32 %v6248, %v6696
        %v6761 = vmul.f32 %v6249, %v6697
        %v6762 = vmul.f32 %v6250, %v6698
        %v6763 = vmul.f32 %v6251, %v6699
        %v6764 = vmul.f32 %v6252, %v6700
        %v6765 = vmul.f32 %v6253, %v6701
        %v6766 = vmul.f32 %v6254, %v6702
        %v6767 = vmul.f32 %v6255, %v6703
        %v6768 = vmul.f32 %v6256, %v6704
        %v6769 = vmul.f32 %v6257, %v6705
        %v6770 = vmul.f32 %v6258, %v6706
        %v6771 = vmul.f32 %v6259, %v6707
        %v6772 = vmul.f32 %v6260, %v6708
        %v6773 = vmul.f32 %v6261, %v6709
        %v6774 = vmul.f32 %v6262, %v6710
        %v6775 = vmul.f32 %v6263, %v6711
        %v6776 = vmul.f32 %v6264, %v6712
        %v6777 = vmul.f32 %v6265, %v6713
        %v6778 = vmul.f32 %v6266, %v6714
        %v6779 = vmul.f32 %v6267, %v6715
        %v6780 = vmul.f32 %v6268, %v6716
        %v6781 = vmul.f32 %v6269, %v6717
        %v6782 = vmul.f32 %v6270, %v6718
        %v6783 = vmul.f32 %v6271, %v6719
        %v6784 = vmul.f32 %v6272, %v6720
        %v6785 = vmul.f32 %v6273, %v6721
        %v6786 = vmul.f32 %v6274, %v6722
        %v6787 = vmul.f32 %v6275, %v6723
        %v6788 = vmul.f32 %v6276, %v6724
        %v6789 = vmul.f32 %v6277, %v6725
        %v6790 = vmul.f32 %v6278, %v6726
        %v6791 = vmul.f32 %v6279, %v6727
        %v6792 = vmul.f32 %v6280, %v6728
        %v6793 = vmul.f32 %v6281, %v6729
        %v6794 = vmul.f32 %v6282, %v6730
        %v6795 = vmul.f32 %v6283, %v6731
        %v6796 = vmul.f32 %v6284, %v6732
        %v6797 = vmul.f32 %v6285, %v6733
        %v6798 = vmul.f32 %v6286, %v6734
        %v6799 = vmul.f32 %v6287, %v6735
        %v6800 = vmul.f32 %v6288, %v6736
        %v6801 = vmul.f32 %v6289, %v6737
        %v6802 = vmul.f32 %v6290, %v6738
        %v6803 = vmul.f32 %v6291, %v6739
        %v6804 = vmul.f32 %v6292, %v6740
        %v6805 = vld [vmem:[%s7] sm:$0xff]
        %v6806 = vld [vmem:[%s7 + $0x8] sm:$0xff]
        %v6807 = vld [vmem:[%s7 + $0x10] sm:$0xff]
        %v6808 = vld [vmem:[%s7 + $0x18] sm:$0xff]
        %v6809 = vld [vmem:[%s7 + $0x20] sm:$0xff]
        %v6810 = vld [vmem:[%s7 + $0x28] sm:$0xff]
        %v6811 = vld [vmem:[%s7 + $0x30] sm:$0xff]
        %v6812 = vld [vmem:[%s7 + $0x38] sm:$0xff]
        %v6813 = vld [vmem:[%s7 + $0x40] sm:$0xff]
        %v6814 = vld [vmem:[%s7 + $0x48] sm:$0xff]
        %v6815 = vld [vmem:[%s7 + $0x50] sm:$0xff]
        %v6816 = vld [vmem:[%s7 + $0x58] sm:$0xff]
        %v6817 = vld [vmem:[%s7 + $0x60] sm:$0xff]
        %v6818 = vld [vmem:[%s7 + $0x68] sm:$0xff]
        %v6819 = vld [vmem:[%s7 + $0x70] sm:$0xff]
        %v6820 = vld [vmem:[%s7 + $0x78] sm:$0xff]
        %v6821 = vld [vmem:[%s7 + $0x80] sm:$0xff]
        %v6822 = vld [vmem:[%s7 + $0x88] sm:$0xff]
        %v6823 = vld [vmem:[%s7 + $0x90] sm:$0xff]
        %v6824 = vld [vmem:[%s7 + $0x98] sm:$0xff]
        %v6825 = vld [vmem:[%s7 + $0xa0] sm:$0xff]
        %v6826 = vld [vmem:[%s7 + $0xa8] sm:$0xff]
        %v6827 = vld [vmem:[%s7 + $0xb0] sm:$0xff]
        %v6828 = vld [vmem:[%s7 + $0xb8] sm:$0xff]
        %v6829 = vld [vmem:[%s7 + $0xc0] sm:$0xff]
        %v6830 = vld [vmem:[%s7 + $0xc8] sm:$0xff]
        %v6831 = vld [vmem:[%s7 + $0xd0] sm:$0xff]
        %v6832 = vld [vmem:[%s7 + $0xd8] sm:$0xff]
        %v6833 = vld [vmem:[%s7 + $0xe0] sm:$0xff]
        %v6834 = vld [vmem:[%s7 + $0xe8] sm:$0xff]
        %v6835 = vld [vmem:[%s7 + $0xf0] sm:$0xff]
        %v6836 = vld [vmem:[%s7 + $0xf8] sm:$0xff]
        %v6837 = vld [vmem:[%s8] sm:$0x1]
        %v6839 = vlaneseq
        %v6840 = vshrl.u32 %v6839, 7
        %v6841 = vsub.s32 0, %v6840
        %v6842 = vrot.slane %v6837, %v6841
        %6844 = vmatprep.subr.mxu0 0.0
        %6845 = vmatpush1.msra.mxu0 %v6805
        %6846 = vmatprep.subr.mxu0 0.0
        %6847 = vmatpush1.msra.mxu0 %v6806
        %6848 = vmatprep.subr.mxu0 0.0
        %6849 = vmatpush1.msra.mxu0 %v6807
        %6850 = vmatprep.subr.mxu0 0.0
        %6851 = vmatpush1.msra.mxu0 %v6808
        %6852 = vmatprep.subr.mxu0 0.0
        %6853 = vmatpush1.msra.mxu0 %v6809
        %6854 = vmatprep.subr.mxu0 0.0
        %6855 = vmatpush1.msra.mxu0 %v6810
        %6856 = vmatprep.subr.mxu0 0.0
        %6857 = vmatpush1.msra.mxu0 %v6811
        %6858 = vmatprep.subr.mxu0 0.0
        %6859 = vmatpush1.msra.mxu0 %v6812
        %6860 = vmatprep.subr.mxu0 0.0
        %6861 = vmatpush1.msra.mxu0 %v6813
        %6862 = vmatprep.subr.mxu0 0.0
        %6863 = vmatpush1.msra.mxu0 %v6814
        %6864 = vmatprep.subr.mxu0 0.0
        %6865 = vmatpush1.msra.mxu0 %v6815
        %6866 = vmatprep.subr.mxu0 0.0
        %6867 = vmatpush1.msra.mxu0 %v6816
        %6868 = vmatprep.subr.mxu0 0.0
        %6869 = vmatpush1.msra.mxu0 %v6817
        %6870 = vmatprep.subr.mxu0 0.0
        %6871 = vmatpush1.msra.mxu0 %v6818
        %6872 = vmatprep.subr.mxu0 0.0
        %6873 = vmatpush1.msra.mxu0 %v6819
        %6874 = vmatprep.subr.mxu0 0.0
        %6875 = vmatpush1.msra.mxu0 %v6820
        %6876 = vmatprep.subr.mxu0 0.0
        %6877 = vmatpush1.msra.mxu0 %v6821
        %6878 = vmatprep.subr.mxu0 0.0
        %6879 = vmatpush1.msra.mxu0 %v6822
        %6880 = vmatprep.subr.mxu0 0.0
        %6881 = vmatpush1.msra.mxu0 %v6823
        %6882 = vmatprep.subr.mxu0 0.0
        %6883 = vmatpush1.msra.mxu0 %v6824
        %6884 = vmatprep.subr.mxu0 0.0
        %6885 = vmatpush1.msra.mxu0 %v6825
        %6886 = vmatprep.subr.mxu0 0.0
        %6887 = vmatpush1.msra.mxu0 %v6826
        %6888 = vmatprep.subr.mxu0 0.0
        %6889 = vmatpush1.msra.mxu0 %v6827
        %6890 = vmatprep.subr.mxu0 0.0
        %6891 = vmatpush1.msra.mxu0 %v6828
        %6892 = vmatprep.subr.mxu0 0.0
        %6893 = vmatpush1.msra.mxu0 %v6829
        %6894 = vmatprep.subr.mxu0 0.0
        %6895 = vmatpush1.msra.mxu0 %v6830
        %6896 = vmatprep.subr.mxu0 0.0
        %6897 = vmatpush1.msra.mxu0 %v6831
        %6898 = vmatprep.subr.mxu0 0.0
        %6899 = vmatpush1.msra.mxu0 %v6832
        %6900 = vmatprep.subr.mxu0 0.0
        %6901 = vmatpush1.msra.mxu0 %v6833
        %6902 = vmatprep.subr.mxu0 0.0
        %6903 = vmatpush1.msra.mxu0 %v6834
        %6904 = vmatprep.subr.mxu0 0.0
        %6905 = vmatpush1.msra.mxu0 %v6835
        %6906 = vmatprep.subr.mxu0 0.0
        %6907 = vmatpush1.msra.mxu0 %v6836
        %6908 = vmatprep.mubr.f32.mxu0 %v6742
        %6909 = vmatmul.mubr.f32.gmra.mrb[0].mxu0 %v6741
        %v6910 = vpop.f32.mrb[0].mxu0
        %v6911 = vadd.f32 %v6842, %v6910
        %v6912 = vpop.f32.mrb[0].mxu0
        %6913 = vmatprep.mubr.f32.mxu0 %v6744
        %6914 = vmatmul.mubr.f32.gmra.mrb[0].mxu0 %v6743
        %v6915 = vpop.f32.mrb[0].mxu0
        %v6916 = vadd.f32 %v6842, %v6915
        %v6917 = vpop.f32.mrb[0].mxu0
        %6918 = vmatprep.mubr.f32.mxu0 %v6746
        %6919 = vmatmul.mubr.f32.gmra.mrb[0].mxu0 %v6745
        %v6920 = vpop.f32.mrb[0].mxu0
        %v6921 = vadd.f32 %v6842, %v6920
        %v6922 = vpop.f32.mrb[0].mxu0
        %6923 = vmatprep.mubr.f32.mxu0 %v6748
        %6924 = vmatmul.mubr.f32.gmra.mrb[0].mxu0 %v6747
        %v6925 = vpop.f32.mrb[0].mxu0
        %v6926 = vadd.f32 %v6842, %v6925
        %v6927 = vpop.f32.mrb[0].mxu0
        %6928 = vmatprep.mubr.f32.mxu0 %v6750
        %6929 = vmatmul.mubr.f32.gmra.mrb[0].mxu0 %v6749
        %v6930 = vpop.f32.mrb[0].mxu0
        %v6931 = vadd.f32 %v6842, %v6930
        %v6932 = vpop.f32.mrb[0].mxu0
        %6933 = vmatprep.mubr.f32.mxu0 %v6752
        %6934 = vmatmul.mubr.f32.gmra.mrb[0].mxu0 %v6751
        %v6935 = vpop.f32.mrb[0].mxu0
        %v6936 = vadd.f32 %v6842, %v6935
        %v6937 = vpop.f32.mrb[0].mxu0
        %6938 = vmatprep.mubr.f32.mxu0 %v6754
        %6939 = vmatmul.mubr.f32.gmra.mrb[0].mxu0 %v6753
        %v6940 = vpop.f32.mrb[0].mxu0
        %v6941 = vadd.f32 %v6842, %v6940
        %v6942 = vpop.f32.mrb[0].mxu0
        %6943 = vmatprep.mubr.f32.mxu0 %v6756
        %6944 = vmatmul.mubr.f32.gmra.mrb[0].mxu0 %v6755
        %v6945 = vpop.f32.mrb[0].mxu0
        %v6946 = vadd.f32 %v6842, %v6945
        %v6947 = vpop.f32.mrb[0].mxu0
        %6948 = vmatprep.mubr.f32.mxu0 %v6758
        %6949 = vmatmul.mubr.f32.gmra.mrb[0].mxu0 %v6757
        %v6950 = vpop.f32.mrb[0].mxu0
        %v6951 = vadd.f32 %v6842, %v6950
        %v6952 = vpop.f32.mrb[0].mxu0
        %6953 = vmatprep.mubr.f32.mxu0 %v6760
        %6954 = vmatmul.mubr.f32.gmra.mrb[0].mxu0 %v6759
        %v6955 = vpop.f32.mrb[0].mxu0
        %v6956 = vadd.f32 %v6842, %v6955
        %v6957 = vpop.f32.mrb[0].mxu0
        %6958 = vmatprep.mubr.f32.mxu0 %v6762
        %6959 = vmatmul.mubr.f32.gmra.mrb[0].mxu0 %v6761
        %v6960 = vpop.f32.mrb[0].mxu0
        %v6961 = vadd.f32 %v6842, %v6960
        %v6962 = vpop.f32.mrb[0].mxu0
        %6963 = vmatprep.mubr.f32.mxu0 %v6764
        %6964 = vmatmul.mubr.f32.gmra.mrb[0].mxu0 %v6763
        %v6965 = vpop.f32.mrb[0].mxu0
        %v6966 = vadd.f32 %v6842, %v6965
        %v6967 = vpop.f32.mrb[0].mxu0
        %6968 = vmatprep.mubr.f32.mxu0 %v6766
        %6969 = vmatmul.mubr.f32.gmra.mrb[0].mxu0 %v6765
        %v6970 = vpop.f32.mrb[0].mxu0
        %v6971 = vadd.f32 %v6842, %v6970
        %v6972 = vpop.f32.mrb[0].mxu0
        %6973 = vmatprep.mubr.f32.mxu0 %v6768
        %6974 = vmatmul.mubr.f32.gmra.mrb[0].mxu0 %v6767
        %v6975 = vpop.f32.mrb[0].mxu0
        %v6976 = vadd.f32 %v6842, %v6975
        %v6977 = vpop.f32.mrb[0].mxu0
        %6978 = vmatprep.mubr.f32.mxu0 %v6770
        %6979 = vmatmul.mubr.f32.gmra.mrb[0].mxu0 %v6769
        %v6980 = vpop.f32.mrb[0].mxu0
        %v6981 = vadd.f32 %v6842, %v6980
        %v6982 = vpop.f32.mrb[0].mxu0
        %6983 = vmatprep.mubr.f32.mxu0 %v6772
        %6984 = vmatmul.mubr.f32.gmra.mrb[0].mxu0 %v6771
        %v6985 = vpop.f32.mrb[0].mxu0
        %v6986 = vadd.f32 %v6842, %v6985
        %v6987 = vpop.f32.mrb[0].mxu0
        %6988 = vmatprep.mubr.f32.mxu0 %v6774
        %6989 = vmatmul.mubr.f32.gmra.mrb[0].mxu0 %v6773
        %v6990 = vpop.f32.mrb[0].mxu0
        %v6991 = vadd.f32 %v6842, %v6990
        %v6992 = vpop.f32.mrb[0].mxu0
        %6993 = vmatprep.mubr.f32.mxu0 %v6776
        %6994 = vmatmul.mubr.f32.gmra.mrb[0].mxu0 %v6775
        %v6995 = vpop.f32.mrb[0].mxu0
        %v6996 = vadd.f32 %v6842, %v6995
        %v6997 = vpop.f32.mrb[0].mxu0
        %6998 = vmatprep.mubr.f32.mxu0 %v6778
        %6999 = vmatmul.mubr.f32.gmra.mrb[0].mxu0 %v6777
        %v7000 = vpop.f32.mrb[0].mxu0
        %v7001 = vadd.f32 %v6842, %v7000
        %v7002 = vpop.f32.mrb[0].mxu0
        %7003 = vmatprep.mubr.f32.mxu0 %v6780
        %7004 = vmatmul.mubr.f32.gmra.mrb[0].mxu0 %v6779
        %v7005 = vpop.f32.mrb[0].mxu0
        %v7006 = vadd.f32 %v6842, %v7005
        %v7007 = vpop.f32.mrb[0].mxu0
        %7008 = vmatprep.mubr.f32.mxu0 %v6782
        %7009 = vmatmul.mubr.f32.gmra.mrb[0].mxu0 %v6781
        %v7010 = vpop.f32.mrb[0].mxu0
        %v7011 = vadd.f32 %v6842, %v7010
        %v7012 = vpop.f32.mrb[0].mxu0
        %7013 = vmatprep.mubr.f32.mxu0 %v6784
        %7014 = vmatmul.mubr.f32.gmra.mrb[0].mxu0 %v6783
        %v7015 = vpop.f32.mrb[0].mxu0
        %v7016 = vadd.f32 %v6842, %v7015
        %v7017 = vpop.f32.mrb[0].mxu0
        %7018 = vmatprep.mubr.f32.mxu0 %v6786
        %7019 = vmatmul.mubr.f32.gmra.mrb[0].mxu0 %v6785
        %v7020 = vpop.f32.mrb[0].mxu0
        %v7021 = vadd.f32 %v6842, %v7020
        %v7022 = vpop.f32.mrb[0].mxu0
        %7023 = vmatprep.mubr.f32.mxu0 %v6788
        %7024 = vmatmul.mubr.f32.gmra.mrb[0].mxu0 %v6787
        %v7025 = vpop.f32.mrb[0].mxu0
        %v7026 = vadd.f32 %v6842, %v7025
        %v7027 = vpop.f32.mrb[0].mxu0
        %7028 = vmatprep.mubr.f32.mxu0 %v6790
        %7029 = vmatmul.mubr.f32.gmra.mrb[0].mxu0 %v6789
        %v7030 = vpop.f32.mrb[0].mxu0
        %v7031 = vadd.f32 %v6842, %v7030
        %v7032 = vpop.f32.mrb[0].mxu0
        %7033 = vmatprep.mubr.f32.mxu0 %v6792
        %7034 = vmatmul.mubr.f32.gmra.mrb[0].mxu0 %v6791
        %v7035 = vpop.f32.mrb[0].mxu0
        %v7036 = vadd.f32 %v6842, %v7035
        %v7037 = vpop.f32.mrb[0].mxu0
        %7038 = vmatprep.mubr.f32.mxu0 %v6794
        %7039 = vmatmul.mubr.f32.gmra.mrb[0].mxu0 %v6793
        %v7040 = vpop.f32.mrb[0].mxu0
        %v7041 = vadd.f32 %v6842, %v7040
        %v7042 = vpop.f32.mrb[0].mxu0
        %7043 = vmatprep.mubr.f32.mxu0 %v6796
        %7044 = vmatmul.mubr.f32.gmra.mrb[0].mxu0 %v6795
        %v7045 = vpop.f32.mrb[0].mxu0
        %v7046 = vadd.f32 %v6842, %v7045
        %v7047 = vpop.f32.mrb[0].mxu0
        %7048 = vmatprep.mubr.f32.mxu0 %v6798
        %7049 = vmatmul.mubr.f32.gmra.mrb[0].mxu0 %v6797
        %v7050 = vpop.f32.mrb[0].mxu0
        %v7051 = vadd.f32 %v6842, %v7050
        %v7052 = vpop.f32.mrb[0].mxu0
        %7053 = vmatprep.mubr.f32.mxu0 %v6800
        %7054 = vmatmul.mubr.f32.gmra.mrb[0].mxu0 %v6799
        %v7055 = vpop.f32.mrb[0].mxu0
        %v7056 = vadd.f32 %v6842, %v7055
        %v7057 = vpop.f32.mrb[0].mxu0
        %7058 = vmatprep.mubr.f32.mxu0 %v6802
        %7059 = vmatmul.mubr.f32.gmra.mrb[0].mxu0 %v6801
        %v7060 = vpop.f32.mrb[0].mxu0
        %v7061 = vadd.f32 %v6842, %v7060
        %v7062 = vpop.f32.mrb[0].mxu0
        %7063 = vmatprep.mubr.f32.mxu0 %v6804
        %7064 = vmatmul.mubr.f32.gmra.mrb[0].mxu0 %v6803
        %v7065 = vpop.f32.mrb[0].mxu0
        %v7066 = vadd.f32 %v6842, %v7065
        %v7067 = vpop.f32.mrb[0].mxu0
        %7068 = vdwg.mxu0
        %v7069 = vld [vmem:[%s9] sm:$0x1]
        %v7071 = vlaneseq
        %v7072 = vshrl.u32 %v7071, 7
        %v7073 = vsub.s32 0, %v7072
        %v7074 = vrot.slane %v7069, %v7073
        %v7076 = vmul.f32 %v6911, %v7074
        %v7077 = vmul.f32 %v6916, %v7074
        %v7078 = vmul.f32 %v6921, %v7074
        %v7079 = vmul.f32 %v6926, %v7074
        %v7080 = vmul.f32 %v6931, %v7074
        %v7081 = vmul.f32 %v6936, %v7074
        %v7082 = vmul.f32 %v6941, %v7074
        %v7083 = vmul.f32 %v6946, %v7074
        %v7084 = vmul.f32 %v6951, %v7074
        %v7085 = vmul.f32 %v6956, %v7074
        %v7086 = vmul.f32 %v6961, %v7074
        %v7087 = vmul.f32 %v6966, %v7074
        %v7088 = vmul.f32 %v6971, %v7074
        %v7089 = vmul.f32 %v6976, %v7074
        %v7090 = vmul.f32 %v6981, %v7074
        %v7091 = vmul.f32 %v6986, %v7074
        %v7092 = vmul.f32 %v6991, %v7074
        %v7093 = vmul.f32 %v6996, %v7074
        %v7094 = vmul.f32 %v7001, %v7074
        %v7095 = vmul.f32 %v7006, %v7074
        %v7096 = vmul.f32 %v7011, %v7074
        %v7097 = vmul.f32 %v7016, %v7074
        %v7098 = vmul.f32 %v7021, %v7074
        %v7099 = vmul.f32 %v7026, %v7074
        %v7100 = vmul.f32 %v7031, %v7074
        %v7101 = vmul.f32 %v7036, %v7074
        %v7102 = vmul.f32 %v7041, %v7074
        %v7103 = vmul.f32 %v7046, %v7074
        %v7104 = vmul.f32 %v7051, %v7074
        %v7105 = vmul.f32 %v7056, %v7074
        %v7106 = vmul.f32 %v7061, %v7074
        %v7107 = vmul.f32 %v7066, %v7074
        %v7108 = vadd.f32 %v2785, %v7076
        %v7109 = vadd.f32 %v2786, %v7077
        %v7110 = vadd.f32 %v2787, %v7078
        %v7111 = vadd.f32 %v2788, %v7079
        %v7112 = vadd.f32 %v2789, %v7080
        %v7113 = vadd.f32 %v2790, %v7081
        %v7114 = vadd.f32 %v2791, %v7082
        %v7115 = vadd.f32 %v2792, %v7083
        %v7116 = vadd.f32 %v2793, %v7084
        %v7117 = vadd.f32 %v2794, %v7085
        %v7118 = vadd.f32 %v2795, %v7086
        %v7119 = vadd.f32 %v2796, %v7087
        %v7120 = vadd.f32 %v2797, %v7088
        %v7121 = vadd.f32 %v2798, %v7089
        %v7122 = vadd.f32 %v2799, %v7090
        %v7123 = vadd.f32 %v2800, %v7091
        %v7124 = vadd.f32 %v2801, %v7092
        %v7125 = vadd.f32 %v2802, %v7093
        %v7126 = vadd.f32 %v2803, %v7094
        %v7127 = vadd.f32 %v2804, %v7095
        %v7128 = vadd.f32 %v2805, %v7096
        %v7129 = vadd.f32 %v2806, %v7097
        %v7130 = vadd.f32 %v2807, %v7098
        %v7131 = vadd.f32 %v2808, %v7099
        %v7132 = vadd.f32 %v2809, %v7100
        %v7133 = vadd.f32 %v2810, %v7101
        %v7134 = vadd.f32 %v2811, %v7102
        %v7135 = vadd.f32 %v2812, %v7103
        %v7136 = vadd.f32 %v2813, %v7104
        %v7137 = vadd.f32 %v2814, %v7105
        %v7138 = vadd.f32 %v2815, %v7106
        %v7139 = vadd.f32 %v2816, %v7107
        %7140 = vst.msk [vmem:[%s352] sm:$0xff] %vm5352, %v7108
        %7141 = vst.msk [vmem:[%s352 + $0x8] sm:$0xff] %vm5352, %v7109
        %7142 = vst.msk [vmem:[%s352 + $0x10] sm:$0xff] %vm5352, %v7110
        %7143 = vst.msk [vmem:[%s352 + $0x18] sm:$0xff] %vm5352, %v7111
        %7144 = vst.msk [vmem:[%s352 + $0x20] sm:$0xff] %vm5352, %v7112
        %7145 = vst.msk [vmem:[%s352 + $0x28] sm:$0xff] %vm5352, %v7113
        %7146 = vst.msk [vmem:[%s352 + $0x30] sm:$0xff] %vm5352, %v7114
        %7147 = vst.msk [vmem:[%s352 + $0x38] sm:$0xff] %vm5352, %v7115
        %7148 = vst.msk [vmem:[%s352 + $0x40] sm:$0xff] %vm5352, %v7116
        %7149 = vst.msk [vmem:[%s352 + $0x48] sm:$0xff] %vm5352, %v7117
        %7150 = vst.msk [vmem:[%s352 + $0x50] sm:$0xff] %vm5352, %v7118
        %7151 = vst.msk [vmem:[%s352 + $0x58] sm:$0xff] %vm5352, %v7119
        %7152 = vst.msk [vmem:[%s352 + $0x60] sm:$0xff] %vm5352, %v7120
        %7153 = vst.msk [vmem:[%s352 + $0x68] sm:$0xff] %vm5352, %v7121
        %7154 = vst.msk [vmem:[%s352 + $0x70] sm:$0xff] %vm5352, %v7122
        %7155 = vst.msk [vmem:[%s352 + $0x78] sm:$0xff] %vm5352, %v7123
        %7156 = vst.msk [vmem:[%s352 + $0x80] sm:$0xff] %vm5352, %v7124
        %7157 = vst.msk [vmem:[%s352 + $0x88] sm:$0xff] %vm5352, %v7125
        %7158 = vst.msk [vmem:[%s352 + $0x90] sm:$0xff] %vm5352, %v7126
        %7159 = vst.msk [vmem:[%s352 + $0x98] sm:$0xff] %vm5352, %v7127
        %7160 = vst.msk [vmem:[%s352 + $0xa0] sm:$0xff] %vm5352, %v7128
        %7161 = vst.msk [vmem:[%s352 + $0xa8] sm:$0xff] %vm5352, %v7129
        %7162 = vst.msk [vmem:[%s352 + $0xb0] sm:$0xff] %vm5352, %v7130
        %7163 = vst.msk [vmem:[%s352 + $0xb8] sm:$0xff] %vm5352, %v7131
        %7164 = vst.msk [vmem:[%s352 + $0xc0] sm:$0xff] %vm5352, %v7132
        %7165 = vst.msk [vmem:[%s352 + $0xc8] sm:$0xff] %vm5352, %v7133
        %7166 = vst.msk [vmem:[%s352 + $0xd0] sm:$0xff] %vm5352, %v7134
        %7167 = vst.msk [vmem:[%s352 + $0xd8] sm:$0xff] %vm5352, %v7135
        %7168 = vst.msk [vmem:[%s352 + $0xe0] sm:$0xff] %vm5352, %v7136
        %7169 = vst.msk [vmem:[%s352 + $0xe8] sm:$0xff] %vm5352, %v7137
        %7170 = vst.msk [vmem:[%s352 + $0xf0] sm:$0xff] %vm5352, %v7138
        %7171 = vst.msk [vmem:[%s352 + $0xf8] sm:$0xff] %vm5352, %v7139
        %s7172 = sand.u32 %s247, 1
        %s7173 = scalar_lea.sflag [#allocation3], %s7172
        %s7174 = sand.u32 %s247, 1
        %s7175 = smul.addr %s7174, 256
        %s7176 = scalar_lea.vmem [#allocation2], %s7175
        // Predicated region
        $region61: #{tpu_custom_call.1} parent=59 // pred_check
          %p7177 = pneg %p257
        $region62: #{tpu_custom_call.1} parent=59 // pred_check_branch
          %7179 = sbr.rel (%p7177) target = $region64
        $region63: #{tpu_custom_call.1} parent=59 // pred_region
          %s7181 = ssub.s32 4096, 4096
          %7182 = vsyncadd %s7173, %s7181
          %s7183 = smul.addr %s24, 32
          %s7184 = smul.addr %s7183, 128
          %s7185 = scalar_lea.hbm %s10, %s7184
          %s7186 = sshll.u32 %s7176, 4
          %s7187 = int_to_ptr.vmem [resolvable:$true] %s7186
          %7192 = dma.vmem_to_hbm [thread:$0]  %s7187, 4096, %s7185, %s7173, 128, 128, 8
        $region64: #{tpu_custom_call.1} parent=59 // pred_fallthru
          _
      $region60: #{tpu_custom_call.1} parent=5 // pred_fallthru
        _
      %p7193 = scmp.le.s32.totalorder 2, %s19
      // Predicated region
      $region65: #{tpu_custom_call.1} parent=5 // pred_check
        %p7194 = pneg %p7193
      $region66: #{tpu_custom_call.1} parent=5 // pred_check_branch
        %7196 = sbr.rel (%p7194) target = $region68
      $region67: #{tpu_custom_call.1} parent=5 // pred_region
        %s7197 = ssub.s32 %s19, 2
        // Predicated region
        $region69: #{tpu_custom_call.1} parent=67 // pred_check
          %p7198 = pneg %p263
        $region70: #{tpu_custom_call.1} parent=67 // pred_check_branch
          %7200 = sbr.rel (%p7198) target = $region72
        $region71: #{tpu_custom_call.1} parent=67 // pred_region
          %s7201 = sand.u32 %s248, 1
          %s7202 = scalar_lea.sflag [#allocation3], %s7201
          %s7203 = sand.u32 %s248, 1
          %s7204 = smul.addr %s7203, 256
          %s7205 = scalar_lea.vmem [#allocation2], %s7204
          %7206 = dma.done %s7202, 4096
        $region72: #{tpu_custom_call.1} parent=67 // pred_fallthru
          _
      $region68: #{tpu_custom_call.1} parent=5 // pred_fallthru
        _
    $region6: #{tpu_custom_call.1} parent=1 // loop_footer
      %s23 = sadd.s32 1, %s19
    $region7: #{tpu_custom_call.1} parent=1 // loop_footer_branch
      %18 = sbr.rel target = $region3
    $region8: #{tpu_custom_call.1} parent=1 // loop_exit
      _
    %7207 = vsyncpa [#allocation3], 1
    %s7208 = scalar_lea.sflag [#allocation3], 1
    %7209 = vsyncpa %s7208, 1

</llo_original>
